<compile_context>
chip_gen: v6e
topology: v6e:2x2x1
jax: 0.10.0
libtpu: 0.0.40
codegen_flags: <defaults>
</compile_context>

<pallas_src>
import functools
import math

import jax
import jax.numpy as jnp
from jax import lax
from jax.experimental import pallas as pl
from jax.experimental.pallas import tpu as pltpu


# ----------------------------------------------------------------------------
# Fused whole-model kernel (one grid step == one batch element)
# ----------------------------------------------------------------------------
def _encoder_kernel(x_ref,                                   # (1, L_in, C_in)
                    cw1_ref, cb1_ref, cw2_ref, cb2_ref, cw3_ref, cb3_ref,
                    pe_ref,                                  # (L, D)
                    wqkv_ref, bqkv_ref, wo_ref, bo_ref,
                    ln1g_ref, ln1b_ref, w1_ref, b1_ref, w2_ref, b2_ref,
                    ln2g_ref, ln2b_ref,
                    mapw_ref, mapb_ref, lin2w_ref, lin2b_ref,
                    o_ref,                                   # (1, 1, npf_pad)
                    *, head, n_layers, eps):
    f32 = jnp.float32
    bf16 = jnp.bfloat16

    def conv_im2col(x_cl, w_ref, b_ref, apply_tanh):
        # channels-last valid conv1d as ONE im2col matmul:
        #   x_cl (L, C_in), w_ref (K*C_in, C_out) bf16, b_ref (1, C_out) f32
        kc, _ = w_ref.shape
        c_in = x_cl.shape[1]
        K = kc // c_in
        L_out = x_cl.shape[0] - K + 1
        cols = jnp.concatenate([x_cl[k:k + L_out, :] for k in range(K)],
                               axis=-1)                       # (L_out, K*C_in)
        acc = jnp.dot(cols.astype(bf16), w_ref[...],
                      preferred_element_type=f32) + b_ref[...]
        return jnp.tanh(acc) if apply_tanh else acc

    def layer_norm(z, g, b):
        mu = jnp.mean(z, axis=-1, keepdims=True)
        zc = z - mu
        var = jnp.mean(zc * zc, axis=-1, keepdims=True)
        return zc * lax.rsqrt(var + eps) * g + b

    # ---- conv front-end (BatchNorm already folded into conv2) ----
    h = conv_im2col(x_ref[0], cw1_ref, cb1_ref, True)         # (L-2, 32)
    h = conv_im2col(h, cw2_ref, cb2_ref, True)                # (L-4, 64)
    h = conv_im2col(h, cw3_ref, cb3_ref, False)               # (L-6, D)

    x = h + pe_ref[...]                                       # + positional enc.
    L, D = x.shape
    Dh = D // head

    # ---- transformer encoder layers (post-LN), fully VMEM/vreg resident ----
    for li in range(n_layers):
        # fused QKV projection (1/sqrt(Dh) folded into the Q weights/bias)
        qkv = jnp.dot(x.astype(bf16), wqkv_ref[li],
                      preferred_element_type=f32) + bqkv_ref[li]   # (L, 3D)
        head_outs = []
        for hx in range(head):                                 # static unroll
            qh = qkv[:, hx * Dh:(hx + 1) * Dh].astype(bf16)
            kh = qkv[:, D + hx * Dh:D + (hx + 1) * Dh].astype(bf16)
            vh = qkv[:, 2 * D + hx * Dh:2 * D + (hx + 1) * Dh].astype(bf16)
            # scores = qh @ kh^T (contract last dims, scale pre-folded)
            s = lax.dot_general(qh, kh, (((1,), (1,)), ((), ())),
                                preferred_element_type=f32)    # (L, L) f32
            m = jnp.max(s, axis=-1, keepdims=True)
            p = jnp.exp(s - m)
            rowsum = jnp.sum(p, axis=-1, keepdims=True)        # >= 1
            oh = jnp.dot(p.astype(bf16), vh, preferred_element_type=f32)
            # deferred softmax normalization on the small (L, Dh) tile
            head_outs.append(oh * (1.0 / rowsum))
        # merged head outputs -> ONE (L, D) @ (D, D) output projection
        attn = jnp.dot(jnp.concatenate(head_outs, axis=-1).astype(bf16),
                       wo_ref[li], preferred_element_type=f32) + bo_ref[li]

        x1 = layer_norm(attn + x, ln1g_ref[li], ln1b_ref[li])
        ff = jnp.dot(x1.astype(bf16), w1_ref[li],
                     preferred_element_type=f32) + b1_ref[li]
        ff = jnp.maximum(ff, 0.0)
        ff = jnp.dot(ff.astype(bf16), w2_ref[li],
                     preferred_element_type=f32) + b2_ref[li]
        x = layer_norm(ff + x1, ln2g_ref[li], ln2b_ref[li])

    # ---- tail: only column 0 of linear_mapping feeds linear2 ----
    vcol = jnp.dot(x.astype(bf16), mapw_ref[...],
                   preferred_element_type=f32) + mapb_ref[...]     # (L, 1)
    out = jnp.sum(vcol * lin2w_ref[...], axis=0, keepdims=True) + lin2b_ref[...]
    o_ref[0] = out                                             # (1, npf_pad)


# ----------------------------------------------------------------------------
# Host-side parameter packing (BN fold, QKV fusion, bf16 weights, padding)
# ----------------------------------------------------------------------------
def _pack_params(p, head):
    layers = p["layers"]
    f32, bf16 = jnp.float32, jnp.bfloat16
    d_model = p["conv3_w"].shape[0]
    dh = d_model // head
    qscale = 1.0 / math.sqrt(dh)

    def conv_w(w):  # PyTorch (C_out, C_in, K) -> im2col (K*C_in, C_out), bf16
        c_out, c_in, k = w.shape
        return jnp.transpose(w, (2, 1, 0)).reshape(k * c_in, c_out).astype(bf16)

    # fold eval-mode BatchNorm affine (x*scale + shift per channel) into conv2
    scale = p["bn_scale"][:, 0]
    shift = p["bn_shift"][:, 0]
    w2c = p["conv2_w"] * scale[None, :, None]
    b2c = p["conv2_b"] + jnp.einsum("oik,i->o", p["conv2_w"], shift)

    L = p["lin2_w"].shape[0]                 # 138 post-conv sequence length
    npf = p["lin2_w"].shape[1]
    npf_pad = ((npf + 127) // 128) * 128     # lane-dense output block
    lin2w = jnp.zeros((L, npf_pad), f32).at[:, :npf].set(p["lin2_w"])
    lin2b = jnp.zeros((1, npf_pad), f32).at[0, :npf].set(p["lin2_b"])

    packed = {
        "cw1": conv_w(p["conv1_w"]), "cb1": p["conv1_b"][None, :].astype(f32),
        "cw2": conv_w(w2c),          "cb2": b2c[None, :].astype(f32),
        "cw3": conv_w(p["conv3_w"]), "cb3": p["conv3_b"][None, :].astype(f32),
        "pe": p["pe"][:L].astype(f32),
        # fused QKV weights/biases; 1/sqrt(Dh) folded into the Q part
        "wqkv": jnp.stack([jnp.concatenate([l["wq"] * qscale, l["wk"], l["wv"]],
                                           axis=1) for l in layers]).astype(bf16),
        "bqkv": jnp.stack([jnp.concatenate([l["bq"] * qscale, l["bk"], l["bv"]]
                                           )[None, :] for l in layers]).astype(f32),
        "wo": jnp.stack([l["wo"] for l in layers]).astype(bf16),
        "bo": jnp.stack([l["bo"][None, :] for l in layers]).astype(f32),
        "ln1g": jnp.stack([l["ln1_g"][None, :] for l in layers]).astype(f32),
        "ln1b": jnp.stack([l["ln1_b"][None, :] for l in layers]).astype(f32),
        "w1": jnp.stack([l["w1"] for l in layers]).astype(bf16),
        "b1": jnp.stack([l["b1"][None, :] for l in layers]).astype(f32),
        "w2": jnp.stack([l["w2"] for l in layers]).astype(bf16),
        "b2": jnp.stack([l["b2"][None, :] for l in layers]).astype(f32),
        "ln2g": jnp.stack([l["ln2_g"][None, :] for l in layers]).astype(f32),
        "ln2b": jnp.stack([l["ln2_b"][None, :] for l in layers]).astype(f32),
        # only column 0 of linear_mapping is used downstream
        "mapw": p["map_w"][:, 0:1].astype(bf16),          # (D, 1)
        "mapb": p["map_b"][0:1][None, :].astype(f32),     # (1, 1)
        "lin2w": lin2w,                                   # (L, npf_pad) f32
        "lin2b": lin2b,                                   # (1, npf_pad) f32
    }
    return packed, npf, npf_pad


@functools.partial(jax.jit, static_argnames=("head", "n_layers"))
def encoder_forward(x, params, *, head, n_layers):
    # x: (B, L_in, input_size); returns (B, num_predicted_features)
    B, L_in, C_in = x.shape
    L = L_in - 6                                  # three valid kernel_size=3 convs
    assert L == params["lin2_w"].shape[0], (L, params["lin2_w"].shape)
    assert n_layers == len(params["layers"])

    packed, npf, npf_pad = _pack_params(params, head)

    order = ("cw1", "cb1", "cw2", "cb2", "cw3", "cb3", "pe",
             "wqkv", "bqkv", "wo", "bo", "ln1g", "ln1b",
             "w1", "b1", "w2", "b2", "ln2g", "ln2b",
             "mapw", "mapb", "lin2w", "lin2b")
    weights = [packed[k] for k in order]

    def full_spec(a):
        return pl.BlockSpec(a.shape, lambda b, _z=(0,) * a.ndim: _z)

    kern = functools.partial(_encoder_kernel, head=head, n_layers=n_layers,
                             eps=1e-5)

    out = pl.pallas_call(
        kern,
        out_shape=jax.ShapeDtypeStruct((B, 1, npf_pad), jnp.float32),
        grid=(B,),
        in_specs=[pl.BlockSpec((1, L_in, C_in), lambda b: (b, 0, 0))]
                 + [full_spec(a) for a in weights],
        out_specs=pl.BlockSpec((1, 1, npf_pad), lambda b: (b, 0, 0)),
        compiler_params=pltpu.CompilerParams(
            dimension_semantics=("parallel",)),   # batch -> both TCs on v7x
    )(x, *weights)
    return out[:, 0, :npf]


# ----------------------------------------------------------------------------
# Deterministic parameter init (same logical params as the PyTorch module)
# ----------------------------------------------------------------------------
def init_params(key, input_size, npf, d_model, head, d_ff, max_len, n_layers):
    del head  # layout does not depend on it
    keys = iter(jax.random.split(key, 128))

    def nrm(shape, s=0.05):
        return (s * jax.random.normal(next(keys), shape)).astype(jnp.float32)

    p = {}
    # layers_1: Conv1d(in,32,3)->Tanh->BN(32)->Conv1d(32,64,3)->Tanh->Conv1d(64,d_model,3)
    p["conv1_w"] = nrm((32, input_size, 3))
    p["conv1_b"] = nrm((32,))
    gamma = 1.0 + nrm((32,))
    beta = nrm((32,))
    run_mean = nrm((32,))
    run_var = 1.0 + jnp.abs(nrm((32,)))
    scale = gamma / jnp.sqrt(run_var + 1e-5)
    p["bn_scale"] = scale.reshape(32, 1).astype(jnp.float32)
    p["bn_shift"] = (beta - run_mean * scale).reshape(32, 1).astype(jnp.float32)
    p["conv2_w"] = nrm((64, 32, 3))
    p["conv2_b"] = nrm((64,))
    p["conv3_w"] = nrm((d_model, 64, 3))
    p["conv3_b"] = nrm((d_model,))

    # sinusoidal positional encoding table
    pos = jnp.arange(max_len, dtype=jnp.float32)[:, None]
    div = jnp.exp(jnp.arange(0, d_model, 2, dtype=jnp.float32)
                  * (-jnp.log(10000.0) / d_model))
    pe = jnp.zeros((max_len, d_model), jnp.float32)
    pe = pe.at[:, 0::2].set(jnp.sin(pos * div))
    pe = pe.at[:, 1::2].set(jnp.cos(pos * div))
    p["pe"] = pe

    layers = []
    for _ in range(n_layers):
        lp = {
            "wq": nrm((d_model, d_model)), "bq": nrm((d_model,)),
            "wk": nrm((d_model, d_model)), "bk": nrm((d_model,)),
            "wv": nrm((d_model, d_model)), "bv": nrm((d_model,)),
            "wo": nrm((d_model, d_model)), "bo": nrm((d_model,)),
            "ln1_g": jnp.ones((d_model,), jnp.float32),
            "ln1_b": jnp.zeros((d_model,), jnp.float32),
            "w1": nrm((d_model, d_ff)), "b1": nrm((d_ff,)),
            "w2": nrm((d_ff, d_model)), "b2": nrm((d_model,)),
            "ln2_g": jnp.ones((d_model,), jnp.float32),
            "ln2_b": jnp.zeros((d_model,), jnp.float32),
        }
        layers.append(lp)
    p["layers"] = layers

    p["map_w"] = nrm((d_model, npf))
    p["map_b"] = nrm((npf,))
    p["lin2_w"] = nrm((138, npf))     # nn.Linear(138, num_predicted_features)
    p["lin2_b"] = nrm((npf,))
    return p


# ----------------------------------------------------------------------------
# Pure-JAX f32 reference (correctness check of the fused kernel)
# ----------------------------------------------------------------------------
def _reference_forward(x, params, head):
    def conv1d(h, w, b):  # h (B, C_in, L), w (C_out, C_in, K)
        K = w.shape[2]
        L_out = h.shape[2] - K + 1
        out = b[None, :, None]
        for k in range(K):
            out = out + jnp.einsum("bil,oi->bol", h[:, :, k:k + L_out], w[:, :, k])
        return out

    def layer_norm(z, g, b, eps=1e-5):
        mu = z.mean(-1, keepdims=True)
        var = ((z - mu) ** 2).mean(-1, keepdims=True)
        return (z - mu) / jnp.sqrt(var + eps) * g + b

    h = jnp.transpose(x, (0, 2, 1))
    h = jnp.tanh(conv1d(h, params["conv1_w"], params["conv1_b"]))
    h = h * params["bn_scale"][None] + params["bn_shift"][None]
    h = jnp.tanh(conv1d(h, params["conv2_w"], params["conv2_b"]))
    h = conv1d(h, params["conv3_w"], params["conv3_b"])
    h = jnp.transpose(h, (0, 2, 1))
    B, L, D = h.shape
    h = h + params["pe"][:L][None]
    for lp in params["layers"]:
        H = head
        Dh = D // H
        q = h @ lp["wq"] + lp["bq"]
        k = h @ lp["wk"] + lp["bk"]
        v = h @ lp["wv"] + lp["bv"]

        def split(t):
            return t.reshape(B, L, H, Dh).transpose(0, 2, 1, 3)

        q, k, v = split(q), split(k), split(v)
        s = jnp.einsum("bhld,bhmd->bhlm", q, k) / math.sqrt(Dh)
        pr = jax.nn.softmax(s, axis=-1)
        a = jnp.einsum("bhlm,bhmd->bhld", pr, v)
        a = a.transpose(0, 2, 1, 3).reshape(B, L, D)
        a = a @ lp["wo"] + lp["bo"]
        x1 = layer_norm(a + h, lp["ln1_g"], lp["ln1_b"])
        ff = jax.nn.relu(x1 @ lp["w1"] + lp["b1"]) @ lp["w2"] + lp["b2"]
        h = layer_norm(ff + x1, lp["ln2_g"], lp["ln2_b"])
    mapped = h @ params["map_w"] + params["map_b"]
    vv = mapped[:, :, 0]
    return vv @ params["lin2_w"] + params["lin2_b"]


# ----------------------------------------------------------------------------
if __name__ == "__main__":
    B = 2
    input_size = 4
    num_predicted_features = 3
    d_model = 32
    head = 4
    d_ff = 64
    max_len = 256
    n_layers = 2
    # Three valid kernel_size=3 convs shrink the sequence by 6; the module's
    # Linear(138, ...) forces the post-conv length to 138 -> input seq = 144.
    seq_len = 144

    root = jax.random.PRNGKey(0)
    pkey, xkey = jax.random.split(root)
    params = init_params(pkey, input_size, num_predicted_features,
                         d_model, head, d_ff, max_len, n_layers)
    x = jax.random.normal(xkey, (B, seq_len, input_size), dtype=jnp.float32)

    out = jax.block_until_ready(
        encoder_forward(x, params, head=head, n_layers=n_layers))
    assert out.shape == (B, num_predicted_features), out.shape
    assert bool(jnp.all(jnp.isfinite(out)))

    # f32 reference; kernel uses bf16 MXU operands, so allow a modest tolerance
    ref = jax.block_until_ready(_reference_forward(x, params, head))
    err = float(jnp.max(jnp.abs(out - ref)))
    assert err < 5e-2, f"max abs err vs reference: {err}"
    print("KERNEL_OK")
</pallas_src>

<mosaic_0001>
module attributes {stable_mosaic.version = 11 : i64} {
  func.func @_encoder_kernel(%arg0: i32, %arg1: memref<1x144x4xf32, #tpu.memory_space<vmem>>, %arg2: memref<12x32xbf16, #tpu.memory_space<vmem>>, %arg3: memref<1x32xf32, #tpu.memory_space<vmem>>, %arg4: memref<96x64xbf16, #tpu.memory_space<vmem>>, %arg5: memref<1x64xf32, #tpu.memory_space<vmem>>, %arg6: memref<192x32xbf16, #tpu.memory_space<vmem>>, %arg7: memref<1x32xf32, #tpu.memory_space<vmem>>, %arg8: memref<138x32xf32, #tpu.memory_space<vmem>>, %arg9: memref<2x32x96xbf16, #tpu.memory_space<vmem>>, %arg10: memref<2x1x96xf32, #tpu.memory_space<vmem>>, %arg11: memref<2x32x32xbf16, #tpu.memory_space<vmem>>, %arg12: memref<2x1x32xf32, #tpu.memory_space<vmem>>, %arg13: memref<2x1x32xf32, #tpu.memory_space<vmem>>, %arg14: memref<2x1x32xf32, #tpu.memory_space<vmem>>, %arg15: memref<2x32x64xbf16, #tpu.memory_space<vmem>>, %arg16: memref<2x1x64xf32, #tpu.memory_space<vmem>>, %arg17: memref<2x64x32xbf16, #tpu.memory_space<vmem>>, %arg18: memref<2x1x32xf32, #tpu.memory_space<vmem>>, %arg19: memref<2x1x32xf32, #tpu.memory_space<vmem>>, %arg20: memref<2x1x32xf32, #tpu.memory_space<vmem>>, %arg21: memref<32x1xbf16, #tpu.memory_space<vmem>>, %arg22: memref<1x1xf32, #tpu.memory_space<vmem>>, %arg23: memref<138x128xf32, #tpu.memory_space<vmem>>, %arg24: memref<1x128xf32, #tpu.memory_space<vmem>>, %arg25: memref<1x1x128xf32, #tpu.memory_space<vmem>>) attributes {dimension_semantics = [#tpu.dimension_semantics<parallel>], iteration_bounds = array<i64: 2>, scalar_prefetch = 0 : i64, scratch_operands = 0 : i64, tpu.core_type = #tpu.core_type<tc>, window_params = [{transform_indices = @transform_0, window_bounds = array<i64: 1, 144, 4>}, {pipeline_mode = #tpu.pipeline_mode<synchronous>, transform_indices = @transform_1, window_bounds = array<i64: 12, 32>}, {pipeline_mode = #tpu.pipeline_mode<synchronous>, transform_indices = @transform_2, window_bounds = array<i64: 1, 32>}, {pipeline_mode = #tpu.pipeline_mode<synchronous>, transform_indices = @transform_3, window_bounds = array<i64: 96, 64>}, {pipeline_mode = #tpu.pipeline_mode<synchronous>, transform_indices = @transform_4, window_bounds = array<i64: 1, 64>}, {pipeline_mode = #tpu.pipeline_mode<synchronous>, transform_indices = @transform_5, window_bounds = array<i64: 192, 32>}, {pipeline_mode = #tpu.pipeline_mode<synchronous>, transform_indices = @transform_6, window_bounds = array<i64: 1, 32>}, {pipeline_mode = #tpu.pipeline_mode<synchronous>, transform_indices = @transform_7, window_bounds = array<i64: 138, 32>}, {pipeline_mode = #tpu.pipeline_mode<synchronous>, transform_indices = @transform_8, window_bounds = array<i64: 2, 32, 96>}, {pipeline_mode = #tpu.pipeline_mode<synchronous>, transform_indices = @transform_9, window_bounds = array<i64: 2, 1, 96>}, {pipeline_mode = #tpu.pipeline_mode<synchronous>, transform_indices = @transform_10, window_bounds = array<i64: 2, 32, 32>}, {pipeline_mode = #tpu.pipeline_mode<synchronous>, transform_indices = @transform_11, window_bounds = array<i64: 2, 1, 32>}, {pipeline_mode = #tpu.pipeline_mode<synchronous>, transform_indices = @transform_12, window_bounds = array<i64: 2, 1, 32>}, {pipeline_mode = #tpu.pipeline_mode<synchronous>, transform_indices = @transform_13, window_bounds = array<i64: 2, 1, 32>}, {pipeline_mode = #tpu.pipeline_mode<synchronous>, transform_indices = @transform_14, window_bounds = array<i64: 2, 32, 64>}, {pipeline_mode = #tpu.pipeline_mode<synchronous>, transform_indices = @transform_15, window_bounds = array<i64: 2, 1, 64>}, {pipeline_mode = #tpu.pipeline_mode<synchronous>, transform_indices = @transform_16, window_bounds = array<i64: 2, 64, 32>}, {pipeline_mode = #tpu.pipeline_mode<synchronous>, transform_indices = @transform_17, window_bounds = array<i64: 2, 1, 32>}, {pipeline_mode = #tpu.pipeline_mode<synchronous>, transform_indices = @transform_18, window_bounds = array<i64: 2, 1, 32>}, {pipeline_mode = #tpu.pipeline_mode<synchronous>, transform_indices = @transform_19, window_bounds = array<i64: 2, 1, 32>}, {pipeline_mode = #tpu.pipeline_mode<synchronous>, transform_indices = @transform_20, window_bounds = array<i64: 32, 1>}, {pipeline_mode = #tpu.pipeline_mode<synchronous>, transform_indices = @transform_21, window_bounds = array<i64: 1, 1>}, {pipeline_mode = #tpu.pipeline_mode<synchronous>, transform_indices = @transform_22, window_bounds = array<i64: 138, 128>}, {pipeline_mode = #tpu.pipeline_mode<synchronous>, transform_indices = @transform_23, window_bounds = array<i64: 1, 128>}, {transform_indices = @transform_24, window_bounds = array<i64: 1, 1, 128>}]} {
    %c0 = arith.constant 0 : index
    %c0_0 = arith.constant 0 : index
    %c0_1 = arith.constant 0 : index
    %0 = vector.load %arg1[%c0, %c0_0, %c0_1] : memref<1x144x4xf32, #tpu.memory_space<vmem>>, vector<1x144x4xf32>
    %1 = vector.shape_cast %0 : vector<1x144x4xf32> to vector<144x4xf32>
    %2 = vector.extract_strided_slice %1 {offsets = [0, 0], sizes = [142, 4], strides = [1, 1]} : vector<144x4xf32> to vector<142x4xf32>
    %3 = vector.extract_strided_slice %1 {offsets = [1, 0], sizes = [142, 4], strides = [1, 1]} : vector<144x4xf32> to vector<142x4xf32>
    %4 = vector.extract_strided_slice %1 {offsets = [2, 0], sizes = [142, 4], strides = [1, 1]} : vector<144x4xf32> to vector<142x4xf32>
    %5 = tpu.concatenate %2, %3, %4 in 1 : vector<142x4xf32>, vector<142x4xf32>, vector<142x4xf32> -> vector<142x12xf32>
    %6 = arith.truncf %5 : vector<142x12xf32> to vector<142x12xbf16>
    %c0_2 = arith.constant 0 : index
    %c0_3 = arith.constant 0 : index
    %7 = vector.load %arg2[%c0_2, %c0_3] : memref<12x32xbf16, #tpu.memory_space<vmem>>, vector<12x32xbf16>
    %cst = arith.constant dense<0.000000e+00> : vector<142x32xf32>
    %8 = tpu.matmul %6, %7, %cst {dimension_numbers = #tpu.dot_dimension_numbers<[1], [0], [0], [1], [0, 0, 1, 1], [], []>} : vector<142x12xbf16>, vector<12x32xbf16>, vector<142x32xf32> -> vector<142x32xf32>
    %c0_4 = arith.constant 0 : index
    %c0_5 = arith.constant 0 : index
    %9 = vector.load %arg3[%c0_4, %c0_5] : memref<1x32xf32, #tpu.memory_space<vmem>>, vector<1x32xf32>
    %10 = vector.broadcast %9 : vector<1x32xf32> to vector<142x32xf32>
    %11 = arith.addf %8, %10 : vector<142x32xf32>
    %12 = math.tanh %11 : vector<142x32xf32>
    %13 = vector.extract_strided_slice %12 {offsets = [0, 0], sizes = [140, 32], strides = [1, 1]} : vector<142x32xf32> to vector<140x32xf32>
    %14 = vector.extract_strided_slice %12 {offsets = [1, 0], sizes = [140, 32], strides = [1, 1]} : vector<142x32xf32> to vector<140x32xf32>
    %15 = vector.extract_strided_slice %12 {offsets = [2, 0], sizes = [140, 32], strides = [1, 1]} : vector<142x32xf32> to vector<140x32xf32>
    %16 = tpu.concatenate %13, %14, %15 in 1 : vector<140x32xf32>, vector<140x32xf32>, vector<140x32xf32> -> vector<140x96xf32>
    %17 = arith.truncf %16 : vector<140x96xf32> to vector<140x96xbf16>
    %c0_6 = arith.constant 0 : index
    %c0_7 = arith.constant 0 : index
    %18 = vector.load %arg4[%c0_6, %c0_7] : memref<96x64xbf16, #tpu.memory_space<vmem>>, vector<96x64xbf16>
    %cst_8 = arith.constant dense<0.000000e+00> : vector<140x64xf32>
    %19 = tpu.matmul %17, %18, %cst_8 {dimension_numbers = #tpu.dot_dimension_numbers<[1], [0], [0], [1], [0, 0, 1, 1], [], []>} : vector<140x96xbf16>, vector<96x64xbf16>, vector<140x64xf32> -> vector<140x64xf32>
    %c0_9 = arith.constant 0 : index
    %c0_10 = arith.constant 0 : index
    %20 = vector.load %arg5[%c0_9, %c0_10] : memref<1x64xf32, #tpu.memory_space<vmem>>, vector<1x64xf32>
    %21 = vector.broadcast %20 : vector<1x64xf32> to vector<140x64xf32>
    %22 = arith.addf %19, %21 : vector<140x64xf32>
    %23 = math.tanh %22 : vector<140x64xf32>
    %24 = vector.extract_strided_slice %23 {offsets = [0, 0], sizes = [138, 64], strides = [1, 1]} : vector<140x64xf32> to vector<138x64xf32>
    %25 = vector.extract_strided_slice %23 {offsets = [1, 0], sizes = [138, 64], strides = [1, 1]} : vector<140x64xf32> to vector<138x64xf32>
    %26 = vector.extract_strided_slice %23 {offsets = [2, 0], sizes = [138, 64], strides = [1, 1]} : vector<140x64xf32> to vector<138x64xf32>
    %27 = tpu.concatenate %24, %25, %26 in 1 : vector<138x64xf32>, vector<138x64xf32>, vector<138x64xf32> -> vector<138x192xf32>
    %28 = arith.truncf %27 : vector<138x192xf32> to vector<138x192xbf16>
    %c0_11 = arith.constant 0 : index
    %c0_12 = arith.constant 0 : index
    %29 = vector.load %arg6[%c0_11, %c0_12] : memref<192x32xbf16, #tpu.memory_space<vmem>>, vector<192x32xbf16>
    %cst_13 = arith.constant dense<0.000000e+00> : vector<138x32xf32>
    %30 = tpu.matmul %28, %29, %cst_13 {dimension_numbers = #tpu.dot_dimension_numbers<[1], [0], [0], [1], [0, 0, 1, 1], [], []>} : vector<138x192xbf16>, vector<192x32xbf16>, vector<138x32xf32> -> vector<138x32xf32>
    %c0_14 = arith.constant 0 : index
    %c0_15 = arith.constant 0 : index
    %31 = vector.load %arg7[%c0_14, %c0_15] : memref<1x32xf32, #tpu.memory_space<vmem>>, vector<1x32xf32>
    %32 = vector.broadcast %31 : vector<1x32xf32> to vector<138x32xf32>
    %33 = arith.addf %30, %32 : vector<138x32xf32>
    %c0_16 = arith.constant 0 : index
    %c0_17 = arith.constant 0 : index
    %34 = vector.load %arg8[%c0_16, %c0_17] : memref<138x32xf32, #tpu.memory_space<vmem>>, vector<138x32xf32>
    %35 = arith.addf %33, %34 : vector<138x32xf32>
    %36 = arith.truncf %35 : vector<138x32xf32> to vector<138x32xbf16>
    %c0_18 = arith.constant 0 : index
    %c0_19 = arith.constant 0 : index
    %c0_20 = arith.constant 0 : index
    %37 = vector.load %arg9[%c0_18, %c0_19, %c0_20] : memref<2x32x96xbf16, #tpu.memory_space<vmem>>, vector<1x32x96xbf16>
    %38 = vector.shape_cast %37 : vector<1x32x96xbf16> to vector<32x96xbf16>
    %cst_21 = arith.constant dense<0.000000e+00> : vector<138x96xf32>
    %39 = tpu.matmul %36, %38, %cst_21 {dimension_numbers = #tpu.dot_dimension_numbers<[1], [0], [0], [1], [0, 0, 1, 1], [], []>} : vector<138x32xbf16>, vector<32x96xbf16>, vector<138x96xf32> -> vector<138x96xf32>
    %c0_22 = arith.constant 0 : index
    %c0_23 = arith.constant 0 : index
    %c0_24 = arith.constant 0 : index
    %40 = vector.load %arg10[%c0_22, %c0_23, %c0_24] : memref<2x1x96xf32, #tpu.memory_space<vmem>>, vector<1x1x96xf32>
    %41 = vector.shape_cast %40 : vector<1x1x96xf32> to vector<1x96xf32>
    %42 = vector.broadcast %41 : vector<1x96xf32> to vector<138x96xf32>
    %43 = arith.addf %39, %42 : vector<138x96xf32>
    %44 = vector.extract_strided_slice %43 {offsets = [0, 0], sizes = [138, 8], strides = [1, 1]} : vector<138x96xf32> to vector<138x8xf32>
    %45 = arith.truncf %44 : vector<138x8xf32> to vector<138x8xbf16>
    %46 = vector.extract_strided_slice %43 {offsets = [0, 32], sizes = [138, 8], strides = [1, 1]} : vector<138x96xf32> to vector<138x8xf32>
    %47 = arith.truncf %46 : vector<138x8xf32> to vector<138x8xbf16>
    %48 = vector.extract_strided_slice %43 {offsets = [0, 64], sizes = [138, 8], strides = [1, 1]} : vector<138x96xf32> to vector<138x8xf32>
    %49 = arith.truncf %48 : vector<138x8xf32> to vector<138x8xbf16>
    %cst_25 = arith.constant dense<0.000000e+00> : vector<138x138xf32>
    %50 = tpu.matmul %45, %47, %cst_25 {dimension_numbers = #tpu.dot_dimension_numbers<[1], [1], [0], [0], [0, 0, 1, 0], [], []>} : vector<138x8xbf16>, vector<138x8xbf16>, vector<138x138xf32> -> vector<138x138xf32>
    %cst_26 = arith.constant dense<0xFF800000> : vector<138xf32>
    %51 = vector.multi_reduction <maximumf>, %50, %cst_26 [1] : vector<138x138xf32> to vector<138xf32>
    %52 = vector.shape_cast %51 : vector<138xf32> to vector<138x1xf32>
    %53 = vector.broadcast %52 : vector<138x1xf32> to vector<138x138xf32>
    %54 = arith.subf %50, %53 : vector<138x138xf32>
    %55 = math.exp %54 : vector<138x138xf32>
    %cst_27 = arith.constant dense<0.000000e+00> : vector<138xf32>
    %56 = vector.multi_reduction <add>, %55, %cst_27 [1] : vector<138x138xf32> to vector<138xf32>
    %57 = vector.shape_cast %56 : vector<138xf32> to vector<138x1xf32>
    %58 = arith.truncf %55 : vector<138x138xf32> to vector<138x138xbf16>
    %cst_28 = arith.constant dense<0.000000e+00> : vector<138x8xf32>
    %59 = tpu.matmul %58, %49, %cst_28 {dimension_numbers = #tpu.dot_dimension_numbers<[1], [0], [0], [1], [0, 0, 1, 1], [], []>} : vector<138x138xbf16>, vector<138x8xbf16>, vector<138x8xf32> -> vector<138x8xf32>
    %cst_29 = arith.constant 1.000000e+00 : f32
    %60 = vector.broadcast %cst_29 : f32 to vector<138x1xf32>
    %61 = arith.divf %60, %57 : vector<138x1xf32>
    %62 = vector.broadcast %61 : vector<138x1xf32> to vector<138x8xf32>
    %63 = arith.mulf %59, %62 : vector<138x8xf32>
    %64 = vector.extract_strided_slice %43 {offsets = [0, 8], sizes = [138, 8], strides = [1, 1]} : vector<138x96xf32> to vector<138x8xf32>
    %65 = arith.truncf %64 : vector<138x8xf32> to vector<138x8xbf16>
    %66 = vector.extract_strided_slice %43 {offsets = [0, 40], sizes = [138, 8], strides = [1, 1]} : vector<138x96xf32> to vector<138x8xf32>
    %67 = arith.truncf %66 : vector<138x8xf32> to vector<138x8xbf16>
    %68 = vector.extract_strided_slice %43 {offsets = [0, 72], sizes = [138, 8], strides = [1, 1]} : vector<138x96xf32> to vector<138x8xf32>
    %69 = arith.truncf %68 : vector<138x8xf32> to vector<138x8xbf16>
    %cst_30 = arith.constant dense<0.000000e+00> : vector<138x138xf32>
    %70 = tpu.matmul %65, %67, %cst_30 {dimension_numbers = #tpu.dot_dimension_numbers<[1], [1], [0], [0], [0, 0, 1, 0], [], []>} : vector<138x8xbf16>, vector<138x8xbf16>, vector<138x138xf32> -> vector<138x138xf32>
    %cst_31 = arith.constant dense<0xFF800000> : vector<138xf32>
    %71 = vector.multi_reduction <maximumf>, %70, %cst_31 [1] : vector<138x138xf32> to vector<138xf32>
    %72 = vector.shape_cast %71 : vector<138xf32> to vector<138x1xf32>
    %73 = vector.broadcast %72 : vector<138x1xf32> to vector<138x138xf32>
    %74 = arith.subf %70, %73 : vector<138x138xf32>
    %75 = math.exp %74 : vector<138x138xf32>
    %cst_32 = arith.constant dense<0.000000e+00> : vector<138xf32>
    %76 = vector.multi_reduction <add>, %75, %cst_32 [1] : vector<138x138xf32> to vector<138xf32>
    %77 = vector.shape_cast %76 : vector<138xf32> to vector<138x1xf32>
    %78 = arith.truncf %75 : vector<138x138xf32> to vector<138x138xbf16>
    %cst_33 = arith.constant dense<0.000000e+00> : vector<138x8xf32>
    %79 = tpu.matmul %78, %69, %cst_33 {dimension_numbers = #tpu.dot_dimension_numbers<[1], [0], [0], [1], [0, 0, 1, 1], [], []>} : vector<138x138xbf16>, vector<138x8xbf16>, vector<138x8xf32> -> vector<138x8xf32>
    %cst_34 = arith.constant 1.000000e+00 : f32
    %80 = vector.broadcast %cst_34 : f32 to vector<138x1xf32>
    %81 = arith.divf %80, %77 : vector<138x1xf32>
    %82 = vector.broadcast %81 : vector<138x1xf32> to vector<138x8xf32>
    %83 = arith.mulf %79, %82 : vector<138x8xf32>
    %84 = vector.extract_strided_slice %43 {offsets = [0, 16], sizes = [138, 8], strides = [1, 1]} : vector<138x96xf32> to vector<138x8xf32>
    %85 = arith.truncf %84 : vector<138x8xf32> to vector<138x8xbf16>
    %86 = vector.extract_strided_slice %43 {offsets = [0, 48], sizes = [138, 8], strides = [1, 1]} : vector<138x96xf32> to vector<138x8xf32>
    %87 = arith.truncf %86 : vector<138x8xf32> to vector<138x8xbf16>
    %88 = vector.extract_strided_slice %43 {offsets = [0, 80], sizes = [138, 8], strides = [1, 1]} : vector<138x96xf32> to vector<138x8xf32>
    %89 = arith.truncf %88 : vector<138x8xf32> to vector<138x8xbf16>
    %cst_35 = arith.constant dense<0.000000e+00> : vector<138x138xf32>
    %90 = tpu.matmul %85, %87, %cst_35 {dimension_numbers = #tpu.dot_dimension_numbers<[1], [1], [0], [0], [0, 0, 1, 0], [], []>} : vector<138x8xbf16>, vector<138x8xbf16>, vector<138x138xf32> -> vector<138x138xf32>
    %cst_36 = arith.constant dense<0xFF800000> : vector<138xf32>
    %91 = vector.multi_reduction <maximumf>, %90, %cst_36 [1] : vector<138x138xf32> to vector<138xf32>
    %92 = vector.shape_cast %91 : vector<138xf32> to vector<138x1xf32>
    %93 = vector.broadcast %92 : vector<138x1xf32> to vector<138x138xf32>
    %94 = arith.subf %90, %93 : vector<138x138xf32>
    %95 = math.exp %94 : vector<138x138xf32>
    %cst_37 = arith.constant dense<0.000000e+00> : vector<138xf32>
    %96 = vector.multi_reduction <add>, %95, %cst_37 [1] : vector<138x138xf32> to vector<138xf32>
    %97 = vector.shape_cast %96 : vector<138xf32> to vector<138x1xf32>
    %98 = arith.truncf %95 : vector<138x138xf32> to vector<138x138xbf16>
    %cst_38 = arith.constant dense<0.000000e+00> : vector<138x8xf32>
    %99 = tpu.matmul %98, %89, %cst_38 {dimension_numbers = #tpu.dot_dimension_numbers<[1], [0], [0], [1], [0, 0, 1, 1], [], []>} : vector<138x138xbf16>, vector<138x8xbf16>, vector<138x8xf32> -> vector<138x8xf32>
    %cst_39 = arith.constant 1.000000e+00 : f32
    %100 = vector.broadcast %cst_39 : f32 to vector<138x1xf32>
    %101 = arith.divf %100, %97 : vector<138x1xf32>
    %102 = vector.broadcast %101 : vector<138x1xf32> to vector<138x8xf32>
    %103 = arith.mulf %99, %102 : vector<138x8xf32>
    %104 = vector.extract_strided_slice %43 {offsets = [0, 24], sizes = [138, 8], strides = [1, 1]} : vector<138x96xf32> to vector<138x8xf32>
    %105 = arith.truncf %104 : vector<138x8xf32> to vector<138x8xbf16>
    %106 = vector.extract_strided_slice %43 {offsets = [0, 56], sizes = [138, 8], strides = [1, 1]} : vector<138x96xf32> to vector<138x8xf32>
    %107 = arith.truncf %106 : vector<138x8xf32> to vector<138x8xbf16>
    %108 = vector.extract_strided_slice %43 {offsets = [0, 88], sizes = [138, 8], strides = [1, 1]} : vector<138x96xf32> to vector<138x8xf32>
    %109 = arith.truncf %108 : vector<138x8xf32> to vector<138x8xbf16>
    %cst_40 = arith.constant dense<0.000000e+00> : vector<138x138xf32>
    %110 = tpu.matmul %105, %107, %cst_40 {dimension_numbers = #tpu.dot_dimension_numbers<[1], [1], [0], [0], [0, 0, 1, 0], [], []>} : vector<138x8xbf16>, vector<138x8xbf16>, vector<138x138xf32> -> vector<138x138xf32>
    %cst_41 = arith.constant dense<0xFF800000> : vector<138xf32>
    %111 = vector.multi_reduction <maximumf>, %110, %cst_41 [1] : vector<138x138xf32> to vector<138xf32>
    %112 = vector.shape_cast %111 : vector<138xf32> to vector<138x1xf32>
    %113 = vector.broadcast %112 : vector<138x1xf32> to vector<138x138xf32>
    %114 = arith.subf %110, %113 : vector<138x138xf32>
    %115 = math.exp %114 : vector<138x138xf32>
    %cst_42 = arith.constant dense<0.000000e+00> : vector<138xf32>
    %116 = vector.multi_reduction <add>, %115, %cst_42 [1] : vector<138x138xf32> to vector<138xf32>
    %117 = vector.shape_cast %116 : vector<138xf32> to vector<138x1xf32>
    %118 = arith.truncf %115 : vector<138x138xf32> to vector<138x138xbf16>
    %cst_43 = arith.constant dense<0.000000e+00> : vector<138x8xf32>
    %119 = tpu.matmul %118, %109, %cst_43 {dimension_numbers = #tpu.dot_dimension_numbers<[1], [0], [0], [1], [0, 0, 1, 1], [], []>} : vector<138x138xbf16>, vector<138x8xbf16>, vector<138x8xf32> -> vector<138x8xf32>
    %cst_44 = arith.constant 1.000000e+00 : f32
    %120 = vector.broadcast %cst_44 : f32 to vector<138x1xf32>
    %121 = arith.divf %120, %117 : vector<138x1xf32>
    %122 = vector.broadcast %121 : vector<138x1xf32> to vector<138x8xf32>
    %123 = arith.mulf %119, %122 : vector<138x8xf32>
    %124 = tpu.concatenate %63, %83, %103, %123 in 1 : vector<138x8xf32>, vector<138x8xf32>, vector<138x8xf32>, vector<138x8xf32> -> vector<138x32xf32>
    %125 = arith.truncf %124 : vector<138x32xf32> to vector<138x32xbf16>
    %c0_45 = arith.constant 0 : index
    %c0_46 = arith.constant 0 : index
    %c0_47 = arith.constant 0 : index
    %126 = vector.load %arg11[%c0_45, %c0_46, %c0_47] : memref<2x32x32xbf16, #tpu.memory_space<vmem>>, vector<1x32x32xbf16>
    %127 = vector.shape_cast %126 : vector<1x32x32xbf16> to vector<32x32xbf16>
    %cst_48 = arith.constant dense<0.000000e+00> : vector<138x32xf32>
    %128 = tpu.matmul %125, %127, %cst_48 {dimension_numbers = #tpu.dot_dimension_numbers<[1], [0], [0], [1], [0, 0, 1, 1], [], []>} : vector<138x32xbf16>, vector<32x32xbf16>, vector<138x32xf32> -> vector<138x32xf32>
    %c0_49 = arith.constant 0 : index
    %c0_50 = arith.constant 0 : index
    %c0_51 = arith.constant 0 : index
    %129 = vector.load %arg12[%c0_49, %c0_50, %c0_51] : memref<2x1x32xf32, #tpu.memory_space<vmem>>, vector<1x1x32xf32>
    %130 = vector.shape_cast %129 : vector<1x1x32xf32> to vector<1x32xf32>
    %131 = vector.broadcast %130 : vector<1x32xf32> to vector<138x32xf32>
    %132 = arith.addf %128, %131 : vector<138x32xf32>
    %133 = arith.addf %132, %35 : vector<138x32xf32>
    %c0_52 = arith.constant 0 : index
    %c0_53 = arith.constant 0 : index
    %c0_54 = arith.constant 0 : index
    %134 = vector.load %arg13[%c0_52, %c0_53, %c0_54] : memref<2x1x32xf32, #tpu.memory_space<vmem>>, vector<1x1x32xf32>
    %135 = vector.shape_cast %134 : vector<1x1x32xf32> to vector<1x32xf32>
    %c0_55 = arith.constant 0 : index
    %c0_56 = arith.constant 0 : index
    %c0_57 = arith.constant 0 : index
    %136 = vector.load %arg14[%c0_55, %c0_56, %c0_57] : memref<2x1x32xf32, #tpu.memory_space<vmem>>, vector<1x1x32xf32>
    %137 = vector.shape_cast %136 : vector<1x1x32xf32> to vector<1x32xf32>
    %cst_58 = arith.constant dense<0.000000e+00> : vector<138xf32>
    %138 = vector.multi_reduction <add>, %133, %cst_58 [1] : vector<138x32xf32> to vector<138xf32>
    %139 = vector.shape_cast %138 : vector<138xf32> to vector<138x1xf32>
    %cst_59 = arith.constant 3.200000e+01 : f32
    %140 = vector.broadcast %cst_59 : f32 to vector<138x1xf32>
    %141 = arith.divf %139, %140 : vector<138x1xf32>
    %142 = vector.broadcast %141 : vector<138x1xf32> to vector<138x32xf32>
    %143 = arith.subf %133, %142 : vector<138x32xf32>
    %144 = arith.mulf %143, %143 : vector<138x32xf32>
    %cst_60 = arith.constant dense<0.000000e+00> : vector<138xf32>
    %145 = vector.multi_reduction <add>, %144, %cst_60 [1] : vector<138x32xf32> to vector<138xf32>
    %146 = vector.shape_cast %145 : vector<138xf32> to vector<138x1xf32>
    %cst_61 = arith.constant 3.200000e+01 : f32
    %147 = vector.broadcast %cst_61 : f32 to vector<138x1xf32>
    %148 = arith.divf %146, %147 : vector<138x1xf32>
    %cst_62 = arith.constant 9.99999974E-6 : f32
    %149 = vector.broadcast %cst_62 : f32 to vector<138x1xf32>
    %150 = arith.addf %148, %149 : vector<138x1xf32>
    %151 = math.rsqrt %150 : vector<138x1xf32>
    %152 = vector.broadcast %151 : vector<138x1xf32> to vector<138x32xf32>
    %153 = arith.mulf %143, %152 : vector<138x32xf32>
    %154 = vector.broadcast %135 : vector<1x32xf32> to vector<138x32xf32>
    %155 = arith.mulf %153, %154 : vector<138x32xf32>
    %156 = vector.broadcast %137 : vector<1x32xf32> to vector<138x32xf32>
    %157 = arith.addf %155, %156 : vector<138x32xf32>
    %158 = arith.truncf %157 : vector<138x32xf32> to vector<138x32xbf16>
    %c0_63 = arith.constant 0 : index
    %c0_64 = arith.constant 0 : index
    %c0_65 = arith.constant 0 : index
    %159 = vector.load %arg15[%c0_63, %c0_64, %c0_65] : memref<2x32x64xbf16, #tpu.memory_space<vmem>>, vector<1x32x64xbf16>
    %160 = vector.shape_cast %159 : vector<1x32x64xbf16> to vector<32x64xbf16>
    %cst_66 = arith.constant dense<0.000000e+00> : vector<138x64xf32>
    %161 = tpu.matmul %158, %160, %cst_66 {dimension_numbers = #tpu.dot_dimension_numbers<[1], [0], [0], [1], [0, 0, 1, 1], [], []>} : vector<138x32xbf16>, vector<32x64xbf16>, vector<138x64xf32> -> vector<138x64xf32>
    %c0_67 = arith.constant 0 : index
    %c0_68 = arith.constant 0 : index
    %c0_69 = arith.constant 0 : index
    %162 = vector.load %arg16[%c0_67, %c0_68, %c0_69] : memref<2x1x64xf32, #tpu.memory_space<vmem>>, vector<1x1x64xf32>
    %163 = vector.shape_cast %162 : vector<1x1x64xf32> to vector<1x64xf32>
    %164 = vector.broadcast %163 : vector<1x64xf32> to vector<138x64xf32>
    %165 = arith.addf %161, %164 : vector<138x64xf32>
    %cst_70 = arith.constant 0.000000e+00 : f32
    %166 = vector.broadcast %cst_70 : f32 to vector<138x64xf32>
    %167 = arith.maximumf %165, %166 : vector<138x64xf32>
    %168 = arith.truncf %167 : vector<138x64xf32> to vector<138x64xbf16>
    %c0_71 = arith.constant 0 : index
    %c0_72 = arith.constant 0 : index
    %c0_73 = arith.constant 0 : index
    %169 = vector.load %arg17[%c0_71, %c0_72, %c0_73] : memref<2x64x32xbf16, #tpu.memory_space<vmem>>, vector<1x64x32xbf16>
    %170 = vector.shape_cast %169 : vector<1x64x32xbf16> to vector<64x32xbf16>
    %cst_74 = arith.constant dense<0.000000e+00> : vector<138x32xf32>
    %171 = tpu.matmul %168, %170, %cst_74 {dimension_numbers = #tpu.dot_dimension_numbers<[1], [0], [0], [1], [0, 0, 1, 1], [], []>} : vector<138x64xbf16>, vector<64x32xbf16>, vector<138x32xf32> -> vector<138x32xf32>
    %c0_75 = arith.constant 0 : index
    %c0_76 = arith.constant 0 : index
    %c0_77 = arith.constant 0 : index
    %172 = vector.load %arg18[%c0_75, %c0_76, %c0_77] : memref<2x1x32xf32, #tpu.memory_space<vmem>>, vector<1x1x32xf32>
    %173 = vector.shape_cast %172 : vector<1x1x32xf32> to vector<1x32xf32>
    %174 = vector.broadcast %173 : vector<1x32xf32> to vector<138x32xf32>
    %175 = arith.addf %171, %174 : vector<138x32xf32>
    %176 = arith.addf %175, %157 : vector<138x32xf32>
    %c0_78 = arith.constant 0 : index
    %c0_79 = arith.constant 0 : index
    %c0_80 = arith.constant 0 : index
    %177 = vector.load %arg19[%c0_78, %c0_79, %c0_80] : memref<2x1x32xf32, #tpu.memory_space<vmem>>, vector<1x1x32xf32>
    %178 = vector.shape_cast %177 : vector<1x1x32xf32> to vector<1x32xf32>
    %c0_81 = arith.constant 0 : index
    %c0_82 = arith.constant 0 : index
    %c0_83 = arith.constant 0 : index
    %179 = vector.load %arg20[%c0_81, %c0_82, %c0_83] : memref<2x1x32xf32, #tpu.memory_space<vmem>>, vector<1x1x32xf32>
    %180 = vector.shape_cast %179 : vector<1x1x32xf32> to vector<1x32xf32>
    %cst_84 = arith.constant dense<0.000000e+00> : vector<138xf32>
    %181 = vector.multi_reduction <add>, %176, %cst_84 [1] : vector<138x32xf32> to vector<138xf32>
    %182 = vector.shape_cast %181 : vector<138xf32> to vector<138x1xf32>
    %cst_85 = arith.constant 3.200000e+01 : f32
    %183 = vector.broadcast %cst_85 : f32 to vector<138x1xf32>
    %184 = arith.divf %182, %183 : vector<138x1xf32>
    %185 = vector.broadcast %184 : vector<138x1xf32> to vector<138x32xf32>
    %186 = arith.subf %176, %185 : vector<138x32xf32>
    %187 = arith.mulf %186, %186 : vector<138x32xf32>
    %cst_86 = arith.constant dense<0.000000e+00> : vector<138xf32>
    %188 = vector.multi_reduction <add>, %187, %cst_86 [1] : vector<138x32xf32> to vector<138xf32>
    %189 = vector.shape_cast %188 : vector<138xf32> to vector<138x1xf32>
    %cst_87 = arith.constant 3.200000e+01 : f32
    %190 = vector.broadcast %cst_87 : f32 to vector<138x1xf32>
    %191 = arith.divf %189, %190 : vector<138x1xf32>
    %cst_88 = arith.constant 9.99999974E-6 : f32
    %192 = vector.broadcast %cst_88 : f32 to vector<138x1xf32>
    %193 = arith.addf %191, %192 : vector<138x1xf32>
    %194 = math.rsqrt %193 : vector<138x1xf32>
    %195 = vector.broadcast %194 : vector<138x1xf32> to vector<138x32xf32>
    %196 = arith.mulf %186, %195 : vector<138x32xf32>
    %197 = vector.broadcast %178 : vector<1x32xf32> to vector<138x32xf32>
    %198 = arith.mulf %196, %197 : vector<138x32xf32>
    %199 = vector.broadcast %180 : vector<1x32xf32> to vector<138x32xf32>
    %200 = arith.addf %198, %199 : vector<138x32xf32>
    %201 = arith.truncf %200 : vector<138x32xf32> to vector<138x32xbf16>
    %c1 = arith.constant 1 : index
    %c0_89 = arith.constant 0 : index
    %c0_90 = arith.constant 0 : index
    %202 = vector.load %arg9[%c1, %c0_89, %c0_90] : memref<2x32x96xbf16, #tpu.memory_space<vmem>>, vector<1x32x96xbf16>
    %203 = vector.shape_cast %202 : vector<1x32x96xbf16> to vector<32x96xbf16>
    %cst_91 = arith.constant dense<0.000000e+00> : vector<138x96xf32>
    %204 = tpu.matmul %201, %203, %cst_91 {dimension_numbers = #tpu.dot_dimension_numbers<[1], [0], [0], [1], [0, 0, 1, 1], [], []>} : vector<138x32xbf16>, vector<32x96xbf16>, vector<138x96xf32> -> vector<138x96xf32>
    %c1_92 = arith.constant 1 : index
    %c0_93 = arith.constant 0 : index
    %c0_94 = arith.constant 0 : index
    %205 = vector.load %arg10[%c1_92, %c0_93, %c0_94] : memref<2x1x96xf32, #tpu.memory_space<vmem>>, vector<1x1x96xf32>
    %206 = vector.shape_cast %205 : vector<1x1x96xf32> to vector<1x96xf32>
    %207 = vector.broadcast %206 : vector<1x96xf32> to vector<138x96xf32>
    %208 = arith.addf %204, %207 : vector<138x96xf32>
    %209 = vector.extract_strided_slice %208 {offsets = [0, 0], sizes = [138, 8], strides = [1, 1]} : vector<138x96xf32> to vector<138x8xf32>
    %210 = arith.truncf %209 : vector<138x8xf32> to vector<138x8xbf16>
    %211 = vector.extract_strided_slice %208 {offsets = [0, 32], sizes = [138, 8], strides = [1, 1]} : vector<138x96xf32> to vector<138x8xf32>
    %212 = arith.truncf %211 : vector<138x8xf32> to vector<138x8xbf16>
    %213 = vector.extract_strided_slice %208 {offsets = [0, 64], sizes = [138, 8], strides = [1, 1]} : vector<138x96xf32> to vector<138x8xf32>
    %214 = arith.truncf %213 : vector<138x8xf32> to vector<138x8xbf16>
    %cst_95 = arith.constant dense<0.000000e+00> : vector<138x138xf32>
    %215 = tpu.matmul %210, %212, %cst_95 {dimension_numbers = #tpu.dot_dimension_numbers<[1], [1], [0], [0], [0, 0, 1, 0], [], []>} : vector<138x8xbf16>, vector<138x8xbf16>, vector<138x138xf32> -> vector<138x138xf32>
    %cst_96 = arith.constant dense<0xFF800000> : vector<138xf32>
    %216 = vector.multi_reduction <maximumf>, %215, %cst_96 [1] : vector<138x138xf32> to vector<138xf32>
    %217 = vector.shape_cast %216 : vector<138xf32> to vector<138x1xf32>
    %218 = vector.broadcast %217 : vector<138x1xf32> to vector<138x138xf32>
    %219 = arith.subf %215, %218 : vector<138x138xf32>
    %220 = math.exp %219 : vector<138x138xf32>
    %cst_97 = arith.constant dense<0.000000e+00> : vector<138xf32>
    %221 = vector.multi_reduction <add>, %220, %cst_97 [1] : vector<138x138xf32> to vector<138xf32>
    %222 = vector.shape_cast %221 : vector<138xf32> to vector<138x1xf32>
    %223 = arith.truncf %220 : vector<138x138xf32> to vector<138x138xbf16>
    %cst_98 = arith.constant dense<0.000000e+00> : vector<138x8xf32>
    %224 = tpu.matmul %223, %214, %cst_98 {dimension_numbers = #tpu.dot_dimension_numbers<[1], [0], [0], [1], [0, 0, 1, 1], [], []>} : vector<138x138xbf16>, vector<138x8xbf16>, vector<138x8xf32> -> vector<138x8xf32>
    %cst_99 = arith.constant 1.000000e+00 : f32
    %225 = vector.broadcast %cst_99 : f32 to vector<138x1xf32>
    %226 = arith.divf %225, %222 : vector<138x1xf32>
    %227 = vector.broadcast %226 : vector<138x1xf32> to vector<138x8xf32>
    %228 = arith.mulf %224, %227 : vector<138x8xf32>
    %229 = vector.extract_strided_slice %208 {offsets = [0, 8], sizes = [138, 8], strides = [1, 1]} : vector<138x96xf32> to vector<138x8xf32>
    %230 = arith.truncf %229 : vector<138x8xf32> to vector<138x8xbf16>
    %231 = vector.extract_strided_slice %208 {offsets = [0, 40], sizes = [138, 8], strides = [1, 1]} : vector<138x96xf32> to vector<138x8xf32>
    %232 = arith.truncf %231 : vector<138x8xf32> to vector<138x8xbf16>
    %233 = vector.extract_strided_slice %208 {offsets = [0, 72], sizes = [138, 8], strides = [1, 1]} : vector<138x96xf32> to vector<138x8xf32>
    %234 = arith.truncf %233 : vector<138x8xf32> to vector<138x8xbf16>
    %cst_100 = arith.constant dense<0.000000e+00> : vector<138x138xf32>
    %235 = tpu.matmul %230, %232, %cst_100 {dimension_numbers = #tpu.dot_dimension_numbers<[1], [1], [0], [0], [0, 0, 1, 0], [], []>} : vector<138x8xbf16>, vector<138x8xbf16>, vector<138x138xf32> -> vector<138x138xf32>
    %cst_101 = arith.constant dense<0xFF800000> : vector<138xf32>
    %236 = vector.multi_reduction <maximumf>, %235, %cst_101 [1] : vector<138x138xf32> to vector<138xf32>
    %237 = vector.shape_cast %236 : vector<138xf32> to vector<138x1xf32>
    %238 = vector.broadcast %237 : vector<138x1xf32> to vector<138x138xf32>
    %239 = arith.subf %235, %238 : vector<138x138xf32>
    %240 = math.exp %239 : vector<138x138xf32>
    %cst_102 = arith.constant dense<0.000000e+00> : vector<138xf32>
    %241 = vector.multi_reduction <add>, %240, %cst_102 [1] : vector<138x138xf32> to vector<138xf32>
    %242 = vector.shape_cast %241 : vector<138xf32> to vector<138x1xf32>
    %243 = arith.truncf %240 : vector<138x138xf32> to vector<138x138xbf16>
    %cst_103 = arith.constant dense<0.000000e+00> : vector<138x8xf32>
    %244 = tpu.matmul %243, %234, %cst_103 {dimension_numbers = #tpu.dot_dimension_numbers<[1], [0], [0], [1], [0, 0, 1, 1], [], []>} : vector<138x138xbf16>, vector<138x8xbf16>, vector<138x8xf32> -> vector<138x8xf32>
    %cst_104 = arith.constant 1.000000e+00 : f32
    %245 = vector.broadcast %cst_104 : f32 to vector<138x1xf32>
    %246 = arith.divf %245, %242 : vector<138x1xf32>
    %247 = vector.broadcast %246 : vector<138x1xf32> to vector<138x8xf32>
    %248 = arith.mulf %244, %247 : vector<138x8xf32>
    %249 = vector.extract_strided_slice %208 {offsets = [0, 16], sizes = [138, 8], strides = [1, 1]} : vector<138x96xf32> to vector<138x8xf32>
    %250 = arith.truncf %249 : vector<138x8xf32> to vector<138x8xbf16>
    %251 = vector.extract_strided_slice %208 {offsets = [0, 48], sizes = [138, 8], strides = [1, 1]} : vector<138x96xf32> to vector<138x8xf32>
    %252 = arith.truncf %251 : vector<138x8xf32> to vector<138x8xbf16>
    %253 = vector.extract_strided_slice %208 {offsets = [0, 80], sizes = [138, 8], strides = [1, 1]} : vector<138x96xf32> to vector<138x8xf32>
    %254 = arith.truncf %253 : vector<138x8xf32> to vector<138x8xbf16>
    %cst_105 = arith.constant dense<0.000000e+00> : vector<138x138xf32>
    %255 = tpu.matmul %250, %252, %cst_105 {dimension_numbers = #tpu.dot_dimension_numbers<[1], [1], [0], [0], [0, 0, 1, 0], [], []>} : vector<138x8xbf16>, vector<138x8xbf16>, vector<138x138xf32> -> vector<138x138xf32>
    %cst_106 = arith.constant dense<0xFF800000> : vector<138xf32>
    %256 = vector.multi_reduction <maximumf>, %255, %cst_106 [1] : vector<138x138xf32> to vector<138xf32>
    %257 = vector.shape_cast %256 : vector<138xf32> to vector<138x1xf32>
    %258 = vector.broadcast %257 : vector<138x1xf32> to vector<138x138xf32>
    %259 = arith.subf %255, %258 : vector<138x138xf32>
    %260 = math.exp %259 : vector<138x138xf32>
    %cst_107 = arith.constant dense<0.000000e+00> : vector<138xf32>
    %261 = vector.multi_reduction <add>, %260, %cst_107 [1] : vector<138x138xf32> to vector<138xf32>
    %262 = vector.shape_cast %261 : vector<138xf32> to vector<138x1xf32>
    %263 = arith.truncf %260 : vector<138x138xf32> to vector<138x138xbf16>
    %cst_108 = arith.constant dense<0.000000e+00> : vector<138x8xf32>
    %264 = tpu.matmul %263, %254, %cst_108 {dimension_numbers = #tpu.dot_dimension_numbers<[1], [0], [0], [1], [0, 0, 1, 1], [], []>} : vector<138x138xbf16>, vector<138x8xbf16>, vector<138x8xf32> -> vector<138x8xf32>
    %cst_109 = arith.constant 1.000000e+00 : f32
    %265 = vector.broadcast %cst_109 : f32 to vector<138x1xf32>
    %266 = arith.divf %265, %262 : vector<138x1xf32>
    %267 = vector.broadcast %266 : vector<138x1xf32> to vector<138x8xf32>
    %268 = arith.mulf %264, %267 : vector<138x8xf32>
    %269 = vector.extract_strided_slice %208 {offsets = [0, 24], sizes = [138, 8], strides = [1, 1]} : vector<138x96xf32> to vector<138x8xf32>
    %270 = arith.truncf %269 : vector<138x8xf32> to vector<138x8xbf16>
    %271 = vector.extract_strided_slice %208 {offsets = [0, 56], sizes = [138, 8], strides = [1, 1]} : vector<138x96xf32> to vector<138x8xf32>
    %272 = arith.truncf %271 : vector<138x8xf32> to vector<138x8xbf16>
    %273 = vector.extract_strided_slice %208 {offsets = [0, 88], sizes = [138, 8], strides = [1, 1]} : vector<138x96xf32> to vector<138x8xf32>
    %274 = arith.truncf %273 : vector<138x8xf32> to vector<138x8xbf16>
    %cst_110 = arith.constant dense<0.000000e+00> : vector<138x138xf32>
    %275 = tpu.matmul %270, %272, %cst_110 {dimension_numbers = #tpu.dot_dimension_numbers<[1], [1], [0], [0], [0, 0, 1, 0], [], []>} : vector<138x8xbf16>, vector<138x8xbf16>, vector<138x138xf32> -> vector<138x138xf32>
    %cst_111 = arith.constant dense<0xFF800000> : vector<138xf32>
    %276 = vector.multi_reduction <maximumf>, %275, %cst_111 [1] : vector<138x138xf32> to vector<138xf32>
    %277 = vector.shape_cast %276 : vector<138xf32> to vector<138x1xf32>
    %278 = vector.broadcast %277 : vector<138x1xf32> to vector<138x138xf32>
    %279 = arith.subf %275, %278 : vector<138x138xf32>
    %280 = math.exp %279 : vector<138x138xf32>
    %cst_112 = arith.constant dense<0.000000e+00> : vector<138xf32>
    %281 = vector.multi_reduction <add>, %280, %cst_112 [1] : vector<138x138xf32> to vector<138xf32>
    %282 = vector.shape_cast %281 : vector<138xf32> to vector<138x1xf32>
    %283 = arith.truncf %280 : vector<138x138xf32> to vector<138x138xbf16>
    %cst_113 = arith.constant dense<0.000000e+00> : vector<138x8xf32>
    %284 = tpu.matmul %283, %274, %cst_113 {dimension_numbers = #tpu.dot_dimension_numbers<[1], [0], [0], [1], [0, 0, 1, 1], [], []>} : vector<138x138xbf16>, vector<138x8xbf16>, vector<138x8xf32> -> vector<138x8xf32>
    %cst_114 = arith.constant 1.000000e+00 : f32
    %285 = vector.broadcast %cst_114 : f32 to vector<138x1xf32>
    %286 = arith.divf %285, %282 : vector<138x1xf32>
    %287 = vector.broadcast %286 : vector<138x1xf32> to vector<138x8xf32>
    %288 = arith.mulf %284, %287 : vector<138x8xf32>
    %289 = tpu.concatenate %228, %248, %268, %288 in 1 : vector<138x8xf32>, vector<138x8xf32>, vector<138x8xf32>, vector<138x8xf32> -> vector<138x32xf32>
    %290 = arith.truncf %289 : vector<138x32xf32> to vector<138x32xbf16>
    %c1_115 = arith.constant 1 : index
    %c0_116 = arith.constant 0 : index
    %c0_117 = arith.constant 0 : index
    %291 = vector.load %arg11[%c1_115, %c0_116, %c0_117] : memref<2x32x32xbf16, #tpu.memory_space<vmem>>, vector<1x32x32xbf16>
    %292 = vector.shape_cast %291 : vector<1x32x32xbf16> to vector<32x32xbf16>
    %cst_118 = arith.constant dense<0.000000e+00> : vector<138x32xf32>
    %293 = tpu.matmul %290, %292, %cst_118 {dimension_numbers = #tpu.dot_dimension_numbers<[1], [0], [0], [1], [0, 0, 1, 1], [], []>} : vector<138x32xbf16>, vector<32x32xbf16>, vector<138x32xf32> -> vector<138x32xf32>
    %c1_119 = arith.constant 1 : index
    %c0_120 = arith.constant 0 : index
    %c0_121 = arith.constant 0 : index
    %294 = vector.load %arg12[%c1_119, %c0_120, %c0_121] : memref<2x1x32xf32, #tpu.memory_space<vmem>>, vector<1x1x32xf32>
    %295 = vector.shape_cast %294 : vector<1x1x32xf32> to vector<1x32xf32>
    %296 = vector.broadcast %295 : vector<1x32xf32> to vector<138x32xf32>
    %297 = arith.addf %293, %296 : vector<138x32xf32>
    %298 = arith.addf %297, %200 : vector<138x32xf32>
    %c1_122 = arith.constant 1 : index
    %c0_123 = arith.constant 0 : index
    %c0_124 = arith.constant 0 : index
    %299 = vector.load %arg13[%c1_122, %c0_123, %c0_124] : memref<2x1x32xf32, #tpu.memory_space<vmem>>, vector<1x1x32xf32>
    %300 = vector.shape_cast %299 : vector<1x1x32xf32> to vector<1x32xf32>
    %c1_125 = arith.constant 1 : index
    %c0_126 = arith.constant 0 : index
    %c0_127 = arith.constant 0 : index
    %301 = vector.load %arg14[%c1_125, %c0_126, %c0_127] : memref<2x1x32xf32, #tpu.memory_space<vmem>>, vector<1x1x32xf32>
    %302 = vector.shape_cast %301 : vector<1x1x32xf32> to vector<1x32xf32>
    %cst_128 = arith.constant dense<0.000000e+00> : vector<138xf32>
    %303 = vector.multi_reduction <add>, %298, %cst_128 [1] : vector<138x32xf32> to vector<138xf32>
    %304 = vector.shape_cast %303 : vector<138xf32> to vector<138x1xf32>
    %cst_129 = arith.constant 3.200000e+01 : f32
    %305 = vector.broadcast %cst_129 : f32 to vector<138x1xf32>
    %306 = arith.divf %304, %305 : vector<138x1xf32>
    %307 = vector.broadcast %306 : vector<138x1xf32> to vector<138x32xf32>
    %308 = arith.subf %298, %307 : vector<138x32xf32>
    %309 = arith.mulf %308, %308 : vector<138x32xf32>
    %cst_130 = arith.constant dense<0.000000e+00> : vector<138xf32>
    %310 = vector.multi_reduction <add>, %309, %cst_130 [1] : vector<138x32xf32> to vector<138xf32>
    %311 = vector.shape_cast %310 : vector<138xf32> to vector<138x1xf32>
    %cst_131 = arith.constant 3.200000e+01 : f32
    %312 = vector.broadcast %cst_131 : f32 to vector<138x1xf32>
    %313 = arith.divf %311, %312 : vector<138x1xf32>
    %cst_132 = arith.constant 9.99999974E-6 : f32
    %314 = vector.broadcast %cst_132 : f32 to vector<138x1xf32>
    %315 = arith.addf %313, %314 : vector<138x1xf32>
    %316 = math.rsqrt %315 : vector<138x1xf32>
    %317 = vector.broadcast %316 : vector<138x1xf32> to vector<138x32xf32>
    %318 = arith.mulf %308, %317 : vector<138x32xf32>
    %319 = vector.broadcast %300 : vector<1x32xf32> to vector<138x32xf32>
    %320 = arith.mulf %318, %319 : vector<138x32xf32>
    %321 = vector.broadcast %302 : vector<1x32xf32> to vector<138x32xf32>
    %322 = arith.addf %320, %321 : vector<138x32xf32>
    %323 = arith.truncf %322 : vector<138x32xf32> to vector<138x32xbf16>
    %c1_133 = arith.constant 1 : index
    %c0_134 = arith.constant 0 : index
    %c0_135 = arith.constant 0 : index
    %324 = vector.load %arg15[%c1_133, %c0_134, %c0_135] : memref<2x32x64xbf16, #tpu.memory_space<vmem>>, vector<1x32x64xbf16>
    %325 = vector.shape_cast %324 : vector<1x32x64xbf16> to vector<32x64xbf16>
    %cst_136 = arith.constant dense<0.000000e+00> : vector<138x64xf32>
    %326 = tpu.matmul %323, %325, %cst_136 {dimension_numbers = #tpu.dot_dimension_numbers<[1], [0], [0], [1], [0, 0, 1, 1], [], []>} : vector<138x32xbf16>, vector<32x64xbf16>, vector<138x64xf32> -> vector<138x64xf32>
    %c1_137 = arith.constant 1 : index
    %c0_138 = arith.constant 0 : index
    %c0_139 = arith.constant 0 : index
    %327 = vector.load %arg16[%c1_137, %c0_138, %c0_139] : memref<2x1x64xf32, #tpu.memory_space<vmem>>, vector<1x1x64xf32>
    %328 = vector.shape_cast %327 : vector<1x1x64xf32> to vector<1x64xf32>
    %329 = vector.broadcast %328 : vector<1x64xf32> to vector<138x64xf32>
    %330 = arith.addf %326, %329 : vector<138x64xf32>
    %cst_140 = arith.constant 0.000000e+00 : f32
    %331 = vector.broadcast %cst_140 : f32 to vector<138x64xf32>
    %332 = arith.maximumf %330, %331 : vector<138x64xf32>
    %333 = arith.truncf %332 : vector<138x64xf32> to vector<138x64xbf16>
    %c1_141 = arith.constant 1 : index
    %c0_142 = arith.constant 0 : index
    %c0_143 = arith.constant 0 : index
    %334 = vector.load %arg17[%c1_141, %c0_142, %c0_143] : memref<2x64x32xbf16, #tpu.memory_space<vmem>>, vector<1x64x32xbf16>
    %335 = vector.shape_cast %334 : vector<1x64x32xbf16> to vector<64x32xbf16>
    %cst_144 = arith.constant dense<0.000000e+00> : vector<138x32xf32>
    %336 = tpu.matmul %333, %335, %cst_144 {dimension_numbers = #tpu.dot_dimension_numbers<[1], [0], [0], [1], [0, 0, 1, 1], [], []>} : vector<138x64xbf16>, vector<64x32xbf16>, vector<138x32xf32> -> vector<138x32xf32>
    %c1_145 = arith.constant 1 : index
    %c0_146 = arith.constant 0 : index
    %c0_147 = arith.constant 0 : index
    %337 = vector.load %arg18[%c1_145, %c0_146, %c0_147] : memref<2x1x32xf32, #tpu.memory_space<vmem>>, vector<1x1x32xf32>
    %338 = vector.shape_cast %337 : vector<1x1x32xf32> to vector<1x32xf32>
    %339 = vector.broadcast %338 : vector<1x32xf32> to vector<138x32xf32>
    %340 = arith.addf %336, %339 : vector<138x32xf32>
    %341 = arith.addf %340, %322 : vector<138x32xf32>
    %c1_148 = arith.constant 1 : index
    %c0_149 = arith.constant 0 : index
    %c0_150 = arith.constant 0 : index
    %342 = vector.load %arg19[%c1_148, %c0_149, %c0_150] : memref<2x1x32xf32, #tpu.memory_space<vmem>>, vector<1x1x32xf32>
    %343 = vector.shape_cast %342 : vector<1x1x32xf32> to vector<1x32xf32>
    %c1_151 = arith.constant 1 : index
    %c0_152 = arith.constant 0 : index
    %c0_153 = arith.constant 0 : index
    %344 = vector.load %arg20[%c1_151, %c0_152, %c0_153] : memref<2x1x32xf32, #tpu.memory_space<vmem>>, vector<1x1x32xf32>
    %345 = vector.shape_cast %344 : vector<1x1x32xf32> to vector<1x32xf32>
    %cst_154 = arith.constant dense<0.000000e+00> : vector<138xf32>
    %346 = vector.multi_reduction <add>, %341, %cst_154 [1] : vector<138x32xf32> to vector<138xf32>
    %347 = vector.shape_cast %346 : vector<138xf32> to vector<138x1xf32>
    %cst_155 = arith.constant 3.200000e+01 : f32
    %348 = vector.broadcast %cst_155 : f32 to vector<138x1xf32>
    %349 = arith.divf %347, %348 : vector<138x1xf32>
    %350 = vector.broadcast %349 : vector<138x1xf32> to vector<138x32xf32>
    %351 = arith.subf %341, %350 : vector<138x32xf32>
    %352 = arith.mulf %351, %351 : vector<138x32xf32>
    %cst_156 = arith.constant dense<0.000000e+00> : vector<138xf32>
    %353 = vector.multi_reduction <add>, %352, %cst_156 [1] : vector<138x32xf32> to vector<138xf32>
    %354 = vector.shape_cast %353 : vector<138xf32> to vector<138x1xf32>
    %cst_157 = arith.constant 3.200000e+01 : f32
    %355 = vector.broadcast %cst_157 : f32 to vector<138x1xf32>
    %356 = arith.divf %354, %355 : vector<138x1xf32>
    %cst_158 = arith.constant 9.99999974E-6 : f32
    %357 = vector.broadcast %cst_158 : f32 to vector<138x1xf32>
    %358 = arith.addf %356, %357 : vector<138x1xf32>
    %359 = math.rsqrt %358 : vector<138x1xf32>
    %360 = vector.broadcast %359 : vector<138x1xf32> to vector<138x32xf32>
    %361 = arith.mulf %351, %360 : vector<138x32xf32>
    %362 = vector.broadcast %343 : vector<1x32xf32> to vector<138x32xf32>
    %363 = arith.mulf %361, %362 : vector<138x32xf32>
    %364 = vector.broadcast %345 : vector<1x32xf32> to vector<138x32xf32>
    %365 = arith.addf %363, %364 : vector<138x32xf32>
    %366 = arith.truncf %365 : vector<138x32xf32> to vector<138x32xbf16>
    %c0_159 = arith.constant 0 : index
    %c0_160 = arith.constant 0 : index
    %367 = vector.load %arg21[%c0_159, %c0_160] : memref<32x1xbf16, #tpu.memory_space<vmem>>, vector<32x1xbf16>
    %cst_161 = arith.constant dense<0.000000e+00> : vector<138x1xf32>
    %368 = tpu.matmul %366, %367, %cst_161 {dimension_numbers = #tpu.dot_dimension_numbers<[1], [0], [0], [1], [0, 0, 1, 1], [], []>} : vector<138x32xbf16>, vector<32x1xbf16>, vector<138x1xf32> -> vector<138x1xf32>
    %c0_162 = arith.constant 0 : index
    %c0_163 = arith.constant 0 : index
    %369 = vector.load %arg22[%c0_162, %c0_163] : memref<1x1xf32, #tpu.memory_space<vmem>>, vector<1x1xf32>
    %370 = vector.broadcast %369 : vector<1x1xf32> to vector<138x1xf32>
    %371 = arith.addf %368, %370 : vector<138x1xf32>
    %c0_164 = arith.constant 0 : index
    %c0_165 = arith.constant 0 : index
    %372 = vector.load %arg23[%c0_164, %c0_165] : memref<138x128xf32, #tpu.memory_space<vmem>>, vector<138x128xf32>
    %373 = vector.broadcast %371 : vector<138x1xf32> to vector<138x128xf32>
    %374 = arith.mulf %373, %372 : vector<138x128xf32>
    %cst_166 = arith.constant dense<0.000000e+00> : vector<128xf32>
    %375 = vector.multi_reduction <add>, %374, %cst_166 [0] : vector<138x128xf32> to vector<128xf32>
    %376 = vector.shape_cast %375 : vector<128xf32> to vector<1x128xf32>
    %c0_167 = arith.constant 0 : index
    %c0_168 = arith.constant 0 : index
    %377 = vector.load %arg24[%c0_167, %c0_168] : memref<1x128xf32, #tpu.memory_space<vmem>>, vector<1x128xf32>
    %378 = arith.addf %376, %377 : vector<1x128xf32>
    %c0_169 = arith.constant 0 : index
    %c0_170 = arith.constant 0 : index
    %c0_171 = arith.constant 0 : index
    %379 = vector.load %arg25[%c0_169, %c0_170, %c0_171] : memref<1x1x128xf32, #tpu.memory_space<vmem>>, vector<1x1x128xf32>
    %380 = vector.shape_cast %379 : vector<1x1x128xf32> to vector<1x128xf32>
    %381 = vector.shape_cast %378 : vector<1x128xf32> to vector<1x1x128xf32>
    tpu.vector_store %arg25[%c0_169, %c0_170, %c0_171], %381 {strides = array<i32>} : memref<1x1x128xf32, #tpu.memory_space<vmem>>, vector<1x1x128xf32>,
    return
  }
  func.func @transform_0(%arg0: i32) -> (i32, i32, i32) {
    %c0_i32 = arith.constant 0 : i32
    %c0_i32_0 = arith.constant 0 : i32
    %c0_i32_1 = arith.constant 0 : i32
    return %arg0, %c0_i32, %c0_i32_0 : i32, i32, i32
  }
  func.func @transform_1(%arg0: i32) -> (i32, i32) {
    %c0_i32 = arith.constant 0 : i32
    %c0_i32_0 = arith.constant 0 : i32
    %c0_i32_1 = arith.constant 0 : i32
    return %c0_i32, %c0_i32_0 : i32, i32
  }
  func.func @transform_2(%arg0: i32) -> (i32, i32) {
    %c0_i32 = arith.constant 0 : i32
    %c0_i32_0 = arith.constant 0 : i32
    %c0_i32_1 = arith.constant 0 : i32
    return %c0_i32, %c0_i32_0 : i32, i32
  }
  func.func @transform_3(%arg0: i32) -> (i32, i32) {
    %c0_i32 = arith.constant 0 : i32
    %c0_i32_0 = arith.constant 0 : i32
    %c0_i32_1 = arith.constant 0 : i32
    return %c0_i32, %c0_i32_0 : i32, i32
  }
  func.func @transform_4(%arg0: i32) -> (i32, i32) {
    %c0_i32 = arith.constant 0 : i32
    %c0_i32_0 = arith.constant 0 : i32
    %c0_i32_1 = arith.constant 0 : i32
    return %c0_i32, %c0_i32_0 : i32, i32
  }
  func.func @transform_5(%arg0: i32) -> (i32, i32) {
    %c0_i32 = arith.constant 0 : i32
    %c0_i32_0 = arith.constant 0 : i32
    %c0_i32_1 = arith.constant 0 : i32
    return %c0_i32, %c0_i32_0 : i32, i32
  }
  func.func @transform_6(%arg0: i32) -> (i32, i32) {
    %c0_i32 = arith.constant 0 : i32
    %c0_i32_0 = arith.constant 0 : i32
    %c0_i32_1 = arith.constant 0 : i32
    return %c0_i32, %c0_i32_0 : i32, i32
  }
  func.func @transform_7(%arg0: i32) -> (i32, i32) {
    %c0_i32 = arith.constant 0 : i32
    %c0_i32_0 = arith.constant 0 : i32
    %c0_i32_1 = arith.constant 0 : i32
    return %c0_i32, %c0_i32_0 : i32, i32
  }
  func.func @transform_8(%arg0: i32) -> (i32, i32, i32) {
    %c0_i32 = arith.constant 0 : i32
    %c0_i32_0 = arith.constant 0 : i32
    %c0_i32_1 = arith.constant 0 : i32
    %c0_i32_2 = arith.constant 0 : i32
    return %c0_i32, %c0_i32_0, %c0_i32_1 : i32, i32, i32
  }
  func.func @transform_9(%arg0: i32) -> (i32, i32, i32) {
    %c0_i32 = arith.constant 0 : i32
    %c0_i32_0 = arith.constant 0 : i32
    %c0_i32_1 = arith.constant 0 : i32
    %c0_i32_2 = arith.constant 0 : i32
    return %c0_i32, %c0_i32_0, %c0_i32_1 : i32, i32, i32
  }
  func.func @transform_10(%arg0: i32) -> (i32, i32, i32) {
    %c0_i32 = arith.constant 0 : i32
    %c0_i32_0 = arith.constant 0 : i32
    %c0_i32_1 = arith.constant 0 : i32
    %c0_i32_2 = arith.constant 0 : i32
    return %c0_i32, %c0_i32_0, %c0_i32_1 : i32, i32, i32
  }
  func.func @transform_11(%arg0: i32) -> (i32, i32, i32) {
    %c0_i32 = arith.constant 0 : i32
    %c0_i32_0 = arith.constant 0 : i32
    %c0_i32_1 = arith.constant 0 : i32
    %c0_i32_2 = arith.constant 0 : i32
    return %c0_i32, %c0_i32_0, %c0_i32_1 : i32, i32, i32
  }
  func.func @transform_12(%arg0: i32) -> (i32, i32, i32) {
    %c0_i32 = arith.constant 0 : i32
    %c0_i32_0 = arith.constant 0 : i32
    %c0_i32_1 = arith.constant 0 : i32
    %c0_i32_2 = arith.constant 0 : i32
    return %c0_i32, %c0_i32_0, %c0_i32_1 : i32, i32, i32
  }
  func.func @transform_13(%arg0: i32) -> (i32, i32, i32) {
    %c0_i32 = arith.constant 0 : i32
    %c0_i32_0 = arith.constant 0 : i32
    %c0_i32_1 = arith.constant 0 : i32
    %c0_i32_2 = arith.constant 0 : i32
    return %c0_i32, %c0_i32_0, %c0_i32_1 : i32, i32, i32
  }
  func.func @transform_14(%arg0: i32) -> (i32, i32, i32) {
    %c0_i32 = arith.constant 0 : i32
    %c0_i32_0 = arith.constant 0 : i32
    %c0_i32_1 = arith.constant 0 : i32
    %c0_i32_2 = arith.constant 0 : i32
    return %c0_i32, %c0_i32_0, %c0_i32_1 : i32, i32, i32
  }
  func.func @transform_15(%arg0: i32) -> (i32, i32, i32) {
    %c0_i32 = arith.constant 0 : i32
    %c0_i32_0 = arith.constant 0 : i32
    %c0_i32_1 = arith.constant 0 : i32
    %c0_i32_2 = arith.constant 0 : i32
    return %c0_i32, %c0_i32_0, %c0_i32_1 : i32, i32, i32
  }
  func.func @transform_16(%arg0: i32) -> (i32, i32, i32) {
    %c0_i32 = arith.constant 0 : i32
    %c0_i32_0 = arith.constant 0 : i32
    %c0_i32_1 = arith.constant 0 : i32
    %c0_i32_2 = arith.constant 0 : i32
    return %c0_i32, %c0_i32_0, %c0_i32_1 : i32, i32, i32
  }
  func.func @transform_17(%arg0: i32) -> (i32, i32, i32) {
    %c0_i32 = arith.constant 0 : i32
    %c0_i32_0 = arith.constant 0 : i32
    %c0_i32_1 = arith.constant 0 : i32
    %c0_i32_2 = arith.constant 0 : i32
    return %c0_i32, %c0_i32_0, %c0_i32_1 : i32, i32, i32
  }
  func.func @transform_18(%arg0: i32) -> (i32, i32, i32) {
    %c0_i32 = arith.constant 0 : i32
    %c0_i32_0 = arith.constant 0 : i32
    %c0_i32_1 = arith.constant 0 : i32
    %c0_i32_2 = arith.constant 0 : i32
    return %c0_i32, %c0_i32_0, %c0_i32_1 : i32, i32, i32
  }
  func.func @transform_19(%arg0: i32) -> (i32, i32, i32) {
    %c0_i32 = arith.constant 0 : i32
    %c0_i32_0 = arith.constant 0 : i32
    %c0_i32_1 = arith.constant 0 : i32
    %c0_i32_2 = arith.constant 0 : i32
    return %c0_i32, %c0_i32_0, %c0_i32_1 : i32, i32, i32
  }
  func.func @transform_20(%arg0: i32) -> (i32, i32) {
    %c0_i32 = arith.constant 0 : i32
    %c0_i32_0 = arith.constant 0 : i32
    %c0_i32_1 = arith.constant 0 : i32
    return %c0_i32, %c0_i32_0 : i32, i32
  }
  func.func @transform_21(%arg0: i32) -> (i32, i32) {
    %c0_i32 = arith.constant 0 : i32
    %c0_i32_0 = arith.constant 0 : i32
    %c0_i32_1 = arith.constant 0 : i32
    return %c0_i32, %c0_i32_0 : i32, i32
  }
  func.func @transform_22(%arg0: i32) -> (i32, i32) {
    %c0_i32 = arith.constant 0 : i32
    %c0_i32_0 = arith.constant 0 : i32
    %c0_i32_1 = arith.constant 0 : i32
    return %c0_i32, %c0_i32_0 : i32, i32
  }
  func.func @transform_23(%arg0: i32) -> (i32, i32) {
    %c0_i32 = arith.constant 0 : i32
    %c0_i32_0 = arith.constant 0 : i32
    %c0_i32_1 = arith.constant 0 : i32
    return %c0_i32, %c0_i32_0 : i32, i32
  }
  func.func @transform_24(%arg0: i32) -> (i32, i32, i32) {
    %c0_i32 = arith.constant 0 : i32
    %c0_i32_0 = arith.constant 0 : i32
    %c0_i32_1 = arith.constant 0 : i32
    return %arg0, %c0_i32, %c0_i32_0 : i32, i32, i32
  }
}

</mosaic_0001>

<llo_original>
// kernel: encoder_forward.1
$region0: #{encoder_forward.1}
  #allocation0 [shape = 'u32[]', space=smem, size = 0x4, offset = 0x4, fixed_abs, tag = 'smem constant byte address 0x4 - core index']
  #allocation1 [shape = 'u32[144,128]{1,0:T(1,128)}', space=vmem, size = 0x12000, scoped, tag = 'internal scratch']
  #allocation2 [shape = 'f32[1,1]{1,0:T(1,128)S(1)}', space=vmem, size = 0x200, scoped, tag = 'scoped memory for encoder_forward.1']
  %s0 = inlined_call_operand.vmem [shape: f32[2,144,4], index: 0, kind: input, shape index: {}]
  %s1 = inlined_call_operand.vmem [shape: bf16[12,32], index: 1, kind: input, shape index: {}]
  %s2 = inlined_call_operand.vmem [shape: f32[1,32], index: 2, kind: input, shape index: {}]
  %s3 = inlined_call_operand.vmem [shape: bf16[96,64], index: 3, kind: input, shape index: {}]
  %s4 = inlined_call_operand.vmem [shape: f32[1,64], index: 4, kind: input, shape index: {}]
  %s5 = inlined_call_operand.vmem [shape: bf16[192,32], index: 5, kind: input, shape index: {}]
  %s6 = inlined_call_operand.vmem [shape: f32[1,32], index: 6, kind: input, shape index: {}]
  %s7 = inlined_call_operand.vmem [shape: f32[138,32], index: 7, kind: input, shape index: {}]
  %s8 = inlined_call_operand.vmem [shape: bf16[2,32,96], index: 8, kind: input, shape index: {}]
  %s9 = inlined_call_operand.vmem [shape: f32[2,1,96], index: 9, kind: input, shape index: {}]
  %s10 = inlined_call_operand.vmem [shape: bf16[2,32,32], index: 10, kind: input, shape index: {}]
  %s11 = inlined_call_operand.vmem [shape: f32[2,1,32], index: 11, kind: input, shape index: {}]
  %s12 = inlined_call_operand.vmem [shape: f32[2,1,32], index: 12, kind: input, shape index: {}]
  %s13 = inlined_call_operand.vmem [shape: f32[2,1,32], index: 13, kind: input, shape index: {}]
  %s14 = inlined_call_operand.vmem [shape: bf16[2,32,64], index: 14, kind: input, shape index: {}]
  %s15 = inlined_call_operand.vmem [shape: f32[2,1,64], index: 15, kind: input, shape index: {}]
  %s16 = inlined_call_operand.vmem [shape: bf16[2,64,32], index: 16, kind: input, shape index: {}]
  %s17 = inlined_call_operand.vmem [shape: f32[2,1,32], index: 17, kind: input, shape index: {}]
  %s18 = inlined_call_operand.vmem [shape: f32[2,1,32], index: 18, kind: input, shape index: {}]
  %s19 = inlined_call_operand.vmem [shape: f32[2,1,32], index: 19, kind: input, shape index: {}]
  %s20 = inlined_call_operand.vmem [shape: bf16[32,1], index: 20, kind: input, shape index: {}]
  %s21 = inlined_call_operand.<no memory space> [shape: f32[1,1], index: 21, kind: input, shape index: {}]
  %s22 = inlined_call_operand.vmem [shape: f32[138,128], index: 22, kind: input, shape index: {}]
  %s23 = inlined_call_operand.vmem [shape: f32[1,128], index: 23, kind: input, shape index: {}]
  %s24 = inlined_call_operand.hbm [shape: f32[2,1,128], index: 24, kind: output, shape index: {}]
  %s25 = sld [smem:[#allocation0]]
  $region129: #{encoder_forward.1} parent=0
    _
  %s27 = ssub.s32 1, %s25
  %s28 = scalar_select 0, %s27, %s25
  %v29 = vstv %s21
  %30 = vst [vmem:[#allocation2] sm:$0x1] %v29
  $region1: #{encoder_forward.1} parent=0
    #allocation3 [shape = 'u8[1024]{0}', space=vmem, size = 0x400, scoped, tag = 'output window, operand 0']
    #allocation4 [shape = 's32[2]{0}', space=sflag, size = 0x8, scoped, tag = 'scoped memory for encoder_forward.1']
    %31 = vsyncpa [#allocation4], 0
    %s32 = scalar_lea.sflag [#allocation4], 1
    %33 = vsyncpa %s32, 0
    loop: start=0, step=1, limit=4
    $region2: #{encoder_forward.1} parent=1 // loop_pre_header
      _
    $region3: #{encoder_forward.1} parent=1 // loop_header
      %s35 = sphi 0, %s39
      %p36 = scmp.ge.s32.totalorder %s35, 4
      %s45 = sphi 0, %s47
      %s48 = sphi 0, %s45
      %s49 = sphi 0, %s48
      %s65 = sphi 0, %s49
      %s69 = sphi 0, %s69
      %s71 = sphi 0, %s69
      %s72 = sphi 0, %s71
      %s86 = sphi 0, %s72
      %s90 = sphi 0, %s90
      %s92 = sphi 0, %s90
      %s93 = sphi 0, %s92
      %s107 = sphi 0, %s93
      %s111 = sphi 0, %s111
      %s113 = sphi 0, %s111
      %s114 = sphi 0, %s113
      %s128 = sphi 0, %s114
      %s132 = sphi 0, %s132
      %s134 = sphi 0, %s132
      %s135 = sphi 0, %s134
      %s149 = sphi 0, %s135
      %s153 = sphi 0, %s153
      %s155 = sphi 0, %s153
      %s156 = sphi 0, %s155
      %s170 = sphi 0, %s156
      %s174 = sphi 0, %s174
      %s176 = sphi 0, %s174
      %s177 = sphi 0, %s176
      %s191 = sphi 0, %s177
      %s195 = sphi 0, %s195
      %s197 = sphi 0, %s195
      %s198 = sphi 0, %s197
      %s212 = sphi 0, %s198
      %s216 = sphi 0, %s216
      %s218 = sphi 0, %s216
      %s219 = sphi 0, %s218
      %s233 = sphi 0, %s219
      %s237 = sphi 0, %s237
      %s239 = sphi 0, %s237
      %s240 = sphi 0, %s239
      %s254 = sphi 0, %s240
      %s258 = sphi 0, %s258
      %s260 = sphi 0, %s258
      %s261 = sphi 0, %s260
      %s275 = sphi 0, %s261
      %s279 = sphi 0, %s279
      %s281 = sphi 0, %s279
      %s282 = sphi 0, %s281
      %s296 = sphi 0, %s282
      %s300 = sphi 0, %s300
      %s302 = sphi 0, %s300
      %s303 = sphi 0, %s302
      %s317 = sphi 0, %s303
      %s321 = sphi 0, %s321
      %s323 = sphi 0, %s321
      %s324 = sphi 0, %s323
      %s338 = sphi 0, %s324
      %s342 = sphi 0, %s342
      %s344 = sphi 0, %s342
      %s345 = sphi 0, %s344
      %s359 = sphi 0, %s345
      %s363 = sphi 0, %s363
      %s365 = sphi 0, %s363
      %s366 = sphi 0, %s365
      %s380 = sphi 0, %s366
      %s384 = sphi 0, %s384
      %s386 = sphi 0, %s384
      %s387 = sphi 0, %s386
      %s401 = sphi 0, %s387
      %s405 = sphi 0, %s405
      %s407 = sphi 0, %s405
      %s408 = sphi 0, %s407
      %s422 = sphi 0, %s408
      %s426 = sphi 0, %s426
      %s428 = sphi 0, %s426
      %s429 = sphi 0, %s428
      %s443 = sphi 0, %s429
      %s447 = sphi 0, %s447
      %s449 = sphi 0, %s447
      %s450 = sphi 0, %s449
      %s464 = sphi 0, %s450
      %s468 = sphi 0, %s468
      %s470 = sphi 0, %s468
      %s471 = sphi 0, %s470
      %s485 = sphi 0, %s471
      %s489 = sphi 0, %s489
      %s491 = sphi 0, %s489
      %s492 = sphi 0, %s491
      %s506 = sphi 0, %s492
      %s510 = sphi 0, %s510
      %s512 = sphi 0, %s510
      %s513 = sphi 0, %s512
      %s527 = sphi 0, %s513
      %s531 = sphi 0, %s531
      %s533 = sphi 0, %s531
      %s534 = sphi 0, %s533
      %s548 = sphi 0, %s534
      %s554 = sphi 0, %s556
      %s557 = sphi 0, %s554
      %s558 = sphi 0, %s557
      %s574 = sphi 0, %s558
    $region4: #{encoder_forward.1} parent=1 // loop_header_branch
      %38 = sbr.rel (%p36) target = $region8
    $region5: #{encoder_forward.1} parent=1 // loop_body
      %s40 = ssub.s32 %s35, 1
      %s41 = ssub.s32 %s35, 2
      %s42 = sadd.s32 %s35, 1
      %s43 = ssub.s32 %s35, %s42
      %p44 = scmp.eq.s32.totalorder %s43, 0
      %s46 = sadd.s32 %s45, 1
      %s47 = scalar_select %p44, %s45, %s46
      %p50 = pneg %p44
      %p51 = scmp.eq.s32.totalorder %s35, 1
      %p52 = por %p50, %p51
      %p53 = scmp.ne.s32.totalorder %s45, %s48
      %p54 = scmp.eq.s32.totalorder %s35, 0
      %p55 = por %p53, %p54
      %p56 = scmp.ne.s32.totalorder %s45, %s48
      %p57 = scmp.eq.s32.totalorder %s40, 1
      %p58 = por %p56, %p57
      %p59 = scmp.ne.s32.totalorder %s48, %s49
      %p60 = scmp.eq.s32.totalorder %s40, 0
      %p61 = por %p59, %p60
      %p62 = scmp.ne.s32.totalorder %s48, %s49
      %p63 = scmp.eq.s32.totalorder %s41, 1
      %p64 = por %p62, %p63
      %p66 = scmp.ne.s32.totalorder %s49, %s65
      %p67 = scmp.eq.s32.totalorder %s41, 0
      %p68 = por %p66, %p67
      %s70 = sadd.s32 %s69, 1
      %p73 = scmp.eq.s32.totalorder %s35, 1
      %p74 = scmp.ne.s32.totalorder %s69, %s71
      %p75 = scmp.eq.s32.totalorder %s35, 0
      %p76 = por %p74, %p75
      %p77 = scmp.ne.s32.totalorder %s69, %s71
      %p78 = scmp.eq.s32.totalorder %s40, 1
      %p79 = por %p77, %p78
      %p80 = scmp.ne.s32.totalorder %s71, %s72
      %p81 = scmp.eq.s32.totalorder %s40, 0
      %p82 = por %p80, %p81
      %p83 = scmp.ne.s32.totalorder %s71, %s72
      %p84 = scmp.eq.s32.totalorder %s41, 1
      %p85 = por %p83, %p84
      %p87 = scmp.ne.s32.totalorder %s72, %s86
      %p88 = scmp.eq.s32.totalorder %s41, 0
      %p89 = por %p87, %p88
      %s91 = sadd.s32 %s90, 1
      %p94 = scmp.eq.s32.totalorder %s35, 1
      %p95 = scmp.ne.s32.totalorder %s90, %s92
      %p96 = scmp.eq.s32.totalorder %s35, 0
      %p97 = por %p95, %p96
      %p98 = scmp.ne.s32.totalorder %s90, %s92
      %p99 = scmp.eq.s32.totalorder %s40, 1
      %p100 = por %p98, %p99
      %p101 = scmp.ne.s32.totalorder %s92, %s93
      %p102 = scmp.eq.s32.totalorder %s40, 0
      %p103 = por %p101, %p102
      %p104 = scmp.ne.s32.totalorder %s92, %s93
      %p105 = scmp.eq.s32.totalorder %s41, 1
      %p106 = por %p104, %p105
      %p108 = scmp.ne.s32.totalorder %s93, %s107
      %p109 = scmp.eq.s32.totalorder %s41, 0
      %p110 = por %p108, %p109
      %s112 = sadd.s32 %s111, 1
      %p115 = scmp.eq.s32.totalorder %s35, 1
      %p116 = scmp.ne.s32.totalorder %s111, %s113
      %p117 = scmp.eq.s32.totalorder %s35, 0
      %p118 = por %p116, %p117
      %p119 = scmp.ne.s32.totalorder %s111, %s113
      %p120 = scmp.eq.s32.totalorder %s40, 1
      %p121 = por %p119, %p120
      %p122 = scmp.ne.s32.totalorder %s113, %s114
      %p123 = scmp.eq.s32.totalorder %s40, 0
      %p124 = por %p122, %p123
      %p125 = scmp.ne.s32.totalorder %s113, %s114
      %p126 = scmp.eq.s32.totalorder %s41, 1
      %p127 = por %p125, %p126
      %p129 = scmp.ne.s32.totalorder %s114, %s128
      %p130 = scmp.eq.s32.totalorder %s41, 0
      %p131 = por %p129, %p130
      %s133 = sadd.s32 %s132, 1
      %p136 = scmp.eq.s32.totalorder %s35, 1
      %p137 = scmp.ne.s32.totalorder %s132, %s134
      %p138 = scmp.eq.s32.totalorder %s35, 0
      %p139 = por %p137, %p138
      %p140 = scmp.ne.s32.totalorder %s132, %s134
      %p141 = scmp.eq.s32.totalorder %s40, 1
      %p142 = por %p140, %p141
      %p143 = scmp.ne.s32.totalorder %s134, %s135
      %p144 = scmp.eq.s32.totalorder %s40, 0
      %p145 = por %p143, %p144
      %p146 = scmp.ne.s32.totalorder %s134, %s135
      %p147 = scmp.eq.s32.totalorder %s41, 1
      %p148 = por %p146, %p147
      %p150 = scmp.ne.s32.totalorder %s135, %s149
      %p151 = scmp.eq.s32.totalorder %s41, 0
      %p152 = por %p150, %p151
      %s154 = sadd.s32 %s153, 1
      %p157 = scmp.eq.s32.totalorder %s35, 1
      %p158 = scmp.ne.s32.totalorder %s153, %s155
      %p159 = scmp.eq.s32.totalorder %s35, 0
      %p160 = por %p158, %p159
      %p161 = scmp.ne.s32.totalorder %s153, %s155
      %p162 = scmp.eq.s32.totalorder %s40, 1
      %p163 = por %p161, %p162
      %p164 = scmp.ne.s32.totalorder %s155, %s156
      %p165 = scmp.eq.s32.totalorder %s40, 0
      %p166 = por %p164, %p165
      %p167 = scmp.ne.s32.totalorder %s155, %s156
      %p168 = scmp.eq.s32.totalorder %s41, 1
      %p169 = por %p167, %p168
      %p171 = scmp.ne.s32.totalorder %s156, %s170
      %p172 = scmp.eq.s32.totalorder %s41, 0
      %p173 = por %p171, %p172
      %s175 = sadd.s32 %s174, 1
      %p178 = scmp.eq.s32.totalorder %s35, 1
      %p179 = scmp.ne.s32.totalorder %s174, %s176
      %p180 = scmp.eq.s32.totalorder %s35, 0
      %p181 = por %p179, %p180
      %p182 = scmp.ne.s32.totalorder %s174, %s176
      %p183 = scmp.eq.s32.totalorder %s40, 1
      %p184 = por %p182, %p183
      %p185 = scmp.ne.s32.totalorder %s176, %s177
      %p186 = scmp.eq.s32.totalorder %s40, 0
      %p187 = por %p185, %p186
      %p188 = scmp.ne.s32.totalorder %s176, %s177
      %p189 = scmp.eq.s32.totalorder %s41, 1
      %p190 = por %p188, %p189
      %p192 = scmp.ne.s32.totalorder %s177, %s191
      %p193 = scmp.eq.s32.totalorder %s41, 0
      %p194 = por %p192, %p193
      %s196 = sadd.s32 %s195, 1
      %p199 = scmp.eq.s32.totalorder %s35, 1
      %p200 = scmp.ne.s32.totalorder %s195, %s197
      %p201 = scmp.eq.s32.totalorder %s35, 0
      %p202 = por %p200, %p201
      %p203 = scmp.ne.s32.totalorder %s195, %s197
      %p204 = scmp.eq.s32.totalorder %s40, 1
      %p205 = por %p203, %p204
      %p206 = scmp.ne.s32.totalorder %s197, %s198
      %p207 = scmp.eq.s32.totalorder %s40, 0
      %p208 = por %p206, %p207
      %p209 = scmp.ne.s32.totalorder %s197, %s198
      %p210 = scmp.eq.s32.totalorder %s41, 1
      %p211 = por %p209, %p210
      %p213 = scmp.ne.s32.totalorder %s198, %s212
      %p214 = scmp.eq.s32.totalorder %s41, 0
      %p215 = por %p213, %p214
      %s217 = sadd.s32 %s216, 1
      %p220 = scmp.eq.s32.totalorder %s35, 1
      %p221 = scmp.ne.s32.totalorder %s216, %s218
      %p222 = scmp.eq.s32.totalorder %s35, 0
      %p223 = por %p221, %p222
      %p224 = scmp.ne.s32.totalorder %s216, %s218
      %p225 = scmp.eq.s32.totalorder %s40, 1
      %p226 = por %p224, %p225
      %p227 = scmp.ne.s32.totalorder %s218, %s219
      %p228 = scmp.eq.s32.totalorder %s40, 0
      %p229 = por %p227, %p228
      %p230 = scmp.ne.s32.totalorder %s218, %s219
      %p231 = scmp.eq.s32.totalorder %s41, 1
      %p232 = por %p230, %p231
      %p234 = scmp.ne.s32.totalorder %s219, %s233
      %p235 = scmp.eq.s32.totalorder %s41, 0
      %p236 = por %p234, %p235
      %s238 = sadd.s32 %s237, 1
      %p241 = scmp.eq.s32.totalorder %s35, 1
      %p242 = scmp.ne.s32.totalorder %s237, %s239
      %p243 = scmp.eq.s32.totalorder %s35, 0
      %p244 = por %p242, %p243
      %p245 = scmp.ne.s32.totalorder %s237, %s239
      %p246 = scmp.eq.s32.totalorder %s40, 1
      %p247 = por %p245, %p246
      %p248 = scmp.ne.s32.totalorder %s239, %s240
      %p249 = scmp.eq.s32.totalorder %s40, 0
      %p250 = por %p248, %p249
      %p251 = scmp.ne.s32.totalorder %s239, %s240
      %p252 = scmp.eq.s32.totalorder %s41, 1
      %p253 = por %p251, %p252
      %p255 = scmp.ne.s32.totalorder %s240, %s254
      %p256 = scmp.eq.s32.totalorder %s41, 0
      %p257 = por %p255, %p256
      %s259 = sadd.s32 %s258, 1
      %p262 = scmp.eq.s32.totalorder %s35, 1
      %p263 = scmp.ne.s32.totalorder %s258, %s260
      %p264 = scmp.eq.s32.totalorder %s35, 0
      %p265 = por %p263, %p264
      %p266 = scmp.ne.s32.totalorder %s258, %s260
      %p267 = scmp.eq.s32.totalorder %s40, 1
      %p268 = por %p266, %p267
      %p269 = scmp.ne.s32.totalorder %s260, %s261
      %p270 = scmp.eq.s32.totalorder %s40, 0
      %p271 = por %p269, %p270
      %p272 = scmp.ne.s32.totalorder %s260, %s261
      %p273 = scmp.eq.s32.totalorder %s41, 1
      %p274 = por %p272, %p273
      %p276 = scmp.ne.s32.totalorder %s261, %s275
      %p277 = scmp.eq.s32.totalorder %s41, 0
      %p278 = por %p276, %p277
      %s280 = sadd.s32 %s279, 1
      %p283 = scmp.eq.s32.totalorder %s35, 1
      %p284 = scmp.ne.s32.totalorder %s279, %s281
      %p285 = scmp.eq.s32.totalorder %s35, 0
      %p286 = por %p284, %p285
      %p287 = scmp.ne.s32.totalorder %s279, %s281
      %p288 = scmp.eq.s32.totalorder %s40, 1
      %p289 = por %p287, %p288
      %p290 = scmp.ne.s32.totalorder %s281, %s282
      %p291 = scmp.eq.s32.totalorder %s40, 0
      %p292 = por %p290, %p291
      %p293 = scmp.ne.s32.totalorder %s281, %s282
      %p294 = scmp.eq.s32.totalorder %s41, 1
      %p295 = por %p293, %p294
      %p297 = scmp.ne.s32.totalorder %s282, %s296
      %p298 = scmp.eq.s32.totalorder %s41, 0
      %p299 = por %p297, %p298
      %s301 = sadd.s32 %s300, 1
      %p304 = scmp.eq.s32.totalorder %s35, 1
      %p305 = scmp.ne.s32.totalorder %s300, %s302
      %p306 = scmp.eq.s32.totalorder %s35, 0
      %p307 = por %p305, %p306
      %p308 = scmp.ne.s32.totalorder %s300, %s302
      %p309 = scmp.eq.s32.totalorder %s40, 1
      %p310 = por %p308, %p309
      %p311 = scmp.ne.s32.totalorder %s302, %s303
      %p312 = scmp.eq.s32.totalorder %s40, 0
      %p313 = por %p311, %p312
      %p314 = scmp.ne.s32.totalorder %s302, %s303
      %p315 = scmp.eq.s32.totalorder %s41, 1
      %p316 = por %p314, %p315
      %p318 = scmp.ne.s32.totalorder %s303, %s317
      %p319 = scmp.eq.s32.totalorder %s41, 0
      %p320 = por %p318, %p319
      %s322 = sadd.s32 %s321, 1
      %p325 = scmp.eq.s32.totalorder %s35, 1
      %p326 = scmp.ne.s32.totalorder %s321, %s323
      %p327 = scmp.eq.s32.totalorder %s35, 0
      %p328 = por %p326, %p327
      %p329 = scmp.ne.s32.totalorder %s321, %s323
      %p330 = scmp.eq.s32.totalorder %s40, 1
      %p331 = por %p329, %p330
      %p332 = scmp.ne.s32.totalorder %s323, %s324
      %p333 = scmp.eq.s32.totalorder %s40, 0
      %p334 = por %p332, %p333
      %p335 = scmp.ne.s32.totalorder %s323, %s324
      %p336 = scmp.eq.s32.totalorder %s41, 1
      %p337 = por %p335, %p336
      %p339 = scmp.ne.s32.totalorder %s324, %s338
      %p340 = scmp.eq.s32.totalorder %s41, 0
      %p341 = por %p339, %p340
      %s343 = sadd.s32 %s342, 1
      %p346 = scmp.eq.s32.totalorder %s35, 1
      %p347 = scmp.ne.s32.totalorder %s342, %s344
      %p348 = scmp.eq.s32.totalorder %s35, 0
      %p349 = por %p347, %p348
      %p350 = scmp.ne.s32.totalorder %s342, %s344
      %p351 = scmp.eq.s32.totalorder %s40, 1
      %p352 = por %p350, %p351
      %p353 = scmp.ne.s32.totalorder %s344, %s345
      %p354 = scmp.eq.s32.totalorder %s40, 0
      %p355 = por %p353, %p354
      %p356 = scmp.ne.s32.totalorder %s344, %s345
      %p357 = scmp.eq.s32.totalorder %s41, 1
      %p358 = por %p356, %p357
      %p360 = scmp.ne.s32.totalorder %s345, %s359
      %p361 = scmp.eq.s32.totalorder %s41, 0
      %p362 = por %p360, %p361
      %s364 = sadd.s32 %s363, 1
      %p367 = scmp.eq.s32.totalorder %s35, 1
      %p368 = scmp.ne.s32.totalorder %s363, %s365
      %p369 = scmp.eq.s32.totalorder %s35, 0
      %p370 = por %p368, %p369
      %p371 = scmp.ne.s32.totalorder %s363, %s365
      %p372 = scmp.eq.s32.totalorder %s40, 1
      %p373 = por %p371, %p372
      %p374 = scmp.ne.s32.totalorder %s365, %s366
      %p375 = scmp.eq.s32.totalorder %s40, 0
      %p376 = por %p374, %p375
      %p377 = scmp.ne.s32.totalorder %s365, %s366
      %p378 = scmp.eq.s32.totalorder %s41, 1
      %p379 = por %p377, %p378
      %p381 = scmp.ne.s32.totalorder %s366, %s380
      %p382 = scmp.eq.s32.totalorder %s41, 0
      %p383 = por %p381, %p382
      %s385 = sadd.s32 %s384, 1
      %p388 = scmp.eq.s32.totalorder %s35, 1
      %p389 = scmp.ne.s32.totalorder %s384, %s386
      %p390 = scmp.eq.s32.totalorder %s35, 0
      %p391 = por %p389, %p390
      %p392 = scmp.ne.s32.totalorder %s384, %s386
      %p393 = scmp.eq.s32.totalorder %s40, 1
      %p394 = por %p392, %p393
      %p395 = scmp.ne.s32.totalorder %s386, %s387
      %p396 = scmp.eq.s32.totalorder %s40, 0
      %p397 = por %p395, %p396
      %p398 = scmp.ne.s32.totalorder %s386, %s387
      %p399 = scmp.eq.s32.totalorder %s41, 1
      %p400 = por %p398, %p399
      %p402 = scmp.ne.s32.totalorder %s387, %s401
      %p403 = scmp.eq.s32.totalorder %s41, 0
      %p404 = por %p402, %p403
      %s406 = sadd.s32 %s405, 1
      %p409 = scmp.eq.s32.totalorder %s35, 1
      %p410 = scmp.ne.s32.totalorder %s405, %s407
      %p411 = scmp.eq.s32.totalorder %s35, 0
      %p412 = por %p410, %p411
      %p413 = scmp.ne.s32.totalorder %s405, %s407
      %p414 = scmp.eq.s32.totalorder %s40, 1
      %p415 = por %p413, %p414
      %p416 = scmp.ne.s32.totalorder %s407, %s408
      %p417 = scmp.eq.s32.totalorder %s40, 0
      %p418 = por %p416, %p417
      %p419 = scmp.ne.s32.totalorder %s407, %s408
      %p420 = scmp.eq.s32.totalorder %s41, 1
      %p421 = por %p419, %p420
      %p423 = scmp.ne.s32.totalorder %s408, %s422
      %p424 = scmp.eq.s32.totalorder %s41, 0
      %p425 = por %p423, %p424
      %s427 = sadd.s32 %s426, 1
      %p430 = scmp.eq.s32.totalorder %s35, 1
      %p431 = scmp.ne.s32.totalorder %s426, %s428
      %p432 = scmp.eq.s32.totalorder %s35, 0
      %p433 = por %p431, %p432
      %p434 = scmp.ne.s32.totalorder %s426, %s428
      %p435 = scmp.eq.s32.totalorder %s40, 1
      %p436 = por %p434, %p435
      %p437 = scmp.ne.s32.totalorder %s428, %s429
      %p438 = scmp.eq.s32.totalorder %s40, 0
      %p439 = por %p437, %p438
      %p440 = scmp.ne.s32.totalorder %s428, %s429
      %p441 = scmp.eq.s32.totalorder %s41, 1
      %p442 = por %p440, %p441
      %p444 = scmp.ne.s32.totalorder %s429, %s443
      %p445 = scmp.eq.s32.totalorder %s41, 0
      %p446 = por %p444, %p445
      %s448 = sadd.s32 %s447, 1
      %p451 = scmp.eq.s32.totalorder %s35, 1
      %p452 = scmp.ne.s32.totalorder %s447, %s449
      %p453 = scmp.eq.s32.totalorder %s35, 0
      %p454 = por %p452, %p453
      %p455 = scmp.ne.s32.totalorder %s447, %s449
      %p456 = scmp.eq.s32.totalorder %s40, 1
      %p457 = por %p455, %p456
      %p458 = scmp.ne.s32.totalorder %s449, %s450
      %p459 = scmp.eq.s32.totalorder %s40, 0
      %p460 = por %p458, %p459
      %p461 = scmp.ne.s32.totalorder %s449, %s450
      %p462 = scmp.eq.s32.totalorder %s41, 1
      %p463 = por %p461, %p462
      %p465 = scmp.ne.s32.totalorder %s450, %s464
      %p466 = scmp.eq.s32.totalorder %s41, 0
      %p467 = por %p465, %p466
      %s469 = sadd.s32 %s468, 1
      %p472 = scmp.eq.s32.totalorder %s35, 1
      %p473 = scmp.ne.s32.totalorder %s468, %s470
      %p474 = scmp.eq.s32.totalorder %s35, 0
      %p475 = por %p473, %p474
      %p476 = scmp.ne.s32.totalorder %s468, %s470
      %p477 = scmp.eq.s32.totalorder %s40, 1
      %p478 = por %p476, %p477
      %p479 = scmp.ne.s32.totalorder %s470, %s471
      %p480 = scmp.eq.s32.totalorder %s40, 0
      %p481 = por %p479, %p480
      %p482 = scmp.ne.s32.totalorder %s470, %s471
      %p483 = scmp.eq.s32.totalorder %s41, 1
      %p484 = por %p482, %p483
      %p486 = scmp.ne.s32.totalorder %s471, %s485
      %p487 = scmp.eq.s32.totalorder %s41, 0
      %p488 = por %p486, %p487
      %s490 = sadd.s32 %s489, 1
      %p493 = scmp.eq.s32.totalorder %s35, 1
      %p494 = scmp.ne.s32.totalorder %s489, %s491
      %p495 = scmp.eq.s32.totalorder %s35, 0
      %p496 = por %p494, %p495
      %p497 = scmp.ne.s32.totalorder %s489, %s491
      %p498 = scmp.eq.s32.totalorder %s40, 1
      %p499 = por %p497, %p498
      %p500 = scmp.ne.s32.totalorder %s491, %s492
      %p501 = scmp.eq.s32.totalorder %s40, 0
      %p502 = por %p500, %p501
      %p503 = scmp.ne.s32.totalorder %s491, %s492
      %p504 = scmp.eq.s32.totalorder %s41, 1
      %p505 = por %p503, %p504
      %p507 = scmp.ne.s32.totalorder %s492, %s506
      %p508 = scmp.eq.s32.totalorder %s41, 0
      %p509 = por %p507, %p508
      %s511 = sadd.s32 %s510, 1
      %p514 = scmp.eq.s32.totalorder %s35, 1
      %p515 = scmp.ne.s32.totalorder %s510, %s512
      %p516 = scmp.eq.s32.totalorder %s35, 0
      %p517 = por %p515, %p516
      %p518 = scmp.ne.s32.totalorder %s510, %s512
      %p519 = scmp.eq.s32.totalorder %s40, 1
      %p520 = por %p518, %p519
      %p521 = scmp.ne.s32.totalorder %s512, %s513
      %p522 = scmp.eq.s32.totalorder %s40, 0
      %p523 = por %p521, %p522
      %p524 = scmp.ne.s32.totalorder %s512, %s513
      %p525 = scmp.eq.s32.totalorder %s41, 1
      %p526 = por %p524, %p525
      %p528 = scmp.ne.s32.totalorder %s513, %s527
      %p529 = scmp.eq.s32.totalorder %s41, 0
      %p530 = por %p528, %p529
      %s532 = sadd.s32 %s531, 1
      %p535 = scmp.eq.s32.totalorder %s35, 1
      %p536 = scmp.ne.s32.totalorder %s531, %s533
      %p537 = scmp.eq.s32.totalorder %s35, 0
      %p538 = por %p536, %p537
      %p539 = scmp.ne.s32.totalorder %s531, %s533
      %p540 = scmp.eq.s32.totalorder %s40, 1
      %p541 = por %p539, %p540
      %p542 = scmp.ne.s32.totalorder %s533, %s534
      %p543 = scmp.eq.s32.totalorder %s40, 0
      %p544 = por %p542, %p543
      %p545 = scmp.ne.s32.totalorder %s533, %s534
      %p546 = scmp.eq.s32.totalorder %s41, 1
      %p547 = por %p545, %p546
      %p549 = scmp.ne.s32.totalorder %s534, %s548
      %p550 = scmp.eq.s32.totalorder %s41, 0
      %p551 = por %p549, %p550
      %s552 = ssub.s32 %s35, %s42
      %p553 = scmp.eq.s32.totalorder %s552, 0
      %s555 = sadd.s32 %s554, 1
      %s556 = scalar_select %p553, %s554, %s555
      %p559 = pneg %p553
      %p560 = scmp.eq.s32.totalorder %s35, 1
      %p561 = por %p559, %p560
      %p562 = scmp.ne.s32.totalorder %s554, %s557
      %p563 = scmp.eq.s32.totalorder %s35, 0
      %p564 = por %p562, %p563
      %p565 = scmp.ne.s32.totalorder %s554, %s557
      %p566 = scmp.eq.s32.totalorder %s40, 1
      %p567 = por %p565, %p566
      %p568 = scmp.ne.s32.totalorder %s557, %s558
      %p569 = scmp.eq.s32.totalorder %s40, 0
      %p570 = por %p568, %p569
      %p571 = scmp.ne.s32.totalorder %s557, %s558
      %p572 = scmp.eq.s32.totalorder %s41, 1
      %p573 = por %p571, %p572
      %p575 = scmp.ne.s32.totalorder %s558, %s574
      %p576 = scmp.eq.s32.totalorder %s41, 0
      %p577 = por %p575, %p576
      %p578 = scmp.le.s32.totalorder 1, %s35
      %p579 = scmp.lt.s32.totalorder %s35, 3
      %p580 = pnand %p578, %p579
      %p581 = pneg %p580
      // Predicated region
      $region9: #{encoder_forward.1} parent=5 // pred_check
        _
      $region10: #{encoder_forward.1} parent=5 // pred_check_branch
        %583 = sbr.rel (%p580) target = $region12
      $region11: #{encoder_forward.1} parent=5 // pred_region
        %s584 = ssub.s32 %s35, 1
        // Predicated region
        $region13: #{encoder_forward.1} parent=11 // pred_check
          %p585 = pneg %p82
        $region14: #{encoder_forward.1} parent=11 // pred_check_branch
          %587 = sbr.rel (%p585) target = $region16
        $region15: #{encoder_forward.1} parent=11 // pred_region
          _
        $region16: #{encoder_forward.1} parent=11 // pred_fallthru
          _
        // Predicated region
        $region17: #{encoder_forward.1} parent=11 // pred_check
          %p588 = pneg %p103
        $region18: #{encoder_forward.1} parent=11 // pred_check_branch
          %590 = sbr.rel (%p588) target = $region20
        $region19: #{encoder_forward.1} parent=11 // pred_region
          _
        $region20: #{encoder_forward.1} parent=11 // pred_fallthru
          _
        // Predicated region
        $region21: #{encoder_forward.1} parent=11 // pred_check
          %p591 = pneg %p124
        $region22: #{encoder_forward.1} parent=11 // pred_check_branch
          %593 = sbr.rel (%p591) target = $region24
        $region23: #{encoder_forward.1} parent=11 // pred_region
          _
        $region24: #{encoder_forward.1} parent=11 // pred_fallthru
          _
        // Predicated region
        $region25: #{encoder_forward.1} parent=11 // pred_check
          %p594 = pneg %p145
        $region26: #{encoder_forward.1} parent=11 // pred_check_branch
          %596 = sbr.rel (%p594) target = $region28
        $region27: #{encoder_forward.1} parent=11 // pred_region
          _
        $region28: #{encoder_forward.1} parent=11 // pred_fallthru
          _
        // Predicated region
        $region29: #{encoder_forward.1} parent=11 // pred_check
          %p597 = pneg %p166
        $region30: #{encoder_forward.1} parent=11 // pred_check_branch
          %599 = sbr.rel (%p597) target = $region32
        $region31: #{encoder_forward.1} parent=11 // pred_region
          _
        $region32: #{encoder_forward.1} parent=11 // pred_fallthru
          _
        // Predicated region
        $region33: #{encoder_forward.1} parent=11 // pred_check
          %p600 = pneg %p187
        $region34: #{encoder_forward.1} parent=11 // pred_check_branch
          %602 = sbr.rel (%p600) target = $region36
        $region35: #{encoder_forward.1} parent=11 // pred_region
          _
        $region36: #{encoder_forward.1} parent=11 // pred_fallthru
          _
        // Predicated region
        $region37: #{encoder_forward.1} parent=11 // pred_check
          %p603 = pneg %p208
        $region38: #{encoder_forward.1} parent=11 // pred_check_branch
          %605 = sbr.rel (%p603) target = $region40
        $region39: #{encoder_forward.1} parent=11 // pred_region
          _
        $region40: #{encoder_forward.1} parent=11 // pred_fallthru
          _
        // Predicated region
        $region41: #{encoder_forward.1} parent=11 // pred_check
          %p606 = pneg %p229
        $region42: #{encoder_forward.1} parent=11 // pred_check_branch
          %608 = sbr.rel (%p606) target = $region44
        $region43: #{encoder_forward.1} parent=11 // pred_region
          _
        $region44: #{encoder_forward.1} parent=11 // pred_fallthru
          _
        // Predicated region
        $region45: #{encoder_forward.1} parent=11 // pred_check
          %p609 = pneg %p250
        $region46: #{encoder_forward.1} parent=11 // pred_check_branch
          %611 = sbr.rel (%p609) target = $region48
        $region47: #{encoder_forward.1} parent=11 // pred_region
          _
        $region48: #{encoder_forward.1} parent=11 // pred_fallthru
          _
        // Predicated region
        $region49: #{encoder_forward.1} parent=11 // pred_check
          %p612 = pneg %p271
        $region50: #{encoder_forward.1} parent=11 // pred_check_branch
          %614 = sbr.rel (%p612) target = $region52
        $region51: #{encoder_forward.1} parent=11 // pred_region
          _
        $region52: #{encoder_forward.1} parent=11 // pred_fallthru
          _
        // Predicated region
        $region53: #{encoder_forward.1} parent=11 // pred_check
          %p615 = pneg %p292
        $region54: #{encoder_forward.1} parent=11 // pred_check_branch
          %617 = sbr.rel (%p615) target = $region56
        $region55: #{encoder_forward.1} parent=11 // pred_region
          _
        $region56: #{encoder_forward.1} parent=11 // pred_fallthru
          _
        // Predicated region
        $region57: #{encoder_forward.1} parent=11 // pred_check
          %p618 = pneg %p313
        $region58: #{encoder_forward.1} parent=11 // pred_check_branch
          %620 = sbr.rel (%p618) target = $region60
        $region59: #{encoder_forward.1} parent=11 // pred_region
          _
        $region60: #{encoder_forward.1} parent=11 // pred_fallthru
          _
        // Predicated region
        $region61: #{encoder_forward.1} parent=11 // pred_check
          %p621 = pneg %p334
        $region62: #{encoder_forward.1} parent=11 // pred_check_branch
          %623 = sbr.rel (%p621) target = $region64
        $region63: #{encoder_forward.1} parent=11 // pred_region
          _
        $region64: #{encoder_forward.1} parent=11 // pred_fallthru
          _
        // Predicated region
        $region65: #{encoder_forward.1} parent=11 // pred_check
          %p624 = pneg %p355
        $region66: #{encoder_forward.1} parent=11 // pred_check_branch
          %626 = sbr.rel (%p624) target = $region68
        $region67: #{encoder_forward.1} parent=11 // pred_region
          _
        $region68: #{encoder_forward.1} parent=11 // pred_fallthru
          _
        // Predicated region
        $region69: #{encoder_forward.1} parent=11 // pred_check
          %p627 = pneg %p376
        $region70: #{encoder_forward.1} parent=11 // pred_check_branch
          %629 = sbr.rel (%p627) target = $region72
        $region71: #{encoder_forward.1} parent=11 // pred_region
          _
        $region72: #{encoder_forward.1} parent=11 // pred_fallthru
          _
        // Predicated region
        $region73: #{encoder_forward.1} parent=11 // pred_check
          %p630 = pneg %p397
        $region74: #{encoder_forward.1} parent=11 // pred_check_branch
          %632 = sbr.rel (%p630) target = $region76
        $region75: #{encoder_forward.1} parent=11 // pred_region
          _
        $region76: #{encoder_forward.1} parent=11 // pred_fallthru
          _
        // Predicated region
        $region77: #{encoder_forward.1} parent=11 // pred_check
          %p633 = pneg %p418
        $region78: #{encoder_forward.1} parent=11 // pred_check_branch
          %635 = sbr.rel (%p633) target = $region80
        $region79: #{encoder_forward.1} parent=11 // pred_region
          _
        $region80: #{encoder_forward.1} parent=11 // pred_fallthru
          _
        // Predicated region
        $region81: #{encoder_forward.1} parent=11 // pred_check
          %p636 = pneg %p439
        $region82: #{encoder_forward.1} parent=11 // pred_check_branch
          %638 = sbr.rel (%p636) target = $region84
        $region83: #{encoder_forward.1} parent=11 // pred_region
          _
        $region84: #{encoder_forward.1} parent=11 // pred_fallthru
          _
        // Predicated region
        $region85: #{encoder_forward.1} parent=11 // pred_check
          %p639 = pneg %p460
        $region86: #{encoder_forward.1} parent=11 // pred_check_branch
          %641 = sbr.rel (%p639) target = $region88
        $region87: #{encoder_forward.1} parent=11 // pred_region
          _
        $region88: #{encoder_forward.1} parent=11 // pred_fallthru
          _
        // Predicated region
        $region89: #{encoder_forward.1} parent=11 // pred_check
          %p642 = pneg %p481
        $region90: #{encoder_forward.1} parent=11 // pred_check_branch
          %644 = sbr.rel (%p642) target = $region92
        $region91: #{encoder_forward.1} parent=11 // pred_region
          _
        $region92: #{encoder_forward.1} parent=11 // pred_fallthru
          _
        // Predicated region
        $region93: #{encoder_forward.1} parent=11 // pred_check
          %p645 = pneg %p502
        $region94: #{encoder_forward.1} parent=11 // pred_check_branch
          %647 = sbr.rel (%p645) target = $region96
        $region95: #{encoder_forward.1} parent=11 // pred_region
          _
        $region96: #{encoder_forward.1} parent=11 // pred_fallthru
          _
        // Predicated region
        $region97: #{encoder_forward.1} parent=11 // pred_check
          %p648 = pneg %p523
        $region98: #{encoder_forward.1} parent=11 // pred_check_branch
          %650 = sbr.rel (%p648) target = $region100
        $region99: #{encoder_forward.1} parent=11 // pred_region
          _
        $region100: #{encoder_forward.1} parent=11 // pred_fallthru
          _
        // Predicated region
        $region101: #{encoder_forward.1} parent=11 // pred_check
          %p651 = pneg %p544
        $region102: #{encoder_forward.1} parent=11 // pred_check_branch
          %653 = sbr.rel (%p651) target = $region104
        $region103: #{encoder_forward.1} parent=11 // pred_region
          _
        $region104: #{encoder_forward.1} parent=11 // pred_fallthru
          _
      $region12: #{encoder_forward.1} parent=5 // pred_fallthru
        _
      %p654 = scmp.lt.s32.totalorder %s35, 2
      // Predicated region
      $region105: #{encoder_forward.1} parent=5 // pred_check
        %p655 = pneg %p654
      $region106: #{encoder_forward.1} parent=5 // pred_check_branch
        %657 = sbr.rel (%p655) target = $region108
      $region107: #{encoder_forward.1} parent=5 // pred_region
        // Predicated region
        $region109: #{encoder_forward.1} parent=107 // pred_check
          %p658 = pneg %p55
        $region110: #{encoder_forward.1} parent=107 // pred_check_branch
          %660 = sbr.rel (%p658) target = $region112
        $region111: #{encoder_forward.1} parent=107 // pred_region
          %p661 = scmp.lt.s32.totalorder %s35, 1
          %s662 = scalar_select %p661, %s35, 1
          %s663 = smul.addr %s662, 18
          %s664 = smul.addr %s663, 8
          %s665 = scalar_lea.vmem %s0, %s664
        $region112: #{encoder_forward.1} parent=107 // pred_fallthru
          _
      $region108: #{encoder_forward.1} parent=5 // pred_fallthru
        _
      %p666 = scmp.le.s32.totalorder 1, %s35
      %p667 = scmp.lt.s32.totalorder %s35, 3
      %p668 = pnand %p666, %p667
      %p669 = pneg %p668
      // Predicated region
      $region113: #{encoder_forward.1} parent=5 // pred_check
        _
      $region114: #{encoder_forward.1} parent=5 // pred_check_branch
        %671 = sbr.rel (%p668) target = $region116
      $region115: #{encoder_forward.1} parent=5 // pred_region
        %s672 = ssub.s32 %s35, 1
        %p673 = scmp.lt.s32.totalorder %s40, 1
        %s674 = scalar_select %p673, %s40, 1
        %s675 = smul.addr %s674, 18
        %s676 = smul.addr %s675, 8
        %s677 = scalar_lea.vmem %s0, %s676
        %p678 = pneg %p61
        %p679 = pneg %p58
        %p680 = pneg %p82
        %p681 = pneg %p79
        %p682 = pneg %p103
        %p683 = pneg %p100
        %p684 = pneg %p124
        %p685 = pneg %p121
        %p686 = pneg %p145
        %p687 = pneg %p142
        %p688 = pneg %p166
        %p689 = pneg %p163
        %p690 = pneg %p187
        %p691 = pneg %p184
        %p692 = pneg %p208
        %p693 = pneg %p205
        %p694 = pneg %p229
        %p695 = pneg %p226
        %p696 = pneg %p250
        %p697 = pneg %p247
        %p698 = pneg %p271
        %p699 = pneg %p268
        %p700 = pneg %p292
        %p701 = pneg %p289
        %p702 = pneg %p313
        %p703 = pneg %p310
        %p704 = pneg %p334
        %p705 = pneg %p331
        %p706 = pneg %p355
        %p707 = pneg %p352
        %p708 = pneg %p376
        %p709 = pneg %p373
        %p710 = pneg %p397
        %p711 = pneg %p394
        %p712 = pneg %p418
        %p713 = pneg %p415
        %p714 = pneg %p439
        %p715 = pneg %p436
        %p716 = pneg %p460
        %p717 = pneg %p457
        %p718 = pneg %p481
        %p719 = pneg %p478
        %p720 = pneg %p502
        %p721 = pneg %p499
        %p722 = pneg %p523
        %p723 = pneg %p520
        %p724 = pneg %p544
        %p725 = pneg %p541
        %p726 = pneg %p570
        %p727 = pneg %p567
        %s728 = sand.u32 %s557, 1
        %s729 = scalar_lea.sflag [#allocation4], %s728
        %s730 = sand.u32 %s557, 1
        %s731 = scalar_lea.vmem [#allocation3], %s730
        %p732 = scmp.lt.s32.totalorder %s40, 1
        %s733 = scalar_select %p732, %s40, 1
        %s734 = smul.addr %s733, 18
        %s735 = smul.addr %s734, 8
        %s736 = scalar_lea.vmem %s0, %s735
        %v738 = vld [vmem:[%s736] sm:$0xff]
        %v739 = vld [vmem:[%s736 + $0x8] sm:$0xff]
        %v740 = vld [vmem:[%s736 + $0x10] sm:$0xff]
        %v741 = vld [vmem:[%s736 + $0x18] sm:$0xff]
        %v742 = vld [vmem:[%s736 + $0x20] sm:$0xff]
        %v743 = vld [vmem:[%s736 + $0x28] sm:$0xff]
        %v744 = vld [vmem:[%s736 + $0x30] sm:$0xff]
        %v745 = vld [vmem:[%s736 + $0x38] sm:$0xff]
        %v746 = vld [vmem:[%s736 + $0x40] sm:$0xff]
        %v747 = vld [vmem:[%s736 + $0x48] sm:$0xff]
        %v748 = vld [vmem:[%s736 + $0x50] sm:$0xff]
        %v749 = vld [vmem:[%s736 + $0x58] sm:$0xff]
        %v750 = vld [vmem:[%s736 + $0x60] sm:$0xff]
        %v751 = vld [vmem:[%s736 + $0x68] sm:$0xff]
        %v752 = vld [vmem:[%s736 + $0x70] sm:$0xff]
        %v753 = vld [vmem:[%s736 + $0x78] sm:$0xff]
        %v754 = vld [vmem:[%s736 + $0x80] sm:$0xff]
        %v755 = vld [vmem:[%s736 + $0x88] sm:$0xff]
        %vm774 = vcmask 1046528
        %v775 = vrot.slane %v738, 1
        %v776 = vrot.slane %v739, 1
        %v777 = vsel %vm774, %v775, %v776
        %v778 = vrot.slane %v740, 1
        %v779 = vsel %vm774, %v776, %v778
        %v780 = vrot.slane %v741, 1
        %v781 = vsel %vm774, %v778, %v780
        %v782 = vrot.slane %v742, 1
        %v783 = vsel %vm774, %v780, %v782
        %v784 = vrot.slane %v743, 1
        %v785 = vsel %vm774, %v782, %v784
        %v786 = vrot.slane %v744, 1
        %v787 = vsel %vm774, %v784, %v786
        %v788 = vrot.slane %v745, 1
        %v789 = vsel %vm774, %v786, %v788
        %v790 = vrot.slane %v746, 1
        %v791 = vsel %vm774, %v788, %v790
        %v792 = vrot.slane %v747, 1
        %v793 = vsel %vm774, %v790, %v792
        %v794 = vrot.slane %v748, 1
        %v795 = vsel %vm774, %v792, %v794
        %v796 = vrot.slane %v749, 1
        %v797 = vsel %vm774, %v794, %v796
        %v798 = vrot.slane %v750, 1
        %v799 = vsel %vm774, %v796, %v798
        %v800 = vrot.slane %v751, 1
        %v801 = vsel %vm774, %v798, %v800
        %v802 = vrot.slane %v752, 1
        %v803 = vsel %vm774, %v800, %v802
        %v804 = vrot.slane %v753, 1
        %v805 = vsel %vm774, %v802, %v804
        %v806 = vrot.slane %v754, 1
        %v807 = vsel %vm774, %v804, %v806
        %v808 = vrot.slane %v755, 1
        %v809 = vsel %vm774, %v806, %v808
        %810 = vrot.lane.b32.xlu0 %v777, 4
        %v811 = vpop.permute.xlu0 %810
        %812 = vrot.lane.b32.xlu0 %v779, 4
        %v813 = vpop.permute.xlu0 %812
        %814 = vrot.lane.b32.xlu0 %v781, 4
        %v815 = vpop.permute.xlu0 %814
        %816 = vrot.lane.b32.xlu0 %v783, 4
        %v817 = vpop.permute.xlu0 %816
        %818 = vrot.lane.b32.xlu0 %v785, 4
        %v819 = vpop.permute.xlu0 %818
        %820 = vrot.lane.b32.xlu0 %v787, 4
        %v821 = vpop.permute.xlu0 %820
        %822 = vrot.lane.b32.xlu0 %v789, 4
        %v823 = vpop.permute.xlu0 %822
        %824 = vrot.lane.b32.xlu0 %v791, 4
        %v825 = vpop.permute.xlu0 %824
        %826 = vrot.lane.b32.xlu0 %v793, 4
        %v827 = vpop.permute.xlu0 %826
        %828 = vrot.lane.b32.xlu0 %v795, 4
        %v829 = vpop.permute.xlu0 %828
        %830 = vrot.lane.b32.xlu0 %v797, 4
        %v831 = vpop.permute.xlu0 %830
        %832 = vrot.lane.b32.xlu0 %v799, 4
        %v833 = vpop.permute.xlu0 %832
        %834 = vrot.lane.b32.xlu0 %v801, 4
        %v835 = vpop.permute.xlu0 %834
        %836 = vrot.lane.b32.xlu0 %v803, 4
        %v837 = vpop.permute.xlu0 %836
        %838 = vrot.lane.b32.xlu0 %v805, 4
        %v839 = vpop.permute.xlu0 %838
        %840 = vrot.lane.b32.xlu0 %v807, 4
        %v841 = vpop.permute.xlu0 %840
        %842 = vrot.lane.b32.xlu0 %v809, 4
        %v843 = vpop.permute.xlu0 %842
        %844 = vrot.lane.b32.xlu0 %v808, 4
        %v845 = vpop.permute.xlu0 %844
        %vm864 = vcmask 1045504
        %v865 = vrot.slane %v738, 2
        %v866 = vrot.slane %v739, 2
        %v867 = vsel %vm864, %v865, %v866
        %v868 = vrot.slane %v740, 2
        %v869 = vsel %vm864, %v866, %v868
        %v870 = vrot.slane %v741, 2
        %v871 = vsel %vm864, %v868, %v870
        %v872 = vrot.slane %v742, 2
        %v873 = vsel %vm864, %v870, %v872
        %v874 = vrot.slane %v743, 2
        %v875 = vsel %vm864, %v872, %v874
        %v876 = vrot.slane %v744, 2
        %v877 = vsel %vm864, %v874, %v876
        %v878 = vrot.slane %v745, 2
        %v879 = vsel %vm864, %v876, %v878
        %v880 = vrot.slane %v746, 2
        %v881 = vsel %vm864, %v878, %v880
        %v882 = vrot.slane %v747, 2
        %v883 = vsel %vm864, %v880, %v882
        %v884 = vrot.slane %v748, 2
        %v885 = vsel %vm864, %v882, %v884
        %v886 = vrot.slane %v749, 2
        %v887 = vsel %vm864, %v884, %v886
        %v888 = vrot.slane %v750, 2
        %v889 = vsel %vm864, %v886, %v888
        %v890 = vrot.slane %v751, 2
        %v891 = vsel %vm864, %v888, %v890
        %v892 = vrot.slane %v752, 2
        %v893 = vsel %vm864, %v890, %v892
        %v894 = vrot.slane %v753, 2
        %v895 = vsel %vm864, %v892, %v894
        %v896 = vrot.slane %v754, 2
        %v897 = vsel %vm864, %v894, %v896
        %v898 = vrot.slane %v755, 2
        %v899 = vsel %vm864, %v896, %v898
        %900 = vrot.lane.b32.xlu0 %v867, 8
        %v901 = vpop.permute.xlu0 %900
        %902 = vrot.lane.b32.xlu0 %v869, 8
        %v903 = vpop.permute.xlu0 %902
        %904 = vrot.lane.b32.xlu0 %v871, 8
        %v905 = vpop.permute.xlu0 %904
        %906 = vrot.lane.b32.xlu0 %v873, 8
        %v907 = vpop.permute.xlu0 %906
        %908 = vrot.lane.b32.xlu0 %v875, 8
        %v909 = vpop.permute.xlu0 %908
        %910 = vrot.lane.b32.xlu0 %v877, 8
        %v911 = vpop.permute.xlu0 %910
        %912 = vrot.lane.b32.xlu0 %v879, 8
        %v913 = vpop.permute.xlu0 %912
        %914 = vrot.lane.b32.xlu0 %v881, 8
        %v915 = vpop.permute.xlu0 %914
        %916 = vrot.lane.b32.xlu0 %v883, 8
        %v917 = vpop.permute.xlu0 %916
        %918 = vrot.lane.b32.xlu0 %v885, 8
        %v919 = vpop.permute.xlu0 %918
        %920 = vrot.lane.b32.xlu0 %v887, 8
        %v921 = vpop.permute.xlu0 %920
        %922 = vrot.lane.b32.xlu0 %v889, 8
        %v923 = vpop.permute.xlu0 %922
        %924 = vrot.lane.b32.xlu0 %v891, 8
        %v925 = vpop.permute.xlu0 %924
        %926 = vrot.lane.b32.xlu0 %v893, 8
        %v927 = vpop.permute.xlu0 %926
        %928 = vrot.lane.b32.xlu0 %v895, 8
        %v929 = vpop.permute.xlu0 %928
        %930 = vrot.lane.b32.xlu0 %v897, 8
        %v931 = vpop.permute.xlu0 %930
        %932 = vrot.lane.b32.xlu0 %v899, 8
        %v933 = vpop.permute.xlu0 %932
        %934 = vrot.lane.b32.xlu0 %v898, 8
        %v935 = vpop.permute.xlu0 %934
        %vm954 = vcmask 31744
        %v955 = vsel %vm954, %v738, %v811
        %v956 = vsel %vm954, %v739, %v813
        %v957 = vsel %vm954, %v740, %v815
        %v958 = vsel %vm954, %v741, %v817
        %v959 = vsel %vm954, %v742, %v819
        %v960 = vsel %vm954, %v743, %v821
        %v961 = vsel %vm954, %v744, %v823
        %v962 = vsel %vm954, %v745, %v825
        %v963 = vsel %vm954, %v746, %v827
        %v964 = vsel %vm954, %v747, %v829
        %v965 = vsel %vm954, %v748, %v831
        %v966 = vsel %vm954, %v749, %v833
        %v967 = vsel %vm954, %v750, %v835
        %v968 = vsel %vm954, %v751, %v837
        %v969 = vsel %vm954, %v752, %v839
        %v970 = vsel %vm954, %v753, %v841
        %v971 = vsel %vm954, %v754, %v843
        %v972 = vsel %vm954, %v755, %v845
        %vm973 = vcmask 64512
        %v974 = vsel %vm973, %v955, %v901
        %v975 = vsel %vm973, %v956, %v903
        %v976 = vsel %vm973, %v957, %v905
        %v977 = vsel %vm973, %v958, %v907
        %v978 = vsel %vm973, %v959, %v909
        %v979 = vsel %vm973, %v960, %v911
        %v980 = vsel %vm973, %v961, %v913
        %v981 = vsel %vm973, %v962, %v915
        %v982 = vsel %vm973, %v963, %v917
        %v983 = vsel %vm973, %v964, %v919
        %v984 = vsel %vm973, %v965, %v921
        %v985 = vsel %vm973, %v966, %v923
        %v986 = vsel %vm973, %v967, %v925
        %v987 = vsel %vm973, %v968, %v927
        %v988 = vsel %vm973, %v969, %v929
        %v989 = vsel %vm973, %v970, %v931
        %v990 = vsel %vm973, %v971, %v933
        %v991 = vsel %vm973, %v972, %v935
        %v992 = vpack.c.bf16 %v975, %v974
        %v993 = vpack.c.bf16 %v977, %v976
        %v994 = vpack.c.bf16 %v979, %v978
        %v995 = vpack.c.bf16 %v981, %v980
        %v996 = vpack.c.bf16 %v983, %v982
        %v997 = vpack.c.bf16 %v985, %v984
        %v998 = vpack.c.bf16 %v987, %v986
        %v999 = vpack.c.bf16 %v989, %v988
        %v1000 = vpack.c.bf16 %v991, %v990
        %v1001 = vld [vmem:[%s1] sm:$0xf]
        %v1002 = vld [vmem:[%s1 + $0x4] sm:$0x3]
        %v1003 = vld [vmem:[%s2] sm:$0x1]
        %v1005 = vlaneseq
        %v1006 = vshrl.u32 %v1005, 7
        %v1007 = vsub.s32 0, %v1006
        %v1008 = vrot.slane %v1003, %v1007
        %v1012 = vunpack.c.l.b16 %v1001
        %v1013 = vunpack.c.l.b16 %v1002
        %v1014 = vpack.c.b16 %v1013, %v1012
        %vm1015 = vcmask 97280
        %v1017 = vsel %vm1015, %v992, 0
        %v1020 = vsel %vm1015, %v993, 0
        %v1023 = vsel %vm1015, %v994, 0
        %v1026 = vsel %vm1015, %v995, 0
        %v1029 = vsel %vm1015, %v996, 0
        %v1032 = vsel %vm1015, %v997, 0
        %v1035 = vsel %vm1015, %v998, 0
        %v1038 = vsel %vm1015, %v999, 0
        %v1041 = vsel %vm1015, %v1000, 0
        %v1044 = vsel %vm864, %v1014, 0
        %1046 = vmatprep.subr.bf16.mxu0 0
        %1047 = vmatpush1.bf16.msra.mxu0 0
        %1048 = vmatprep.subr.bf16.mxu0 0
        %1049 = vmatpush1.bf16.msra.mxu0 0
        %1050 = vmatprep.subr.bf16.mxu0 0
        %1051 = vmatpush1.bf16.msra.mxu0 0
        %1052 = vmatprep.subr.bf16.mxu0 0
        %1053 = vmatpush1.bf16.msra.mxu0 0
        %1054 = vmatprep.subr.bf16.mxu0 0
        %1055 = vmatpush1.bf16.msra.mxu0 0
        %1056 = vmatprep.subr.bf16.mxu0 0
        %1057 = vmatpush1.bf16.msra.mxu0 0
        %1058 = vmatprep.subr.bf16.mxu0 0
        %1059 = vmatpush1.bf16.msra.mxu0 0
        %1060 = vmatprep.subr.bf16.mxu0 0
        %1061 = vmatpush1.bf16.msra.mxu0 %v1044
        %1062 = vmatprep.subr.bf16.mxu0 0
        %1063 = vmatpush2.bf16.msra.mxu0 0
        %1064 = vmatprep.subr.bf16.mxu0 0
        %1065 = vmatpush2.bf16.msra.mxu0 0
        %1066 = vmatprep.subr.bf16.mxu0 0
        %1067 = vmatpush2.bf16.msra.mxu0 0
        %1068 = vmatprep.subr.bf16.mxu0 0
        %1069 = vmatpush2.bf16.msra.mxu0 0
        %1070 = vmatprep.subr.bf16.mxu0 0
        %1071 = vmatpush2.bf16.msra.mxu0 0
        %1072 = vmatprep.subr.bf16.mxu0 0
        %1073 = vmatpush2.bf16.msra.mxu0 0
        %1074 = vmatprep.subr.bf16.mxu0 0
        %1075 = vmatpush2.bf16.msra.mxu0 0
        %1076 = vmatprep.subr.bf16.mxu0 0
        %1077 = vmatpush2.bf16.msra.mxu0 0
        %1078 = vmatprep.mubr.bf16.mxu0 0
        %1079 = vmatmul.mubr.bf16.gmra.mxu0 %v1017
        %v1080 = vpop.f32.mrf.mxu0
        %v1081 = vadd.f32 %v1008, %v1080
        %v1082 = vpop.f32.mrf.mxu0
        %v1083 = vpop.f32.mrf.mxu0
        %v1084 = vadd.f32 %v1008, %v1083
        %v1085 = vpop.f32.mrf.mxu0
        %1086 = vmatprep.mubr.bf16.mxu0 0
        %1087 = vmatmul.mubr.bf16.gmra.mxu0 %v1020
        %v1088 = vpop.f32.mrf.mxu0
        %v1089 = vadd.f32 %v1008, %v1088
        %v1090 = vpop.f32.mrf.mxu0
        %v1091 = vpop.f32.mrf.mxu0
        %v1092 = vadd.f32 %v1008, %v1091
        %v1093 = vpop.f32.mrf.mxu0
        %1094 = vmatprep.mubr.bf16.mxu0 0
        %1095 = vmatmul.mubr.bf16.gmra.mxu0 %v1023
        %v1096 = vpop.f32.mrf.mxu0
        %v1097 = vadd.f32 %v1008, %v1096
        %v1098 = vpop.f32.mrf.mxu0
        %v1099 = vpop.f32.mrf.mxu0
        %v1100 = vadd.f32 %v1008, %v1099
        %v1101 = vpop.f32.mrf.mxu0
        %1102 = vmatprep.mubr.bf16.mxu0 0
        %1103 = vmatmul.mubr.bf16.gmra.mxu0 %v1026
        %v1104 = vpop.f32.mrf.mxu0
        %v1105 = vadd.f32 %v1008, %v1104
        %v1106 = vpop.f32.mrf.mxu0
        %v1107 = vpop.f32.mrf.mxu0
        %v1108 = vadd.f32 %v1008, %v1107
        %v1109 = vpop.f32.mrf.mxu0
        %1110 = vmatprep.mubr.bf16.mxu0 0
        %1111 = vmatmul.mubr.bf16.gmra.mxu0 %v1029
        %v1112 = vpop.f32.mrf.mxu0
        %v1113 = vadd.f32 %v1008, %v1112
        %v1114 = vpop.f32.mrf.mxu0
        %v1115 = vpop.f32.mrf.mxu0
        %v1116 = vadd.f32 %v1008, %v1115
        %v1117 = vpop.f32.mrf.mxu0
        %1118 = vmatprep.mubr.bf16.mxu0 0
        %1119 = vmatmul.mubr.bf16.gmra.mxu0 %v1032
        %v1120 = vpop.f32.mrf.mxu0
        %v1121 = vadd.f32 %v1008, %v1120
        %v1122 = vpop.f32.mrf.mxu0
        %v1123 = vpop.f32.mrf.mxu0
        %v1124 = vadd.f32 %v1008, %v1123
        %v1125 = vpop.f32.mrf.mxu0
        %1126 = vmatprep.mubr.bf16.mxu0 0
        %1127 = vmatmul.mubr.bf16.gmra.mxu0 %v1035
        %v1128 = vpop.f32.mrf.mxu0
        %v1129 = vadd.f32 %v1008, %v1128
        %v1130 = vpop.f32.mrf.mxu0
        %v1131 = vpop.f32.mrf.mxu0
        %v1132 = vadd.f32 %v1008, %v1131
        %v1133 = vpop.f32.mrf.mxu0
        %1134 = vmatprep.mubr.bf16.mxu0 0
        %1135 = vmatmul.mubr.bf16.gmra.mxu0 %v1038
        %v1136 = vpop.f32.mrf.mxu0
        %v1137 = vadd.f32 %v1008, %v1136
        %v1138 = vpop.f32.mrf.mxu0
        %v1139 = vpop.f32.mrf.mxu0
        %v1140 = vadd.f32 %v1008, %v1139
        %v1141 = vpop.f32.mrf.mxu0
        %1142 = vmatprep.mubr.bf16.mxu0 0
        %1143 = vmatmul.mubr.bf16.gmra.mxu0 %v1041
        %v1144 = vpop.f32.mrf.mxu0
        %v1145 = vadd.f32 %v1008, %v1144
        %v1146 = vpop.f32.mrf.mxu0
        %v1147 = vpop.f32.mrf.mxu0
        %v1148 = vadd.f32 %v1008, %v1147
        %v1149 = vpop.f32.mrf.mxu0
        %1150 = vdwg.mxu0
        %v1151 = vtanh.pop %v1081
        %v1152 = vtanh.pop %v1084
        %v1153 = vtanh.pop %v1089
        %v1154 = vtanh.pop %v1092
        %v1155 = vtanh.pop %v1097
        %v1156 = vtanh.pop %v1100
        %v1157 = vtanh.pop %v1105
        %v1158 = vtanh.pop %v1108
        %v1159 = vtanh.pop %v1113
        %v1160 = vtanh.pop %v1116
        %v1161 = vtanh.pop %v1121
        %v1162 = vtanh.pop %v1124
        %v1163 = vtanh.pop %v1129
        %v1164 = vtanh.pop %v1132
        %v1165 = vtanh.pop %v1137
        %v1166 = vtanh.pop %v1140
        %v1167 = vtanh.pop %v1145
        %v1168 = vtanh.pop %v1148
        %v1187 = vrot.slane %v1151, 1
        %v1188 = vrot.slane %v1152, 1
        %v1189 = vsel %vm774, %v1187, %v1188
        %v1190 = vrot.slane %v1153, 1
        %v1191 = vsel %vm774, %v1188, %v1190
        %v1192 = vrot.slane %v1154, 1
        %v1193 = vsel %vm774, %v1190, %v1192
        %v1194 = vrot.slane %v1155, 1
        %v1195 = vsel %vm774, %v1192, %v1194
        %v1196 = vrot.slane %v1156, 1
        %v1197 = vsel %vm774, %v1194, %v1196
        %v1198 = vrot.slane %v1157, 1
        %v1199 = vsel %vm774, %v1196, %v1198
        %v1200 = vrot.slane %v1158, 1
        %v1201 = vsel %vm774, %v1198, %v1200
        %v1202 = vrot.slane %v1159, 1
        %v1203 = vsel %vm774, %v1200, %v1202
        %v1204 = vrot.slane %v1160, 1
        %v1205 = vsel %vm774, %v1202, %v1204
        %v1206 = vrot.slane %v1161, 1
        %v1207 = vsel %vm774, %v1204, %v1206
        %v1208 = vrot.slane %v1162, 1
        %v1209 = vsel %vm774, %v1206, %v1208
        %v1210 = vrot.slane %v1163, 1
        %v1211 = vsel %vm774, %v1208, %v1210
        %v1212 = vrot.slane %v1164, 1
        %v1213 = vsel %vm774, %v1210, %v1212
        %v1214 = vrot.slane %v1165, 1
        %v1215 = vsel %vm774, %v1212, %v1214
        %v1216 = vrot.slane %v1166, 1
        %v1217 = vsel %vm774, %v1214, %v1216
        %v1218 = vrot.slane %v1167, 1
        %v1219 = vsel %vm774, %v1216, %v1218
        %v1220 = vrot.slane %v1168, 1
        %v1221 = vsel %vm774, %v1218, %v1220
        %1222 = vrot.lane.b32.xlu0 %v1189, 32
        %v1223 = vpop.permute.xlu0 %1222
        %1224 = vrot.lane.b32.xlu0 %v1191, 32
        %v1225 = vpop.permute.xlu0 %1224
        %1226 = vrot.lane.b32.xlu0 %v1193, 32
        %v1227 = vpop.permute.xlu0 %1226
        %1228 = vrot.lane.b32.xlu0 %v1195, 32
        %v1229 = vpop.permute.xlu0 %1228
        %1230 = vrot.lane.b32.xlu0 %v1197, 32
        %v1231 = vpop.permute.xlu0 %1230
        %1232 = vrot.lane.b32.xlu0 %v1199, 32
        %v1233 = vpop.permute.xlu0 %1232
        %1234 = vrot.lane.b32.xlu0 %v1201, 32
        %v1235 = vpop.permute.xlu0 %1234
        %1236 = vrot.lane.b32.xlu0 %v1203, 32
        %v1237 = vpop.permute.xlu0 %1236
        %1238 = vrot.lane.b32.xlu0 %v1205, 32
        %v1239 = vpop.permute.xlu0 %1238
        %1240 = vrot.lane.b32.xlu0 %v1207, 32
        %v1241 = vpop.permute.xlu0 %1240
        %1242 = vrot.lane.b32.xlu0 %v1209, 32
        %v1243 = vpop.permute.xlu0 %1242
        %1244 = vrot.lane.b32.xlu0 %v1211, 32
        %v1245 = vpop.permute.xlu0 %1244
        %1246 = vrot.lane.b32.xlu0 %v1213, 32
        %v1247 = vpop.permute.xlu0 %1246
        %1248 = vrot.lane.b32.xlu0 %v1215, 32
        %v1249 = vpop.permute.xlu0 %1248
        %1250 = vrot.lane.b32.xlu0 %v1217, 32
        %v1251 = vpop.permute.xlu0 %1250
        %1252 = vrot.lane.b32.xlu0 %v1219, 32
        %v1253 = vpop.permute.xlu0 %1252
        %1254 = vrot.lane.b32.xlu0 %v1221, 32
        %v1255 = vpop.permute.xlu0 %1254
        %1256 = vrot.lane.b32.xlu0 %v1220, 32
        %v1257 = vpop.permute.xlu0 %1256
        %v1276 = vrot.slane %v1151, 2
        %v1277 = vrot.slane %v1152, 2
        %v1278 = vsel %vm864, %v1276, %v1277
        %v1279 = vrot.slane %v1153, 2
        %v1280 = vsel %vm864, %v1277, %v1279
        %v1281 = vrot.slane %v1154, 2
        %v1282 = vsel %vm864, %v1279, %v1281
        %v1283 = vrot.slane %v1155, 2
        %v1284 = vsel %vm864, %v1281, %v1283
        %v1285 = vrot.slane %v1156, 2
        %v1286 = vsel %vm864, %v1283, %v1285
        %v1287 = vrot.slane %v1157, 2
        %v1288 = vsel %vm864, %v1285, %v1287
        %v1289 = vrot.slane %v1158, 2
        %v1290 = vsel %vm864, %v1287, %v1289
        %v1291 = vrot.slane %v1159, 2
        %v1292 = vsel %vm864, %v1289, %v1291
        %v1293 = vrot.slane %v1160, 2
        %v1294 = vsel %vm864, %v1291, %v1293
        %v1295 = vrot.slane %v1161, 2
        %v1296 = vsel %vm864, %v1293, %v1295
        %v1297 = vrot.slane %v1162, 2
        %v1298 = vsel %vm864, %v1295, %v1297
        %v1299 = vrot.slane %v1163, 2
        %v1300 = vsel %vm864, %v1297, %v1299
        %v1301 = vrot.slane %v1164, 2
        %v1302 = vsel %vm864, %v1299, %v1301
        %v1303 = vrot.slane %v1165, 2
        %v1304 = vsel %vm864, %v1301, %v1303
        %v1305 = vrot.slane %v1166, 2
        %v1306 = vsel %vm864, %v1303, %v1305
        %v1307 = vrot.slane %v1167, 2
        %v1308 = vsel %vm864, %v1305, %v1307
        %v1309 = vrot.slane %v1168, 2
        %v1310 = vsel %vm864, %v1307, %v1309
        %1311 = vrot.lane.b32.xlu0 %v1278, 64
        %v1312 = vpop.permute.xlu0 %1311
        %1313 = vrot.lane.b32.xlu0 %v1280, 64
        %v1314 = vpop.permute.xlu0 %1313
        %1315 = vrot.lane.b32.xlu0 %v1282, 64
        %v1316 = vpop.permute.xlu0 %1315
        %1317 = vrot.lane.b32.xlu0 %v1284, 64
        %v1318 = vpop.permute.xlu0 %1317
        %1319 = vrot.lane.b32.xlu0 %v1286, 64
        %v1320 = vpop.permute.xlu0 %1319
        %1321 = vrot.lane.b32.xlu0 %v1288, 64
        %v1322 = vpop.permute.xlu0 %1321
        %1323 = vrot.lane.b32.xlu0 %v1290, 64
        %v1324 = vpop.permute.xlu0 %1323
        %1325 = vrot.lane.b32.xlu0 %v1292, 64
        %v1326 = vpop.permute.xlu0 %1325
        %1327 = vrot.lane.b32.xlu0 %v1294, 64
        %v1328 = vpop.permute.xlu0 %1327
        %1329 = vrot.lane.b32.xlu0 %v1296, 64
        %v1330 = vpop.permute.xlu0 %1329
        %1331 = vrot.lane.b32.xlu0 %v1298, 64
        %v1332 = vpop.permute.xlu0 %1331
        %1333 = vrot.lane.b32.xlu0 %v1300, 64
        %v1334 = vpop.permute.xlu0 %1333
        %1335 = vrot.lane.b32.xlu0 %v1302, 64
        %v1336 = vpop.permute.xlu0 %1335
        %1337 = vrot.lane.b32.xlu0 %v1304, 64
        %v1338 = vpop.permute.xlu0 %1337
        %1339 = vrot.lane.b32.xlu0 %v1306, 64
        %v1340 = vpop.permute.xlu0 %1339
        %1341 = vrot.lane.b32.xlu0 %v1308, 64
        %v1342 = vpop.permute.xlu0 %1341
        %1343 = vrot.lane.b32.xlu0 %v1310, 64
        %v1344 = vpop.permute.xlu0 %1343
        %1345 = vrot.lane.b32.xlu0 %v1309, 64
        %v1346 = vpop.permute.xlu0 %1345
        %vm1365 = vcmask 261120
        %v1366 = vsel %vm1365, %v1151, %v1223
        %v1367 = vsel %vm1365, %v1152, %v1225
        %v1368 = vsel %vm1365, %v1153, %v1227
        %v1369 = vsel %vm1365, %v1154, %v1229
        %v1370 = vsel %vm1365, %v1155, %v1231
        %v1371 = vsel %vm1365, %v1156, %v1233
        %v1372 = vsel %vm1365, %v1157, %v1235
        %v1373 = vsel %vm1365, %v1158, %v1237
        %v1374 = vsel %vm1365, %v1159, %v1239
        %v1375 = vsel %vm1365, %v1160, %v1241
        %v1376 = vsel %vm1365, %v1161, %v1243
        %v1377 = vsel %vm1365, %v1162, %v1245
        %v1378 = vsel %vm1365, %v1163, %v1247
        %v1379 = vsel %vm1365, %v1164, %v1249
        %v1380 = vsel %vm1365, %v1165, %v1251
        %v1381 = vsel %vm1365, %v1166, %v1253
        %v1382 = vsel %vm1365, %v1167, %v1255
        %v1383 = vsel %vm1365, %v1168, %v1257
        %vm1384 = vcmask 523264
        %v1385 = vsel %vm1384, %v1366, %v1312
        %v1386 = vsel %vm1384, %v1367, %v1314
        %v1387 = vsel %vm1384, %v1368, %v1316
        %v1388 = vsel %vm1384, %v1369, %v1318
        %v1389 = vsel %vm1384, %v1370, %v1320
        %v1390 = vsel %vm1384, %v1371, %v1322
        %v1391 = vsel %vm1384, %v1372, %v1324
        %v1392 = vsel %vm1384, %v1373, %v1326
        %v1393 = vsel %vm1384, %v1374, %v1328
        %v1394 = vsel %vm1384, %v1375, %v1330
        %v1395 = vsel %vm1384, %v1376, %v1332
        %v1396 = vsel %vm1384, %v1377, %v1334
        %v1397 = vsel %vm1384, %v1378, %v1336
        %v1398 = vsel %vm1384, %v1379, %v1338
        %v1399 = vsel %vm1384, %v1380, %v1340
        %v1400 = vsel %vm1384, %v1381, %v1342
        %v1401 = vsel %vm1384, %v1382, %v1344
        %v1402 = vsel %vm1384, %v1383, %v1346
        %v1403 = vpack.c.bf16 %v1386, %v1385
        %v1404 = vpack.c.bf16 %v1388, %v1387
        %v1405 = vpack.c.bf16 %v1390, %v1389
        %v1406 = vpack.c.bf16 %v1392, %v1391
        %v1407 = vpack.c.bf16 %v1394, %v1393
        %v1408 = vpack.c.bf16 %v1396, %v1395
        %v1409 = vpack.c.bf16 %v1398, %v1397
        %v1410 = vpack.c.bf16 %v1400, %v1399
        %v1411 = vpack.c.bf16 %v1402, %v1401
        %v1412 = vld [vmem:[%s3] sm:$0xf]
        %v1413 = vld [vmem:[%s3 + $0x4] sm:$0xf]
        %v1414 = vld [vmem:[%s3 + $0x8] sm:$0xf]
        %v1415 = vld [vmem:[%s3 + $0xc] sm:$0xf]
        %v1416 = vld [vmem:[%s3 + $0x10] sm:$0xf]
        %v1417 = vld [vmem:[%s3 + $0x14] sm:$0xf]
        %v1418 = vld [vmem:[%s3 + $0x18] sm:$0xf]
        %v1419 = vld [vmem:[%s3 + $0x1c] sm:$0xf]
        %v1420 = vld [vmem:[%s3 + $0x20] sm:$0xf]
        %v1421 = vld [vmem:[%s3 + $0x24] sm:$0xf]
        %v1422 = vld [vmem:[%s3 + $0x28] sm:$0xf]
        %v1423 = vld [vmem:[%s3 + $0x2c] sm:$0xf]
        %v1424 = vld [vmem:[%s4] sm:$0x1]
        %v1426 = vlaneseq
        %v1427 = vshrl.u32 %v1426, 7
        %v1428 = vsub.s32 0, %v1427
        %v1429 = vrot.slane %v1424, %v1428
        %v1443 = vunpack.c.l.b16 %v1412
        %v1444 = vunpack.c.l.b16 %v1413
        %v1445 = vunpack.c.l.b16 %v1414
        %v1446 = vunpack.c.l.b16 %v1415
        %v1447 = vunpack.c.l.b16 %v1416
        %v1448 = vunpack.c.l.b16 %v1417
        %v1449 = vunpack.c.l.b16 %v1418
        %v1450 = vunpack.c.l.b16 %v1419
        %v1451 = vunpack.c.l.b16 %v1420
        %v1452 = vunpack.c.l.b16 %v1421
        %v1453 = vunpack.c.l.b16 %v1422
        %v1454 = vunpack.c.l.b16 %v1423
        %v1455 = vpack.c.b16 %v1444, %v1443
        %v1456 = vpack.c.b16 %v1446, %v1445
        %v1457 = vpack.c.b16 %v1448, %v1447
        %v1458 = vpack.c.b16 %v1450, %v1449
        %v1459 = vpack.c.b16 %v1452, %v1451
        %v1460 = vpack.c.b16 %v1454, %v1453
        %vm1467 = vcmask 785408
        %v1469 = vsel %vm1467, %v1403, 0
        %v1472 = vsel %vm1467, %v1404, 0
        %v1475 = vsel %vm1467, %v1405, 0
        %v1478 = vsel %vm1467, %v1406, 0
        %v1481 = vsel %vm1467, %v1407, 0
        %v1484 = vsel %vm1467, %v1408, 0
        %v1487 = vsel %vm1467, %v1409, 0
        %v1490 = vsel %vm1467, %v1410, 0
        %v1493 = vsel %vm1467, %v1411, 0
        %1495 = vmatprep.subr.bf16.mxu0 0
        %1496 = vmatpush1.bf16.msra.mxu0 0
        %1497 = vmatprep.subr.bf16.mxu0 0
        %1498 = vmatpush1.bf16.msra.mxu0 0
        %1499 = vmatprep.subr.bf16.mxu0 0
        %1500 = vmatpush1.bf16.msra.mxu0 %v1460
        %1501 = vmatprep.subr.bf16.mxu0 0
        %1502 = vmatpush1.bf16.msra.mxu0 %v1459
        %1503 = vmatprep.subr.bf16.mxu0 0
        %1504 = vmatpush1.bf16.msra.mxu0 %v1458
        %1505 = vmatprep.subr.bf16.mxu0 0
        %1506 = vmatpush1.bf16.msra.mxu0 %v1457
        %1507 = vmatprep.subr.bf16.mxu0 0
        %1508 = vmatpush1.bf16.msra.mxu0 %v1456
        %1509 = vmatprep.subr.bf16.mxu0 0
        %1510 = vmatpush1.bf16.msra.mxu0 %v1455
        %1511 = vmatprep.subr.bf16.mxu0 0
        %1512 = vmatpush2.bf16.msra.mxu0 0
        %1513 = vmatprep.subr.bf16.mxu0 0
        %1514 = vmatpush2.bf16.msra.mxu0 0
        %1515 = vmatprep.subr.bf16.mxu0 0
        %1516 = vmatpush2.bf16.msra.mxu0 0
        %1517 = vmatprep.subr.bf16.mxu0 0
        %1518 = vmatpush2.bf16.msra.mxu0 0
        %1519 = vmatprep.subr.bf16.mxu0 0
        %1520 = vmatpush2.bf16.msra.mxu0 0
        %1521 = vmatprep.subr.bf16.mxu0 0
        %1522 = vmatpush2.bf16.msra.mxu0 0
        %1523 = vmatprep.subr.bf16.mxu0 0
        %1524 = vmatpush2.bf16.msra.mxu0 0
        %1525 = vmatprep.subr.bf16.mxu0 0
        %1526 = vmatpush2.bf16.msra.mxu0 0
        %1527 = vmatprep.mubr.bf16.mxu0 0
        %1528 = vmatmul.mubr.bf16.gmra.mxu0 %v1469
        %v1529 = vpop.f32.mrf.mxu0
        %v1530 = vadd.f32 %v1429, %v1529
        %v1531 = vpop.f32.mrf.mxu0
        %v1532 = vpop.f32.mrf.mxu0
        %v1533 = vadd.f32 %v1429, %v1532
        %v1534 = vpop.f32.mrf.mxu0
        %1535 = vmatprep.mubr.bf16.mxu0 0
        %1536 = vmatmul.mubr.bf16.gmra.mxu0 %v1472
        %v1537 = vpop.f32.mrf.mxu0
        %v1538 = vadd.f32 %v1429, %v1537
        %v1539 = vpop.f32.mrf.mxu0
        %v1540 = vpop.f32.mrf.mxu0
        %v1541 = vadd.f32 %v1429, %v1540
        %v1542 = vpop.f32.mrf.mxu0
        %1543 = vmatprep.mubr.bf16.mxu0 0
        %1544 = vmatmul.mubr.bf16.gmra.mxu0 %v1475
        %v1545 = vpop.f32.mrf.mxu0
        %v1546 = vadd.f32 %v1429, %v1545
        %v1547 = vpop.f32.mrf.mxu0
        %v1548 = vpop.f32.mrf.mxu0
        %v1549 = vadd.f32 %v1429, %v1548
        %v1550 = vpop.f32.mrf.mxu0
        %1551 = vmatprep.mubr.bf16.mxu0 0
        %1552 = vmatmul.mubr.bf16.gmra.mxu0 %v1478
        %v1553 = vpop.f32.mrf.mxu0
        %v1554 = vadd.f32 %v1429, %v1553
        %v1555 = vpop.f32.mrf.mxu0
        %v1556 = vpop.f32.mrf.mxu0
        %v1557 = vadd.f32 %v1429, %v1556
        %v1558 = vpop.f32.mrf.mxu0
        %1559 = vmatprep.mubr.bf16.mxu0 0
        %1560 = vmatmul.mubr.bf16.gmra.mxu0 %v1481
        %v1561 = vpop.f32.mrf.mxu0
        %v1562 = vadd.f32 %v1429, %v1561
        %v1563 = vpop.f32.mrf.mxu0
        %v1564 = vpop.f32.mrf.mxu0
        %v1565 = vadd.f32 %v1429, %v1564
        %v1566 = vpop.f32.mrf.mxu0
        %1567 = vmatprep.mubr.bf16.mxu0 0
        %1568 = vmatmul.mubr.bf16.gmra.mxu0 %v1484
        %v1569 = vpop.f32.mrf.mxu0
        %v1570 = vadd.f32 %v1429, %v1569
        %v1571 = vpop.f32.mrf.mxu0
        %v1572 = vpop.f32.mrf.mxu0
        %v1573 = vadd.f32 %v1429, %v1572
        %v1574 = vpop.f32.mrf.mxu0
        %1575 = vmatprep.mubr.bf16.mxu0 0
        %1576 = vmatmul.mubr.bf16.gmra.mxu0 %v1487
        %v1577 = vpop.f32.mrf.mxu0
        %v1578 = vadd.f32 %v1429, %v1577
        %v1579 = vpop.f32.mrf.mxu0
        %v1580 = vpop.f32.mrf.mxu0
        %v1581 = vadd.f32 %v1429, %v1580
        %v1582 = vpop.f32.mrf.mxu0
        %1583 = vmatprep.mubr.bf16.mxu0 0
        %1584 = vmatmul.mubr.bf16.gmra.mxu0 %v1490
        %v1585 = vpop.f32.mrf.mxu0
        %v1586 = vadd.f32 %v1429, %v1585
        %v1587 = vpop.f32.mrf.mxu0
        %v1588 = vpop.f32.mrf.mxu0
        %v1589 = vadd.f32 %v1429, %v1588
        %v1590 = vpop.f32.mrf.mxu0
        %1591 = vmatprep.mubr.bf16.mxu0 0
        %1592 = vmatmul.mubr.bf16.gmra.mxu0 %v1493
        %v1593 = vpop.f32.mrf.mxu0
        %v1594 = vadd.f32 %v1429, %v1593
        %v1595 = vpop.f32.mrf.mxu0
        %v1596 = vpop.f32.mrf.mxu0
        %v1597 = vadd.f32 %v1429, %v1596
        %v1598 = vpop.f32.mrf.mxu0
        %1599 = vdwg.mxu0
        %v1600 = vtanh.pop %v1530
        %v1601 = vtanh.pop %v1533
        %v1602 = vtanh.pop %v1538
        %v1603 = vtanh.pop %v1541
        %v1604 = vtanh.pop %v1546
        %v1605 = vtanh.pop %v1549
        %v1606 = vtanh.pop %v1554
        %v1607 = vtanh.pop %v1557
        %v1608 = vtanh.pop %v1562
        %v1609 = vtanh.pop %v1565
        %v1610 = vtanh.pop %v1570
        %v1611 = vtanh.pop %v1573
        %v1612 = vtanh.pop %v1578
        %v1613 = vtanh.pop %v1581
        %v1614 = vtanh.pop %v1586
        %v1615 = vtanh.pop %v1589
        %v1616 = vtanh.pop %v1594
        %v1617 = vtanh.pop %v1597
        %v1636 = vrot.slane %v1600, 1
        %v1637 = vrot.slane %v1601, 1
        %v1638 = vsel %vm774, %v1636, %v1637
        %v1639 = vrot.slane %v1602, 1
        %v1640 = vsel %vm774, %v1637, %v1639
        %v1641 = vrot.slane %v1603, 1
        %v1642 = vsel %vm774, %v1639, %v1641
        %v1643 = vrot.slane %v1604, 1
        %v1644 = vsel %vm774, %v1641, %v1643
        %v1645 = vrot.slane %v1605, 1
        %v1646 = vsel %vm774, %v1643, %v1645
        %v1647 = vrot.slane %v1606, 1
        %v1648 = vsel %vm774, %v1645, %v1647
        %v1649 = vrot.slane %v1607, 1
        %v1650 = vsel %vm774, %v1647, %v1649
        %v1651 = vrot.slane %v1608, 1
        %v1652 = vsel %vm774, %v1649, %v1651
        %v1653 = vrot.slane %v1609, 1
        %v1654 = vsel %vm774, %v1651, %v1653
        %v1655 = vrot.slane %v1610, 1
        %v1656 = vsel %vm774, %v1653, %v1655
        %v1657 = vrot.slane %v1611, 1
        %v1658 = vsel %vm774, %v1655, %v1657
        %v1659 = vrot.slane %v1612, 1
        %v1660 = vsel %vm774, %v1657, %v1659
        %v1661 = vrot.slane %v1613, 1
        %v1662 = vsel %vm774, %v1659, %v1661
        %v1663 = vrot.slane %v1614, 1
        %v1664 = vsel %vm774, %v1661, %v1663
        %v1665 = vrot.slane %v1615, 1
        %v1666 = vsel %vm774, %v1663, %v1665
        %v1667 = vrot.slane %v1616, 1
        %v1668 = vsel %vm774, %v1665, %v1667
        %v1669 = vrot.slane %v1617, 1
        %v1670 = vsel %vm774, %v1667, %v1669
        %1671 = vrot.lane.b32.xlu0 %v1638, 64
        %v1672 = vpop.permute.xlu0 %1671
        %1673 = vrot.lane.b32.xlu0 %v1640, 64
        %v1674 = vpop.permute.xlu0 %1673
        %1675 = vrot.lane.b32.xlu0 %v1642, 64
        %v1676 = vpop.permute.xlu0 %1675
        %1677 = vrot.lane.b32.xlu0 %v1644, 64
        %v1678 = vpop.permute.xlu0 %1677
        %1679 = vrot.lane.b32.xlu0 %v1646, 64
        %v1680 = vpop.permute.xlu0 %1679
        %1681 = vrot.lane.b32.xlu0 %v1648, 64
        %v1682 = vpop.permute.xlu0 %1681
        %1683 = vrot.lane.b32.xlu0 %v1650, 64
        %v1684 = vpop.permute.xlu0 %1683
        %1685 = vrot.lane.b32.xlu0 %v1652, 64
        %v1686 = vpop.permute.xlu0 %1685
        %1687 = vrot.lane.b32.xlu0 %v1654, 64
        %v1688 = vpop.permute.xlu0 %1687
        %1689 = vrot.lane.b32.xlu0 %v1656, 64
        %v1690 = vpop.permute.xlu0 %1689
        %1691 = vrot.lane.b32.xlu0 %v1658, 64
        %v1692 = vpop.permute.xlu0 %1691
        %1693 = vrot.lane.b32.xlu0 %v1660, 64
        %v1694 = vpop.permute.xlu0 %1693
        %1695 = vrot.lane.b32.xlu0 %v1662, 64
        %v1696 = vpop.permute.xlu0 %1695
        %1697 = vrot.lane.b32.xlu0 %v1664, 64
        %v1698 = vpop.permute.xlu0 %1697
        %1699 = vrot.lane.b32.xlu0 %v1666, 64
        %v1700 = vpop.permute.xlu0 %1699
        %1701 = vrot.lane.b32.xlu0 %v1668, 64
        %v1702 = vpop.permute.xlu0 %1701
        %1703 = vrot.lane.b32.xlu0 %v1670, 64
        %v1704 = vpop.permute.xlu0 %1703
        %1705 = vrot.lane.b32.xlu0 %v1669, 64
        %v1706 = vpop.permute.xlu0 %1705
        %v1725 = vrot.slane %v1600, 2
        %v1726 = vrot.slane %v1601, 2
        %v1727 = vsel %vm864, %v1725, %v1726
        %v1728 = vrot.slane %v1602, 2
        %v1729 = vsel %vm864, %v1726, %v1728
        %v1730 = vrot.slane %v1603, 2
        %v1731 = vsel %vm864, %v1728, %v1730
        %v1732 = vrot.slane %v1604, 2
        %v1733 = vsel %vm864, %v1730, %v1732
        %v1734 = vrot.slane %v1605, 2
        %v1735 = vsel %vm864, %v1732, %v1734
        %v1736 = vrot.slane %v1606, 2
        %v1737 = vsel %vm864, %v1734, %v1736
        %v1738 = vrot.slane %v1607, 2
        %v1739 = vsel %vm864, %v1736, %v1738
        %v1740 = vrot.slane %v1608, 2
        %v1741 = vsel %vm864, %v1738, %v1740
        %v1742 = vrot.slane %v1609, 2
        %v1743 = vsel %vm864, %v1740, %v1742
        %v1744 = vrot.slane %v1610, 2
        %v1745 = vsel %vm864, %v1742, %v1744
        %v1746 = vrot.slane %v1611, 2
        %v1747 = vsel %vm864, %v1744, %v1746
        %v1748 = vrot.slane %v1612, 2
        %v1749 = vsel %vm864, %v1746, %v1748
        %v1750 = vrot.slane %v1613, 2
        %v1751 = vsel %vm864, %v1748, %v1750
        %v1752 = vrot.slane %v1614, 2
        %v1753 = vsel %vm864, %v1750, %v1752
        %v1754 = vrot.slane %v1615, 2
        %v1755 = vsel %vm864, %v1752, %v1754
        %v1756 = vrot.slane %v1616, 2
        %v1757 = vsel %vm864, %v1754, %v1756
        %v1758 = vrot.slane %v1617, 2
        %v1759 = vsel %vm864, %v1756, %v1758
        %v1778 = vsel %vm1384, %v1600, %v1672
        %v1779 = vsel %vm1384, %v1601, %v1674
        %v1780 = vsel %vm1384, %v1602, %v1676
        %v1781 = vsel %vm1384, %v1603, %v1678
        %v1782 = vsel %vm1384, %v1604, %v1680
        %v1783 = vsel %vm1384, %v1605, %v1682
        %v1784 = vsel %vm1384, %v1606, %v1684
        %v1785 = vsel %vm1384, %v1607, %v1686
        %v1786 = vsel %vm1384, %v1608, %v1688
        %v1787 = vsel %vm1384, %v1609, %v1690
        %v1788 = vsel %vm1384, %v1610, %v1692
        %v1789 = vsel %vm1384, %v1611, %v1694
        %v1790 = vsel %vm1384, %v1612, %v1696
        %v1791 = vsel %vm1384, %v1613, %v1698
        %v1792 = vsel %vm1384, %v1614, %v1700
        %v1793 = vsel %vm1384, %v1615, %v1702
        %v1794 = vsel %vm1384, %v1616, %v1704
        %v1795 = vsel %vm1384, %v1617, %v1706
        %v1796 = vpack.c.bf16 %v1779, %v1778
        %v1797 = vpack.c.bf16 %v1729, %v1727
        %v1798 = vpack.c.bf16 %v1781, %v1780
        %v1799 = vpack.c.bf16 %v1733, %v1731
        %v1800 = vpack.c.bf16 %v1783, %v1782
        %v1801 = vpack.c.bf16 %v1737, %v1735
        %v1802 = vpack.c.bf16 %v1785, %v1784
        %v1803 = vpack.c.bf16 %v1741, %v1739
        %v1804 = vpack.c.bf16 %v1787, %v1786
        %v1805 = vpack.c.bf16 %v1745, %v1743
        %v1806 = vpack.c.bf16 %v1789, %v1788
        %v1807 = vpack.c.bf16 %v1749, %v1747
        %v1808 = vpack.c.bf16 %v1791, %v1790
        %v1809 = vpack.c.bf16 %v1753, %v1751
        %v1810 = vpack.c.bf16 %v1793, %v1792
        %v1811 = vpack.c.bf16 %v1757, %v1755
        %v1812 = vpack.c.bf16 %v1795, %v1794
        %v1813 = vpack.c.bf16 %v1758, %v1759
        %v1814 = vld [vmem:[%s5] sm:$0xf]
        %v1815 = vld [vmem:[%s5 + $0x4] sm:$0xf]
        %v1816 = vld [vmem:[%s5 + $0x8] sm:$0xf]
        %v1817 = vld [vmem:[%s5 + $0xc] sm:$0xf]
        %v1818 = vld [vmem:[%s5 + $0x10] sm:$0xf]
        %v1819 = vld [vmem:[%s5 + $0x14] sm:$0xf]
        %v1820 = vld [vmem:[%s5 + $0x18] sm:$0xf]
        %v1821 = vld [vmem:[%s5 + $0x1c] sm:$0xf]
        %v1822 = vld [vmem:[%s5 + $0x20] sm:$0xf]
        %v1823 = vld [vmem:[%s5 + $0x24] sm:$0xf]
        %v1824 = vld [vmem:[%s5 + $0x28] sm:$0xf]
        %v1825 = vld [vmem:[%s5 + $0x2c] sm:$0xf]
        %v1826 = vld [vmem:[%s5 + $0x30] sm:$0xf]
        %v1827 = vld [vmem:[%s5 + $0x34] sm:$0xf]
        %v1828 = vld [vmem:[%s5 + $0x38] sm:$0xf]
        %v1829 = vld [vmem:[%s5 + $0x3c] sm:$0xf]
        %v1830 = vld [vmem:[%s5 + $0x40] sm:$0xf]
        %v1831 = vld [vmem:[%s5 + $0x44] sm:$0xf]
        %v1832 = vld [vmem:[%s5 + $0x48] sm:$0xf]
        %v1833 = vld [vmem:[%s5 + $0x4c] sm:$0xf]
        %v1834 = vld [vmem:[%s5 + $0x50] sm:$0xf]
        %v1835 = vld [vmem:[%s5 + $0x54] sm:$0xf]
        %v1836 = vld [vmem:[%s5 + $0x58] sm:$0xf]
        %v1837 = vld [vmem:[%s5 + $0x5c] sm:$0xf]
        %v1838 = vld [vmem:[%s6] sm:$0x1]
        %v1840 = vlaneseq
        %v1841 = vshrl.u32 %v1840, 7
        %v1842 = vsub.s32 0, %v1841
        %v1843 = vrot.slane %v1838, %v1842
        %v1869 = vunpack.c.l.b16 %v1814
        %v1870 = vunpack.c.l.b16 %v1815
        %v1871 = vunpack.c.l.b16 %v1816
        %v1872 = vunpack.c.l.b16 %v1817
        %v1873 = vunpack.c.l.b16 %v1818
        %v1874 = vunpack.c.l.b16 %v1819
        %v1875 = vunpack.c.l.b16 %v1820
        %v1876 = vunpack.c.l.b16 %v1821
        %v1877 = vunpack.c.l.b16 %v1822
        %v1878 = vunpack.c.l.b16 %v1823
        %v1879 = vunpack.c.l.b16 %v1824
        %v1880 = vunpack.c.l.b16 %v1825
        %v1881 = vunpack.c.l.b16 %v1826
        %v1882 = vunpack.c.l.b16 %v1827
        %v1883 = vunpack.c.l.b16 %v1828
        %v1884 = vunpack.c.l.b16 %v1829
        %v1885 = vunpack.c.l.b16 %v1830
        %v1886 = vunpack.c.l.b16 %v1831
        %v1887 = vunpack.c.l.b16 %v1832
        %v1888 = vunpack.c.l.b16 %v1833
        %v1889 = vunpack.c.l.b16 %v1834
        %v1890 = vunpack.c.l.b16 %v1835
        %v1891 = vunpack.c.l.b16 %v1836
        %v1892 = vunpack.c.l.b16 %v1837
        %v1893 = vpack.c.b16 %v1870, %v1869
        %v1894 = vpack.c.b16 %v1872, %v1871
        %v1895 = vpack.c.b16 %v1874, %v1873
        %v1896 = vpack.c.b16 %v1876, %v1875
        %v1897 = vpack.c.b16 %v1878, %v1877
        %v1898 = vpack.c.b16 %v1880, %v1879
        %v1899 = vpack.c.b16 %v1882, %v1881
        %v1900 = vpack.c.b16 %v1884, %v1883
        %v1901 = vpack.c.b16 %v1886, %v1885
        %v1902 = vpack.c.b16 %v1888, %v1887
        %v1903 = vpack.c.b16 %v1890, %v1889
        %v1904 = vpack.c.b16 %v1892, %v1891
        %v1918 = vsel %vm1384, %v1797, 0
        %v1921 = vsel %vm1384, %v1799, 0
        %v1924 = vsel %vm1384, %v1801, 0
        %v1927 = vsel %vm1384, %v1803, 0
        %v1930 = vsel %vm1384, %v1805, 0
        %v1933 = vsel %vm1384, %v1807, 0
        %v1936 = vsel %vm1384, %v1809, 0
        %v1939 = vsel %vm1384, %v1811, 0
        %v1942 = vsel %vm1384, %v1813, 0
        %1944 = vmatprep.subr.bf16.mxu0 0
        %1945 = vmatpush1.bf16.msra.mxu0 %v1900
        %1946 = vmatprep.subr.bf16.mxu0 0
        %1947 = vmatpush1.bf16.msra.mxu0 %v1899
        %1948 = vmatprep.subr.bf16.mxu0 0
        %1949 = vmatpush1.bf16.msra.mxu0 %v1898
        %1950 = vmatprep.subr.bf16.mxu0 0
        %1951 = vmatpush1.bf16.msra.mxu0 %v1897
        %1952 = vmatprep.subr.bf16.mxu0 0
        %1953 = vmatpush1.bf16.msra.mxu0 %v1896
        %1954 = vmatprep.subr.bf16.mxu0 0
        %1955 = vmatpush1.bf16.msra.mxu0 %v1895
        %1956 = vmatprep.subr.bf16.mxu0 0
        %1957 = vmatpush1.bf16.msra.mxu0 %v1894
        %1958 = vmatprep.subr.bf16.mxu0 0
        %1959 = vmatpush1.bf16.msra.mxu0 %v1893
        %1960 = vmatprep.subr.bf16.mxu0 0
        %1961 = vmatpush2.bf16.msra.mxu0 0
        %1962 = vmatprep.subr.bf16.mxu0 0
        %1963 = vmatpush2.bf16.msra.mxu0 0
        %1964 = vmatprep.subr.bf16.mxu0 0
        %1965 = vmatpush2.bf16.msra.mxu0 0
        %1966 = vmatprep.subr.bf16.mxu0 0
        %1967 = vmatpush2.bf16.msra.mxu0 0
        %1968 = vmatprep.subr.bf16.mxu0 0
        %1969 = vmatpush2.bf16.msra.mxu0 %v1904
        %1970 = vmatprep.subr.bf16.mxu0 0
        %1971 = vmatpush2.bf16.msra.mxu0 %v1903
        %1972 = vmatprep.subr.bf16.mxu0 0
        %1973 = vmatpush2.bf16.msra.mxu0 %v1902
        %1974 = vmatprep.subr.bf16.mxu0 0
        %1975 = vmatpush2.bf16.msra.mxu0 %v1901
        %1976 = vmatprep.mubr.bf16.mxu0 %v1918
        %1977 = vmatmul.mubr.bf16.gmra.mxu0 %v1796
        %v1978 = vpop.f32.mrf.mxu0
        %v1979 = vadd.f32 %v1843, %v1978
        %v1980 = vpop.f32.mrf.mxu0
        %v1981 = vpop.f32.mrf.mxu0
        %v1982 = vadd.f32 %v1843, %v1981
        %v1983 = vpop.f32.mrf.mxu0
        %1984 = vmatprep.mubr.bf16.mxu0 %v1921
        %1985 = vmatmul.mubr.bf16.gmra.mxu0 %v1798
        %v1986 = vpop.f32.mrf.mxu0
        %v1987 = vadd.f32 %v1843, %v1986
        %v1988 = vpop.f32.mrf.mxu0
        %v1989 = vpop.f32.mrf.mxu0
        %v1990 = vadd.f32 %v1843, %v1989
        %v1991 = vpop.f32.mrf.mxu0
        %1992 = vmatprep.mubr.bf16.mxu0 %v1924
        %1993 = vmatmul.mubr.bf16.gmra.mxu0 %v1800
        %v1994 = vpop.f32.mrf.mxu0
        %v1995 = vadd.f32 %v1843, %v1994
        %v1996 = vpop.f32.mrf.mxu0
        %v1997 = vpop.f32.mrf.mxu0
        %v1998 = vadd.f32 %v1843, %v1997
        %v1999 = vpop.f32.mrf.mxu0
        %2000 = vmatprep.mubr.bf16.mxu0 %v1927
        %2001 = vmatmul.mubr.bf16.gmra.mxu0 %v1802
        %v2002 = vpop.f32.mrf.mxu0
        %v2003 = vadd.f32 %v1843, %v2002
        %v2004 = vpop.f32.mrf.mxu0
        %v2005 = vpop.f32.mrf.mxu0
        %v2006 = vadd.f32 %v1843, %v2005
        %v2007 = vpop.f32.mrf.mxu0
        %2008 = vmatprep.mubr.bf16.mxu0 %v1930
        %2009 = vmatmul.mubr.bf16.gmra.mxu0 %v1804
        %v2010 = vpop.f32.mrf.mxu0
        %v2011 = vadd.f32 %v1843, %v2010
        %v2012 = vpop.f32.mrf.mxu0
        %v2013 = vpop.f32.mrf.mxu0
        %v2014 = vadd.f32 %v1843, %v2013
        %v2015 = vpop.f32.mrf.mxu0
        %2016 = vmatprep.mubr.bf16.mxu0 %v1933
        %2017 = vmatmul.mubr.bf16.gmra.mxu0 %v1806
        %v2018 = vpop.f32.mrf.mxu0
        %v2019 = vadd.f32 %v1843, %v2018
        %v2020 = vpop.f32.mrf.mxu0
        %v2021 = vpop.f32.mrf.mxu0
        %v2022 = vadd.f32 %v1843, %v2021
        %v2023 = vpop.f32.mrf.mxu0
        %2024 = vmatprep.mubr.bf16.mxu0 %v1936
        %2025 = vmatmul.mubr.bf16.gmra.mxu0 %v1808
        %v2026 = vpop.f32.mrf.mxu0
        %v2027 = vadd.f32 %v1843, %v2026
        %v2028 = vpop.f32.mrf.mxu0
        %v2029 = vpop.f32.mrf.mxu0
        %v2030 = vadd.f32 %v1843, %v2029
        %v2031 = vpop.f32.mrf.mxu0
        %2032 = vmatprep.mubr.bf16.mxu0 %v1939
        %2033 = vmatmul.mubr.bf16.gmra.mxu0 %v1810
        %v2034 = vpop.f32.mrf.mxu0
        %v2035 = vadd.f32 %v1843, %v2034
        %v2036 = vpop.f32.mrf.mxu0
        %v2037 = vpop.f32.mrf.mxu0
        %v2038 = vadd.f32 %v1843, %v2037
        %v2039 = vpop.f32.mrf.mxu0
        %2040 = vmatprep.mubr.bf16.mxu0 %v1942
        %2041 = vmatmul.mubr.bf16.gmra.mxu0 %v1812
        %v2042 = vpop.f32.mrf.mxu0
        %v2043 = vadd.f32 %v1843, %v2042
        %v2044 = vpop.f32.mrf.mxu0
        %v2045 = vpop.f32.mrf.mxu0
        %v2046 = vadd.f32 %v1843, %v2045
        %v2047 = vpop.f32.mrf.mxu0
        %2048 = vdwg.mxu0
        %v2049 = vld [vmem:[%s7] sm:$0xff]
        %v2050 = vld [vmem:[%s7 + $0x8] sm:$0xff]
        %v2051 = vld [vmem:[%s7 + $0x10] sm:$0xff]
        %v2052 = vld [vmem:[%s7 + $0x18] sm:$0xff]
        %v2053 = vld [vmem:[%s7 + $0x20] sm:$0xff]
        %v2054 = vld [vmem:[%s7 + $0x28] sm:$0xff]
        %v2055 = vld [vmem:[%s7 + $0x30] sm:$0xff]
        %v2056 = vld [vmem:[%s7 + $0x38] sm:$0xff]
        %v2057 = vld [vmem:[%s7 + $0x40] sm:$0xff]
        %v2058 = vld [vmem:[%s7 + $0x48] sm:$0xff]
        %v2059 = vld [vmem:[%s7 + $0x50] sm:$0xff]
        %v2060 = vld [vmem:[%s7 + $0x58] sm:$0xff]
        %v2061 = vld [vmem:[%s7 + $0x60] sm:$0xff]
        %v2062 = vld [vmem:[%s7 + $0x68] sm:$0xff]
        %v2063 = vld [vmem:[%s7 + $0x70] sm:$0xff]
        %v2064 = vld [vmem:[%s7 + $0x78] sm:$0xff]
        %v2065 = vld [vmem:[%s7 + $0x80] sm:$0xff]
        %v2066 = vld [vmem:[%s7 + $0x88] sm:$0x3]
        %v2067 = vadd.f32 %v1979, %v2049
        %v2068 = vadd.f32 %v1982, %v2050
        %v2069 = vadd.f32 %v1987, %v2051
        %v2070 = vadd.f32 %v1990, %v2052
        %v2071 = vadd.f32 %v1995, %v2053
        %v2072 = vadd.f32 %v1998, %v2054
        %v2073 = vadd.f32 %v2003, %v2055
        %v2074 = vadd.f32 %v2006, %v2056
        %v2075 = vadd.f32 %v2011, %v2057
        %v2076 = vadd.f32 %v2014, %v2058
        %v2077 = vadd.f32 %v2019, %v2059
        %v2078 = vadd.f32 %v2022, %v2060
        %v2079 = vadd.f32 %v2027, %v2061
        %v2080 = vadd.f32 %v2030, %v2062
        %v2081 = vadd.f32 %v2035, %v2063
        %v2082 = vadd.f32 %v2038, %v2064
        %v2083 = vadd.f32 %v2043, %v2065
        %v2084 = vadd.f32 %v2046, %v2066
        %v2085 = vpack.c.bf16 %v2068, %v2067
        %v2086 = vpack.c.bf16 %v2070, %v2069
        %v2087 = vpack.c.bf16 %v2072, %v2071
        %v2088 = vpack.c.bf16 %v2074, %v2073
        %v2089 = vpack.c.bf16 %v2076, %v2075
        %v2090 = vpack.c.bf16 %v2078, %v2077
        %v2091 = vpack.c.bf16 %v2080, %v2079
        %v2092 = vpack.c.bf16 %v2082, %v2081
        %v2093 = vpack.c.bf16 %v2084, %v2083
        %v2094 = vld [vmem:[%s8] sm:$0xf]
        %v2095 = vld [vmem:[%s8 + $0x4] sm:$0xf]
        %v2096 = vld [vmem:[%s8 + $0x8] sm:$0xf]
        %v2097 = vld [vmem:[%s8 + $0xc] sm:$0xf]
        %v2098 = vld [vmem:[%s9] sm:$0x1]
        %v2100 = vlaneseq
        %v2101 = vshrl.u32 %v2100, 7
        %v2102 = vsub.s32 0, %v2101
        %v2103 = vrot.slane %v2098, %v2102
        %v2109 = vunpack.c.l.b16 %v2094
        %v2110 = vunpack.c.l.b16 %v2095
        %v2111 = vunpack.c.l.b16 %v2096
        %v2112 = vunpack.c.l.b16 %v2097
        %v2113 = vpack.c.b16 %v2110, %v2109
        %v2114 = vpack.c.b16 %v2112, %v2111
        %v2118 = vsel %vm1365, %v2085, 0
        %v2121 = vsel %vm1365, %v2086, 0
        %v2124 = vsel %vm1365, %v2087, 0
        %v2127 = vsel %vm1365, %v2088, 0
        %v2130 = vsel %vm1365, %v2089, 0
        %v2133 = vsel %vm1365, %v2090, 0
        %v2136 = vsel %vm1365, %v2091, 0
        %v2139 = vsel %vm1365, %v2092, 0
        %v2142 = vsel %vm1365, %v2093, 0
        %2144 = vmatprep.subr.bf16.mxu0 0
        %2145 = vmatpush1.bf16.msra.mxu0 0
        %2146 = vmatprep.subr.bf16.mxu0 0
        %2147 = vmatpush1.bf16.msra.mxu0 0
        %2148 = vmatprep.subr.bf16.mxu0 0
        %2149 = vmatpush1.bf16.msra.mxu0 0
        %2150 = vmatprep.subr.bf16.mxu0 0
        %2151 = vmatpush1.bf16.msra.mxu0 0
        %2152 = vmatprep.subr.bf16.mxu0 0
        %2153 = vmatpush1.bf16.msra.mxu0 0
        %2154 = vmatprep.subr.bf16.mxu0 0
        %2155 = vmatpush1.bf16.msra.mxu0 0
        %2156 = vmatprep.subr.bf16.mxu0 0
        %2157 = vmatpush1.bf16.msra.mxu0 %v2114
        %2158 = vmatprep.subr.bf16.mxu0 0
        %2159 = vmatpush1.bf16.msra.mxu0 %v2113
        %2160 = vmatprep.subr.bf16.mxu0 0
        %2161 = vmatpush2.bf16.msra.mxu0 0
        %2162 = vmatprep.subr.bf16.mxu0 0
        %2163 = vmatpush2.bf16.msra.mxu0 0
        %2164 = vmatprep.subr.bf16.mxu0 0
        %2165 = vmatpush2.bf16.msra.mxu0 0
        %2166 = vmatprep.subr.bf16.mxu0 0
        %2167 = vmatpush2.bf16.msra.mxu0 0
        %2168 = vmatprep.subr.bf16.mxu0 0
        %2169 = vmatpush2.bf16.msra.mxu0 0
        %2170 = vmatprep.subr.bf16.mxu0 0
        %2171 = vmatpush2.bf16.msra.mxu0 0
        %2172 = vmatprep.subr.bf16.mxu0 0
        %2173 = vmatpush2.bf16.msra.mxu0 0
        %2174 = vmatprep.subr.bf16.mxu0 0
        %2175 = vmatpush2.bf16.msra.mxu0 0
        %2176 = vmatprep.mubr.bf16.mxu0 0
        %2177 = vmatmul.mubr.bf16.gmra.mxu0 %v2118
        %v2178 = vpop.f32.mrf.mxu0
        %v2179 = vadd.f32 %v2103, %v2178
        %v2180 = vpop.f32.mrf.mxu0
        %v2181 = vpop.f32.mrf.mxu0
        %v2182 = vadd.f32 %v2103, %v2181
        %v2183 = vpop.f32.mrf.mxu0
        %2184 = vmatprep.mubr.bf16.mxu0 0
        %2185 = vmatmul.mubr.bf16.gmra.mxu0 %v2121
        %v2186 = vpop.f32.mrf.mxu0
        %v2187 = vadd.f32 %v2103, %v2186
        %v2188 = vpop.f32.mrf.mxu0
        %v2189 = vpop.f32.mrf.mxu0
        %v2190 = vadd.f32 %v2103, %v2189
        %v2191 = vpop.f32.mrf.mxu0
        %2192 = vmatprep.mubr.bf16.mxu0 0
        %2193 = vmatmul.mubr.bf16.gmra.mxu0 %v2124
        %v2194 = vpop.f32.mrf.mxu0
        %v2195 = vadd.f32 %v2103, %v2194
        %v2196 = vpop.f32.mrf.mxu0
        %v2197 = vpop.f32.mrf.mxu0
        %v2198 = vadd.f32 %v2103, %v2197
        %v2199 = vpop.f32.mrf.mxu0
        %2200 = vmatprep.mubr.bf16.mxu0 0
        %2201 = vmatmul.mubr.bf16.gmra.mxu0 %v2127
        %v2202 = vpop.f32.mrf.mxu0
        %v2203 = vadd.f32 %v2103, %v2202
        %v2204 = vpop.f32.mrf.mxu0
        %v2205 = vpop.f32.mrf.mxu0
        %v2206 = vadd.f32 %v2103, %v2205
        %v2207 = vpop.f32.mrf.mxu0
        %2208 = vmatprep.mubr.bf16.mxu0 0
        %2209 = vmatmul.mubr.bf16.gmra.mxu0 %v2130
        %v2210 = vpop.f32.mrf.mxu0
        %v2211 = vadd.f32 %v2103, %v2210
        %v2212 = vpop.f32.mrf.mxu0
        %v2213 = vpop.f32.mrf.mxu0
        %v2214 = vadd.f32 %v2103, %v2213
        %v2215 = vpop.f32.mrf.mxu0
        %2216 = vmatprep.mubr.bf16.mxu0 0
        %2217 = vmatmul.mubr.bf16.gmra.mxu0 %v2133
        %v2218 = vpop.f32.mrf.mxu0
        %v2219 = vadd.f32 %v2103, %v2218
        %v2220 = vpop.f32.mrf.mxu0
        %v2221 = vpop.f32.mrf.mxu0
        %v2222 = vadd.f32 %v2103, %v2221
        %v2223 = vpop.f32.mrf.mxu0
        %2224 = vmatprep.mubr.bf16.mxu0 0
        %2225 = vmatmul.mubr.bf16.gmra.mxu0 %v2136
        %v2226 = vpop.f32.mrf.mxu0
        %v2227 = vadd.f32 %v2103, %v2226
        %v2228 = vpop.f32.mrf.mxu0
        %v2229 = vpop.f32.mrf.mxu0
        %v2230 = vadd.f32 %v2103, %v2229
        %v2231 = vpop.f32.mrf.mxu0
        %2232 = vmatprep.mubr.bf16.mxu0 0
        %2233 = vmatmul.mubr.bf16.gmra.mxu0 %v2139
        %v2234 = vpop.f32.mrf.mxu0
        %v2235 = vadd.f32 %v2103, %v2234
        %v2236 = vpop.f32.mrf.mxu0
        %v2237 = vpop.f32.mrf.mxu0
        %v2238 = vadd.f32 %v2103, %v2237
        %v2239 = vpop.f32.mrf.mxu0
        %2240 = vmatprep.mubr.bf16.mxu0 0
        %2241 = vmatmul.mubr.bf16.gmra.mxu0 %v2142
        %v2242 = vpop.f32.mrf.mxu0
        %v2243 = vadd.f32 %v2103, %v2242
        %v2244 = vpop.f32.mrf.mxu0
        %v2245 = vpop.f32.mrf.mxu0
        %v2246 = vadd.f32 %v2103, %v2245
        %v2247 = vpop.f32.mrf.mxu0
        %2248 = vdwg.mxu0
        %v2249 = vpack.c.bf16 %v2182, %v2179
        %v2250 = vpack.c.bf16 %v2190, %v2187
        %v2251 = vpack.c.bf16 %v2198, %v2195
        %v2252 = vpack.c.bf16 %v2206, %v2203
        %v2253 = vpack.c.bf16 %v2214, %v2211
        %v2254 = vpack.c.bf16 %v2222, %v2219
        %v2255 = vpack.c.bf16 %v2230, %v2227
        %v2256 = vpack.c.bf16 %v2238, %v2235
        %v2257 = vpack.c.bf16 %v2246, %v2243
        %2267 = vrot.lane.b32.xlu0 %v2249, 96
        %v2268 = vpop.permute.xlu0 %2267
        %2269 = vrot.lane.b32.xlu0 %v2250, 96
        %v2270 = vpop.permute.xlu0 %2269
        %2271 = vrot.lane.b32.xlu0 %v2251, 96
        %v2272 = vpop.permute.xlu0 %2271
        %2273 = vrot.lane.b32.xlu0 %v2252, 96
        %v2274 = vpop.permute.xlu0 %2273
        %2275 = vrot.lane.b32.xlu0 %v2253, 96
        %v2276 = vpop.permute.xlu0 %2275
        %2277 = vrot.lane.b32.xlu0 %v2254, 96
        %v2278 = vpop.permute.xlu0 %2277
        %2279 = vrot.lane.b32.xlu0 %v2255, 96
        %v2280 = vpop.permute.xlu0 %2279
        %2281 = vrot.lane.b32.xlu0 %v2256, 96
        %v2282 = vpop.permute.xlu0 %2281
        %2283 = vrot.lane.b32.xlu0 %v2257, 96
        %v2284 = vpop.permute.xlu0 %2283
        %v2286 = vsel %vm973, %v2249, 0
        %v2289 = vsel %vm973, %v2250, 0
        %v2292 = vsel %vm973, %v2251, 0
        %v2295 = vsel %vm973, %v2252, 0
        %v2298 = vsel %vm973, %v2253, 0
        %v2301 = vsel %vm973, %v2254, 0
        %v2304 = vsel %vm973, %v2255, 0
        %v2307 = vsel %vm973, %v2256, 0
        %v2310 = vsel %vm973, %v2257, 0
        %v2313 = vsel %vm973, %v2268, 0
        %v2316 = vsel %vm973, %v2270, 0
        %v2319 = vsel %vm973, %v2272, 0
        %v2322 = vsel %vm973, %v2274, 0
        %v2325 = vsel %vm973, %v2276, 0
        %v2328 = vsel %vm973, %v2278, 0
        %v2331 = vsel %vm973, %v2280, 0
        %v2334 = vsel %vm973, %v2282, 0
        %v2337 = vsel %vm973, %v2284, 0
        %2339 = vmatprep.subr.bf16.mxu0 0
        %2340 = vmatpush1.bf16.xpose.msra.mxu0 %v2334
        %2341 = vmatprep.subr.bf16.mxu0 0
        %2342 = vmatpush1.bf16.xpose.msra.mxu0 %v2331
        %2343 = vmatprep.subr.bf16.mxu0 0
        %2344 = vmatpush1.bf16.xpose.msra.mxu0 %v2328
        %2345 = vmatprep.subr.bf16.mxu0 0
        %2346 = vmatpush1.bf16.xpose.msra.mxu0 %v2325
        %2347 = vmatprep.subr.bf16.mxu0 0
        %2348 = vmatpush1.bf16.xpose.msra.mxu0 %v2322
        %2349 = vmatprep.subr.bf16.mxu0 0
        %2350 = vmatpush1.bf16.xpose.msra.mxu0 %v2319
        %2351 = vmatprep.subr.bf16.mxu0 0
        %2352 = vmatpush1.bf16.xpose.msra.mxu0 %v2316
        %2353 = vmatprep.subr.bf16.mxu0 0
        %2354 = vmatpush1.bf16.xpose.msra.mxu0 %v2313
        %2355 = vmatprep.subr.bf16.mxu0 0
        %2356 = vmatpush2.bf16.xpose.msra.mxu0 0
        %2357 = vmatprep.subr.bf16.mxu0 0
        %2358 = vmatpush2.bf16.xpose.msra.mxu0 0
        %2359 = vmatprep.subr.bf16.mxu0 0
        %2360 = vmatpush2.bf16.xpose.msra.mxu0 0
        %2361 = vmatprep.subr.bf16.mxu0 0
        %2362 = vmatpush2.bf16.xpose.msra.mxu0 0
        %2363 = vmatprep.subr.bf16.mxu0 0
        %2364 = vmatpush2.bf16.xpose.msra.mxu0 0
        %2365 = vmatprep.subr.bf16.mxu0 0
        %2366 = vmatpush2.bf16.xpose.msra.mxu0 0
        %2367 = vmatprep.subr.bf16.mxu0 0
        %2368 = vmatpush2.bf16.xpose.msra.mxu0 0
        %2369 = vmatprep.subr.bf16.mxu0 0
        %2370 = vmatpush2.bf16.xpose.msra.mxu0 %v2337
        %2371 = vmatprep.mubr.bf16.mxu0 0
        %2372 = vmatmul.mubr.bf16.gmra.mxu0 %v2286
        %v2373 = vpop.f32.mrf.mxu0
        %v2374 = vadd.f32 0.0, %v2373
        %v2375 = vpop.f32.mrf.mxu0
        %v2376 = vadd.f32 0.0, %v2375
        %v2377 = vpop.f32.mrf.mxu0
        %v2378 = vadd.f32 0.0, %v2377
        %v2379 = vpop.f32.mrf.mxu0
        %v2380 = vadd.f32 0.0, %v2379
        %2381 = vmatprep.mubr.bf16.mxu0 0
        %2382 = vmatmul.mubr.bf16.gmra.mxu0 %v2289
        %v2383 = vpop.f32.mrf.mxu0
        %v2384 = vadd.f32 0.0, %v2383
        %v2385 = vpop.f32.mrf.mxu0
        %v2386 = vadd.f32 0.0, %v2385
        %v2387 = vpop.f32.mrf.mxu0
        %v2388 = vadd.f32 0.0, %v2387
        %v2389 = vpop.f32.mrf.mxu0
        %v2390 = vadd.f32 0.0, %v2389
        %2391 = vmatprep.mubr.bf16.mxu0 0
        %2392 = vmatmul.mubr.bf16.gmra.mxu0 %v2292
        %v2393 = vpop.f32.mrf.mxu0
        %v2394 = vadd.f32 0.0, %v2393
        %v2395 = vpop.f32.mrf.mxu0
        %v2396 = vadd.f32 0.0, %v2395
        %v2397 = vpop.f32.mrf.mxu0
        %v2398 = vadd.f32 0.0, %v2397
        %v2399 = vpop.f32.mrf.mxu0
        %v2400 = vadd.f32 0.0, %v2399
        %2401 = vmatprep.mubr.bf16.mxu0 0
        %2402 = vmatmul.mubr.bf16.gmra.mxu0 %v2295
        %v2403 = vpop.f32.mrf.mxu0
        %v2404 = vadd.f32 0.0, %v2403
        %v2405 = vpop.f32.mrf.mxu0
        %v2406 = vadd.f32 0.0, %v2405
        %v2407 = vpop.f32.mrf.mxu0
        %v2408 = vadd.f32 0.0, %v2407
        %v2409 = vpop.f32.mrf.mxu0
        %v2410 = vadd.f32 0.0, %v2409
        %2411 = vmatprep.mubr.bf16.mxu0 0
        %2412 = vmatmul.mubr.bf16.gmra.mxu0 %v2298
        %v2413 = vpop.f32.mrf.mxu0
        %v2414 = vadd.f32 0.0, %v2413
        %v2415 = vpop.f32.mrf.mxu0
        %v2416 = vadd.f32 0.0, %v2415
        %v2417 = vpop.f32.mrf.mxu0
        %v2418 = vadd.f32 0.0, %v2417
        %v2419 = vpop.f32.mrf.mxu0
        %v2420 = vadd.f32 0.0, %v2419
        %2421 = vmatprep.mubr.bf16.mxu0 0
        %2422 = vmatmul.mubr.bf16.gmra.mxu0 %v2301
        %v2423 = vpop.f32.mrf.mxu0
        %v2424 = vadd.f32 0.0, %v2423
        %v2425 = vpop.f32.mrf.mxu0
        %v2426 = vadd.f32 0.0, %v2425
        %v2427 = vpop.f32.mrf.mxu0
        %v2428 = vadd.f32 0.0, %v2427
        %v2429 = vpop.f32.mrf.mxu0
        %v2430 = vadd.f32 0.0, %v2429
        %2431 = vmatprep.mubr.bf16.mxu0 0
        %2432 = vmatmul.mubr.bf16.gmra.mxu0 %v2304
        %v2433 = vpop.f32.mrf.mxu0
        %v2434 = vadd.f32 0.0, %v2433
        %v2435 = vpop.f32.mrf.mxu0
        %v2436 = vadd.f32 0.0, %v2435
        %v2437 = vpop.f32.mrf.mxu0
        %v2438 = vadd.f32 0.0, %v2437
        %v2439 = vpop.f32.mrf.mxu0
        %v2440 = vadd.f32 0.0, %v2439
        %2441 = vmatprep.mubr.bf16.mxu0 0
        %2442 = vmatmul.mubr.bf16.gmra.mxu0 %v2307
        %v2443 = vpop.f32.mrf.mxu0
        %v2444 = vadd.f32 0.0, %v2443
        %v2445 = vpop.f32.mrf.mxu0
        %v2446 = vadd.f32 0.0, %v2445
        %v2447 = vpop.f32.mrf.mxu0
        %v2448 = vadd.f32 0.0, %v2447
        %v2449 = vpop.f32.mrf.mxu0
        %v2450 = vadd.f32 0.0, %v2449
        %2451 = vmatprep.mubr.bf16.mxu0 0
        %2452 = vmatmul.mubr.bf16.gmra.mxu0 %v2310
        %v2453 = vpop.f32.mrf.mxu0
        %v2454 = vadd.f32 0.0, %v2453
        %v2455 = vpop.f32.mrf.mxu0
        %v2456 = vadd.f32 0.0, %v2455
        %v2457 = vpop.f32.mrf.mxu0
        %v2458 = vadd.f32 0.0, %v2457
        %v2459 = vpop.f32.mrf.mxu0
        %v2460 = vadd.f32 0.0, %v2459
        %2461 = vdwg.mxu0
        %vm2462 = vcmask 80896
        %v2463 = vsel %vm2462, %v2376, -inf
        %v2464 = vmax.f32 %v2374, %v2463
        %2465 = vmax.xlane.f32.xlu0 %v2464
        %v2466 = vpop.xlane.xlu0 %2465
        %v2467 = vsel %vm2462, %v2380, -inf
        %v2468 = vmax.f32 %v2378, %v2467
        %2469 = vmax.xlane.f32.xlu0 %v2468
        %v2470 = vpop.xlane.xlu0 %2469
        %v2471 = vsel %vm2462, %v2386, -inf
        %v2472 = vmax.f32 %v2384, %v2471
        %2473 = vmax.xlane.f32.xlu0 %v2472
        %v2474 = vpop.xlane.xlu0 %2473
        %v2475 = vsel %vm2462, %v2390, -inf
        %v2476 = vmax.f32 %v2388, %v2475
        %2477 = vmax.xlane.f32.xlu0 %v2476
        %v2478 = vpop.xlane.xlu0 %2477
        %v2479 = vsel %vm2462, %v2396, -inf
        %v2480 = vmax.f32 %v2394, %v2479
        %2481 = vmax.xlane.f32.xlu0 %v2480
        %v2482 = vpop.xlane.xlu0 %2481
        %v2483 = vsel %vm2462, %v2400, -inf
        %v2484 = vmax.f32 %v2398, %v2483
        %2485 = vmax.xlane.f32.xlu0 %v2484
        %v2486 = vpop.xlane.xlu0 %2485
        %v2487 = vsel %vm2462, %v2406, -inf
        %v2488 = vmax.f32 %v2404, %v2487
        %2489 = vmax.xlane.f32.xlu0 %v2488
        %v2490 = vpop.xlane.xlu0 %2489
        %v2491 = vsel %vm2462, %v2410, -inf
        %v2492 = vmax.f32 %v2408, %v2491
        %2493 = vmax.xlane.f32.xlu0 %v2492
        %v2494 = vpop.xlane.xlu0 %2493
        %v2495 = vsel %vm2462, %v2416, -inf
        %v2496 = vmax.f32 %v2414, %v2495
        %2497 = vmax.xlane.f32.xlu0 %v2496
        %v2498 = vpop.xlane.xlu0 %2497
        %v2499 = vsel %vm2462, %v2420, -inf
        %v2500 = vmax.f32 %v2418, %v2499
        %2501 = vmax.xlane.f32.xlu0 %v2500
        %v2502 = vpop.xlane.xlu0 %2501
        %v2503 = vsel %vm2462, %v2426, -inf
        %v2504 = vmax.f32 %v2424, %v2503
        %2505 = vmax.xlane.f32.xlu0 %v2504
        %v2506 = vpop.xlane.xlu0 %2505
        %v2507 = vsel %vm2462, %v2430, -inf
        %v2508 = vmax.f32 %v2428, %v2507
        %2509 = vmax.xlane.f32.xlu0 %v2508
        %v2510 = vpop.xlane.xlu0 %2509
        %v2511 = vsel %vm2462, %v2436, -inf
        %v2512 = vmax.f32 %v2434, %v2511
        %2513 = vmax.xlane.f32.xlu0 %v2512
        %v2514 = vpop.xlane.xlu0 %2513
        %v2515 = vsel %vm2462, %v2440, -inf
        %v2516 = vmax.f32 %v2438, %v2515
        %2517 = vmax.xlane.f32.xlu0 %v2516
        %v2518 = vpop.xlane.xlu0 %2517
        %v2519 = vsel %vm2462, %v2446, -inf
        %v2520 = vmax.f32 %v2444, %v2519
        %2521 = vmax.xlane.f32.xlu0 %v2520
        %v2522 = vpop.xlane.xlu0 %2521
        %v2523 = vsel %vm2462, %v2450, -inf
        %v2524 = vmax.f32 %v2448, %v2523
        %2525 = vmax.xlane.f32.xlu0 %v2524
        %v2526 = vpop.xlane.xlu0 %2525
        %v2527 = vsel %vm2462, %v2456, -inf
        %v2528 = vmax.f32 %v2454, %v2527
        %2529 = vmax.xlane.f32.xlu0 %v2528
        %v2530 = vpop.xlane.xlu0 %2529
        %vm2531 = vcmask 1041408
        %v2532 = vsel %vm2531, %v2458, -inf
        %vm2533 = vcmask 74752
        %v2534 = vsel %vm2533, %v2460, -inf
        %v2535 = vmax.f32 %v2532, %v2534
        %2536 = vmax.xlane.f32.xlu0 %v2535
        %v2537 = vpop.xlane.xlu0 %2536
        %v2538 = vsub.f32 %v2374, %v2466
        %v2539 = vsub.f32 %v2376, %v2466
        %v2540 = vsub.f32 %v2378, %v2470
        %v2541 = vsub.f32 %v2380, %v2470
        %v2542 = vsub.f32 %v2384, %v2474
        %v2543 = vsub.f32 %v2386, %v2474
        %v2544 = vsub.f32 %v2388, %v2478
        %v2545 = vsub.f32 %v2390, %v2478
        %v2546 = vsub.f32 %v2394, %v2482
        %v2547 = vsub.f32 %v2396, %v2482
        %v2548 = vsub.f32 %v2398, %v2486
        %v2549 = vsub.f32 %v2400, %v2486
        %v2550 = vsub.f32 %v2404, %v2490
        %v2551 = vsub.f32 %v2406, %v2490
        %v2552 = vsub.f32 %v2408, %v2494
        %v2553 = vsub.f32 %v2410, %v2494
        %v2554 = vsub.f32 %v2414, %v2498
        %v2555 = vsub.f32 %v2416, %v2498
        %v2556 = vsub.f32 %v2418, %v2502
        %v2557 = vsub.f32 %v2420, %v2502
        %v2558 = vsub.f32 %v2424, %v2506
        %v2559 = vsub.f32 %v2426, %v2506
        %v2560 = vsub.f32 %v2428, %v2510
        %v2561 = vsub.f32 %v2430, %v2510
        %v2562 = vsub.f32 %v2434, %v2514
        %v2563 = vsub.f32 %v2436, %v2514
        %v2564 = vsub.f32 %v2438, %v2518
        %v2565 = vsub.f32 %v2440, %v2518
        %v2566 = vsub.f32 %v2444, %v2522
        %v2567 = vsub.f32 %v2446, %v2522
        %v2568 = vsub.f32 %v2448, %v2526
        %v2569 = vsub.f32 %v2450, %v2526
        %v2570 = vsub.f32 %v2454, %v2530
        %v2571 = vsub.f32 %v2456, %v2530
        %v2572 = vsub.f32 %v2458, %v2537
        %v2573 = vsub.f32 %v2460, %v2537
        %v2574 = vmul.f32 %v2538, 1.442695
        %v2575 = vpow.pop %v2574
        %v2576 = vmul.f32 %v2539, 1.442695
        %v2577 = vpow.pop %v2576
        %v2578 = vmul.f32 %v2540, 1.442695
        %v2579 = vpow.pop %v2578
        %v2580 = vmul.f32 %v2541, 1.442695
        %v2581 = vpow.pop %v2580
        %v2582 = vmul.f32 %v2542, 1.442695
        %v2583 = vpow.pop %v2582
        %v2584 = vmul.f32 %v2543, 1.442695
        %v2585 = vpow.pop %v2584
        %v2586 = vmul.f32 %v2544, 1.442695
        %v2587 = vpow.pop %v2586
        %v2588 = vmul.f32 %v2545, 1.442695
        %v2589 = vpow.pop %v2588
        %v2590 = vmul.f32 %v2546, 1.442695
        %v2591 = vpow.pop %v2590
        %v2592 = vmul.f32 %v2547, 1.442695
        %v2593 = vpow.pop %v2592
        %v2594 = vmul.f32 %v2548, 1.442695
        %v2595 = vpow.pop %v2594
        %v2596 = vmul.f32 %v2549, 1.442695
        %v2597 = vpow.pop %v2596
        %v2598 = vmul.f32 %v2550, 1.442695
        %v2599 = vpow.pop %v2598
        %v2600 = vmul.f32 %v2551, 1.442695
        %v2601 = vpow.pop %v2600
        %v2602 = vmul.f32 %v2552, 1.442695
        %v2603 = vpow.pop %v2602
        %v2604 = vmul.f32 %v2553, 1.442695
        %v2605 = vpow.pop %v2604
        %v2606 = vmul.f32 %v2554, 1.442695
        %v2607 = vpow.pop %v2606
        %v2608 = vmul.f32 %v2555, 1.442695
        %v2609 = vpow.pop %v2608
        %v2610 = vmul.f32 %v2556, 1.442695
        %v2611 = vpow.pop %v2610
        %v2612 = vmul.f32 %v2557, 1.442695
        %v2613 = vpow.pop %v2612
        %v2614 = vmul.f32 %v2558, 1.442695
        %v2615 = vpow.pop %v2614
        %v2616 = vmul.f32 %v2559, 1.442695
        %v2617 = vpow.pop %v2616
        %v2618 = vmul.f32 %v2560, 1.442695
        %v2619 = vpow.pop %v2618
        %v2620 = vmul.f32 %v2561, 1.442695
        %v2621 = vpow.pop %v2620
        %v2622 = vmul.f32 %v2562, 1.442695
        %v2623 = vpow.pop %v2622
        %v2624 = vmul.f32 %v2563, 1.442695
        %v2625 = vpow.pop %v2624
        %v2626 = vmul.f32 %v2564, 1.442695
        %v2627 = vpow.pop %v2626
        %v2628 = vmul.f32 %v2565, 1.442695
        %v2629 = vpow.pop %v2628
        %v2630 = vmul.f32 %v2566, 1.442695
        %v2631 = vpow.pop %v2630
        %v2632 = vmul.f32 %v2567, 1.442695
        %v2633 = vpow.pop %v2632
        %v2634 = vmul.f32 %v2568, 1.442695
        %v2635 = vpow.pop %v2634
        %v2636 = vmul.f32 %v2569, 1.442695
        %v2637 = vpow.pop %v2636
        %v2638 = vmul.f32 %v2570, 1.442695
        %v2639 = vpow.pop %v2638
        %v2640 = vmul.f32 %v2571, 1.442695
        %v2641 = vpow.pop %v2640
        %v2642 = vmul.f32 %v2572, 1.442695
        %v2643 = vpow.pop %v2642
        %v2644 = vmul.f32 %v2573, 1.442695
        %v2645 = vpow.pop %v2644
        %v2646 = vsel %vm2462, %v2577, 0.0
        %v2647 = vadd.f32 %v2575, %v2646
        %2648 = vadd.xlane.f32.xlu0 %v2647
        %v2649 = vpop.xlane.xlu0 %2648
        %v2650 = vsel %vm2462, %v2581, 0.0
        %v2651 = vadd.f32 %v2579, %v2650
        %2652 = vadd.xlane.f32.xlu0 %v2651
        %v2653 = vpop.xlane.xlu0 %2652
        %v2654 = vsel %vm2462, %v2585, 0.0
        %v2655 = vadd.f32 %v2583, %v2654
        %2656 = vadd.xlane.f32.xlu0 %v2655
        %v2657 = vpop.xlane.xlu0 %2656
        %v2658 = vsel %vm2462, %v2589, 0.0
        %v2659 = vadd.f32 %v2587, %v2658
        %2660 = vadd.xlane.f32.xlu0 %v2659
        %v2661 = vpop.xlane.xlu0 %2660
        %v2662 = vsel %vm2462, %v2593, 0.0
        %v2663 = vadd.f32 %v2591, %v2662
        %2664 = vadd.xlane.f32.xlu0 %v2663
        %v2665 = vpop.xlane.xlu0 %2664
        %v2666 = vsel %vm2462, %v2597, 0.0
        %v2667 = vadd.f32 %v2595, %v2666
        %2668 = vadd.xlane.f32.xlu0 %v2667
        %v2669 = vpop.xlane.xlu0 %2668
        %v2670 = vsel %vm2462, %v2601, 0.0
        %v2671 = vadd.f32 %v2599, %v2670
        %2672 = vadd.xlane.f32.xlu0 %v2671
        %v2673 = vpop.xlane.xlu0 %2672
        %v2674 = vsel %vm2462, %v2605, 0.0
        %v2675 = vadd.f32 %v2603, %v2674
        %2676 = vadd.xlane.f32.xlu0 %v2675
        %v2677 = vpop.xlane.xlu0 %2676
        %v2678 = vsel %vm2462, %v2609, 0.0
        %v2679 = vadd.f32 %v2607, %v2678
        %2680 = vadd.xlane.f32.xlu0 %v2679
        %v2681 = vpop.xlane.xlu0 %2680
        %v2682 = vsel %vm2462, %v2613, 0.0
        %v2683 = vadd.f32 %v2611, %v2682
        %2684 = vadd.xlane.f32.xlu0 %v2683
        %v2685 = vpop.xlane.xlu0 %2684
        %v2686 = vsel %vm2462, %v2617, 0.0
        %v2687 = vadd.f32 %v2615, %v2686
        %2688 = vadd.xlane.f32.xlu0 %v2687
        %v2689 = vpop.xlane.xlu0 %2688
        %v2690 = vsel %vm2462, %v2621, 0.0
        %v2691 = vadd.f32 %v2619, %v2690
        %2692 = vadd.xlane.f32.xlu0 %v2691
        %v2693 = vpop.xlane.xlu0 %2692
        %v2694 = vsel %vm2462, %v2625, 0.0
        %v2695 = vadd.f32 %v2623, %v2694
        %2696 = vadd.xlane.f32.xlu0 %v2695
        %v2697 = vpop.xlane.xlu0 %2696
        %v2698 = vsel %vm2462, %v2629, 0.0
        %v2699 = vadd.f32 %v2627, %v2698
        %2700 = vadd.xlane.f32.xlu0 %v2699
        %v2701 = vpop.xlane.xlu0 %2700
        %v2702 = vsel %vm2462, %v2633, 0.0
        %v2703 = vadd.f32 %v2631, %v2702
        %2704 = vadd.xlane.f32.xlu0 %v2703
        %v2705 = vpop.xlane.xlu0 %2704
        %v2706 = vsel %vm2462, %v2637, 0.0
        %v2707 = vadd.f32 %v2635, %v2706
        %2708 = vadd.xlane.f32.xlu0 %v2707
        %v2709 = vpop.xlane.xlu0 %2708
        %v2710 = vsel %vm2462, %v2641, 0.0
        %v2711 = vadd.f32 %v2639, %v2710
        %2712 = vadd.xlane.f32.xlu0 %v2711
        %v2713 = vpop.xlane.xlu0 %2712
        %v2714 = vsel %vm2531, %v2643, 0.0
        %v2715 = vsel %vm2533, %v2645, 0.0
        %v2716 = vadd.f32 %v2714, %v2715
        %2717 = vadd.xlane.f32.xlu0 %v2716
        %v2718 = vpop.xlane.xlu0 %2717
        %v2719 = vpack.c.bf16 %v2579, %v2575
        %v2720 = vpack.c.bf16 %v2581, %v2577
        %v2721 = vpack.c.bf16 %v2587, %v2583
        %v2722 = vpack.c.bf16 %v2589, %v2585
        %v2723 = vpack.c.bf16 %v2595, %v2591
        %v2724 = vpack.c.bf16 %v2597, %v2593
        %v2725 = vpack.c.bf16 %v2603, %v2599
        %v2726 = vpack.c.bf16 %v2605, %v2601
        %v2727 = vpack.c.bf16 %v2611, %v2607
        %v2728 = vpack.c.bf16 %v2613, %v2609
        %v2729 = vpack.c.bf16 %v2619, %v2615
        %v2730 = vpack.c.bf16 %v2621, %v2617
        %v2731 = vpack.c.bf16 %v2627, %v2623
        %v2732 = vpack.c.bf16 %v2629, %v2625
        %v2733 = vpack.c.bf16 %v2635, %v2631
        %v2734 = vpack.c.bf16 %v2637, %v2633
        %v2735 = vpack.c.bf16 %v2643, %v2639
        %v2736 = vpack.c.bf16 %v2645, %v2641
        %2737 = vrot.lane.b32.xlu0 %v2249, 64
        %v2738 = vpop.permute.xlu0 %2737
        %2739 = vrot.lane.b32.xlu0 %v2250, 64
        %v2740 = vpop.permute.xlu0 %2739
        %2741 = vrot.lane.b32.xlu0 %v2251, 64
        %v2742 = vpop.permute.xlu0 %2741
        %2743 = vrot.lane.b32.xlu0 %v2252, 64
        %v2744 = vpop.permute.xlu0 %2743
        %2745 = vrot.lane.b32.xlu0 %v2253, 64
        %v2746 = vpop.permute.xlu0 %2745
        %2747 = vrot.lane.b32.xlu0 %v2254, 64
        %v2748 = vpop.permute.xlu0 %2747
        %2749 = vrot.lane.b32.xlu0 %v2255, 64
        %v2750 = vpop.permute.xlu0 %2749
        %2751 = vrot.lane.b32.xlu0 %v2256, 64
        %v2752 = vpop.permute.xlu0 %2751
        %2753 = vrot.lane.b32.xlu0 %v2257, 64
        %v2754 = vpop.permute.xlu0 %2753
        %v2764 = vsel %vm2462, %v2720, 0
        %v2767 = vsel %vm2462, %v2722, 0
        %v2770 = vsel %vm2462, %v2724, 0
        %v2773 = vsel %vm2462, %v2726, 0
        %v2776 = vsel %vm2462, %v2728, 0
        %v2779 = vsel %vm2462, %v2730, 0
        %v2782 = vsel %vm2462, %v2732, 0
        %v2785 = vsel %vm2462, %v2734, 0
        %v2788 = vsel %vm2462, %v2736, 0
        %vm2790 = vcmask 1044480
        %v2792 = vsel %vm2790, %v2754, 0
        %2794 = vmatprep.subr.bf16.mxu0 0
        %2795 = vmatpush1.bf16.msra.mxu0 %v2752
        %2796 = vmatprep.subr.bf16.mxu0 0
        %2797 = vmatpush1.bf16.msra.mxu0 %v2750
        %2798 = vmatprep.subr.bf16.mxu0 0
        %2799 = vmatpush1.bf16.msra.mxu0 %v2748
        %2800 = vmatprep.subr.bf16.mxu0 0
        %2801 = vmatpush1.bf16.msra.mxu0 %v2746
        %2802 = vmatprep.subr.bf16.mxu0 0
        %2803 = vmatpush1.bf16.msra.mxu0 %v2744
        %2804 = vmatprep.subr.bf16.mxu0 0
        %2805 = vmatpush1.bf16.msra.mxu0 %v2742
        %2806 = vmatprep.subr.bf16.mxu0 0
        %2807 = vmatpush1.bf16.msra.mxu0 %v2740
        %2808 = vmatprep.subr.bf16.mxu0 0
        %2809 = vmatpush1.bf16.msra.mxu0 %v2738
        %2810 = vmatprep.subr.bf16.mxu0 0
        %2811 = vmatpush2.bf16.msra.mxu0 0
        %2812 = vmatprep.subr.bf16.mxu0 0
        %2813 = vmatpush2.bf16.msra.mxu0 0
        %2814 = vmatprep.subr.bf16.mxu0 0
        %2815 = vmatpush2.bf16.msra.mxu0 0
        %2816 = vmatprep.subr.bf16.mxu0 0
        %2817 = vmatpush2.bf16.msra.mxu0 0
        %2818 = vmatprep.subr.bf16.mxu0 0
        %2819 = vmatpush2.bf16.msra.mxu0 0
        %2820 = vmatprep.subr.bf16.mxu0 0
        %2821 = vmatpush2.bf16.msra.mxu0 0
        %2822 = vmatprep.subr.bf16.mxu0 0
        %2823 = vmatpush2.bf16.msra.mxu0 0
        %2824 = vmatprep.subr.bf16.mxu0 0
        %2825 = vmatpush2.bf16.msra.mxu0 %v2792
        %2826 = vmatprep.mubr.bf16.mxu0 %v2764
        %2827 = vmatmul.mubr.bf16.gmra.mxu0 %v2719
        %v2828 = vpop.f32.mrf.mxu0
        %v2829 = vadd.f32 0.0, %v2828
        %v2830 = vpop.f32.mrf.mxu0
        %v2831 = vpop.f32.mrf.mxu0
        %v2832 = vadd.f32 0.0, %v2831
        %v2833 = vpop.f32.mrf.mxu0
        %2834 = vmatprep.mubr.bf16.mxu0 %v2767
        %2835 = vmatmul.mubr.bf16.gmra.mxu0 %v2721
        %v2836 = vpop.f32.mrf.mxu0
        %v2837 = vadd.f32 0.0, %v2836
        %v2838 = vpop.f32.mrf.mxu0
        %v2839 = vpop.f32.mrf.mxu0
        %v2840 = vadd.f32 0.0, %v2839
        %v2841 = vpop.f32.mrf.mxu0
        %2842 = vmatprep.mubr.bf16.mxu0 %v2770
        %2843 = vmatmul.mubr.bf16.gmra.mxu0 %v2723
        %v2844 = vpop.f32.mrf.mxu0
        %v2845 = vadd.f32 0.0, %v2844
        %v2846 = vpop.f32.mrf.mxu0
        %v2847 = vpop.f32.mrf.mxu0
        %v2848 = vadd.f32 0.0, %v2847
        %v2849 = vpop.f32.mrf.mxu0
        %2850 = vmatprep.mubr.bf16.mxu0 %v2773
        %2851 = vmatmul.mubr.bf16.gmra.mxu0 %v2725
        %v2852 = vpop.f32.mrf.mxu0
        %v2853 = vadd.f32 0.0, %v2852
        %v2854 = vpop.f32.mrf.mxu0
        %v2855 = vpop.f32.mrf.mxu0
        %v2856 = vadd.f32 0.0, %v2855
        %v2857 = vpop.f32.mrf.mxu0
        %2858 = vmatprep.mubr.bf16.mxu0 %v2776
        %2859 = vmatmul.mubr.bf16.gmra.mxu0 %v2727
        %v2860 = vpop.f32.mrf.mxu0
        %v2861 = vadd.f32 0.0, %v2860
        %v2862 = vpop.f32.mrf.mxu0
        %v2863 = vpop.f32.mrf.mxu0
        %v2864 = vadd.f32 0.0, %v2863
        %v2865 = vpop.f32.mrf.mxu0
        %2866 = vmatprep.mubr.bf16.mxu0 %v2779
        %2867 = vmatmul.mubr.bf16.gmra.mxu0 %v2729
        %v2868 = vpop.f32.mrf.mxu0
        %v2869 = vadd.f32 0.0, %v2868
        %v2870 = vpop.f32.mrf.mxu0
        %v2871 = vpop.f32.mrf.mxu0
        %v2872 = vadd.f32 0.0, %v2871
        %v2873 = vpop.f32.mrf.mxu0
        %2874 = vmatprep.mubr.bf16.mxu0 %v2782
        %2875 = vmatmul.mubr.bf16.gmra.mxu0 %v2731
        %v2876 = vpop.f32.mrf.mxu0
        %v2877 = vadd.f32 0.0, %v2876
        %v2878 = vpop.f32.mrf.mxu0
        %v2879 = vpop.f32.mrf.mxu0
        %v2880 = vadd.f32 0.0, %v2879
        %v2881 = vpop.f32.mrf.mxu0
        %2882 = vmatprep.mubr.bf16.mxu0 %v2785
        %2883 = vmatmul.mubr.bf16.gmra.mxu0 %v2733
        %v2884 = vpop.f32.mrf.mxu0
        %v2885 = vadd.f32 0.0, %v2884
        %v2886 = vpop.f32.mrf.mxu0
        %v2887 = vpop.f32.mrf.mxu0
        %v2888 = vadd.f32 0.0, %v2887
        %v2889 = vpop.f32.mrf.mxu0
        %2890 = vmatprep.mubr.bf16.mxu0 %v2788
        %2891 = vmatmul.mubr.bf16.gmra.mxu0 %v2735
        %v2892 = vpop.f32.mrf.mxu0
        %v2893 = vadd.f32 0.0, %v2892
        %v2894 = vpop.f32.mrf.mxu0
        %v2895 = vpop.f32.mrf.mxu0
        %v2896 = vadd.f32 0.0, %v2895
        %v2897 = vpop.f32.mrf.mxu0
        %2898 = vdwg.mxu0
        %v2899 = vrcp.pop %v2649
        %v2900 = vmul.f32 1.0, %v2899
        %v2901 = vrcp.pop %v2653
        %v2902 = vmul.f32 1.0, %v2901
        %v2903 = vrcp.pop %v2657
        %v2904 = vmul.f32 1.0, %v2903
        %v2905 = vrcp.pop %v2661
        %v2906 = vmul.f32 1.0, %v2905
        %v2907 = vrcp.pop %v2665
        %v2908 = vmul.f32 1.0, %v2907
        %v2909 = vrcp.pop %v2669
        %v2910 = vmul.f32 1.0, %v2909
        %v2911 = vrcp.pop %v2673
        %v2912 = vmul.f32 1.0, %v2911
        %v2913 = vrcp.pop %v2677
        %v2914 = vmul.f32 1.0, %v2913
        %v2915 = vrcp.pop %v2681
        %v2916 = vmul.f32 1.0, %v2915
        %v2917 = vrcp.pop %v2685
        %v2918 = vmul.f32 1.0, %v2917
        %v2919 = vrcp.pop %v2689
        %v2920 = vmul.f32 1.0, %v2919
        %v2921 = vrcp.pop %v2693
        %v2922 = vmul.f32 1.0, %v2921
        %v2923 = vrcp.pop %v2697
        %v2924 = vmul.f32 1.0, %v2923
        %v2925 = vrcp.pop %v2701
        %v2926 = vmul.f32 1.0, %v2925
        %v2927 = vrcp.pop %v2705
        %v2928 = vmul.f32 1.0, %v2927
        %v2929 = vrcp.pop %v2709
        %v2930 = vmul.f32 1.0, %v2929
        %v2931 = vrcp.pop %v2713
        %v2932 = vmul.f32 1.0, %v2931
        %v2933 = vrcp.pop %v2718
        %v2934 = vmul.f32 1.0, %v2933
        %v2935 = vmul.f32 %v2829, %v2900
        %v2936 = vmul.f32 %v2832, %v2902
        %v2937 = vmul.f32 %v2837, %v2904
        %v2938 = vmul.f32 %v2840, %v2906
        %v2939 = vmul.f32 %v2845, %v2908
        %v2940 = vmul.f32 %v2848, %v2910
        %v2941 = vmul.f32 %v2853, %v2912
        %v2942 = vmul.f32 %v2856, %v2914
        %v2943 = vmul.f32 %v2861, %v2916
        %v2944 = vmul.f32 %v2864, %v2918
        %v2945 = vmul.f32 %v2869, %v2920
        %v2946 = vmul.f32 %v2872, %v2922
        %v2947 = vmul.f32 %v2877, %v2924
        %v2948 = vmul.f32 %v2880, %v2926
        %v2949 = vmul.f32 %v2885, %v2928
        %v2950 = vmul.f32 %v2888, %v2930
        %v2951 = vmul.f32 %v2893, %v2932
        %v2952 = vmul.f32 %v2896, %v2934
        %2953 = vrot.lane.b32.xlu0 %v2249, 120
        %v2954 = vpop.permute.xlu0 %2953
        %2955 = vrot.lane.b32.xlu0 %v2250, 120
        %v2956 = vpop.permute.xlu0 %2955
        %2957 = vrot.lane.b32.xlu0 %v2251, 120
        %v2958 = vpop.permute.xlu0 %2957
        %2959 = vrot.lane.b32.xlu0 %v2252, 120
        %v2960 = vpop.permute.xlu0 %2959
        %2961 = vrot.lane.b32.xlu0 %v2253, 120
        %v2962 = vpop.permute.xlu0 %2961
        %2963 = vrot.lane.b32.xlu0 %v2254, 120
        %v2964 = vpop.permute.xlu0 %2963
        %2965 = vrot.lane.b32.xlu0 %v2255, 120
        %v2966 = vpop.permute.xlu0 %2965
        %2967 = vrot.lane.b32.xlu0 %v2256, 120
        %v2968 = vpop.permute.xlu0 %2967
        %2969 = vrot.lane.b32.xlu0 %v2257, 120
        %v2970 = vpop.permute.xlu0 %2969
        %2971 = vrot.lane.b32.xlu0 %v2249, 88
        %v2972 = vpop.permute.xlu0 %2971
        %2973 = vrot.lane.b32.xlu0 %v2250, 88
        %v2974 = vpop.permute.xlu0 %2973
        %2975 = vrot.lane.b32.xlu0 %v2251, 88
        %v2976 = vpop.permute.xlu0 %2975
        %2977 = vrot.lane.b32.xlu0 %v2252, 88
        %v2978 = vpop.permute.xlu0 %2977
        %2979 = vrot.lane.b32.xlu0 %v2253, 88
        %v2980 = vpop.permute.xlu0 %2979
        %2981 = vrot.lane.b32.xlu0 %v2254, 88
        %v2982 = vpop.permute.xlu0 %2981
        %2983 = vrot.lane.b32.xlu0 %v2255, 88
        %v2984 = vpop.permute.xlu0 %2983
        %2985 = vrot.lane.b32.xlu0 %v2256, 88
        %v2986 = vpop.permute.xlu0 %2985
        %2987 = vrot.lane.b32.xlu0 %v2257, 88
        %v2988 = vpop.permute.xlu0 %2987
        %v2990 = vsel %vm973, %v2954, 0
        %v2993 = vsel %vm973, %v2956, 0
        %v2996 = vsel %vm973, %v2958, 0
        %v2999 = vsel %vm973, %v2960, 0
        %v3002 = vsel %vm973, %v2962, 0
        %v3005 = vsel %vm973, %v2964, 0
        %v3008 = vsel %vm973, %v2966, 0
        %v3011 = vsel %vm973, %v2968, 0
        %v3014 = vsel %vm973, %v2970, 0
        %v3017 = vsel %vm973, %v2972, 0
        %v3020 = vsel %vm973, %v2974, 0
        %v3023 = vsel %vm973, %v2976, 0
        %v3026 = vsel %vm973, %v2978, 0
        %v3029 = vsel %vm973, %v2980, 0
        %v3032 = vsel %vm973, %v2982, 0
        %v3035 = vsel %vm973, %v2984, 0
        %v3038 = vsel %vm973, %v2986, 0
        %v3041 = vsel %vm973, %v2988, 0
        %3043 = vmatprep.subr.bf16.mxu0 0
        %3044 = vmatpush1.bf16.xpose.msra.mxu0 %v3038
        %3045 = vmatprep.subr.bf16.mxu0 0
        %3046 = vmatpush1.bf16.xpose.msra.mxu0 %v3035
        %3047 = vmatprep.subr.bf16.mxu0 0
        %3048 = vmatpush1.bf16.xpose.msra.mxu0 %v3032
        %3049 = vmatprep.subr.bf16.mxu0 0
        %3050 = vmatpush1.bf16.xpose.msra.mxu0 %v3029
        %3051 = vmatprep.subr.bf16.mxu0 0
        %3052 = vmatpush1.bf16.xpose.msra.mxu0 %v3026
        %3053 = vmatprep.subr.bf16.mxu0 0
        %3054 = vmatpush1.bf16.xpose.msra.mxu0 %v3023
        %3055 = vmatprep.subr.bf16.mxu0 0
        %3056 = vmatpush1.bf16.xpose.msra.mxu0 %v3020
        %3057 = vmatprep.subr.bf16.mxu0 0
        %3058 = vmatpush1.bf16.xpose.msra.mxu0 %v3017
        %3059 = vmatprep.subr.bf16.mxu0 0
        %3060 = vmatpush2.bf16.xpose.msra.mxu0 0
        %3061 = vmatprep.subr.bf16.mxu0 0
        %3062 = vmatpush2.bf16.xpose.msra.mxu0 0
        %3063 = vmatprep.subr.bf16.mxu0 0
        %3064 = vmatpush2.bf16.xpose.msra.mxu0 0
        %3065 = vmatprep.subr.bf16.mxu0 0
        %3066 = vmatpush2.bf16.xpose.msra.mxu0 0
        %3067 = vmatprep.subr.bf16.mxu0 0
        %3068 = vmatpush2.bf16.xpose.msra.mxu0 0
        %3069 = vmatprep.subr.bf16.mxu0 0
        %3070 = vmatpush2.bf16.xpose.msra.mxu0 0
        %3071 = vmatprep.subr.bf16.mxu0 0
        %3072 = vmatpush2.bf16.xpose.msra.mxu0 0
        %3073 = vmatprep.subr.bf16.mxu0 0
        %3074 = vmatpush2.bf16.xpose.msra.mxu0 %v3041
        %3075 = vmatprep.mubr.bf16.mxu0 0
        %3076 = vmatmul.mubr.bf16.gmra.mxu0 %v2990
        %v3077 = vpop.f32.mrf.mxu0
        %v3078 = vadd.f32 0.0, %v3077
        %v3079 = vpop.f32.mrf.mxu0
        %v3080 = vadd.f32 0.0, %v3079
        %v3081 = vpop.f32.mrf.mxu0
        %v3082 = vadd.f32 0.0, %v3081
        %v3083 = vpop.f32.mrf.mxu0
        %v3084 = vadd.f32 0.0, %v3083
        %3085 = vmatprep.mubr.bf16.mxu0 0
        %3086 = vmatmul.mubr.bf16.gmra.mxu0 %v2993
        %v3087 = vpop.f32.mrf.mxu0
        %v3088 = vadd.f32 0.0, %v3087
        %v3089 = vpop.f32.mrf.mxu0
        %v3090 = vadd.f32 0.0, %v3089
        %v3091 = vpop.f32.mrf.mxu0
        %v3092 = vadd.f32 0.0, %v3091
        %v3093 = vpop.f32.mrf.mxu0
        %v3094 = vadd.f32 0.0, %v3093
        %3095 = vmatprep.mubr.bf16.mxu0 0
        %3096 = vmatmul.mubr.bf16.gmra.mxu0 %v2996
        %v3097 = vpop.f32.mrf.mxu0
        %v3098 = vadd.f32 0.0, %v3097
        %v3099 = vpop.f32.mrf.mxu0
        %v3100 = vadd.f32 0.0, %v3099
        %v3101 = vpop.f32.mrf.mxu0
        %v3102 = vadd.f32 0.0, %v3101
        %v3103 = vpop.f32.mrf.mxu0
        %v3104 = vadd.f32 0.0, %v3103
        %3105 = vmatprep.mubr.bf16.mxu0 0
        %3106 = vmatmul.mubr.bf16.gmra.mxu0 %v2999
        %v3107 = vpop.f32.mrf.mxu0
        %v3108 = vadd.f32 0.0, %v3107
        %v3109 = vpop.f32.mrf.mxu0
        %v3110 = vadd.f32 0.0, %v3109
        %v3111 = vpop.f32.mrf.mxu0
        %v3112 = vadd.f32 0.0, %v3111
        %v3113 = vpop.f32.mrf.mxu0
        %v3114 = vadd.f32 0.0, %v3113
        %3115 = vmatprep.mubr.bf16.mxu0 0
        %3116 = vmatmul.mubr.bf16.gmra.mxu0 %v3002
        %v3117 = vpop.f32.mrf.mxu0
        %v3118 = vadd.f32 0.0, %v3117
        %v3119 = vpop.f32.mrf.mxu0
        %v3120 = vadd.f32 0.0, %v3119
        %v3121 = vpop.f32.mrf.mxu0
        %v3122 = vadd.f32 0.0, %v3121
        %v3123 = vpop.f32.mrf.mxu0
        %v3124 = vadd.f32 0.0, %v3123
        %3125 = vmatprep.mubr.bf16.mxu0 0
        %3126 = vmatmul.mubr.bf16.gmra.mxu0 %v3005
        %v3127 = vpop.f32.mrf.mxu0
        %v3128 = vadd.f32 0.0, %v3127
        %v3129 = vpop.f32.mrf.mxu0
        %v3130 = vadd.f32 0.0, %v3129
        %v3131 = vpop.f32.mrf.mxu0
        %v3132 = vadd.f32 0.0, %v3131
        %v3133 = vpop.f32.mrf.mxu0
        %v3134 = vadd.f32 0.0, %v3133
        %3135 = vmatprep.mubr.bf16.mxu0 0
        %3136 = vmatmul.mubr.bf16.gmra.mxu0 %v3008
        %v3137 = vpop.f32.mrf.mxu0
        %v3138 = vadd.f32 0.0, %v3137
        %v3139 = vpop.f32.mrf.mxu0
        %v3140 = vadd.f32 0.0, %v3139
        %v3141 = vpop.f32.mrf.mxu0
        %v3142 = vadd.f32 0.0, %v3141
        %v3143 = vpop.f32.mrf.mxu0
        %v3144 = vadd.f32 0.0, %v3143
        %3145 = vmatprep.mubr.bf16.mxu0 0
        %3146 = vmatmul.mubr.bf16.gmra.mxu0 %v3011
        %v3147 = vpop.f32.mrf.mxu0
        %v3148 = vadd.f32 0.0, %v3147
        %v3149 = vpop.f32.mrf.mxu0
        %v3150 = vadd.f32 0.0, %v3149
        %v3151 = vpop.f32.mrf.mxu0
        %v3152 = vadd.f32 0.0, %v3151
        %v3153 = vpop.f32.mrf.mxu0
        %v3154 = vadd.f32 0.0, %v3153
        %3155 = vmatprep.mubr.bf16.mxu0 0
        %3156 = vmatmul.mubr.bf16.gmra.mxu0 %v3014
        %v3157 = vpop.f32.mrf.mxu0
        %v3158 = vadd.f32 0.0, %v3157
        %v3159 = vpop.f32.mrf.mxu0
        %v3160 = vadd.f32 0.0, %v3159
        %v3161 = vpop.f32.mrf.mxu0
        %v3162 = vadd.f32 0.0, %v3161
        %v3163 = vpop.f32.mrf.mxu0
        %v3164 = vadd.f32 0.0, %v3163
        %3165 = vdwg.mxu0
        %v3166 = vsel %vm2462, %v3080, -inf
        %v3167 = vmax.f32 %v3078, %v3166
        %3168 = vmax.xlane.f32.xlu0 %v3167
        %v3169 = vpop.xlane.xlu0 %3168
        %v3170 = vsel %vm2462, %v3084, -inf
        %v3171 = vmax.f32 %v3082, %v3170
        %3172 = vmax.xlane.f32.xlu0 %v3171
        %v3173 = vpop.xlane.xlu0 %3172
        %v3174 = vsel %vm2462, %v3090, -inf
        %v3175 = vmax.f32 %v3088, %v3174
        %3176 = vmax.xlane.f32.xlu0 %v3175
        %v3177 = vpop.xlane.xlu0 %3176
        %v3178 = vsel %vm2462, %v3094, -inf
        %v3179 = vmax.f32 %v3092, %v3178
        %3180 = vmax.xlane.f32.xlu0 %v3179
        %v3181 = vpop.xlane.xlu0 %3180
        %v3182 = vsel %vm2462, %v3100, -inf
        %v3183 = vmax.f32 %v3098, %v3182
        %3184 = vmax.xlane.f32.xlu0 %v3183
        %v3185 = vpop.xlane.xlu0 %3184
        %v3186 = vsel %vm2462, %v3104, -inf
        %v3187 = vmax.f32 %v3102, %v3186
        %3188 = vmax.xlane.f32.xlu0 %v3187
        %v3189 = vpop.xlane.xlu0 %3188
        %v3190 = vsel %vm2462, %v3110, -inf
        %v3191 = vmax.f32 %v3108, %v3190
        %3192 = vmax.xlane.f32.xlu0 %v3191
        %v3193 = vpop.xlane.xlu0 %3192
        %v3194 = vsel %vm2462, %v3114, -inf
        %v3195 = vmax.f32 %v3112, %v3194
        %3196 = vmax.xlane.f32.xlu0 %v3195
        %v3197 = vpop.xlane.xlu0 %3196
        %v3198 = vsel %vm2462, %v3120, -inf
        %v3199 = vmax.f32 %v3118, %v3198
        %3200 = vmax.xlane.f32.xlu0 %v3199
        %v3201 = vpop.xlane.xlu0 %3200
        %v3202 = vsel %vm2462, %v3124, -inf
        %v3203 = vmax.f32 %v3122, %v3202
        %3204 = vmax.xlane.f32.xlu0 %v3203
        %v3205 = vpop.xlane.xlu0 %3204
        %v3206 = vsel %vm2462, %v3130, -inf
        %v3207 = vmax.f32 %v3128, %v3206
        %3208 = vmax.xlane.f32.xlu0 %v3207
        %v3209 = vpop.xlane.xlu0 %3208
        %v3210 = vsel %vm2462, %v3134, -inf
        %v3211 = vmax.f32 %v3132, %v3210
        %3212 = vmax.xlane.f32.xlu0 %v3211
        %v3213 = vpop.xlane.xlu0 %3212
        %v3214 = vsel %vm2462, %v3140, -inf
        %v3215 = vmax.f32 %v3138, %v3214
        %3216 = vmax.xlane.f32.xlu0 %v3215
        %v3217 = vpop.xlane.xlu0 %3216
        %v3218 = vsel %vm2462, %v3144, -inf
        %v3219 = vmax.f32 %v3142, %v3218
        %3220 = vmax.xlane.f32.xlu0 %v3219
        %v3221 = vpop.xlane.xlu0 %3220
        %v3222 = vsel %vm2462, %v3150, -inf
        %v3223 = vmax.f32 %v3148, %v3222
        %3224 = vmax.xlane.f32.xlu0 %v3223
        %v3225 = vpop.xlane.xlu0 %3224
        %v3226 = vsel %vm2462, %v3154, -inf
        %v3227 = vmax.f32 %v3152, %v3226
        %3228 = vmax.xlane.f32.xlu0 %v3227
        %v3229 = vpop.xlane.xlu0 %3228
        %v3230 = vsel %vm2462, %v3160, -inf
        %v3231 = vmax.f32 %v3158, %v3230
        %3232 = vmax.xlane.f32.xlu0 %v3231
        %v3233 = vpop.xlane.xlu0 %3232
        %v3234 = vsel %vm2531, %v3162, -inf
        %v3235 = vsel %vm2533, %v3164, -inf
        %v3236 = vmax.f32 %v3234, %v3235
        %3237 = vmax.xlane.f32.xlu0 %v3236
        %v3238 = vpop.xlane.xlu0 %3237
        %v3239 = vsub.f32 %v3078, %v3169
        %v3240 = vsub.f32 %v3080, %v3169
        %v3241 = vsub.f32 %v3082, %v3173
        %v3242 = vsub.f32 %v3084, %v3173
        %v3243 = vsub.f32 %v3088, %v3177
        %v3244 = vsub.f32 %v3090, %v3177
        %v3245 = vsub.f32 %v3092, %v3181
        %v3246 = vsub.f32 %v3094, %v3181
        %v3247 = vsub.f32 %v3098, %v3185
        %v3248 = vsub.f32 %v3100, %v3185
        %v3249 = vsub.f32 %v3102, %v3189
        %v3250 = vsub.f32 %v3104, %v3189
        %v3251 = vsub.f32 %v3108, %v3193
        %v3252 = vsub.f32 %v3110, %v3193
        %v3253 = vsub.f32 %v3112, %v3197
        %v3254 = vsub.f32 %v3114, %v3197
        %v3255 = vsub.f32 %v3118, %v3201
        %v3256 = vsub.f32 %v3120, %v3201
        %v3257 = vsub.f32 %v3122, %v3205
        %v3258 = vsub.f32 %v3124, %v3205
        %v3259 = vsub.f32 %v3128, %v3209
        %v3260 = vsub.f32 %v3130, %v3209
        %v3261 = vsub.f32 %v3132, %v3213
        %v3262 = vsub.f32 %v3134, %v3213
        %v3263 = vsub.f32 %v3138, %v3217
        %v3264 = vsub.f32 %v3140, %v3217
        %v3265 = vsub.f32 %v3142, %v3221
        %v3266 = vsub.f32 %v3144, %v3221
        %v3267 = vsub.f32 %v3148, %v3225
        %v3268 = vsub.f32 %v3150, %v3225
        %v3269 = vsub.f32 %v3152, %v3229
        %v3270 = vsub.f32 %v3154, %v3229
        %v3271 = vsub.f32 %v3158, %v3233
        %v3272 = vsub.f32 %v3160, %v3233
        %v3273 = vsub.f32 %v3162, %v3238
        %v3274 = vsub.f32 %v3164, %v3238
        %v3275 = vmul.f32 %v3239, 1.442695
        %v3276 = vpow.pop %v3275
        %v3277 = vmul.f32 %v3240, 1.442695
        %v3278 = vpow.pop %v3277
        %v3279 = vmul.f32 %v3241, 1.442695
        %v3280 = vpow.pop %v3279
        %v3281 = vmul.f32 %v3242, 1.442695
        %v3282 = vpow.pop %v3281
        %v3283 = vmul.f32 %v3243, 1.442695
        %v3284 = vpow.pop %v3283
        %v3285 = vmul.f32 %v3244, 1.442695
        %v3286 = vpow.pop %v3285
        %v3287 = vmul.f32 %v3245, 1.442695
        %v3288 = vpow.pop %v3287
        %v3289 = vmul.f32 %v3246, 1.442695
        %v3290 = vpow.pop %v3289
        %v3291 = vmul.f32 %v3247, 1.442695
        %v3292 = vpow.pop %v3291
        %v3293 = vmul.f32 %v3248, 1.442695
        %v3294 = vpow.pop %v3293
        %v3295 = vmul.f32 %v3249, 1.442695
        %v3296 = vpow.pop %v3295
        %v3297 = vmul.f32 %v3250, 1.442695
        %v3298 = vpow.pop %v3297
        %v3299 = vmul.f32 %v3251, 1.442695
        %v3300 = vpow.pop %v3299
        %v3301 = vmul.f32 %v3252, 1.442695
        %v3302 = vpow.pop %v3301
        %v3303 = vmul.f32 %v3253, 1.442695
        %v3304 = vpow.pop %v3303
        %v3305 = vmul.f32 %v3254, 1.442695
        %v3306 = vpow.pop %v3305
        %v3307 = vmul.f32 %v3255, 1.442695
        %v3308 = vpow.pop %v3307
        %v3309 = vmul.f32 %v3256, 1.442695
        %v3310 = vpow.pop %v3309
        %v3311 = vmul.f32 %v3257, 1.442695
        %v3312 = vpow.pop %v3311
        %v3313 = vmul.f32 %v3258, 1.442695
        %v3314 = vpow.pop %v3313
        %v3315 = vmul.f32 %v3259, 1.442695
        %v3316 = vpow.pop %v3315
        %v3317 = vmul.f32 %v3260, 1.442695
        %v3318 = vpow.pop %v3317
        %v3319 = vmul.f32 %v3261, 1.442695
        %v3320 = vpow.pop %v3319
        %v3321 = vmul.f32 %v3262, 1.442695
        %v3322 = vpow.pop %v3321
        %v3323 = vmul.f32 %v3263, 1.442695
        %v3324 = vpow.pop %v3323
        %v3325 = vmul.f32 %v3264, 1.442695
        %v3326 = vpow.pop %v3325
        %v3327 = vmul.f32 %v3265, 1.442695
        %v3328 = vpow.pop %v3327
        %v3329 = vmul.f32 %v3266, 1.442695
        %v3330 = vpow.pop %v3329
        %v3331 = vmul.f32 %v3267, 1.442695
        %v3332 = vpow.pop %v3331
        %v3333 = vmul.f32 %v3268, 1.442695
        %v3334 = vpow.pop %v3333
        %v3335 = vmul.f32 %v3269, 1.442695
        %v3336 = vpow.pop %v3335
        %v3337 = vmul.f32 %v3270, 1.442695
        %v3338 = vpow.pop %v3337
        %v3339 = vmul.f32 %v3271, 1.442695
        %v3340 = vpow.pop %v3339
        %v3341 = vmul.f32 %v3272, 1.442695
        %v3342 = vpow.pop %v3341
        %v3343 = vmul.f32 %v3273, 1.442695
        %v3344 = vpow.pop %v3343
        %v3345 = vmul.f32 %v3274, 1.442695
        %v3346 = vpow.pop %v3345
        %v3347 = vsel %vm2462, %v3278, 0.0
        %v3348 = vadd.f32 %v3276, %v3347
        %3349 = vadd.xlane.f32.xlu0 %v3348
        %v3350 = vpop.xlane.xlu0 %3349
        %v3351 = vsel %vm2462, %v3282, 0.0
        %v3352 = vadd.f32 %v3280, %v3351
        %3353 = vadd.xlane.f32.xlu0 %v3352
        %v3354 = vpop.xlane.xlu0 %3353
        %v3355 = vsel %vm2462, %v3286, 0.0
        %v3356 = vadd.f32 %v3284, %v3355
        %3357 = vadd.xlane.f32.xlu0 %v3356
        %v3358 = vpop.xlane.xlu0 %3357
        %v3359 = vsel %vm2462, %v3290, 0.0
        %v3360 = vadd.f32 %v3288, %v3359
        %3361 = vadd.xlane.f32.xlu0 %v3360
        %v3362 = vpop.xlane.xlu0 %3361
        %v3363 = vsel %vm2462, %v3294, 0.0
        %v3364 = vadd.f32 %v3292, %v3363
        %3365 = vadd.xlane.f32.xlu0 %v3364
        %v3366 = vpop.xlane.xlu0 %3365
        %v3367 = vsel %vm2462, %v3298, 0.0
        %v3368 = vadd.f32 %v3296, %v3367
        %3369 = vadd.xlane.f32.xlu0 %v3368
        %v3370 = vpop.xlane.xlu0 %3369
        %v3371 = vsel %vm2462, %v3302, 0.0
        %v3372 = vadd.f32 %v3300, %v3371
        %3373 = vadd.xlane.f32.xlu0 %v3372
        %v3374 = vpop.xlane.xlu0 %3373
        %v3375 = vsel %vm2462, %v3306, 0.0
        %v3376 = vadd.f32 %v3304, %v3375
        %3377 = vadd.xlane.f32.xlu0 %v3376
        %v3378 = vpop.xlane.xlu0 %3377
        %v3379 = vsel %vm2462, %v3310, 0.0
        %v3380 = vadd.f32 %v3308, %v3379
        %3381 = vadd.xlane.f32.xlu0 %v3380
        %v3382 = vpop.xlane.xlu0 %3381
        %v3383 = vsel %vm2462, %v3314, 0.0
        %v3384 = vadd.f32 %v3312, %v3383
        %3385 = vadd.xlane.f32.xlu0 %v3384
        %v3386 = vpop.xlane.xlu0 %3385
        %v3387 = vsel %vm2462, %v3318, 0.0
        %v3388 = vadd.f32 %v3316, %v3387
        %3389 = vadd.xlane.f32.xlu0 %v3388
        %v3390 = vpop.xlane.xlu0 %3389
        %v3391 = vsel %vm2462, %v3322, 0.0
        %v3392 = vadd.f32 %v3320, %v3391
        %3393 = vadd.xlane.f32.xlu0 %v3392
        %v3394 = vpop.xlane.xlu0 %3393
        %v3395 = vsel %vm2462, %v3326, 0.0
        %v3396 = vadd.f32 %v3324, %v3395
        %3397 = vadd.xlane.f32.xlu0 %v3396
        %v3398 = vpop.xlane.xlu0 %3397
        %v3399 = vsel %vm2462, %v3330, 0.0
        %v3400 = vadd.f32 %v3328, %v3399
        %3401 = vadd.xlane.f32.xlu0 %v3400
        %v3402 = vpop.xlane.xlu0 %3401
        %v3403 = vsel %vm2462, %v3334, 0.0
        %v3404 = vadd.f32 %v3332, %v3403
        %3405 = vadd.xlane.f32.xlu0 %v3404
        %v3406 = vpop.xlane.xlu0 %3405
        %v3407 = vsel %vm2462, %v3338, 0.0
        %v3408 = vadd.f32 %v3336, %v3407
        %3409 = vadd.xlane.f32.xlu0 %v3408
        %v3410 = vpop.xlane.xlu0 %3409
        %v3411 = vsel %vm2462, %v3342, 0.0
        %v3412 = vadd.f32 %v3340, %v3411
        %3413 = vadd.xlane.f32.xlu0 %v3412
        %v3414 = vpop.xlane.xlu0 %3413
        %v3415 = vsel %vm2531, %v3344, 0.0
        %v3416 = vsel %vm2533, %v3346, 0.0
        %v3417 = vadd.f32 %v3415, %v3416
        %3418 = vadd.xlane.f32.xlu0 %v3417
        %v3419 = vpop.xlane.xlu0 %3418
        %v3420 = vpack.c.bf16 %v3280, %v3276
        %v3421 = vpack.c.bf16 %v3282, %v3278
        %v3422 = vpack.c.bf16 %v3288, %v3284
        %v3423 = vpack.c.bf16 %v3290, %v3286
        %v3424 = vpack.c.bf16 %v3296, %v3292
        %v3425 = vpack.c.bf16 %v3298, %v3294
        %v3426 = vpack.c.bf16 %v3304, %v3300
        %v3427 = vpack.c.bf16 %v3306, %v3302
        %v3428 = vpack.c.bf16 %v3312, %v3308
        %v3429 = vpack.c.bf16 %v3314, %v3310
        %v3430 = vpack.c.bf16 %v3320, %v3316
        %v3431 = vpack.c.bf16 %v3322, %v3318
        %v3432 = vpack.c.bf16 %v3328, %v3324
        %v3433 = vpack.c.bf16 %v3330, %v3326
        %v3434 = vpack.c.bf16 %v3336, %v3332
        %v3435 = vpack.c.bf16 %v3338, %v3334
        %v3436 = vpack.c.bf16 %v3344, %v3340
        %v3437 = vpack.c.bf16 %v3346, %v3342
        %3438 = vrot.lane.b32.xlu0 %v2249, 56
        %v3439 = vpop.permute.xlu0 %3438
        %3440 = vrot.lane.b32.xlu0 %v2250, 56
        %v3441 = vpop.permute.xlu0 %3440
        %3442 = vrot.lane.b32.xlu0 %v2251, 56
        %v3443 = vpop.permute.xlu0 %3442
        %3444 = vrot.lane.b32.xlu0 %v2252, 56
        %v3445 = vpop.permute.xlu0 %3444
        %3446 = vrot.lane.b32.xlu0 %v2253, 56
        %v3447 = vpop.permute.xlu0 %3446
        %3448 = vrot.lane.b32.xlu0 %v2254, 56
        %v3449 = vpop.permute.xlu0 %3448
        %3450 = vrot.lane.b32.xlu0 %v2255, 56
        %v3451 = vpop.permute.xlu0 %3450
        %3452 = vrot.lane.b32.xlu0 %v2256, 56
        %v3453 = vpop.permute.xlu0 %3452
        %3454 = vrot.lane.b32.xlu0 %v2257, 56
        %v3455 = vpop.permute.xlu0 %3454
        %v3465 = vsel %vm2462, %v3421, 0
        %v3468 = vsel %vm2462, %v3423, 0
        %v3471 = vsel %vm2462, %v3425, 0
        %v3474 = vsel %vm2462, %v3427, 0
        %v3477 = vsel %vm2462, %v3429, 0
        %v3480 = vsel %vm2462, %v3431, 0
        %v3483 = vsel %vm2462, %v3433, 0
        %v3486 = vsel %vm2462, %v3435, 0
        %v3489 = vsel %vm2462, %v3437, 0
        %v3492 = vsel %vm2790, %v3455, 0
        %3494 = vmatprep.subr.bf16.mxu0 0
        %3495 = vmatpush1.bf16.msra.mxu0 %v3453
        %3496 = vmatprep.subr.bf16.mxu0 0
        %3497 = vmatpush1.bf16.msra.mxu0 %v3451
        %3498 = vmatprep.subr.bf16.mxu0 0
        %3499 = vmatpush1.bf16.msra.mxu0 %v3449
        %3500 = vmatprep.subr.bf16.mxu0 0
        %3501 = vmatpush1.bf16.msra.mxu0 %v3447
        %3502 = vmatprep.subr.bf16.mxu0 0
        %3503 = vmatpush1.bf16.msra.mxu0 %v3445
        %3504 = vmatprep.subr.bf16.mxu0 0
        %3505 = vmatpush1.bf16.msra.mxu0 %v3443
        %3506 = vmatprep.subr.bf16.mxu0 0
        %3507 = vmatpush1.bf16.msra.mxu0 %v3441
        %3508 = vmatprep.subr.bf16.mxu0 0
        %3509 = vmatpush1.bf16.msra.mxu0 %v3439
        %3510 = vmatprep.subr.bf16.mxu0 0
        %3511 = vmatpush2.bf16.msra.mxu0 0
        %3512 = vmatprep.subr.bf16.mxu0 0
        %3513 = vmatpush2.bf16.msra.mxu0 0
        %3514 = vmatprep.subr.bf16.mxu0 0
        %3515 = vmatpush2.bf16.msra.mxu0 0
        %3516 = vmatprep.subr.bf16.mxu0 0
        %3517 = vmatpush2.bf16.msra.mxu0 0
        %3518 = vmatprep.subr.bf16.mxu0 0
        %3519 = vmatpush2.bf16.msra.mxu0 0
        %3520 = vmatprep.subr.bf16.mxu0 0
        %3521 = vmatpush2.bf16.msra.mxu0 0
        %3522 = vmatprep.subr.bf16.mxu0 0
        %3523 = vmatpush2.bf16.msra.mxu0 0
        %3524 = vmatprep.subr.bf16.mxu0 0
        %3525 = vmatpush2.bf16.msra.mxu0 %v3492
        %3526 = vmatprep.mubr.bf16.mxu0 %v3465
        %3527 = vmatmul.mubr.bf16.gmra.mxu0 %v3420
        %v3528 = vpop.f32.mrf.mxu0
        %v3529 = vadd.f32 0.0, %v3528
        %v3530 = vpop.f32.mrf.mxu0
        %v3531 = vpop.f32.mrf.mxu0
        %v3532 = vadd.f32 0.0, %v3531
        %v3533 = vpop.f32.mrf.mxu0
        %3534 = vmatprep.mubr.bf16.mxu0 %v3468
        %3535 = vmatmul.mubr.bf16.gmra.mxu0 %v3422
        %v3536 = vpop.f32.mrf.mxu0
        %v3537 = vadd.f32 0.0, %v3536
        %v3538 = vpop.f32.mrf.mxu0
        %v3539 = vpop.f32.mrf.mxu0
        %v3540 = vadd.f32 0.0, %v3539
        %v3541 = vpop.f32.mrf.mxu0
        %3542 = vmatprep.mubr.bf16.mxu0 %v3471
        %3543 = vmatmul.mubr.bf16.gmra.mxu0 %v3424
        %v3544 = vpop.f32.mrf.mxu0
        %v3545 = vadd.f32 0.0, %v3544
        %v3546 = vpop.f32.mrf.mxu0
        %v3547 = vpop.f32.mrf.mxu0
        %v3548 = vadd.f32 0.0, %v3547
        %v3549 = vpop.f32.mrf.mxu0
        %3550 = vmatprep.mubr.bf16.mxu0 %v3474
        %3551 = vmatmul.mubr.bf16.gmra.mxu0 %v3426
        %v3552 = vpop.f32.mrf.mxu0
        %v3553 = vadd.f32 0.0, %v3552
        %v3554 = vpop.f32.mrf.mxu0
        %v3555 = vpop.f32.mrf.mxu0
        %v3556 = vadd.f32 0.0, %v3555
        %v3557 = vpop.f32.mrf.mxu0
        %3558 = vmatprep.mubr.bf16.mxu0 %v3477
        %3559 = vmatmul.mubr.bf16.gmra.mxu0 %v3428
        %v3560 = vpop.f32.mrf.mxu0
        %v3561 = vadd.f32 0.0, %v3560
        %v3562 = vpop.f32.mrf.mxu0
        %v3563 = vpop.f32.mrf.mxu0
        %v3564 = vadd.f32 0.0, %v3563
        %v3565 = vpop.f32.mrf.mxu0
        %3566 = vmatprep.mubr.bf16.mxu0 %v3480
        %3567 = vmatmul.mubr.bf16.gmra.mxu0 %v3430
        %v3568 = vpop.f32.mrf.mxu0
        %v3569 = vadd.f32 0.0, %v3568
        %v3570 = vpop.f32.mrf.mxu0
        %v3571 = vpop.f32.mrf.mxu0
        %v3572 = vadd.f32 0.0, %v3571
        %v3573 = vpop.f32.mrf.mxu0
        %3574 = vmatprep.mubr.bf16.mxu0 %v3483
        %3575 = vmatmul.mubr.bf16.gmra.mxu0 %v3432
        %v3576 = vpop.f32.mrf.mxu0
        %v3577 = vadd.f32 0.0, %v3576
        %v3578 = vpop.f32.mrf.mxu0
        %v3579 = vpop.f32.mrf.mxu0
        %v3580 = vadd.f32 0.0, %v3579
        %v3581 = vpop.f32.mrf.mxu0
        %3582 = vmatprep.mubr.bf16.mxu0 %v3486
        %3583 = vmatmul.mubr.bf16.gmra.mxu0 %v3434
        %v3584 = vpop.f32.mrf.mxu0
        %v3585 = vadd.f32 0.0, %v3584
        %v3586 = vpop.f32.mrf.mxu0
        %v3587 = vpop.f32.mrf.mxu0
        %v3588 = vadd.f32 0.0, %v3587
        %v3589 = vpop.f32.mrf.mxu0
        %3590 = vmatprep.mubr.bf16.mxu0 %v3489
        %3591 = vmatmul.mubr.bf16.gmra.mxu0 %v3436
        %v3592 = vpop.f32.mrf.mxu0
        %v3593 = vadd.f32 0.0, %v3592
        %v3594 = vpop.f32.mrf.mxu0
        %v3595 = vpop.f32.mrf.mxu0
        %v3596 = vadd.f32 0.0, %v3595
        %v3597 = vpop.f32.mrf.mxu0
        %3598 = vdwg.mxu0
        %v3599 = vrcp.pop %v3350
        %v3600 = vmul.f32 1.0, %v3599
        %v3601 = vrcp.pop %v3354
        %v3602 = vmul.f32 1.0, %v3601
        %v3603 = vrcp.pop %v3358
        %v3604 = vmul.f32 1.0, %v3603
        %v3605 = vrcp.pop %v3362
        %v3606 = vmul.f32 1.0, %v3605
        %v3607 = vrcp.pop %v3366
        %v3608 = vmul.f32 1.0, %v3607
        %v3609 = vrcp.pop %v3370
        %v3610 = vmul.f32 1.0, %v3609
        %v3611 = vrcp.pop %v3374
        %v3612 = vmul.f32 1.0, %v3611
        %v3613 = vrcp.pop %v3378
        %v3614 = vmul.f32 1.0, %v3613
        %v3615 = vrcp.pop %v3382
        %v3616 = vmul.f32 1.0, %v3615
        %v3617 = vrcp.pop %v3386
        %v3618 = vmul.f32 1.0, %v3617
        %v3619 = vrcp.pop %v3390
        %v3620 = vmul.f32 1.0, %v3619
        %v3621 = vrcp.pop %v3394
        %v3622 = vmul.f32 1.0, %v3621
        %v3623 = vrcp.pop %v3398
        %v3624 = vmul.f32 1.0, %v3623
        %v3625 = vrcp.pop %v3402
        %v3626 = vmul.f32 1.0, %v3625
        %v3627 = vrcp.pop %v3406
        %v3628 = vmul.f32 1.0, %v3627
        %v3629 = vrcp.pop %v3410
        %v3630 = vmul.f32 1.0, %v3629
        %v3631 = vrcp.pop %v3414
        %v3632 = vmul.f32 1.0, %v3631
        %v3633 = vrcp.pop %v3419
        %v3634 = vmul.f32 1.0, %v3633
        %v3635 = vmul.f32 %v3529, %v3600
        %v3636 = vmul.f32 %v3532, %v3602
        %v3637 = vmul.f32 %v3537, %v3604
        %v3638 = vmul.f32 %v3540, %v3606
        %v3639 = vmul.f32 %v3545, %v3608
        %v3640 = vmul.f32 %v3548, %v3610
        %v3641 = vmul.f32 %v3553, %v3612
        %v3642 = vmul.f32 %v3556, %v3614
        %v3643 = vmul.f32 %v3561, %v3616
        %v3644 = vmul.f32 %v3564, %v3618
        %v3645 = vmul.f32 %v3569, %v3620
        %v3646 = vmul.f32 %v3572, %v3622
        %v3647 = vmul.f32 %v3577, %v3624
        %v3648 = vmul.f32 %v3580, %v3626
        %v3649 = vmul.f32 %v3585, %v3628
        %v3650 = vmul.f32 %v3588, %v3630
        %v3651 = vmul.f32 %v3593, %v3632
        %v3652 = vmul.f32 %v3596, %v3634
        %3653 = vrot.lane.b32.xlu0 %v2249, 112
        %v3654 = vpop.permute.xlu0 %3653
        %3655 = vrot.lane.b32.xlu0 %v2250, 112
        %v3656 = vpop.permute.xlu0 %3655
        %3657 = vrot.lane.b32.xlu0 %v2251, 112
        %v3658 = vpop.permute.xlu0 %3657
        %3659 = vrot.lane.b32.xlu0 %v2252, 112
        %v3660 = vpop.permute.xlu0 %3659
        %3661 = vrot.lane.b32.xlu0 %v2253, 112
        %v3662 = vpop.permute.xlu0 %3661
        %3663 = vrot.lane.b32.xlu0 %v2254, 112
        %v3664 = vpop.permute.xlu0 %3663
        %3665 = vrot.lane.b32.xlu0 %v2255, 112
        %v3666 = vpop.permute.xlu0 %3665
        %3667 = vrot.lane.b32.xlu0 %v2256, 112
        %v3668 = vpop.permute.xlu0 %3667
        %3669 = vrot.lane.b32.xlu0 %v2257, 112
        %v3670 = vpop.permute.xlu0 %3669
        %3671 = vrot.lane.b32.xlu0 %v2249, 80
        %v3672 = vpop.permute.xlu0 %3671
        %3673 = vrot.lane.b32.xlu0 %v2250, 80
        %v3674 = vpop.permute.xlu0 %3673
        %3675 = vrot.lane.b32.xlu0 %v2251, 80
        %v3676 = vpop.permute.xlu0 %3675
        %3677 = vrot.lane.b32.xlu0 %v2252, 80
        %v3678 = vpop.permute.xlu0 %3677
        %3679 = vrot.lane.b32.xlu0 %v2253, 80
        %v3680 = vpop.permute.xlu0 %3679
        %3681 = vrot.lane.b32.xlu0 %v2254, 80
        %v3682 = vpop.permute.xlu0 %3681
        %3683 = vrot.lane.b32.xlu0 %v2255, 80
        %v3684 = vpop.permute.xlu0 %3683
        %3685 = vrot.lane.b32.xlu0 %v2256, 80
        %v3686 = vpop.permute.xlu0 %3685
        %3687 = vrot.lane.b32.xlu0 %v2257, 80
        %v3688 = vpop.permute.xlu0 %3687
        %v3690 = vsel %vm973, %v3654, 0
        %v3693 = vsel %vm973, %v3656, 0
        %v3696 = vsel %vm973, %v3658, 0
        %v3699 = vsel %vm973, %v3660, 0
        %v3702 = vsel %vm973, %v3662, 0
        %v3705 = vsel %vm973, %v3664, 0
        %v3708 = vsel %vm973, %v3666, 0
        %v3711 = vsel %vm973, %v3668, 0
        %v3714 = vsel %vm973, %v3670, 0
        %v3717 = vsel %vm973, %v3672, 0
        %v3720 = vsel %vm973, %v3674, 0
        %v3723 = vsel %vm973, %v3676, 0
        %v3726 = vsel %vm973, %v3678, 0
        %v3729 = vsel %vm973, %v3680, 0
        %v3732 = vsel %vm973, %v3682, 0
        %v3735 = vsel %vm973, %v3684, 0
        %v3738 = vsel %vm973, %v3686, 0
        %v3741 = vsel %vm973, %v3688, 0
        %3743 = vmatprep.subr.bf16.mxu0 0
        %3744 = vmatpush1.bf16.xpose.msra.mxu0 %v3738
        %3745 = vmatprep.subr.bf16.mxu0 0
        %3746 = vmatpush1.bf16.xpose.msra.mxu0 %v3735
        %3747 = vmatprep.subr.bf16.mxu0 0
        %3748 = vmatpush1.bf16.xpose.msra.mxu0 %v3732
        %3749 = vmatprep.subr.bf16.mxu0 0
        %3750 = vmatpush1.bf16.xpose.msra.mxu0 %v3729
        %3751 = vmatprep.subr.bf16.mxu0 0
        %3752 = vmatpush1.bf16.xpose.msra.mxu0 %v3726
        %3753 = vmatprep.subr.bf16.mxu0 0
        %3754 = vmatpush1.bf16.xpose.msra.mxu0 %v3723
        %3755 = vmatprep.subr.bf16.mxu0 0
        %3756 = vmatpush1.bf16.xpose.msra.mxu0 %v3720
        %3757 = vmatprep.subr.bf16.mxu0 0
        %3758 = vmatpush1.bf16.xpose.msra.mxu0 %v3717
        %3759 = vmatprep.subr.bf16.mxu0 0
        %3760 = vmatpush2.bf16.xpose.msra.mxu0 0
        %3761 = vmatprep.subr.bf16.mxu0 0
        %3762 = vmatpush2.bf16.xpose.msra.mxu0 0
        %3763 = vmatprep.subr.bf16.mxu0 0
        %3764 = vmatpush2.bf16.xpose.msra.mxu0 0
        %3765 = vmatprep.subr.bf16.mxu0 0
        %3766 = vmatpush2.bf16.xpose.msra.mxu0 0
        %3767 = vmatprep.subr.bf16.mxu0 0
        %3768 = vmatpush2.bf16.xpose.msra.mxu0 0
        %3769 = vmatprep.subr.bf16.mxu0 0
        %3770 = vmatpush2.bf16.xpose.msra.mxu0 0
        %3771 = vmatprep.subr.bf16.mxu0 0
        %3772 = vmatpush2.bf16.xpose.msra.mxu0 0
        %3773 = vmatprep.subr.bf16.mxu0 0
        %3774 = vmatpush2.bf16.xpose.msra.mxu0 %v3741
        %3775 = vmatprep.mubr.bf16.mxu0 0
        %3776 = vmatmul.mubr.bf16.gmra.mxu0 %v3690
        %v3777 = vpop.f32.mrf.mxu0
        %v3778 = vadd.f32 0.0, %v3777
        %v3779 = vpop.f32.mrf.mxu0
        %v3780 = vadd.f32 0.0, %v3779
        %v3781 = vpop.f32.mrf.mxu0
        %v3782 = vadd.f32 0.0, %v3781
        %v3783 = vpop.f32.mrf.mxu0
        %v3784 = vadd.f32 0.0, %v3783
        %3785 = vmatprep.mubr.bf16.mxu0 0
        %3786 = vmatmul.mubr.bf16.gmra.mxu0 %v3693
        %v3787 = vpop.f32.mrf.mxu0
        %v3788 = vadd.f32 0.0, %v3787
        %v3789 = vpop.f32.mrf.mxu0
        %v3790 = vadd.f32 0.0, %v3789
        %v3791 = vpop.f32.mrf.mxu0
        %v3792 = vadd.f32 0.0, %v3791
        %v3793 = vpop.f32.mrf.mxu0
        %v3794 = vadd.f32 0.0, %v3793
        %3795 = vmatprep.mubr.bf16.mxu0 0
        %3796 = vmatmul.mubr.bf16.gmra.mxu0 %v3696
        %v3797 = vpop.f32.mrf.mxu0
        %v3798 = vadd.f32 0.0, %v3797
        %v3799 = vpop.f32.mrf.mxu0
        %v3800 = vadd.f32 0.0, %v3799
        %v3801 = vpop.f32.mrf.mxu0
        %v3802 = vadd.f32 0.0, %v3801
        %v3803 = vpop.f32.mrf.mxu0
        %v3804 = vadd.f32 0.0, %v3803
        %3805 = vmatprep.mubr.bf16.mxu0 0
        %3806 = vmatmul.mubr.bf16.gmra.mxu0 %v3699
        %v3807 = vpop.f32.mrf.mxu0
        %v3808 = vadd.f32 0.0, %v3807
        %v3809 = vpop.f32.mrf.mxu0
        %v3810 = vadd.f32 0.0, %v3809
        %v3811 = vpop.f32.mrf.mxu0
        %v3812 = vadd.f32 0.0, %v3811
        %v3813 = vpop.f32.mrf.mxu0
        %v3814 = vadd.f32 0.0, %v3813
        %3815 = vmatprep.mubr.bf16.mxu0 0
        %3816 = vmatmul.mubr.bf16.gmra.mxu0 %v3702
        %v3817 = vpop.f32.mrf.mxu0
        %v3818 = vadd.f32 0.0, %v3817
        %v3819 = vpop.f32.mrf.mxu0
        %v3820 = vadd.f32 0.0, %v3819
        %v3821 = vpop.f32.mrf.mxu0
        %v3822 = vadd.f32 0.0, %v3821
        %v3823 = vpop.f32.mrf.mxu0
        %v3824 = vadd.f32 0.0, %v3823
        %3825 = vmatprep.mubr.bf16.mxu0 0
        %3826 = vmatmul.mubr.bf16.gmra.mxu0 %v3705
        %v3827 = vpop.f32.mrf.mxu0
        %v3828 = vadd.f32 0.0, %v3827
        %v3829 = vpop.f32.mrf.mxu0
        %v3830 = vadd.f32 0.0, %v3829
        %v3831 = vpop.f32.mrf.mxu0
        %v3832 = vadd.f32 0.0, %v3831
        %v3833 = vpop.f32.mrf.mxu0
        %v3834 = vadd.f32 0.0, %v3833
        %3835 = vmatprep.mubr.bf16.mxu0 0
        %3836 = vmatmul.mubr.bf16.gmra.mxu0 %v3708
        %v3837 = vpop.f32.mrf.mxu0
        %v3838 = vadd.f32 0.0, %v3837
        %v3839 = vpop.f32.mrf.mxu0
        %v3840 = vadd.f32 0.0, %v3839
        %v3841 = vpop.f32.mrf.mxu0
        %v3842 = vadd.f32 0.0, %v3841
        %v3843 = vpop.f32.mrf.mxu0
        %v3844 = vadd.f32 0.0, %v3843
        %3845 = vmatprep.mubr.bf16.mxu0 0
        %3846 = vmatmul.mubr.bf16.gmra.mxu0 %v3711
        %v3847 = vpop.f32.mrf.mxu0
        %v3848 = vadd.f32 0.0, %v3847
        %v3849 = vpop.f32.mrf.mxu0
        %v3850 = vadd.f32 0.0, %v3849
        %v3851 = vpop.f32.mrf.mxu0
        %v3852 = vadd.f32 0.0, %v3851
        %v3853 = vpop.f32.mrf.mxu0
        %v3854 = vadd.f32 0.0, %v3853
        %3855 = vmatprep.mubr.bf16.mxu0 0
        %3856 = vmatmul.mubr.bf16.gmra.mxu0 %v3714
        %v3857 = vpop.f32.mrf.mxu0
        %v3858 = vadd.f32 0.0, %v3857
        %v3859 = vpop.f32.mrf.mxu0
        %v3860 = vadd.f32 0.0, %v3859
        %v3861 = vpop.f32.mrf.mxu0
        %v3862 = vadd.f32 0.0, %v3861
        %v3863 = vpop.f32.mrf.mxu0
        %v3864 = vadd.f32 0.0, %v3863
        %3865 = vdwg.mxu0
        %v3866 = vsel %vm2462, %v3780, -inf
        %v3867 = vmax.f32 %v3778, %v3866
        %3868 = vmax.xlane.f32.xlu0 %v3867
        %v3869 = vpop.xlane.xlu0 %3868
        %v3870 = vsel %vm2462, %v3784, -inf
        %v3871 = vmax.f32 %v3782, %v3870
        %3872 = vmax.xlane.f32.xlu0 %v3871
        %v3873 = vpop.xlane.xlu0 %3872
        %v3874 = vsel %vm2462, %v3790, -inf
        %v3875 = vmax.f32 %v3788, %v3874
        %3876 = vmax.xlane.f32.xlu0 %v3875
        %v3877 = vpop.xlane.xlu0 %3876
        %v3878 = vsel %vm2462, %v3794, -inf
        %v3879 = vmax.f32 %v3792, %v3878
        %3880 = vmax.xlane.f32.xlu0 %v3879
        %v3881 = vpop.xlane.xlu0 %3880
        %v3882 = vsel %vm2462, %v3800, -inf
        %v3883 = vmax.f32 %v3798, %v3882
        %3884 = vmax.xlane.f32.xlu0 %v3883
        %v3885 = vpop.xlane.xlu0 %3884
        %v3886 = vsel %vm2462, %v3804, -inf
        %v3887 = vmax.f32 %v3802, %v3886
        %3888 = vmax.xlane.f32.xlu0 %v3887
        %v3889 = vpop.xlane.xlu0 %3888
        %v3890 = vsel %vm2462, %v3810, -inf
        %v3891 = vmax.f32 %v3808, %v3890
        %3892 = vmax.xlane.f32.xlu0 %v3891
        %v3893 = vpop.xlane.xlu0 %3892
        %v3894 = vsel %vm2462, %v3814, -inf
        %v3895 = vmax.f32 %v3812, %v3894
        %3896 = vmax.xlane.f32.xlu0 %v3895
        %v3897 = vpop.xlane.xlu0 %3896
        %v3898 = vsel %vm2462, %v3820, -inf
        %v3899 = vmax.f32 %v3818, %v3898
        %3900 = vmax.xlane.f32.xlu0 %v3899
        %v3901 = vpop.xlane.xlu0 %3900
        %v3902 = vsel %vm2462, %v3824, -inf
        %v3903 = vmax.f32 %v3822, %v3902
        %3904 = vmax.xlane.f32.xlu0 %v3903
        %v3905 = vpop.xlane.xlu0 %3904
        %v3906 = vsel %vm2462, %v3830, -inf
        %v3907 = vmax.f32 %v3828, %v3906
        %3908 = vmax.xlane.f32.xlu0 %v3907
        %v3909 = vpop.xlane.xlu0 %3908
        %v3910 = vsel %vm2462, %v3834, -inf
        %v3911 = vmax.f32 %v3832, %v3910
        %3912 = vmax.xlane.f32.xlu0 %v3911
        %v3913 = vpop.xlane.xlu0 %3912
        %v3914 = vsel %vm2462, %v3840, -inf
        %v3915 = vmax.f32 %v3838, %v3914
        %3916 = vmax.xlane.f32.xlu0 %v3915
        %v3917 = vpop.xlane.xlu0 %3916
        %v3918 = vsel %vm2462, %v3844, -inf
        %v3919 = vmax.f32 %v3842, %v3918
        %3920 = vmax.xlane.f32.xlu0 %v3919
        %v3921 = vpop.xlane.xlu0 %3920
        %v3922 = vsel %vm2462, %v3850, -inf
        %v3923 = vmax.f32 %v3848, %v3922
        %3924 = vmax.xlane.f32.xlu0 %v3923
        %v3925 = vpop.xlane.xlu0 %3924
        %v3926 = vsel %vm2462, %v3854, -inf
        %v3927 = vmax.f32 %v3852, %v3926
        %3928 = vmax.xlane.f32.xlu0 %v3927
        %v3929 = vpop.xlane.xlu0 %3928
        %v3930 = vsel %vm2462, %v3860, -inf
        %v3931 = vmax.f32 %v3858, %v3930
        %3932 = vmax.xlane.f32.xlu0 %v3931
        %v3933 = vpop.xlane.xlu0 %3932
        %v3934 = vsel %vm2531, %v3862, -inf
        %v3935 = vsel %vm2533, %v3864, -inf
        %v3936 = vmax.f32 %v3934, %v3935
        %3937 = vmax.xlane.f32.xlu0 %v3936
        %v3938 = vpop.xlane.xlu0 %3937
        %v3939 = vsub.f32 %v3778, %v3869
        %v3940 = vsub.f32 %v3780, %v3869
        %v3941 = vsub.f32 %v3782, %v3873
        %v3942 = vsub.f32 %v3784, %v3873
        %v3943 = vsub.f32 %v3788, %v3877
        %v3944 = vsub.f32 %v3790, %v3877
        %v3945 = vsub.f32 %v3792, %v3881
        %v3946 = vsub.f32 %v3794, %v3881
        %v3947 = vsub.f32 %v3798, %v3885
        %v3948 = vsub.f32 %v3800, %v3885
        %v3949 = vsub.f32 %v3802, %v3889
        %v3950 = vsub.f32 %v3804, %v3889
        %v3951 = vsub.f32 %v3808, %v3893
        %v3952 = vsub.f32 %v3810, %v3893
        %v3953 = vsub.f32 %v3812, %v3897
        %v3954 = vsub.f32 %v3814, %v3897
        %v3955 = vsub.f32 %v3818, %v3901
        %v3956 = vsub.f32 %v3820, %v3901
        %v3957 = vsub.f32 %v3822, %v3905
        %v3958 = vsub.f32 %v3824, %v3905
        %v3959 = vsub.f32 %v3828, %v3909
        %v3960 = vsub.f32 %v3830, %v3909
        %v3961 = vsub.f32 %v3832, %v3913
        %v3962 = vsub.f32 %v3834, %v3913
        %v3963 = vsub.f32 %v3838, %v3917
        %v3964 = vsub.f32 %v3840, %v3917
        %v3965 = vsub.f32 %v3842, %v3921
        %v3966 = vsub.f32 %v3844, %v3921
        %v3967 = vsub.f32 %v3848, %v3925
        %v3968 = vsub.f32 %v3850, %v3925
        %v3969 = vsub.f32 %v3852, %v3929
        %v3970 = vsub.f32 %v3854, %v3929
        %v3971 = vsub.f32 %v3858, %v3933
        %v3972 = vsub.f32 %v3860, %v3933
        %v3973 = vsub.f32 %v3862, %v3938
        %v3974 = vsub.f32 %v3864, %v3938
        %v3975 = vmul.f32 %v3939, 1.442695
        %v3976 = vpow.pop %v3975
        %v3977 = vmul.f32 %v3940, 1.442695
        %v3978 = vpow.pop %v3977
        %v3979 = vmul.f32 %v3941, 1.442695
        %v3980 = vpow.pop %v3979
        %v3981 = vmul.f32 %v3942, 1.442695
        %v3982 = vpow.pop %v3981
        %v3983 = vmul.f32 %v3943, 1.442695
        %v3984 = vpow.pop %v3983
        %v3985 = vmul.f32 %v3944, 1.442695
        %v3986 = vpow.pop %v3985
        %v3987 = vmul.f32 %v3945, 1.442695
        %v3988 = vpow.pop %v3987
        %v3989 = vmul.f32 %v3946, 1.442695
        %v3990 = vpow.pop %v3989
        %v3991 = vmul.f32 %v3947, 1.442695
        %v3992 = vpow.pop %v3991
        %v3993 = vmul.f32 %v3948, 1.442695
        %v3994 = vpow.pop %v3993
        %v3995 = vmul.f32 %v3949, 1.442695
        %v3996 = vpow.pop %v3995
        %v3997 = vmul.f32 %v3950, 1.442695
        %v3998 = vpow.pop %v3997
        %v3999 = vmul.f32 %v3951, 1.442695
        %v4000 = vpow.pop %v3999
        %v4001 = vmul.f32 %v3952, 1.442695
        %v4002 = vpow.pop %v4001
        %v4003 = vmul.f32 %v3953, 1.442695
        %v4004 = vpow.pop %v4003
        %v4005 = vmul.f32 %v3954, 1.442695
        %v4006 = vpow.pop %v4005
        %v4007 = vmul.f32 %v3955, 1.442695
        %v4008 = vpow.pop %v4007
        %v4009 = vmul.f32 %v3956, 1.442695
        %v4010 = vpow.pop %v4009
        %v4011 = vmul.f32 %v3957, 1.442695
        %v4012 = vpow.pop %v4011
        %v4013 = vmul.f32 %v3958, 1.442695
        %v4014 = vpow.pop %v4013
        %v4015 = vmul.f32 %v3959, 1.442695
        %v4016 = vpow.pop %v4015
        %v4017 = vmul.f32 %v3960, 1.442695
        %v4018 = vpow.pop %v4017
        %v4019 = vmul.f32 %v3961, 1.442695
        %v4020 = vpow.pop %v4019
        %v4021 = vmul.f32 %v3962, 1.442695
        %v4022 = vpow.pop %v4021
        %v4023 = vmul.f32 %v3963, 1.442695
        %v4024 = vpow.pop %v4023
        %v4025 = vmul.f32 %v3964, 1.442695
        %v4026 = vpow.pop %v4025
        %v4027 = vmul.f32 %v3965, 1.442695
        %v4028 = vpow.pop %v4027
        %v4029 = vmul.f32 %v3966, 1.442695
        %v4030 = vpow.pop %v4029
        %v4031 = vmul.f32 %v3967, 1.442695
        %v4032 = vpow.pop %v4031
        %v4033 = vmul.f32 %v3968, 1.442695
        %v4034 = vpow.pop %v4033
        %v4035 = vmul.f32 %v3969, 1.442695
        %v4036 = vpow.pop %v4035
        %v4037 = vmul.f32 %v3970, 1.442695
        %v4038 = vpow.pop %v4037
        %v4039 = vmul.f32 %v3971, 1.442695
        %v4040 = vpow.pop %v4039
        %v4041 = vmul.f32 %v3972, 1.442695
        %v4042 = vpow.pop %v4041
        %v4043 = vmul.f32 %v3973, 1.442695
        %v4044 = vpow.pop %v4043
        %v4045 = vmul.f32 %v3974, 1.442695
        %v4046 = vpow.pop %v4045
        %v4047 = vsel %vm2462, %v3978, 0.0
        %v4048 = vadd.f32 %v3976, %v4047
        %4049 = vadd.xlane.f32.xlu0 %v4048
        %v4050 = vpop.xlane.xlu0 %4049
        %v4051 = vsel %vm2462, %v3982, 0.0
        %v4052 = vadd.f32 %v3980, %v4051
        %4053 = vadd.xlane.f32.xlu0 %v4052
        %v4054 = vpop.xlane.xlu0 %4053
        %v4055 = vsel %vm2462, %v3986, 0.0
        %v4056 = vadd.f32 %v3984, %v4055
        %4057 = vadd.xlane.f32.xlu0 %v4056
        %v4058 = vpop.xlane.xlu0 %4057
        %v4059 = vsel %vm2462, %v3990, 0.0
        %v4060 = vadd.f32 %v3988, %v4059
        %4061 = vadd.xlane.f32.xlu0 %v4060
        %v4062 = vpop.xlane.xlu0 %4061
        %v4063 = vsel %vm2462, %v3994, 0.0
        %v4064 = vadd.f32 %v3992, %v4063
        %4065 = vadd.xlane.f32.xlu0 %v4064
        %v4066 = vpop.xlane.xlu0 %4065
        %v4067 = vsel %vm2462, %v3998, 0.0
        %v4068 = vadd.f32 %v3996, %v4067
        %4069 = vadd.xlane.f32.xlu0 %v4068
        %v4070 = vpop.xlane.xlu0 %4069
        %v4071 = vsel %vm2462, %v4002, 0.0
        %v4072 = vadd.f32 %v4000, %v4071
        %4073 = vadd.xlane.f32.xlu0 %v4072
        %v4074 = vpop.xlane.xlu0 %4073
        %v4075 = vsel %vm2462, %v4006, 0.0
        %v4076 = vadd.f32 %v4004, %v4075
        %4077 = vadd.xlane.f32.xlu0 %v4076
        %v4078 = vpop.xlane.xlu0 %4077
        %v4079 = vsel %vm2462, %v4010, 0.0
        %v4080 = vadd.f32 %v4008, %v4079
        %4081 = vadd.xlane.f32.xlu0 %v4080
        %v4082 = vpop.xlane.xlu0 %4081
        %v4083 = vsel %vm2462, %v4014, 0.0
        %v4084 = vadd.f32 %v4012, %v4083
        %4085 = vadd.xlane.f32.xlu0 %v4084
        %v4086 = vpop.xlane.xlu0 %4085
        %v4087 = vsel %vm2462, %v4018, 0.0
        %v4088 = vadd.f32 %v4016, %v4087
        %4089 = vadd.xlane.f32.xlu0 %v4088
        %v4090 = vpop.xlane.xlu0 %4089
        %v4091 = vsel %vm2462, %v4022, 0.0
        %v4092 = vadd.f32 %v4020, %v4091
        %4093 = vadd.xlane.f32.xlu0 %v4092
        %v4094 = vpop.xlane.xlu0 %4093
        %v4095 = vsel %vm2462, %v4026, 0.0
        %v4096 = vadd.f32 %v4024, %v4095
        %4097 = vadd.xlane.f32.xlu0 %v4096
        %v4098 = vpop.xlane.xlu0 %4097
        %v4099 = vsel %vm2462, %v4030, 0.0
        %v4100 = vadd.f32 %v4028, %v4099
        %4101 = vadd.xlane.f32.xlu0 %v4100
        %v4102 = vpop.xlane.xlu0 %4101
        %v4103 = vsel %vm2462, %v4034, 0.0
        %v4104 = vadd.f32 %v4032, %v4103
        %4105 = vadd.xlane.f32.xlu0 %v4104
        %v4106 = vpop.xlane.xlu0 %4105
        %v4107 = vsel %vm2462, %v4038, 0.0
        %v4108 = vadd.f32 %v4036, %v4107
        %4109 = vadd.xlane.f32.xlu0 %v4108
        %v4110 = vpop.xlane.xlu0 %4109
        %v4111 = vsel %vm2462, %v4042, 0.0
        %v4112 = vadd.f32 %v4040, %v4111
        %4113 = vadd.xlane.f32.xlu0 %v4112
        %v4114 = vpop.xlane.xlu0 %4113
        %v4115 = vsel %vm2531, %v4044, 0.0
        %v4116 = vsel %vm2533, %v4046, 0.0
        %v4117 = vadd.f32 %v4115, %v4116
        %4118 = vadd.xlane.f32.xlu0 %v4117
        %v4119 = vpop.xlane.xlu0 %4118
        %v4120 = vpack.c.bf16 %v3980, %v3976
        %v4121 = vpack.c.bf16 %v3982, %v3978
        %v4122 = vpack.c.bf16 %v3988, %v3984
        %v4123 = vpack.c.bf16 %v3990, %v3986
        %v4124 = vpack.c.bf16 %v3996, %v3992
        %v4125 = vpack.c.bf16 %v3998, %v3994
        %v4126 = vpack.c.bf16 %v4004, %v4000
        %v4127 = vpack.c.bf16 %v4006, %v4002
        %v4128 = vpack.c.bf16 %v4012, %v4008
        %v4129 = vpack.c.bf16 %v4014, %v4010
        %v4130 = vpack.c.bf16 %v4020, %v4016
        %v4131 = vpack.c.bf16 %v4022, %v4018
        %v4132 = vpack.c.bf16 %v4028, %v4024
        %v4133 = vpack.c.bf16 %v4030, %v4026
        %v4134 = vpack.c.bf16 %v4036, %v4032
        %v4135 = vpack.c.bf16 %v4038, %v4034
        %v4136 = vpack.c.bf16 %v4044, %v4040
        %v4137 = vpack.c.bf16 %v4046, %v4042
        %4138 = vrot.lane.b32.xlu0 %v2249, 48
        %v4139 = vpop.permute.xlu0 %4138
        %4140 = vrot.lane.b32.xlu0 %v2250, 48
        %v4141 = vpop.permute.xlu0 %4140
        %4142 = vrot.lane.b32.xlu0 %v2251, 48
        %v4143 = vpop.permute.xlu0 %4142
        %4144 = vrot.lane.b32.xlu0 %v2252, 48
        %v4145 = vpop.permute.xlu0 %4144
        %4146 = vrot.lane.b32.xlu0 %v2253, 48
        %v4147 = vpop.permute.xlu0 %4146
        %4148 = vrot.lane.b32.xlu0 %v2254, 48
        %v4149 = vpop.permute.xlu0 %4148
        %4150 = vrot.lane.b32.xlu0 %v2255, 48
        %v4151 = vpop.permute.xlu0 %4150
        %4152 = vrot.lane.b32.xlu0 %v2256, 48
        %v4153 = vpop.permute.xlu0 %4152
        %4154 = vrot.lane.b32.xlu0 %v2257, 48
        %v4155 = vpop.permute.xlu0 %4154
        %v4165 = vsel %vm2462, %v4121, 0
        %v4168 = vsel %vm2462, %v4123, 0
        %v4171 = vsel %vm2462, %v4125, 0
        %v4174 = vsel %vm2462, %v4127, 0
        %v4177 = vsel %vm2462, %v4129, 0
        %v4180 = vsel %vm2462, %v4131, 0
        %v4183 = vsel %vm2462, %v4133, 0
        %v4186 = vsel %vm2462, %v4135, 0
        %v4189 = vsel %vm2462, %v4137, 0
        %v4192 = vsel %vm2790, %v4155, 0
        %4194 = vmatprep.subr.bf16.mxu0 0
        %4195 = vmatpush1.bf16.msra.mxu0 %v4153
        %4196 = vmatprep.subr.bf16.mxu0 0
        %4197 = vmatpush1.bf16.msra.mxu0 %v4151
        %4198 = vmatprep.subr.bf16.mxu0 0
        %4199 = vmatpush1.bf16.msra.mxu0 %v4149
        %4200 = vmatprep.subr.bf16.mxu0 0
        %4201 = vmatpush1.bf16.msra.mxu0 %v4147
        %4202 = vmatprep.subr.bf16.mxu0 0
        %4203 = vmatpush1.bf16.msra.mxu0 %v4145
        %4204 = vmatprep.subr.bf16.mxu0 0
        %4205 = vmatpush1.bf16.msra.mxu0 %v4143
        %4206 = vmatprep.subr.bf16.mxu0 0
        %4207 = vmatpush1.bf16.msra.mxu0 %v4141
        %4208 = vmatprep.subr.bf16.mxu0 0
        %4209 = vmatpush1.bf16.msra.mxu0 %v4139
        %4210 = vmatprep.subr.bf16.mxu0 0
        %4211 = vmatpush2.bf16.msra.mxu0 0
        %4212 = vmatprep.subr.bf16.mxu0 0
        %4213 = vmatpush2.bf16.msra.mxu0 0
        %4214 = vmatprep.subr.bf16.mxu0 0
        %4215 = vmatpush2.bf16.msra.mxu0 0
        %4216 = vmatprep.subr.bf16.mxu0 0
        %4217 = vmatpush2.bf16.msra.mxu0 0
        %4218 = vmatprep.subr.bf16.mxu0 0
        %4219 = vmatpush2.bf16.msra.mxu0 0
        %4220 = vmatprep.subr.bf16.mxu0 0
        %4221 = vmatpush2.bf16.msra.mxu0 0
        %4222 = vmatprep.subr.bf16.mxu0 0
        %4223 = vmatpush2.bf16.msra.mxu0 0
        %4224 = vmatprep.subr.bf16.mxu0 0
        %4225 = vmatpush2.bf16.msra.mxu0 %v4192
        %4226 = vmatprep.mubr.bf16.mxu0 %v4165
        %4227 = vmatmul.mubr.bf16.gmra.mxu0 %v4120
        %v4228 = vpop.f32.mrf.mxu0
        %v4229 = vadd.f32 0.0, %v4228
        %v4230 = vpop.f32.mrf.mxu0
        %v4231 = vpop.f32.mrf.mxu0
        %v4232 = vadd.f32 0.0, %v4231
        %v4233 = vpop.f32.mrf.mxu0
        %4234 = vmatprep.mubr.bf16.mxu0 %v4168
        %4235 = vmatmul.mubr.bf16.gmra.mxu0 %v4122
        %v4236 = vpop.f32.mrf.mxu0
        %v4237 = vadd.f32 0.0, %v4236
        %v4238 = vpop.f32.mrf.mxu0
        %v4239 = vpop.f32.mrf.mxu0
        %v4240 = vadd.f32 0.0, %v4239
        %v4241 = vpop.f32.mrf.mxu0
        %4242 = vmatprep.mubr.bf16.mxu0 %v4171
        %4243 = vmatmul.mubr.bf16.gmra.mxu0 %v4124
        %v4244 = vpop.f32.mrf.mxu0
        %v4245 = vadd.f32 0.0, %v4244
        %v4246 = vpop.f32.mrf.mxu0
        %v4247 = vpop.f32.mrf.mxu0
        %v4248 = vadd.f32 0.0, %v4247
        %v4249 = vpop.f32.mrf.mxu0
        %4250 = vmatprep.mubr.bf16.mxu0 %v4174
        %4251 = vmatmul.mubr.bf16.gmra.mxu0 %v4126
        %v4252 = vpop.f32.mrf.mxu0
        %v4253 = vadd.f32 0.0, %v4252
        %v4254 = vpop.f32.mrf.mxu0
        %v4255 = vpop.f32.mrf.mxu0
        %v4256 = vadd.f32 0.0, %v4255
        %v4257 = vpop.f32.mrf.mxu0
        %4258 = vmatprep.mubr.bf16.mxu0 %v4177
        %4259 = vmatmul.mubr.bf16.gmra.mxu0 %v4128
        %v4260 = vpop.f32.mrf.mxu0
        %v4261 = vadd.f32 0.0, %v4260
        %v4262 = vpop.f32.mrf.mxu0
        %v4263 = vpop.f32.mrf.mxu0
        %v4264 = vadd.f32 0.0, %v4263
        %v4265 = vpop.f32.mrf.mxu0
        %4266 = vmatprep.mubr.bf16.mxu0 %v4180
        %4267 = vmatmul.mubr.bf16.gmra.mxu0 %v4130
        %v4268 = vpop.f32.mrf.mxu0
        %v4269 = vadd.f32 0.0, %v4268
        %v4270 = vpop.f32.mrf.mxu0
        %v4271 = vpop.f32.mrf.mxu0
        %v4272 = vadd.f32 0.0, %v4271
        %v4273 = vpop.f32.mrf.mxu0
        %4274 = vmatprep.mubr.bf16.mxu0 %v4183
        %4275 = vmatmul.mubr.bf16.gmra.mxu0 %v4132
        %v4276 = vpop.f32.mrf.mxu0
        %v4277 = vadd.f32 0.0, %v4276
        %v4278 = vpop.f32.mrf.mxu0
        %v4279 = vpop.f32.mrf.mxu0
        %v4280 = vadd.f32 0.0, %v4279
        %v4281 = vpop.f32.mrf.mxu0
        %4282 = vmatprep.mubr.bf16.mxu0 %v4186
        %4283 = vmatmul.mubr.bf16.gmra.mxu0 %v4134
        %v4284 = vpop.f32.mrf.mxu0
        %v4285 = vadd.f32 0.0, %v4284
        %v4286 = vpop.f32.mrf.mxu0
        %v4287 = vpop.f32.mrf.mxu0
        %v4288 = vadd.f32 0.0, %v4287
        %v4289 = vpop.f32.mrf.mxu0
        %4290 = vmatprep.mubr.bf16.mxu0 %v4189
        %4291 = vmatmul.mubr.bf16.gmra.mxu0 %v4136
        %v4292 = vpop.f32.mrf.mxu0
        %v4293 = vadd.f32 0.0, %v4292
        %v4294 = vpop.f32.mrf.mxu0
        %v4295 = vpop.f32.mrf.mxu0
        %v4296 = vadd.f32 0.0, %v4295
        %v4297 = vpop.f32.mrf.mxu0
        %4298 = vdwg.mxu0
        %v4299 = vrcp.pop %v4050
        %v4300 = vmul.f32 1.0, %v4299
        %v4301 = vrcp.pop %v4054
        %v4302 = vmul.f32 1.0, %v4301
        %v4303 = vrcp.pop %v4058
        %v4304 = vmul.f32 1.0, %v4303
        %v4305 = vrcp.pop %v4062
        %v4306 = vmul.f32 1.0, %v4305
        %v4307 = vrcp.pop %v4066
        %v4308 = vmul.f32 1.0, %v4307
        %v4309 = vrcp.pop %v4070
        %v4310 = vmul.f32 1.0, %v4309
        %v4311 = vrcp.pop %v4074
        %v4312 = vmul.f32 1.0, %v4311
        %v4313 = vrcp.pop %v4078
        %v4314 = vmul.f32 1.0, %v4313
        %v4315 = vrcp.pop %v4082
        %v4316 = vmul.f32 1.0, %v4315
        %v4317 = vrcp.pop %v4086
        %v4318 = vmul.f32 1.0, %v4317
        %v4319 = vrcp.pop %v4090
        %v4320 = vmul.f32 1.0, %v4319
        %v4321 = vrcp.pop %v4094
        %v4322 = vmul.f32 1.0, %v4321
        %v4323 = vrcp.pop %v4098
        %v4324 = vmul.f32 1.0, %v4323
        %v4325 = vrcp.pop %v4102
        %v4326 = vmul.f32 1.0, %v4325
        %v4327 = vrcp.pop %v4106
        %v4328 = vmul.f32 1.0, %v4327
        %v4329 = vrcp.pop %v4110
        %v4330 = vmul.f32 1.0, %v4329
        %v4331 = vrcp.pop %v4114
        %v4332 = vmul.f32 1.0, %v4331
        %v4333 = vrcp.pop %v4119
        %v4334 = vmul.f32 1.0, %v4333
        %v4335 = vmul.f32 %v4229, %v4300
        %v4336 = vmul.f32 %v4232, %v4302
        %v4337 = vmul.f32 %v4237, %v4304
        %v4338 = vmul.f32 %v4240, %v4306
        %v4339 = vmul.f32 %v4245, %v4308
        %v4340 = vmul.f32 %v4248, %v4310
        %v4341 = vmul.f32 %v4253, %v4312
        %v4342 = vmul.f32 %v4256, %v4314
        %v4343 = vmul.f32 %v4261, %v4316
        %v4344 = vmul.f32 %v4264, %v4318
        %v4345 = vmul.f32 %v4269, %v4320
        %v4346 = vmul.f32 %v4272, %v4322
        %v4347 = vmul.f32 %v4277, %v4324
        %v4348 = vmul.f32 %v4280, %v4326
        %v4349 = vmul.f32 %v4285, %v4328
        %v4350 = vmul.f32 %v4288, %v4330
        %v4351 = vmul.f32 %v4293, %v4332
        %v4352 = vmul.f32 %v4296, %v4334
        %4353 = vrot.lane.b32.xlu0 %v2249, 104
        %v4354 = vpop.permute.xlu0 %4353
        %4355 = vrot.lane.b32.xlu0 %v2250, 104
        %v4356 = vpop.permute.xlu0 %4355
        %4357 = vrot.lane.b32.xlu0 %v2251, 104
        %v4358 = vpop.permute.xlu0 %4357
        %4359 = vrot.lane.b32.xlu0 %v2252, 104
        %v4360 = vpop.permute.xlu0 %4359
        %4361 = vrot.lane.b32.xlu0 %v2253, 104
        %v4362 = vpop.permute.xlu0 %4361
        %4363 = vrot.lane.b32.xlu0 %v2254, 104
        %v4364 = vpop.permute.xlu0 %4363
        %4365 = vrot.lane.b32.xlu0 %v2255, 104
        %v4366 = vpop.permute.xlu0 %4365
        %4367 = vrot.lane.b32.xlu0 %v2256, 104
        %v4368 = vpop.permute.xlu0 %4367
        %4369 = vrot.lane.b32.xlu0 %v2257, 104
        %v4370 = vpop.permute.xlu0 %4369
        %4371 = vrot.lane.b32.xlu0 %v2249, 72
        %v4372 = vpop.permute.xlu0 %4371
        %4373 = vrot.lane.b32.xlu0 %v2250, 72
        %v4374 = vpop.permute.xlu0 %4373
        %4375 = vrot.lane.b32.xlu0 %v2251, 72
        %v4376 = vpop.permute.xlu0 %4375
        %4377 = vrot.lane.b32.xlu0 %v2252, 72
        %v4378 = vpop.permute.xlu0 %4377
        %4379 = vrot.lane.b32.xlu0 %v2253, 72
        %v4380 = vpop.permute.xlu0 %4379
        %4381 = vrot.lane.b32.xlu0 %v2254, 72
        %v4382 = vpop.permute.xlu0 %4381
        %4383 = vrot.lane.b32.xlu0 %v2255, 72
        %v4384 = vpop.permute.xlu0 %4383
        %4385 = vrot.lane.b32.xlu0 %v2256, 72
        %v4386 = vpop.permute.xlu0 %4385
        %4387 = vrot.lane.b32.xlu0 %v2257, 72
        %v4388 = vpop.permute.xlu0 %4387
        %v4390 = vsel %vm973, %v4354, 0
        %v4393 = vsel %vm973, %v4356, 0
        %v4396 = vsel %vm973, %v4358, 0
        %v4399 = vsel %vm973, %v4360, 0
        %v4402 = vsel %vm973, %v4362, 0
        %v4405 = vsel %vm973, %v4364, 0
        %v4408 = vsel %vm973, %v4366, 0
        %v4411 = vsel %vm973, %v4368, 0
        %v4414 = vsel %vm973, %v4370, 0
        %v4417 = vsel %vm973, %v4372, 0
        %v4420 = vsel %vm973, %v4374, 0
        %v4423 = vsel %vm973, %v4376, 0
        %v4426 = vsel %vm973, %v4378, 0
        %v4429 = vsel %vm973, %v4380, 0
        %v4432 = vsel %vm973, %v4382, 0
        %v4435 = vsel %vm973, %v4384, 0
        %v4438 = vsel %vm973, %v4386, 0
        %v4441 = vsel %vm973, %v4388, 0
        %4443 = vmatprep.subr.bf16.mxu0 0
        %4444 = vmatpush1.bf16.xpose.msra.mxu0 %v4438
        %4445 = vmatprep.subr.bf16.mxu0 0
        %4446 = vmatpush1.bf16.xpose.msra.mxu0 %v4435
        %4447 = vmatprep.subr.bf16.mxu0 0
        %4448 = vmatpush1.bf16.xpose.msra.mxu0 %v4432
        %4449 = vmatprep.subr.bf16.mxu0 0
        %4450 = vmatpush1.bf16.xpose.msra.mxu0 %v4429
        %4451 = vmatprep.subr.bf16.mxu0 0
        %4452 = vmatpush1.bf16.xpose.msra.mxu0 %v4426
        %4453 = vmatprep.subr.bf16.mxu0 0
        %4454 = vmatpush1.bf16.xpose.msra.mxu0 %v4423
        %4455 = vmatprep.subr.bf16.mxu0 0
        %4456 = vmatpush1.bf16.xpose.msra.mxu0 %v4420
        %4457 = vmatprep.subr.bf16.mxu0 0
        %4458 = vmatpush1.bf16.xpose.msra.mxu0 %v4417
        %4459 = vmatprep.subr.bf16.mxu0 0
        %4460 = vmatpush2.bf16.xpose.msra.mxu0 0
        %4461 = vmatprep.subr.bf16.mxu0 0
        %4462 = vmatpush2.bf16.xpose.msra.mxu0 0
        %4463 = vmatprep.subr.bf16.mxu0 0
        %4464 = vmatpush2.bf16.xpose.msra.mxu0 0
        %4465 = vmatprep.subr.bf16.mxu0 0
        %4466 = vmatpush2.bf16.xpose.msra.mxu0 0
        %4467 = vmatprep.subr.bf16.mxu0 0
        %4468 = vmatpush2.bf16.xpose.msra.mxu0 0
        %4469 = vmatprep.subr.bf16.mxu0 0
        %4470 = vmatpush2.bf16.xpose.msra.mxu0 0
        %4471 = vmatprep.subr.bf16.mxu0 0
        %4472 = vmatpush2.bf16.xpose.msra.mxu0 0
        %4473 = vmatprep.subr.bf16.mxu0 0
        %4474 = vmatpush2.bf16.xpose.msra.mxu0 %v4441
        %4475 = vmatprep.mubr.bf16.mxu0 0
        %4476 = vmatmul.mubr.bf16.gmra.mxu0 %v4390
        %v4477 = vpop.f32.mrf.mxu0
        %v4478 = vadd.f32 0.0, %v4477
        %v4479 = vpop.f32.mrf.mxu0
        %v4480 = vadd.f32 0.0, %v4479
        %v4481 = vpop.f32.mrf.mxu0
        %v4482 = vadd.f32 0.0, %v4481
        %v4483 = vpop.f32.mrf.mxu0
        %v4484 = vadd.f32 0.0, %v4483
        %4485 = vmatprep.mubr.bf16.mxu0 0
        %4486 = vmatmul.mubr.bf16.gmra.mxu0 %v4393
        %v4487 = vpop.f32.mrf.mxu0
        %v4488 = vadd.f32 0.0, %v4487
        %v4489 = vpop.f32.mrf.mxu0
        %v4490 = vadd.f32 0.0, %v4489
        %v4491 = vpop.f32.mrf.mxu0
        %v4492 = vadd.f32 0.0, %v4491
        %v4493 = vpop.f32.mrf.mxu0
        %v4494 = vadd.f32 0.0, %v4493
        %4495 = vmatprep.mubr.bf16.mxu0 0
        %4496 = vmatmul.mubr.bf16.gmra.mxu0 %v4396
        %v4497 = vpop.f32.mrf.mxu0
        %v4498 = vadd.f32 0.0, %v4497
        %v4499 = vpop.f32.mrf.mxu0
        %v4500 = vadd.f32 0.0, %v4499
        %v4501 = vpop.f32.mrf.mxu0
        %v4502 = vadd.f32 0.0, %v4501
        %v4503 = vpop.f32.mrf.mxu0
        %v4504 = vadd.f32 0.0, %v4503
        %4505 = vmatprep.mubr.bf16.mxu0 0
        %4506 = vmatmul.mubr.bf16.gmra.mxu0 %v4399
        %v4507 = vpop.f32.mrf.mxu0
        %v4508 = vadd.f32 0.0, %v4507
        %v4509 = vpop.f32.mrf.mxu0
        %v4510 = vadd.f32 0.0, %v4509
        %v4511 = vpop.f32.mrf.mxu0
        %v4512 = vadd.f32 0.0, %v4511
        %v4513 = vpop.f32.mrf.mxu0
        %v4514 = vadd.f32 0.0, %v4513
        %4515 = vmatprep.mubr.bf16.mxu0 0
        %4516 = vmatmul.mubr.bf16.gmra.mxu0 %v4402
        %v4517 = vpop.f32.mrf.mxu0
        %v4518 = vadd.f32 0.0, %v4517
        %v4519 = vpop.f32.mrf.mxu0
        %v4520 = vadd.f32 0.0, %v4519
        %v4521 = vpop.f32.mrf.mxu0
        %v4522 = vadd.f32 0.0, %v4521
        %v4523 = vpop.f32.mrf.mxu0
        %v4524 = vadd.f32 0.0, %v4523
        %4525 = vmatprep.mubr.bf16.mxu0 0
        %4526 = vmatmul.mubr.bf16.gmra.mxu0 %v4405
        %v4527 = vpop.f32.mrf.mxu0
        %v4528 = vadd.f32 0.0, %v4527
        %v4529 = vpop.f32.mrf.mxu0
        %v4530 = vadd.f32 0.0, %v4529
        %v4531 = vpop.f32.mrf.mxu0
        %v4532 = vadd.f32 0.0, %v4531
        %v4533 = vpop.f32.mrf.mxu0
        %v4534 = vadd.f32 0.0, %v4533
        %4535 = vmatprep.mubr.bf16.mxu0 0
        %4536 = vmatmul.mubr.bf16.gmra.mxu0 %v4408
        %v4537 = vpop.f32.mrf.mxu0
        %v4538 = vadd.f32 0.0, %v4537
        %v4539 = vpop.f32.mrf.mxu0
        %v4540 = vadd.f32 0.0, %v4539
        %v4541 = vpop.f32.mrf.mxu0
        %v4542 = vadd.f32 0.0, %v4541
        %v4543 = vpop.f32.mrf.mxu0
        %v4544 = vadd.f32 0.0, %v4543
        %4545 = vmatprep.mubr.bf16.mxu0 0
        %4546 = vmatmul.mubr.bf16.gmra.mxu0 %v4411
        %v4547 = vpop.f32.mrf.mxu0
        %v4548 = vadd.f32 0.0, %v4547
        %v4549 = vpop.f32.mrf.mxu0
        %v4550 = vadd.f32 0.0, %v4549
        %v4551 = vpop.f32.mrf.mxu0
        %v4552 = vadd.f32 0.0, %v4551
        %v4553 = vpop.f32.mrf.mxu0
        %v4554 = vadd.f32 0.0, %v4553
        %4555 = vmatprep.mubr.bf16.mxu0 0
        %4556 = vmatmul.mubr.bf16.gmra.mxu0 %v4414
        %v4557 = vpop.f32.mrf.mxu0
        %v4558 = vadd.f32 0.0, %v4557
        %v4559 = vpop.f32.mrf.mxu0
        %v4560 = vadd.f32 0.0, %v4559
        %v4561 = vpop.f32.mrf.mxu0
        %v4562 = vadd.f32 0.0, %v4561
        %v4563 = vpop.f32.mrf.mxu0
        %v4564 = vadd.f32 0.0, %v4563
        %4565 = vdwg.mxu0
        %v4566 = vsel %vm2462, %v4480, -inf
        %v4567 = vmax.f32 %v4478, %v4566
        %4568 = vmax.xlane.f32.xlu0 %v4567
        %v4569 = vpop.xlane.xlu0 %4568
        %v4570 = vsel %vm2462, %v4484, -inf
        %v4571 = vmax.f32 %v4482, %v4570
        %4572 = vmax.xlane.f32.xlu0 %v4571
        %v4573 = vpop.xlane.xlu0 %4572
        %v4574 = vsel %vm2462, %v4490, -inf
        %v4575 = vmax.f32 %v4488, %v4574
        %4576 = vmax.xlane.f32.xlu0 %v4575
        %v4577 = vpop.xlane.xlu0 %4576
        %v4578 = vsel %vm2462, %v4494, -inf
        %v4579 = vmax.f32 %v4492, %v4578
        %4580 = vmax.xlane.f32.xlu0 %v4579
        %v4581 = vpop.xlane.xlu0 %4580
        %v4582 = vsel %vm2462, %v4500, -inf
        %v4583 = vmax.f32 %v4498, %v4582
        %4584 = vmax.xlane.f32.xlu0 %v4583
        %v4585 = vpop.xlane.xlu0 %4584
        %v4586 = vsel %vm2462, %v4504, -inf
        %v4587 = vmax.f32 %v4502, %v4586
        %4588 = vmax.xlane.f32.xlu0 %v4587
        %v4589 = vpop.xlane.xlu0 %4588
        %v4590 = vsel %vm2462, %v4510, -inf
        %v4591 = vmax.f32 %v4508, %v4590
        %4592 = vmax.xlane.f32.xlu0 %v4591
        %v4593 = vpop.xlane.xlu0 %4592
        %v4594 = vsel %vm2462, %v4514, -inf
        %v4595 = vmax.f32 %v4512, %v4594
        %4596 = vmax.xlane.f32.xlu0 %v4595
        %v4597 = vpop.xlane.xlu0 %4596
        %v4598 = vsel %vm2462, %v4520, -inf
        %v4599 = vmax.f32 %v4518, %v4598
        %4600 = vmax.xlane.f32.xlu0 %v4599
        %v4601 = vpop.xlane.xlu0 %4600
        %v4602 = vsel %vm2462, %v4524, -inf
        %v4603 = vmax.f32 %v4522, %v4602
        %4604 = vmax.xlane.f32.xlu0 %v4603
        %v4605 = vpop.xlane.xlu0 %4604
        %v4606 = vsel %vm2462, %v4530, -inf
        %v4607 = vmax.f32 %v4528, %v4606
        %4608 = vmax.xlane.f32.xlu0 %v4607
        %v4609 = vpop.xlane.xlu0 %4608
        %v4610 = vsel %vm2462, %v4534, -inf
        %v4611 = vmax.f32 %v4532, %v4610
        %4612 = vmax.xlane.f32.xlu0 %v4611
        %v4613 = vpop.xlane.xlu0 %4612
        %v4614 = vsel %vm2462, %v4540, -inf
        %v4615 = vmax.f32 %v4538, %v4614
        %4616 = vmax.xlane.f32.xlu0 %v4615
        %v4617 = vpop.xlane.xlu0 %4616
        %v4618 = vsel %vm2462, %v4544, -inf
        %v4619 = vmax.f32 %v4542, %v4618
        %4620 = vmax.xlane.f32.xlu0 %v4619
        %v4621 = vpop.xlane.xlu0 %4620
        %v4622 = vsel %vm2462, %v4550, -inf
        %v4623 = vmax.f32 %v4548, %v4622
        %4624 = vmax.xlane.f32.xlu0 %v4623
        %v4625 = vpop.xlane.xlu0 %4624
        %v4626 = vsel %vm2462, %v4554, -inf
        %v4627 = vmax.f32 %v4552, %v4626
        %4628 = vmax.xlane.f32.xlu0 %v4627
        %v4629 = vpop.xlane.xlu0 %4628
        %v4630 = vsel %vm2462, %v4560, -inf
        %v4631 = vmax.f32 %v4558, %v4630
        %4632 = vmax.xlane.f32.xlu0 %v4631
        %v4633 = vpop.xlane.xlu0 %4632
        %v4634 = vsel %vm2531, %v4562, -inf
        %v4635 = vsel %vm2533, %v4564, -inf
        %v4636 = vmax.f32 %v4634, %v4635
        %4637 = vmax.xlane.f32.xlu0 %v4636
        %v4638 = vpop.xlane.xlu0 %4637
        %v4639 = vsub.f32 %v4478, %v4569
        %v4640 = vsub.f32 %v4480, %v4569
        %v4641 = vsub.f32 %v4482, %v4573
        %v4642 = vsub.f32 %v4484, %v4573
        %v4643 = vsub.f32 %v4488, %v4577
        %v4644 = vsub.f32 %v4490, %v4577
        %v4645 = vsub.f32 %v4492, %v4581
        %v4646 = vsub.f32 %v4494, %v4581
        %v4647 = vsub.f32 %v4498, %v4585
        %v4648 = vsub.f32 %v4500, %v4585
        %v4649 = vsub.f32 %v4502, %v4589
        %v4650 = vsub.f32 %v4504, %v4589
        %v4651 = vsub.f32 %v4508, %v4593
        %v4652 = vsub.f32 %v4510, %v4593
        %v4653 = vsub.f32 %v4512, %v4597
        %v4654 = vsub.f32 %v4514, %v4597
        %v4655 = vsub.f32 %v4518, %v4601
        %v4656 = vsub.f32 %v4520, %v4601
        %v4657 = vsub.f32 %v4522, %v4605
        %v4658 = vsub.f32 %v4524, %v4605
        %v4659 = vsub.f32 %v4528, %v4609
        %v4660 = vsub.f32 %v4530, %v4609
        %v4661 = vsub.f32 %v4532, %v4613
        %v4662 = vsub.f32 %v4534, %v4613
        %v4663 = vsub.f32 %v4538, %v4617
        %v4664 = vsub.f32 %v4540, %v4617
        %v4665 = vsub.f32 %v4542, %v4621
        %v4666 = vsub.f32 %v4544, %v4621
        %v4667 = vsub.f32 %v4548, %v4625
        %v4668 = vsub.f32 %v4550, %v4625
        %v4669 = vsub.f32 %v4552, %v4629
        %v4670 = vsub.f32 %v4554, %v4629
        %v4671 = vsub.f32 %v4558, %v4633
        %v4672 = vsub.f32 %v4560, %v4633
        %v4673 = vsub.f32 %v4562, %v4638
        %v4674 = vsub.f32 %v4564, %v4638
        %v4675 = vmul.f32 %v4639, 1.442695
        %v4676 = vpow.pop %v4675
        %v4677 = vmul.f32 %v4640, 1.442695
        %v4678 = vpow.pop %v4677
        %v4679 = vmul.f32 %v4641, 1.442695
        %v4680 = vpow.pop %v4679
        %v4681 = vmul.f32 %v4642, 1.442695
        %v4682 = vpow.pop %v4681
        %v4683 = vmul.f32 %v4643, 1.442695
        %v4684 = vpow.pop %v4683
        %v4685 = vmul.f32 %v4644, 1.442695
        %v4686 = vpow.pop %v4685
        %v4687 = vmul.f32 %v4645, 1.442695
        %v4688 = vpow.pop %v4687
        %v4689 = vmul.f32 %v4646, 1.442695
        %v4690 = vpow.pop %v4689
        %v4691 = vmul.f32 %v4647, 1.442695
        %v4692 = vpow.pop %v4691
        %v4693 = vmul.f32 %v4648, 1.442695
        %v4694 = vpow.pop %v4693
        %v4695 = vmul.f32 %v4649, 1.442695
        %v4696 = vpow.pop %v4695
        %v4697 = vmul.f32 %v4650, 1.442695
        %v4698 = vpow.pop %v4697
        %v4699 = vmul.f32 %v4651, 1.442695
        %v4700 = vpow.pop %v4699
        %v4701 = vmul.f32 %v4652, 1.442695
        %v4702 = vpow.pop %v4701
        %v4703 = vmul.f32 %v4653, 1.442695
        %v4704 = vpow.pop %v4703
        %v4705 = vmul.f32 %v4654, 1.442695
        %v4706 = vpow.pop %v4705
        %v4707 = vmul.f32 %v4655, 1.442695
        %v4708 = vpow.pop %v4707
        %v4709 = vmul.f32 %v4656, 1.442695
        %v4710 = vpow.pop %v4709
        %v4711 = vmul.f32 %v4657, 1.442695
        %v4712 = vpow.pop %v4711
        %v4713 = vmul.f32 %v4658, 1.442695
        %v4714 = vpow.pop %v4713
        %v4715 = vmul.f32 %v4659, 1.442695
        %v4716 = vpow.pop %v4715
        %v4717 = vmul.f32 %v4660, 1.442695
        %v4718 = vpow.pop %v4717
        %v4719 = vmul.f32 %v4661, 1.442695
        %v4720 = vpow.pop %v4719
        %v4721 = vmul.f32 %v4662, 1.442695
        %v4722 = vpow.pop %v4721
        %v4723 = vmul.f32 %v4663, 1.442695
        %v4724 = vpow.pop %v4723
        %v4725 = vmul.f32 %v4664, 1.442695
        %v4726 = vpow.pop %v4725
        %v4727 = vmul.f32 %v4665, 1.442695
        %v4728 = vpow.pop %v4727
        %v4729 = vmul.f32 %v4666, 1.442695
        %v4730 = vpow.pop %v4729
        %v4731 = vmul.f32 %v4667, 1.442695
        %v4732 = vpow.pop %v4731
        %v4733 = vmul.f32 %v4668, 1.442695
        %v4734 = vpow.pop %v4733
        %v4735 = vmul.f32 %v4669, 1.442695
        %v4736 = vpow.pop %v4735
        %v4737 = vmul.f32 %v4670, 1.442695
        %v4738 = vpow.pop %v4737
        %v4739 = vmul.f32 %v4671, 1.442695
        %v4740 = vpow.pop %v4739
        %v4741 = vmul.f32 %v4672, 1.442695
        %v4742 = vpow.pop %v4741
        %v4743 = vmul.f32 %v4673, 1.442695
        %v4744 = vpow.pop %v4743
        %v4745 = vmul.f32 %v4674, 1.442695
        %v4746 = vpow.pop %v4745
        %v4747 = vsel %vm2462, %v4678, 0.0
        %v4748 = vadd.f32 %v4676, %v4747
        %4749 = vadd.xlane.f32.xlu0 %v4748
        %v4750 = vpop.xlane.xlu0 %4749
        %v4751 = vsel %vm2462, %v4682, 0.0
        %v4752 = vadd.f32 %v4680, %v4751
        %4753 = vadd.xlane.f32.xlu0 %v4752
        %v4754 = vpop.xlane.xlu0 %4753
        %v4755 = vsel %vm2462, %v4686, 0.0
        %v4756 = vadd.f32 %v4684, %v4755
        %4757 = vadd.xlane.f32.xlu0 %v4756
        %v4758 = vpop.xlane.xlu0 %4757
        %v4759 = vsel %vm2462, %v4690, 0.0
        %v4760 = vadd.f32 %v4688, %v4759
        %4761 = vadd.xlane.f32.xlu0 %v4760
        %v4762 = vpop.xlane.xlu0 %4761
        %v4763 = vsel %vm2462, %v4694, 0.0
        %v4764 = vadd.f32 %v4692, %v4763
        %4765 = vadd.xlane.f32.xlu0 %v4764
        %v4766 = vpop.xlane.xlu0 %4765
        %v4767 = vsel %vm2462, %v4698, 0.0
        %v4768 = vadd.f32 %v4696, %v4767
        %4769 = vadd.xlane.f32.xlu0 %v4768
        %v4770 = vpop.xlane.xlu0 %4769
        %v4771 = vsel %vm2462, %v4702, 0.0
        %v4772 = vadd.f32 %v4700, %v4771
        %4773 = vadd.xlane.f32.xlu0 %v4772
        %v4774 = vpop.xlane.xlu0 %4773
        %v4775 = vsel %vm2462, %v4706, 0.0
        %v4776 = vadd.f32 %v4704, %v4775
        %4777 = vadd.xlane.f32.xlu0 %v4776
        %v4778 = vpop.xlane.xlu0 %4777
        %v4779 = vsel %vm2462, %v4710, 0.0
        %v4780 = vadd.f32 %v4708, %v4779
        %4781 = vadd.xlane.f32.xlu0 %v4780
        %v4782 = vpop.xlane.xlu0 %4781
        %v4783 = vsel %vm2462, %v4714, 0.0
        %v4784 = vadd.f32 %v4712, %v4783
        %4785 = vadd.xlane.f32.xlu0 %v4784
        %v4786 = vpop.xlane.xlu0 %4785
        %v4787 = vsel %vm2462, %v4718, 0.0
        %v4788 = vadd.f32 %v4716, %v4787
        %4789 = vadd.xlane.f32.xlu0 %v4788
        %v4790 = vpop.xlane.xlu0 %4789
        %v4791 = vsel %vm2462, %v4722, 0.0
        %v4792 = vadd.f32 %v4720, %v4791
        %4793 = vadd.xlane.f32.xlu0 %v4792
        %v4794 = vpop.xlane.xlu0 %4793
        %v4795 = vsel %vm2462, %v4726, 0.0
        %v4796 = vadd.f32 %v4724, %v4795
        %4797 = vadd.xlane.f32.xlu0 %v4796
        %v4798 = vpop.xlane.xlu0 %4797
        %v4799 = vsel %vm2462, %v4730, 0.0
        %v4800 = vadd.f32 %v4728, %v4799
        %4801 = vadd.xlane.f32.xlu0 %v4800
        %v4802 = vpop.xlane.xlu0 %4801
        %v4803 = vsel %vm2462, %v4734, 0.0
        %v4804 = vadd.f32 %v4732, %v4803
        %4805 = vadd.xlane.f32.xlu0 %v4804
        %v4806 = vpop.xlane.xlu0 %4805
        %v4807 = vsel %vm2462, %v4738, 0.0
        %v4808 = vadd.f32 %v4736, %v4807
        %4809 = vadd.xlane.f32.xlu0 %v4808
        %v4810 = vpop.xlane.xlu0 %4809
        %v4811 = vsel %vm2462, %v4742, 0.0
        %v4812 = vadd.f32 %v4740, %v4811
        %4813 = vadd.xlane.f32.xlu0 %v4812
        %v4814 = vpop.xlane.xlu0 %4813
        %v4815 = vsel %vm2531, %v4744, 0.0
        %v4816 = vsel %vm2533, %v4746, 0.0
        %v4817 = vadd.f32 %v4815, %v4816
        %4818 = vadd.xlane.f32.xlu0 %v4817
        %v4819 = vpop.xlane.xlu0 %4818
        %v4820 = vpack.c.bf16 %v4680, %v4676
        %v4821 = vpack.c.bf16 %v4682, %v4678
        %v4822 = vpack.c.bf16 %v4688, %v4684
        %v4823 = vpack.c.bf16 %v4690, %v4686
        %v4824 = vpack.c.bf16 %v4696, %v4692
        %v4825 = vpack.c.bf16 %v4698, %v4694
        %v4826 = vpack.c.bf16 %v4704, %v4700
        %v4827 = vpack.c.bf16 %v4706, %v4702
        %v4828 = vpack.c.bf16 %v4712, %v4708
        %v4829 = vpack.c.bf16 %v4714, %v4710
        %v4830 = vpack.c.bf16 %v4720, %v4716
        %v4831 = vpack.c.bf16 %v4722, %v4718
        %v4832 = vpack.c.bf16 %v4728, %v4724
        %v4833 = vpack.c.bf16 %v4730, %v4726
        %v4834 = vpack.c.bf16 %v4736, %v4732
        %v4835 = vpack.c.bf16 %v4738, %v4734
        %v4836 = vpack.c.bf16 %v4744, %v4740
        %v4837 = vpack.c.bf16 %v4746, %v4742
        %4838 = vrot.lane.b32.xlu0 %v2249, 40
        %v4839 = vpop.permute.xlu0 %4838
        %4840 = vrot.lane.b32.xlu0 %v2250, 40
        %v4841 = vpop.permute.xlu0 %4840
        %4842 = vrot.lane.b32.xlu0 %v2251, 40
        %v4843 = vpop.permute.xlu0 %4842
        %4844 = vrot.lane.b32.xlu0 %v2252, 40
        %v4845 = vpop.permute.xlu0 %4844
        %4846 = vrot.lane.b32.xlu0 %v2253, 40
        %v4847 = vpop.permute.xlu0 %4846
        %4848 = vrot.lane.b32.xlu0 %v2254, 40
        %v4849 = vpop.permute.xlu0 %4848
        %4850 = vrot.lane.b32.xlu0 %v2255, 40
        %v4851 = vpop.permute.xlu0 %4850
        %4852 = vrot.lane.b32.xlu0 %v2256, 40
        %v4853 = vpop.permute.xlu0 %4852
        %4854 = vrot.lane.b32.xlu0 %v2257, 40
        %v4855 = vpop.permute.xlu0 %4854
        %v4865 = vsel %vm2462, %v4821, 0
        %v4868 = vsel %vm2462, %v4823, 0
        %v4871 = vsel %vm2462, %v4825, 0
        %v4874 = vsel %vm2462, %v4827, 0
        %v4877 = vsel %vm2462, %v4829, 0
        %v4880 = vsel %vm2462, %v4831, 0
        %v4883 = vsel %vm2462, %v4833, 0
        %v4886 = vsel %vm2462, %v4835, 0
        %v4889 = vsel %vm2462, %v4837, 0
        %v4892 = vsel %vm2790, %v4855, 0
        %4894 = vmatprep.subr.bf16.mxu0 0
        %4895 = vmatpush1.bf16.msra.mxu0 %v4853
        %4896 = vmatprep.subr.bf16.mxu0 0
        %4897 = vmatpush1.bf16.msra.mxu0 %v4851
        %4898 = vmatprep.subr.bf16.mxu0 0
        %4899 = vmatpush1.bf16.msra.mxu0 %v4849
        %4900 = vmatprep.subr.bf16.mxu0 0
        %4901 = vmatpush1.bf16.msra.mxu0 %v4847
        %4902 = vmatprep.subr.bf16.mxu0 0
        %4903 = vmatpush1.bf16.msra.mxu0 %v4845
        %4904 = vmatprep.subr.bf16.mxu0 0
        %4905 = vmatpush1.bf16.msra.mxu0 %v4843
        %4906 = vmatprep.subr.bf16.mxu0 0
        %4907 = vmatpush1.bf16.msra.mxu0 %v4841
        %4908 = vmatprep.subr.bf16.mxu0 0
        %4909 = vmatpush1.bf16.msra.mxu0 %v4839
        %4910 = vmatprep.subr.bf16.mxu0 0
        %4911 = vmatpush2.bf16.msra.mxu0 0
        %4912 = vmatprep.subr.bf16.mxu0 0
        %4913 = vmatpush2.bf16.msra.mxu0 0
        %4914 = vmatprep.subr.bf16.mxu0 0
        %4915 = vmatpush2.bf16.msra.mxu0 0
        %4916 = vmatprep.subr.bf16.mxu0 0
        %4917 = vmatpush2.bf16.msra.mxu0 0
        %4918 = vmatprep.subr.bf16.mxu0 0
        %4919 = vmatpush2.bf16.msra.mxu0 0
        %4920 = vmatprep.subr.bf16.mxu0 0
        %4921 = vmatpush2.bf16.msra.mxu0 0
        %4922 = vmatprep.subr.bf16.mxu0 0
        %4923 = vmatpush2.bf16.msra.mxu0 0
        %4924 = vmatprep.subr.bf16.mxu0 0
        %4925 = vmatpush2.bf16.msra.mxu0 %v4892
        %4926 = vmatprep.mubr.bf16.mxu0 %v4865
        %4927 = vmatmul.mubr.bf16.gmra.mxu0 %v4820
        %v4928 = vpop.f32.mrf.mxu0
        %v4929 = vadd.f32 0.0, %v4928
        %v4930 = vpop.f32.mrf.mxu0
        %v4931 = vpop.f32.mrf.mxu0
        %v4932 = vadd.f32 0.0, %v4931
        %v4933 = vpop.f32.mrf.mxu0
        %4934 = vmatprep.mubr.bf16.mxu0 %v4868
        %4935 = vmatmul.mubr.bf16.gmra.mxu0 %v4822
        %v4936 = vpop.f32.mrf.mxu0
        %v4937 = vadd.f32 0.0, %v4936
        %v4938 = vpop.f32.mrf.mxu0
        %v4939 = vpop.f32.mrf.mxu0
        %v4940 = vadd.f32 0.0, %v4939
        %v4941 = vpop.f32.mrf.mxu0
        %4942 = vmatprep.mubr.bf16.mxu0 %v4871
        %4943 = vmatmul.mubr.bf16.gmra.mxu0 %v4824
        %v4944 = vpop.f32.mrf.mxu0
        %v4945 = vadd.f32 0.0, %v4944
        %v4946 = vpop.f32.mrf.mxu0
        %v4947 = vpop.f32.mrf.mxu0
        %v4948 = vadd.f32 0.0, %v4947
        %v4949 = vpop.f32.mrf.mxu0
        %4950 = vmatprep.mubr.bf16.mxu0 %v4874
        %4951 = vmatmul.mubr.bf16.gmra.mxu0 %v4826
        %v4952 = vpop.f32.mrf.mxu0
        %v4953 = vadd.f32 0.0, %v4952
        %v4954 = vpop.f32.mrf.mxu0
        %v4955 = vpop.f32.mrf.mxu0
        %v4956 = vadd.f32 0.0, %v4955
        %v4957 = vpop.f32.mrf.mxu0
        %4958 = vmatprep.mubr.bf16.mxu0 %v4877
        %4959 = vmatmul.mubr.bf16.gmra.mxu0 %v4828
        %v4960 = vpop.f32.mrf.mxu0
        %v4961 = vadd.f32 0.0, %v4960
        %v4962 = vpop.f32.mrf.mxu0
        %v4963 = vpop.f32.mrf.mxu0
        %v4964 = vadd.f32 0.0, %v4963
        %v4965 = vpop.f32.mrf.mxu0
        %4966 = vmatprep.mubr.bf16.mxu0 %v4880
        %4967 = vmatmul.mubr.bf16.gmra.mxu0 %v4830
        %v4968 = vpop.f32.mrf.mxu0
        %v4969 = vadd.f32 0.0, %v4968
        %v4970 = vpop.f32.mrf.mxu0
        %v4971 = vpop.f32.mrf.mxu0
        %v4972 = vadd.f32 0.0, %v4971
        %v4973 = vpop.f32.mrf.mxu0
        %4974 = vmatprep.mubr.bf16.mxu0 %v4883
        %4975 = vmatmul.mubr.bf16.gmra.mxu0 %v4832
        %v4976 = vpop.f32.mrf.mxu0
        %v4977 = vadd.f32 0.0, %v4976
        %v4978 = vpop.f32.mrf.mxu0
        %v4979 = vpop.f32.mrf.mxu0
        %v4980 = vadd.f32 0.0, %v4979
        %v4981 = vpop.f32.mrf.mxu0
        %4982 = vmatprep.mubr.bf16.mxu0 %v4886
        %4983 = vmatmul.mubr.bf16.gmra.mxu0 %v4834
        %v4984 = vpop.f32.mrf.mxu0
        %v4985 = vadd.f32 0.0, %v4984
        %v4986 = vpop.f32.mrf.mxu0
        %v4987 = vpop.f32.mrf.mxu0
        %v4988 = vadd.f32 0.0, %v4987
        %v4989 = vpop.f32.mrf.mxu0
        %4990 = vmatprep.mubr.bf16.mxu0 %v4889
        %4991 = vmatmul.mubr.bf16.gmra.mxu0 %v4836
        %v4992 = vpop.f32.mrf.mxu0
        %v4993 = vadd.f32 0.0, %v4992
        %v4994 = vpop.f32.mrf.mxu0
        %v4995 = vpop.f32.mrf.mxu0
        %v4996 = vadd.f32 0.0, %v4995
        %v4997 = vpop.f32.mrf.mxu0
        %4998 = vdwg.mxu0
        %v4999 = vrcp.pop %v4750
        %v5000 = vmul.f32 1.0, %v4999
        %v5001 = vrcp.pop %v4754
        %v5002 = vmul.f32 1.0, %v5001
        %v5003 = vrcp.pop %v4758
        %v5004 = vmul.f32 1.0, %v5003
        %v5005 = vrcp.pop %v4762
        %v5006 = vmul.f32 1.0, %v5005
        %v5007 = vrcp.pop %v4766
        %v5008 = vmul.f32 1.0, %v5007
        %v5009 = vrcp.pop %v4770
        %v5010 = vmul.f32 1.0, %v5009
        %v5011 = vrcp.pop %v4774
        %v5012 = vmul.f32 1.0, %v5011
        %v5013 = vrcp.pop %v4778
        %v5014 = vmul.f32 1.0, %v5013
        %v5015 = vrcp.pop %v4782
        %v5016 = vmul.f32 1.0, %v5015
        %v5017 = vrcp.pop %v4786
        %v5018 = vmul.f32 1.0, %v5017
        %v5019 = vrcp.pop %v4790
        %v5020 = vmul.f32 1.0, %v5019
        %v5021 = vrcp.pop %v4794
        %v5022 = vmul.f32 1.0, %v5021
        %v5023 = vrcp.pop %v4798
        %v5024 = vmul.f32 1.0, %v5023
        %v5025 = vrcp.pop %v4802
        %v5026 = vmul.f32 1.0, %v5025
        %v5027 = vrcp.pop %v4806
        %v5028 = vmul.f32 1.0, %v5027
        %v5029 = vrcp.pop %v4810
        %v5030 = vmul.f32 1.0, %v5029
        %v5031 = vrcp.pop %v4814
        %v5032 = vmul.f32 1.0, %v5031
        %v5033 = vrcp.pop %v4819
        %v5034 = vmul.f32 1.0, %v5033
        %v5035 = vmul.f32 %v4929, %v5000
        %v5036 = vmul.f32 %v4932, %v5002
        %v5037 = vmul.f32 %v4937, %v5004
        %v5038 = vmul.f32 %v4940, %v5006
        %v5039 = vmul.f32 %v4945, %v5008
        %v5040 = vmul.f32 %v4948, %v5010
        %v5041 = vmul.f32 %v4953, %v5012
        %v5042 = vmul.f32 %v4956, %v5014
        %v5043 = vmul.f32 %v4961, %v5016
        %v5044 = vmul.f32 %v4964, %v5018
        %v5045 = vmul.f32 %v4969, %v5020
        %v5046 = vmul.f32 %v4972, %v5022
        %v5047 = vmul.f32 %v4977, %v5024
        %v5048 = vmul.f32 %v4980, %v5026
        %v5049 = vmul.f32 %v4985, %v5028
        %v5050 = vmul.f32 %v4988, %v5030
        %v5051 = vmul.f32 %v4993, %v5032
        %v5052 = vmul.f32 %v4996, %v5034
        %5071 = vrot.lane.b32.xlu0 %v3635, 8
        %v5072 = vpop.permute.xlu0 %5071
        %5073 = vrot.lane.b32.xlu0 %v3636, 8
        %v5074 = vpop.permute.xlu0 %5073
        %5075 = vrot.lane.b32.xlu0 %v3637, 8
        %v5076 = vpop.permute.xlu0 %5075
        %5077 = vrot.lane.b32.xlu0 %v3638, 8
        %v5078 = vpop.permute.xlu0 %5077
        %5079 = vrot.lane.b32.xlu0 %v3639, 8
        %v5080 = vpop.permute.xlu0 %5079
        %5081 = vrot.lane.b32.xlu0 %v3640, 8
        %v5082 = vpop.permute.xlu0 %5081
        %5083 = vrot.lane.b32.xlu0 %v3641, 8
        %v5084 = vpop.permute.xlu0 %5083
        %5085 = vrot.lane.b32.xlu0 %v3642, 8
        %v5086 = vpop.permute.xlu0 %5085
        %5087 = vrot.lane.b32.xlu0 %v3643, 8
        %v5088 = vpop.permute.xlu0 %5087
        %5089 = vrot.lane.b32.xlu0 %v3644, 8
        %v5090 = vpop.permute.xlu0 %5089
        %5091 = vrot.lane.b32.xlu0 %v3645, 8
        %v5092 = vpop.permute.xlu0 %5091
        %5093 = vrot.lane.b32.xlu0 %v3646, 8
        %v5094 = vpop.permute.xlu0 %5093
        %5095 = vrot.lane.b32.xlu0 %v3647, 8
        %v5096 = vpop.permute.xlu0 %5095
        %5097 = vrot.lane.b32.xlu0 %v3648, 8
        %v5098 = vpop.permute.xlu0 %5097
        %5099 = vrot.lane.b32.xlu0 %v3649, 8
        %v5100 = vpop.permute.xlu0 %5099
        %5101 = vrot.lane.b32.xlu0 %v3650, 8
        %v5102 = vpop.permute.xlu0 %5101
        %5103 = vrot.lane.b32.xlu0 %v3651, 8
        %v5104 = vpop.permute.xlu0 %5103
        %5105 = vrot.lane.b32.xlu0 %v3652, 8
        %v5106 = vpop.permute.xlu0 %5105
        %5143 = vrot.lane.b32.xlu0 %v4335, 16
        %v5144 = vpop.permute.xlu0 %5143
        %5145 = vrot.lane.b32.xlu0 %v4336, 16
        %v5146 = vpop.permute.xlu0 %5145
        %5147 = vrot.lane.b32.xlu0 %v4337, 16
        %v5148 = vpop.permute.xlu0 %5147
        %5149 = vrot.lane.b32.xlu0 %v4338, 16
        %v5150 = vpop.permute.xlu0 %5149
        %5151 = vrot.lane.b32.xlu0 %v4339, 16
        %v5152 = vpop.permute.xlu0 %5151
        %5153 = vrot.lane.b32.xlu0 %v4340, 16
        %v5154 = vpop.permute.xlu0 %5153
        %5155 = vrot.lane.b32.xlu0 %v4341, 16
        %v5156 = vpop.permute.xlu0 %5155
        %5157 = vrot.lane.b32.xlu0 %v4342, 16
        %v5158 = vpop.permute.xlu0 %5157
        %5159 = vrot.lane.b32.xlu0 %v4343, 16
        %v5160 = vpop.permute.xlu0 %5159
        %5161 = vrot.lane.b32.xlu0 %v4344, 16
        %v5162 = vpop.permute.xlu0 %5161
        %5163 = vrot.lane.b32.xlu0 %v4345, 16
        %v5164 = vpop.permute.xlu0 %5163
        %5165 = vrot.lane.b32.xlu0 %v4346, 16
        %v5166 = vpop.permute.xlu0 %5165
        %5167 = vrot.lane.b32.xlu0 %v4347, 16
        %v5168 = vpop.permute.xlu0 %5167
        %5169 = vrot.lane.b32.xlu0 %v4348, 16
        %v5170 = vpop.permute.xlu0 %5169
        %5171 = vrot.lane.b32.xlu0 %v4349, 16
        %v5172 = vpop.permute.xlu0 %5171
        %5173 = vrot.lane.b32.xlu0 %v4350, 16
        %v5174 = vpop.permute.xlu0 %5173
        %5175 = vrot.lane.b32.xlu0 %v4351, 16
        %v5176 = vpop.permute.xlu0 %5175
        %5177 = vrot.lane.b32.xlu0 %v4352, 16
        %v5178 = vpop.permute.xlu0 %5177
        %5215 = vrot.lane.b32.xlu0 %v5035, 24
        %v5216 = vpop.permute.xlu0 %5215
        %5217 = vrot.lane.b32.xlu0 %v5036, 24
        %v5218 = vpop.permute.xlu0 %5217
        %5219 = vrot.lane.b32.xlu0 %v5037, 24
        %v5220 = vpop.permute.xlu0 %5219
        %5221 = vrot.lane.b32.xlu0 %v5038, 24
        %v5222 = vpop.permute.xlu0 %5221
        %5223 = vrot.lane.b32.xlu0 %v5039, 24
        %v5224 = vpop.permute.xlu0 %5223
        %5225 = vrot.lane.b32.xlu0 %v5040, 24
        %v5226 = vpop.permute.xlu0 %5225
        %5227 = vrot.lane.b32.xlu0 %v5041, 24
        %v5228 = vpop.permute.xlu0 %5227
        %5229 = vrot.lane.b32.xlu0 %v5042, 24
        %v5230 = vpop.permute.xlu0 %5229
        %5231 = vrot.lane.b32.xlu0 %v5043, 24
        %v5232 = vpop.permute.xlu0 %5231
        %5233 = vrot.lane.b32.xlu0 %v5044, 24
        %v5234 = vpop.permute.xlu0 %5233
        %5235 = vrot.lane.b32.xlu0 %v5045, 24
        %v5236 = vpop.permute.xlu0 %5235
        %5237 = vrot.lane.b32.xlu0 %v5046, 24
        %v5238 = vpop.permute.xlu0 %5237
        %5239 = vrot.lane.b32.xlu0 %v5047, 24
        %v5240 = vpop.permute.xlu0 %5239
        %5241 = vrot.lane.b32.xlu0 %v5048, 24
        %v5242 = vpop.permute.xlu0 %5241
        %5243 = vrot.lane.b32.xlu0 %v5049, 24
        %v5244 = vpop.permute.xlu0 %5243
        %5245 = vrot.lane.b32.xlu0 %v5050, 24
        %v5246 = vpop.permute.xlu0 %5245
        %5247 = vrot.lane.b32.xlu0 %v5051, 24
        %v5248 = vpop.permute.xlu0 %5247
        %5249 = vrot.lane.b32.xlu0 %v5052, 24
        %v5250 = vpop.permute.xlu0 %5249
        %v5269 = vsel %vm973, %v2935, %v5072
        %v5270 = vsel %vm973, %v2936, %v5074
        %v5271 = vsel %vm973, %v2937, %v5076
        %v5272 = vsel %vm973, %v2938, %v5078
        %v5273 = vsel %vm973, %v2939, %v5080
        %v5274 = vsel %vm973, %v2940, %v5082
        %v5275 = vsel %vm973, %v2941, %v5084
        %v5276 = vsel %vm973, %v2942, %v5086
        %v5277 = vsel %vm973, %v2943, %v5088
        %v5278 = vsel %vm973, %v2944, %v5090
        %v5279 = vsel %vm973, %v2945, %v5092
        %v5280 = vsel %vm973, %v2946, %v5094
        %v5281 = vsel %vm973, %v2947, %v5096
        %v5282 = vsel %vm973, %v2948, %v5098
        %v5283 = vsel %vm973, %v2949, %v5100
        %v5284 = vsel %vm973, %v2950, %v5102
        %v5285 = vsel %vm973, %v2951, %v5104
        %v5286 = vsel %vm973, %v2952, %v5106
        %vm5287 = vcmask 130048
        %v5288 = vsel %vm5287, %v5269, %v5144
        %v5289 = vsel %vm5287, %v5270, %v5146
        %v5290 = vsel %vm5287, %v5271, %v5148
        %v5291 = vsel %vm5287, %v5272, %v5150
        %v5292 = vsel %vm5287, %v5273, %v5152
        %v5293 = vsel %vm5287, %v5274, %v5154
        %v5294 = vsel %vm5287, %v5275, %v5156
        %v5295 = vsel %vm5287, %v5276, %v5158
        %v5296 = vsel %vm5287, %v5277, %v5160
        %v5297 = vsel %vm5287, %v5278, %v5162
        %v5298 = vsel %vm5287, %v5279, %v5164
        %v5299 = vsel %vm5287, %v5280, %v5166
        %v5300 = vsel %vm5287, %v5281, %v5168
        %v5301 = vsel %vm5287, %v5282, %v5170
        %v5302 = vsel %vm5287, %v5283, %v5172
        %v5303 = vsel %vm5287, %v5284, %v5174
        %v5304 = vsel %vm5287, %v5285, %v5176
        %v5305 = vsel %vm5287, %v5286, %v5178
        %vm5306 = vcmask 195584
        %v5307 = vsel %vm5306, %v5288, %v5216
        %v5308 = vsel %vm5306, %v5289, %v5218
        %v5309 = vsel %vm5306, %v5290, %v5220
        %v5310 = vsel %vm5306, %v5291, %v5222
        %v5311 = vsel %vm5306, %v5292, %v5224
        %v5312 = vsel %vm5306, %v5293, %v5226
        %v5313 = vsel %vm5306, %v5294, %v5228
        %v5314 = vsel %vm5306, %v5295, %v5230
        %v5315 = vsel %vm5306, %v5296, %v5232
        %v5316 = vsel %vm5306, %v5297, %v5234
        %v5317 = vsel %vm5306, %v5298, %v5236
        %v5318 = vsel %vm5306, %v5299, %v5238
        %v5319 = vsel %vm5306, %v5300, %v5240
        %v5320 = vsel %vm5306, %v5301, %v5242
        %v5321 = vsel %vm5306, %v5302, %v5244
        %v5322 = vsel %vm5306, %v5303, %v5246
        %v5323 = vsel %vm5306, %v5304, %v5248
        %v5324 = vsel %vm5306, %v5305, %v5250
        %v5325 = vpack.c.bf16 %v5308, %v5307
        %v5326 = vpack.c.bf16 %v5310, %v5309
        %v5327 = vpack.c.bf16 %v5312, %v5311
        %v5328 = vpack.c.bf16 %v5314, %v5313
        %v5329 = vpack.c.bf16 %v5316, %v5315
        %v5330 = vpack.c.bf16 %v5318, %v5317
        %v5331 = vpack.c.bf16 %v5320, %v5319
        %v5332 = vpack.c.bf16 %v5322, %v5321
        %v5333 = vpack.c.bf16 %v5324, %v5323
        %v5334 = vld [vmem:[%s10] sm:$0xf]
        %v5335 = vld [vmem:[%s10 + $0x4] sm:$0xf]
        %v5336 = vld [vmem:[%s10 + $0x8] sm:$0xf]
        %v5337 = vld [vmem:[%s10 + $0xc] sm:$0xf]
        %v5338 = vld [vmem:[%s11] sm:$0x1]
        %v5340 = vlaneseq
        %v5341 = vshrl.u32 %v5340, 7
        %v5342 = vsub.s32 0, %v5341
        %v5343 = vrot.slane %v5338, %v5342
        %v5349 = vunpack.c.l.b16 %v5334
        %v5350 = vunpack.c.l.b16 %v5335
        %v5351 = vunpack.c.l.b16 %v5336
        %v5352 = vunpack.c.l.b16 %v5337
        %v5353 = vpack.c.b16 %v5350, %v5349
        %v5354 = vpack.c.b16 %v5352, %v5351
        %v5358 = vsel %vm1365, %v5325, 0
        %v5361 = vsel %vm1365, %v5326, 0
        %v5364 = vsel %vm1365, %v5327, 0
        %v5367 = vsel %vm1365, %v5328, 0
        %v5370 = vsel %vm1365, %v5329, 0
        %v5373 = vsel %vm1365, %v5330, 0
        %v5376 = vsel %vm1365, %v5331, 0
        %v5379 = vsel %vm1365, %v5332, 0
        %v5382 = vsel %vm1365, %v5333, 0
        %5384 = vmatprep.subr.bf16.mxu0 0
        %5385 = vmatpush1.bf16.msra.mxu0 0
        %5386 = vmatprep.subr.bf16.mxu0 0
        %5387 = vmatpush1.bf16.msra.mxu0 0
        %5388 = vmatprep.subr.bf16.mxu0 0
        %5389 = vmatpush1.bf16.msra.mxu0 0
        %5390 = vmatprep.subr.bf16.mxu0 0
        %5391 = vmatpush1.bf16.msra.mxu0 0
        %5392 = vmatprep.subr.bf16.mxu0 0
        %5393 = vmatpush1.bf16.msra.mxu0 0
        %5394 = vmatprep.subr.bf16.mxu0 0
        %5395 = vmatpush1.bf16.msra.mxu0 0
        %5396 = vmatprep.subr.bf16.mxu0 0
        %5397 = vmatpush1.bf16.msra.mxu0 %v5354
        %5398 = vmatprep.subr.bf16.mxu0 0
        %5399 = vmatpush1.bf16.msra.mxu0 %v5353
        %5400 = vmatprep.subr.bf16.mxu0 0
        %5401 = vmatpush2.bf16.msra.mxu0 0
        %5402 = vmatprep.subr.bf16.mxu0 0
        %5403 = vmatpush2.bf16.msra.mxu0 0
        %5404 = vmatprep.subr.bf16.mxu0 0
        %5405 = vmatpush2.bf16.msra.mxu0 0
        %5406 = vmatprep.subr.bf16.mxu0 0
        %5407 = vmatpush2.bf16.msra.mxu0 0
        %5408 = vmatprep.subr.bf16.mxu0 0
        %5409 = vmatpush2.bf16.msra.mxu0 0
        %5410 = vmatprep.subr.bf16.mxu0 0
        %5411 = vmatpush2.bf16.msra.mxu0 0
        %5412 = vmatprep.subr.bf16.mxu0 0
        %5413 = vmatpush2.bf16.msra.mxu0 0
        %5414 = vmatprep.subr.bf16.mxu0 0
        %5415 = vmatpush2.bf16.msra.mxu0 0
        %5416 = vmatprep.mubr.bf16.mxu0 0
        %5417 = vmatmul.mubr.bf16.gmra.mxu0 %v5358
        %v5418 = vpop.f32.mrf.mxu0
        %v5419 = vadd.f32 %v5343, %v5418
        %v5420 = vpop.f32.mrf.mxu0
        %v5421 = vpop.f32.mrf.mxu0
        %v5422 = vadd.f32 %v5343, %v5421
        %v5423 = vpop.f32.mrf.mxu0
        %5424 = vmatprep.mubr.bf16.mxu0 0
        %5425 = vmatmul.mubr.bf16.gmra.mxu0 %v5361
        %v5426 = vpop.f32.mrf.mxu0
        %v5427 = vadd.f32 %v5343, %v5426
        %v5428 = vpop.f32.mrf.mxu0
        %v5429 = vpop.f32.mrf.mxu0
        %v5430 = vadd.f32 %v5343, %v5429
        %v5431 = vpop.f32.mrf.mxu0
        %5432 = vmatprep.mubr.bf16.mxu0 0
        %5433 = vmatmul.mubr.bf16.gmra.mxu0 %v5364
        %v5434 = vpop.f32.mrf.mxu0
        %v5435 = vadd.f32 %v5343, %v5434
        %v5436 = vpop.f32.mrf.mxu0
        %v5437 = vpop.f32.mrf.mxu0
        %v5438 = vadd.f32 %v5343, %v5437
        %v5439 = vpop.f32.mrf.mxu0
        %5440 = vmatprep.mubr.bf16.mxu0 0
        %5441 = vmatmul.mubr.bf16.gmra.mxu0 %v5367
        %v5442 = vpop.f32.mrf.mxu0
        %v5443 = vadd.f32 %v5343, %v5442
        %v5444 = vpop.f32.mrf.mxu0
        %v5445 = vpop.f32.mrf.mxu0
        %v5446 = vadd.f32 %v5343, %v5445
        %v5447 = vpop.f32.mrf.mxu0
        %5448 = vmatprep.mubr.bf16.mxu0 0
        %5449 = vmatmul.mubr.bf16.gmra.mxu0 %v5370
        %v5450 = vpop.f32.mrf.mxu0
        %v5451 = vadd.f32 %v5343, %v5450
        %v5452 = vpop.f32.mrf.mxu0
        %v5453 = vpop.f32.mrf.mxu0
        %v5454 = vadd.f32 %v5343, %v5453
        %v5455 = vpop.f32.mrf.mxu0
        %5456 = vmatprep.mubr.bf16.mxu0 0
        %5457 = vmatmul.mubr.bf16.gmra.mxu0 %v5373
        %v5458 = vpop.f32.mrf.mxu0
        %v5459 = vadd.f32 %v5343, %v5458
        %v5460 = vpop.f32.mrf.mxu0
        %v5461 = vpop.f32.mrf.mxu0
        %v5462 = vadd.f32 %v5343, %v5461
        %v5463 = vpop.f32.mrf.mxu0
        %5464 = vmatprep.mubr.bf16.mxu0 0
        %5465 = vmatmul.mubr.bf16.gmra.mxu0 %v5376
        %v5466 = vpop.f32.mrf.mxu0
        %v5467 = vadd.f32 %v5343, %v5466
        %v5468 = vpop.f32.mrf.mxu0
        %v5469 = vpop.f32.mrf.mxu0
        %v5470 = vadd.f32 %v5343, %v5469
        %v5471 = vpop.f32.mrf.mxu0
        %5472 = vmatprep.mubr.bf16.mxu0 0
        %5473 = vmatmul.mubr.bf16.gmra.mxu0 %v5379
        %v5474 = vpop.f32.mrf.mxu0
        %v5475 = vadd.f32 %v5343, %v5474
        %v5476 = vpop.f32.mrf.mxu0
        %v5477 = vpop.f32.mrf.mxu0
        %v5478 = vadd.f32 %v5343, %v5477
        %v5479 = vpop.f32.mrf.mxu0
        %5480 = vmatprep.mubr.bf16.mxu0 0
        %5481 = vmatmul.mubr.bf16.gmra.mxu0 %v5382
        %v5482 = vpop.f32.mrf.mxu0
        %v5483 = vadd.f32 %v5343, %v5482
        %v5484 = vpop.f32.mrf.mxu0
        %v5485 = vpop.f32.mrf.mxu0
        %v5486 = vadd.f32 %v5343, %v5485
        %v5487 = vpop.f32.mrf.mxu0
        %5488 = vdwg.mxu0
        %v5489 = vadd.f32 %v5419, %v2067
        %v5490 = vadd.f32 %v5422, %v2068
        %v5491 = vadd.f32 %v5427, %v2069
        %v5492 = vadd.f32 %v5430, %v2070
        %v5493 = vadd.f32 %v5435, %v2071
        %v5494 = vadd.f32 %v5438, %v2072
        %v5495 = vadd.f32 %v5443, %v2073
        %v5496 = vadd.f32 %v5446, %v2074
        %v5497 = vadd.f32 %v5451, %v2075
        %v5498 = vadd.f32 %v5454, %v2076
        %v5499 = vadd.f32 %v5459, %v2077
        %v5500 = vadd.f32 %v5462, %v2078
        %v5501 = vadd.f32 %v5467, %v2079
        %v5502 = vadd.f32 %v5470, %v2080
        %v5503 = vadd.f32 %v5475, %v2081
        %v5504 = vadd.f32 %v5478, %v2082
        %v5505 = vadd.f32 %v5483, %v2083
        %v5506 = vadd.f32 %v5486, %v2084
        %v5507 = vld [vmem:[%s12] sm:$0x1]
        %v5508 = vld [vmem:[%s13] sm:$0x1]
        %v5509 = vsel %vm1365, %v5489, 0.0
        %5510 = vadd.xlane.f32.xlu0 %v5509
        %v5511 = vpop.xlane.xlu0 %5510
        %v5512 = vsel %vm1365, %v5490, 0.0
        %5513 = vadd.xlane.f32.xlu0 %v5512
        %v5514 = vpop.xlane.xlu0 %5513
        %v5515 = vsel %vm1365, %v5491, 0.0
        %5516 = vadd.xlane.f32.xlu0 %v5515
        %v5517 = vpop.xlane.xlu0 %5516
        %v5518 = vsel %vm1365, %v5492, 0.0
        %5519 = vadd.xlane.f32.xlu0 %v5518
        %v5520 = vpop.xlane.xlu0 %5519
        %v5521 = vsel %vm1365, %v5493, 0.0
        %5522 = vadd.xlane.f32.xlu0 %v5521
        %v5523 = vpop.xlane.xlu0 %5522
        %v5524 = vsel %vm1365, %v5494, 0.0
        %5525 = vadd.xlane.f32.xlu0 %v5524
        %v5526 = vpop.xlane.xlu0 %5525
        %v5527 = vsel %vm1365, %v5495, 0.0
        %5528 = vadd.xlane.f32.xlu0 %v5527
        %v5529 = vpop.xlane.xlu0 %5528
        %v5530 = vsel %vm1365, %v5496, 0.0
        %5531 = vadd.xlane.f32.xlu0 %v5530
        %v5532 = vpop.xlane.xlu0 %5531
        %v5533 = vsel %vm1365, %v5497, 0.0
        %5534 = vadd.xlane.f32.xlu0 %v5533
        %v5535 = vpop.xlane.xlu0 %5534
        %v5536 = vsel %vm1365, %v5498, 0.0
        %5537 = vadd.xlane.f32.xlu0 %v5536
        %v5538 = vpop.xlane.xlu0 %5537
        %v5539 = vsel %vm1365, %v5499, 0.0
        %5540 = vadd.xlane.f32.xlu0 %v5539
        %v5541 = vpop.xlane.xlu0 %5540
        %v5542 = vsel %vm1365, %v5500, 0.0
        %5543 = vadd.xlane.f32.xlu0 %v5542
        %v5544 = vpop.xlane.xlu0 %5543
        %v5545 = vsel %vm1365, %v5501, 0.0
        %5546 = vadd.xlane.f32.xlu0 %v5545
        %v5547 = vpop.xlane.xlu0 %5546
        %v5548 = vsel %vm1365, %v5502, 0.0
        %5549 = vadd.xlane.f32.xlu0 %v5548
        %v5550 = vpop.xlane.xlu0 %5549
        %v5551 = vsel %vm1365, %v5503, 0.0
        %5552 = vadd.xlane.f32.xlu0 %v5551
        %v5553 = vpop.xlane.xlu0 %5552
        %v5554 = vsel %vm1365, %v5504, 0.0
        %5555 = vadd.xlane.f32.xlu0 %v5554
        %v5556 = vpop.xlane.xlu0 %5555
        %v5557 = vsel %vm1365, %v5505, 0.0
        %5558 = vadd.xlane.f32.xlu0 %v5557
        %v5559 = vpop.xlane.xlu0 %5558
        %vm5560 = vcmask 254976
        %v5561 = vsel %vm5560, %v5506, 0.0
        %5562 = vadd.xlane.f32.xlu0 %v5561
        %v5563 = vpop.xlane.xlu0 %5562
        %v5564 = vrcp.pop 32.0
        %v5565 = vmul.f32 %v5511, %v5564
        %v5566 = vmul.f32 %v5514, %v5564
        %v5567 = vmul.f32 %v5517, %v5564
        %v5568 = vmul.f32 %v5520, %v5564
        %v5569 = vmul.f32 %v5523, %v5564
        %v5570 = vmul.f32 %v5526, %v5564
        %v5571 = vmul.f32 %v5529, %v5564
        %v5572 = vmul.f32 %v5532, %v5564
        %v5573 = vmul.f32 %v5535, %v5564
        %v5574 = vmul.f32 %v5538, %v5564
        %v5575 = vmul.f32 %v5541, %v5564
        %v5576 = vmul.f32 %v5544, %v5564
        %v5577 = vmul.f32 %v5547, %v5564
        %v5578 = vmul.f32 %v5550, %v5564
        %v5579 = vmul.f32 %v5553, %v5564
        %v5580 = vmul.f32 %v5556, %v5564
        %v5581 = vmul.f32 %v5559, %v5564
        %v5582 = vmul.f32 %v5563, %v5564
        %v5583 = vsub.f32 %v5489, %v5565
        %v5584 = vsub.f32 %v5490, %v5566
        %v5585 = vsub.f32 %v5491, %v5567
        %v5586 = vsub.f32 %v5492, %v5568
        %v5587 = vsub.f32 %v5493, %v5569
        %v5588 = vsub.f32 %v5494, %v5570
        %v5589 = vsub.f32 %v5495, %v5571
        %v5590 = vsub.f32 %v5496, %v5572
        %v5591 = vsub.f32 %v5497, %v5573
        %v5592 = vsub.f32 %v5498, %v5574
        %v5593 = vsub.f32 %v5499, %v5575
        %v5594 = vsub.f32 %v5500, %v5576
        %v5595 = vsub.f32 %v5501, %v5577
        %v5596 = vsub.f32 %v5502, %v5578
        %v5597 = vsub.f32 %v5503, %v5579
        %v5598 = vsub.f32 %v5504, %v5580
        %v5599 = vsub.f32 %v5505, %v5581
        %v5600 = vsub.f32 %v5506, %v5582
        %v5601 = vmul.f32 %v5583, %v5583
        %v5602 = vmul.f32 %v5584, %v5584
        %v5603 = vmul.f32 %v5585, %v5585
        %v5604 = vmul.f32 %v5586, %v5586
        %v5605 = vmul.f32 %v5587, %v5587
        %v5606 = vmul.f32 %v5588, %v5588
        %v5607 = vmul.f32 %v5589, %v5589
        %v5608 = vmul.f32 %v5590, %v5590
        %v5609 = vmul.f32 %v5591, %v5591
        %v5610 = vmul.f32 %v5592, %v5592
        %v5611 = vmul.f32 %v5593, %v5593
        %v5612 = vmul.f32 %v5594, %v5594
        %v5613 = vmul.f32 %v5595, %v5595
        %v5614 = vmul.f32 %v5596, %v5596
        %v5615 = vmul.f32 %v5597, %v5597
        %v5616 = vmul.f32 %v5598, %v5598
        %v5617 = vmul.f32 %v5599, %v5599
        %v5618 = vmul.f32 %v5600, %v5600
        %v5619 = vsel %vm1365, %v5601, 0.0
        %5620 = vadd.xlane.f32.xlu0 %v5619
        %v5621 = vpop.xlane.xlu0 %5620
        %v5622 = vsel %vm1365, %v5602, 0.0
        %5623 = vadd.xlane.f32.xlu0 %v5622
        %v5624 = vpop.xlane.xlu0 %5623
        %v5625 = vsel %vm1365, %v5603, 0.0
        %5626 = vadd.xlane.f32.xlu0 %v5625
        %v5627 = vpop.xlane.xlu0 %5626
        %v5628 = vsel %vm1365, %v5604, 0.0
        %5629 = vadd.xlane.f32.xlu0 %v5628
        %v5630 = vpop.xlane.xlu0 %5629
        %v5631 = vsel %vm1365, %v5605, 0.0
        %5632 = vadd.xlane.f32.xlu0 %v5631
        %v5633 = vpop.xlane.xlu0 %5632
        %v5634 = vsel %vm1365, %v5606, 0.0
        %5635 = vadd.xlane.f32.xlu0 %v5634
        %v5636 = vpop.xlane.xlu0 %5635
        %v5637 = vsel %vm1365, %v5607, 0.0
        %5638 = vadd.xlane.f32.xlu0 %v5637
        %v5639 = vpop.xlane.xlu0 %5638
        %v5640 = vsel %vm1365, %v5608, 0.0
        %5641 = vadd.xlane.f32.xlu0 %v5640
        %v5642 = vpop.xlane.xlu0 %5641
        %v5643 = vsel %vm1365, %v5609, 0.0
        %5644 = vadd.xlane.f32.xlu0 %v5643
        %v5645 = vpop.xlane.xlu0 %5644
        %v5646 = vsel %vm1365, %v5610, 0.0
        %5647 = vadd.xlane.f32.xlu0 %v5646
        %v5648 = vpop.xlane.xlu0 %5647
        %v5649 = vsel %vm1365, %v5611, 0.0
        %5650 = vadd.xlane.f32.xlu0 %v5649
        %v5651 = vpop.xlane.xlu0 %5650
        %v5652 = vsel %vm1365, %v5612, 0.0
        %5653 = vadd.xlane.f32.xlu0 %v5652
        %v5654 = vpop.xlane.xlu0 %5653
        %v5655 = vsel %vm1365, %v5613, 0.0
        %5656 = vadd.xlane.f32.xlu0 %v5655
        %v5657 = vpop.xlane.xlu0 %5656
        %v5658 = vsel %vm1365, %v5614, 0.0
        %5659 = vadd.xlane.f32.xlu0 %v5658
        %v5660 = vpop.xlane.xlu0 %5659
        %v5661 = vsel %vm1365, %v5615, 0.0
        %5662 = vadd.xlane.f32.xlu0 %v5661
        %v5663 = vpop.xlane.xlu0 %5662
        %v5664 = vsel %vm1365, %v5616, 0.0
        %5665 = vadd.xlane.f32.xlu0 %v5664
        %v5666 = vpop.xlane.xlu0 %5665
        %v5667 = vsel %vm1365, %v5617, 0.0
        %5668 = vadd.xlane.f32.xlu0 %v5667
        %v5669 = vpop.xlane.xlu0 %5668
        %v5670 = vsel %vm5560, %v5618, 0.0
        %5671 = vadd.xlane.f32.xlu0 %v5670
        %v5672 = vpop.xlane.xlu0 %5671
        %v5673 = vmul.f32 %v5621, %v5564
        %v5674 = vmul.f32 %v5624, %v5564
        %v5675 = vmul.f32 %v5627, %v5564
        %v5676 = vmul.f32 %v5630, %v5564
        %v5677 = vmul.f32 %v5633, %v5564
        %v5678 = vmul.f32 %v5636, %v5564
        %v5679 = vmul.f32 %v5639, %v5564
        %v5680 = vmul.f32 %v5642, %v5564
        %v5681 = vmul.f32 %v5645, %v5564
        %v5682 = vmul.f32 %v5648, %v5564
        %v5683 = vmul.f32 %v5651, %v5564
        %v5684 = vmul.f32 %v5654, %v5564
        %v5685 = vmul.f32 %v5657, %v5564
        %v5686 = vmul.f32 %v5660, %v5564
        %v5687 = vmul.f32 %v5663, %v5564
        %v5688 = vmul.f32 %v5666, %v5564
        %v5689 = vmul.f32 %v5669, %v5564
        %v5690 = vmul.f32 %v5672, %v5564
        %v5691 = vadd.f32 %v5673, 1e-05
        %v5692 = vadd.f32 %v5674, 1e-05
        %v5693 = vadd.f32 %v5675, 1e-05
        %v5694 = vadd.f32 %v5676, 1e-05
        %v5695 = vadd.f32 %v5677, 1e-05
        %v5696 = vadd.f32 %v5678, 1e-05
        %v5697 = vadd.f32 %v5679, 1e-05
        %v5698 = vadd.f32 %v5680, 1e-05
        %v5699 = vadd.f32 %v5681, 1e-05
        %v5700 = vadd.f32 %v5682, 1e-05
        %v5701 = vadd.f32 %v5683, 1e-05
        %v5702 = vadd.f32 %v5684, 1e-05
        %v5703 = vadd.f32 %v5685, 1e-05
        %v5704 = vadd.f32 %v5686, 1e-05
        %v5705 = vadd.f32 %v5687, 1e-05
        %v5706 = vadd.f32 %v5688, 1e-05
        %v5707 = vadd.f32 %v5689, 1e-05
        %v5708 = vadd.f32 %v5690, 1e-05
        %v5709 = vrsqrt.pop %v5691
        %v5710 = vrsqrt.pop %v5692
        %v5711 = vrsqrt.pop %v5693
        %v5712 = vrsqrt.pop %v5694
        %v5713 = vrsqrt.pop %v5695
        %v5714 = vrsqrt.pop %v5696
        %v5715 = vrsqrt.pop %v5697
        %v5716 = vrsqrt.pop %v5698
        %v5717 = vrsqrt.pop %v5699
        %v5718 = vrsqrt.pop %v5700
        %v5719 = vrsqrt.pop %v5701
        %v5720 = vrsqrt.pop %v5702
        %v5721 = vrsqrt.pop %v5703
        %v5722 = vrsqrt.pop %v5704
        %v5723 = vrsqrt.pop %v5705
        %v5724 = vrsqrt.pop %v5706
        %v5725 = vrsqrt.pop %v5707
        %v5726 = vrsqrt.pop %v5708
        %v5727 = vmul.f32 %v5583, %v5709
        %v5728 = vmul.f32 %v5584, %v5710
        %v5729 = vmul.f32 %v5585, %v5711
        %v5730 = vmul.f32 %v5586, %v5712
        %v5731 = vmul.f32 %v5587, %v5713
        %v5732 = vmul.f32 %v5588, %v5714
        %v5733 = vmul.f32 %v5589, %v5715
        %v5734 = vmul.f32 %v5590, %v5716
        %v5735 = vmul.f32 %v5591, %v5717
        %v5736 = vmul.f32 %v5592, %v5718
        %v5737 = vmul.f32 %v5593, %v5719
        %v5738 = vmul.f32 %v5594, %v5720
        %v5739 = vmul.f32 %v5595, %v5721
        %v5740 = vmul.f32 %v5596, %v5722
        %v5741 = vmul.f32 %v5597, %v5723
        %v5742 = vmul.f32 %v5598, %v5724
        %v5743 = vmul.f32 %v5599, %v5725
        %v5744 = vmul.f32 %v5600, %v5726
        %v5746 = vlaneseq
        %v5747 = vshrl.u32 %v5746, 7
        %v5748 = vsub.s32 0, %v5747
        %v5749 = vrot.slane %v5507, %v5748
        %v5751 = vmul.f32 %v5727, %v5749
        %v5752 = vmul.f32 %v5728, %v5749
        %v5753 = vmul.f32 %v5729, %v5749
        %v5754 = vmul.f32 %v5730, %v5749
        %v5755 = vmul.f32 %v5731, %v5749
        %v5756 = vmul.f32 %v5732, %v5749
        %v5757 = vmul.f32 %v5733, %v5749
        %v5758 = vmul.f32 %v5734, %v5749
        %v5759 = vmul.f32 %v5735, %v5749
        %v5760 = vmul.f32 %v5736, %v5749
        %v5761 = vmul.f32 %v5737, %v5749
        %v5762 = vmul.f32 %v5738, %v5749
        %v5763 = vmul.f32 %v5739, %v5749
        %v5764 = vmul.f32 %v5740, %v5749
        %v5765 = vmul.f32 %v5741, %v5749
        %v5766 = vmul.f32 %v5742, %v5749
        %v5767 = vmul.f32 %v5743, %v5749
        %v5768 = vmul.f32 %v5744, %v5749
        %v5770 = vlaneseq
        %v5771 = vshrl.u32 %v5770, 7
        %v5772 = vsub.s32 0, %v5771
        %v5773 = vrot.slane %v5508, %v5772
        %v5775 = vadd.f32 %v5751, %v5773
        %v5776 = vadd.f32 %v5752, %v5773
        %v5777 = vadd.f32 %v5753, %v5773
        %v5778 = vadd.f32 %v5754, %v5773
        %v5779 = vadd.f32 %v5755, %v5773
        %v5780 = vadd.f32 %v5756, %v5773
        %v5781 = vadd.f32 %v5757, %v5773
        %v5782 = vadd.f32 %v5758, %v5773
        %v5783 = vadd.f32 %v5759, %v5773
        %v5784 = vadd.f32 %v5760, %v5773
        %v5785 = vadd.f32 %v5761, %v5773
        %v5786 = vadd.f32 %v5762, %v5773
        %v5787 = vadd.f32 %v5763, %v5773
        %v5788 = vadd.f32 %v5764, %v5773
        %v5789 = vadd.f32 %v5765, %v5773
        %v5790 = vadd.f32 %v5766, %v5773
        %v5791 = vadd.f32 %v5767, %v5773
        %v5792 = vadd.f32 %v5768, %v5773
        %v5793 = vpack.c.bf16 %v5776, %v5775
        %v5794 = vpack.c.bf16 %v5778, %v5777
        %v5795 = vpack.c.bf16 %v5780, %v5779
        %v5796 = vpack.c.bf16 %v5782, %v5781
        %v5797 = vpack.c.bf16 %v5784, %v5783
        %v5798 = vpack.c.bf16 %v5786, %v5785
        %v5799 = vpack.c.bf16 %v5788, %v5787
        %v5800 = vpack.c.bf16 %v5790, %v5789
        %v5801 = vpack.c.bf16 %v5792, %v5791
        %v5802 = vld [vmem:[%s14] sm:$0xf]
        %v5803 = vld [vmem:[%s14 + $0x4] sm:$0xf]
        %v5804 = vld [vmem:[%s14 + $0x8] sm:$0xf]
        %v5805 = vld [vmem:[%s14 + $0xc] sm:$0xf]
        %v5806 = vld [vmem:[%s15] sm:$0x1]
        %v5808 = vlaneseq
        %v5809 = vshrl.u32 %v5808, 7
        %v5810 = vsub.s32 0, %v5809
        %v5811 = vrot.slane %v5806, %v5810
        %v5817 = vunpack.c.l.b16 %v5802
        %v5818 = vunpack.c.l.b16 %v5803
        %v5819 = vunpack.c.l.b16 %v5804
        %v5820 = vunpack.c.l.b16 %v5805
        %v5821 = vpack.c.b16 %v5818, %v5817
        %v5822 = vpack.c.b16 %v5820, %v5819
        %v5826 = vsel %vm1365, %v5793, 0
        %v5829 = vsel %vm1365, %v5794, 0
        %v5832 = vsel %vm1365, %v5795, 0
        %v5835 = vsel %vm1365, %v5796, 0
        %v5838 = vsel %vm1365, %v5797, 0
        %v5841 = vsel %vm1365, %v5798, 0
        %v5844 = vsel %vm1365, %v5799, 0
        %v5847 = vsel %vm1365, %v5800, 0
        %v5850 = vsel %vm1365, %v5801, 0
        %5852 = vmatprep.subr.bf16.mxu0 0
        %5853 = vmatpush1.bf16.msra.mxu0 0
        %5854 = vmatprep.subr.bf16.mxu0 0
        %5855 = vmatpush1.bf16.msra.mxu0 0
        %5856 = vmatprep.subr.bf16.mxu0 0
        %5857 = vmatpush1.bf16.msra.mxu0 0
        %5858 = vmatprep.subr.bf16.mxu0 0
        %5859 = vmatpush1.bf16.msra.mxu0 0
        %5860 = vmatprep.subr.bf16.mxu0 0
        %5861 = vmatpush1.bf16.msra.mxu0 0
        %5862 = vmatprep.subr.bf16.mxu0 0
        %5863 = vmatpush1.bf16.msra.mxu0 0
        %5864 = vmatprep.subr.bf16.mxu0 0
        %5865 = vmatpush1.bf16.msra.mxu0 %v5822
        %5866 = vmatprep.subr.bf16.mxu0 0
        %5867 = vmatpush1.bf16.msra.mxu0 %v5821
        %5868 = vmatprep.subr.bf16.mxu0 0
        %5869 = vmatpush2.bf16.msra.mxu0 0
        %5870 = vmatprep.subr.bf16.mxu0 0
        %5871 = vmatpush2.bf16.msra.mxu0 0
        %5872 = vmatprep.subr.bf16.mxu0 0
        %5873 = vmatpush2.bf16.msra.mxu0 0
        %5874 = vmatprep.subr.bf16.mxu0 0
        %5875 = vmatpush2.bf16.msra.mxu0 0
        %5876 = vmatprep.subr.bf16.mxu0 0
        %5877 = vmatpush2.bf16.msra.mxu0 0
        %5878 = vmatprep.subr.bf16.mxu0 0
        %5879 = vmatpush2.bf16.msra.mxu0 0
        %5880 = vmatprep.subr.bf16.mxu0 0
        %5881 = vmatpush2.bf16.msra.mxu0 0
        %5882 = vmatprep.subr.bf16.mxu0 0
        %5883 = vmatpush2.bf16.msra.mxu0 0
        %5884 = vmatprep.mubr.bf16.mxu0 0
        %5885 = vmatmul.mubr.bf16.gmra.mxu0 %v5826
        %v5886 = vpop.f32.mrf.mxu0
        %v5887 = vadd.f32 %v5811, %v5886
        %v5888 = vpop.f32.mrf.mxu0
        %v5889 = vpop.f32.mrf.mxu0
        %v5890 = vadd.f32 %v5811, %v5889
        %v5891 = vpop.f32.mrf.mxu0
        %5892 = vmatprep.mubr.bf16.mxu0 0
        %5893 = vmatmul.mubr.bf16.gmra.mxu0 %v5829
        %v5894 = vpop.f32.mrf.mxu0
        %v5895 = vadd.f32 %v5811, %v5894
        %v5896 = vpop.f32.mrf.mxu0
        %v5897 = vpop.f32.mrf.mxu0
        %v5898 = vadd.f32 %v5811, %v5897
        %v5899 = vpop.f32.mrf.mxu0
        %5900 = vmatprep.mubr.bf16.mxu0 0
        %5901 = vmatmul.mubr.bf16.gmra.mxu0 %v5832
        %v5902 = vpop.f32.mrf.mxu0
        %v5903 = vadd.f32 %v5811, %v5902
        %v5904 = vpop.f32.mrf.mxu0
        %v5905 = vpop.f32.mrf.mxu0
        %v5906 = vadd.f32 %v5811, %v5905
        %v5907 = vpop.f32.mrf.mxu0
        %5908 = vmatprep.mubr.bf16.mxu0 0
        %5909 = vmatmul.mubr.bf16.gmra.mxu0 %v5835
        %v5910 = vpop.f32.mrf.mxu0
        %v5911 = vadd.f32 %v5811, %v5910
        %v5912 = vpop.f32.mrf.mxu0
        %v5913 = vpop.f32.mrf.mxu0
        %v5914 = vadd.f32 %v5811, %v5913
        %v5915 = vpop.f32.mrf.mxu0
        %5916 = vmatprep.mubr.bf16.mxu0 0
        %5917 = vmatmul.mubr.bf16.gmra.mxu0 %v5838
        %v5918 = vpop.f32.mrf.mxu0
        %v5919 = vadd.f32 %v5811, %v5918
        %v5920 = vpop.f32.mrf.mxu0
        %v5921 = vpop.f32.mrf.mxu0
        %v5922 = vadd.f32 %v5811, %v5921
        %v5923 = vpop.f32.mrf.mxu0
        %5924 = vmatprep.mubr.bf16.mxu0 0
        %5925 = vmatmul.mubr.bf16.gmra.mxu0 %v5841
        %v5926 = vpop.f32.mrf.mxu0
        %v5927 = vadd.f32 %v5811, %v5926
        %v5928 = vpop.f32.mrf.mxu0
        %v5929 = vpop.f32.mrf.mxu0
        %v5930 = vadd.f32 %v5811, %v5929
        %v5931 = vpop.f32.mrf.mxu0
        %5932 = vmatprep.mubr.bf16.mxu0 0
        %5933 = vmatmul.mubr.bf16.gmra.mxu0 %v5844
        %v5934 = vpop.f32.mrf.mxu0
        %v5935 = vadd.f32 %v5811, %v5934
        %v5936 = vpop.f32.mrf.mxu0
        %v5937 = vpop.f32.mrf.mxu0
        %v5938 = vadd.f32 %v5811, %v5937
        %v5939 = vpop.f32.mrf.mxu0
        %5940 = vmatprep.mubr.bf16.mxu0 0
        %5941 = vmatmul.mubr.bf16.gmra.mxu0 %v5847
        %v5942 = vpop.f32.mrf.mxu0
        %v5943 = vadd.f32 %v5811, %v5942
        %v5944 = vpop.f32.mrf.mxu0
        %v5945 = vpop.f32.mrf.mxu0
        %v5946 = vadd.f32 %v5811, %v5945
        %v5947 = vpop.f32.mrf.mxu0
        %5948 = vmatprep.mubr.bf16.mxu0 0
        %5949 = vmatmul.mubr.bf16.gmra.mxu0 %v5850
        %v5950 = vpop.f32.mrf.mxu0
        %v5951 = vadd.f32 %v5811, %v5950
        %v5952 = vpop.f32.mrf.mxu0
        %v5953 = vpop.f32.mrf.mxu0
        %v5954 = vadd.f32 %v5811, %v5953
        %v5955 = vpop.f32.mrf.mxu0
        %5956 = vdwg.mxu0
        %v5957 = vmax.f32 %v5887, 0.0
        %v5958 = vmax.f32 %v5890, 0.0
        %v5959 = vmax.f32 %v5895, 0.0
        %v5960 = vmax.f32 %v5898, 0.0
        %v5961 = vmax.f32 %v5903, 0.0
        %v5962 = vmax.f32 %v5906, 0.0
        %v5963 = vmax.f32 %v5911, 0.0
        %v5964 = vmax.f32 %v5914, 0.0
        %v5965 = vmax.f32 %v5919, 0.0
        %v5966 = vmax.f32 %v5922, 0.0
        %v5967 = vmax.f32 %v5927, 0.0
        %v5968 = vmax.f32 %v5930, 0.0
        %v5969 = vmax.f32 %v5935, 0.0
        %v5970 = vmax.f32 %v5938, 0.0
        %v5971 = vmax.f32 %v5943, 0.0
        %v5972 = vmax.f32 %v5946, 0.0
        %v5973 = vmax.f32 %v5951, 0.0
        %v5974 = vmax.f32 %v5954, 0.0
        %v5975 = vpack.c.bf16 %v5958, %v5957
        %v5976 = vpack.c.bf16 %v5960, %v5959
        %v5977 = vpack.c.bf16 %v5962, %v5961
        %v5978 = vpack.c.bf16 %v5964, %v5963
        %v5979 = vpack.c.bf16 %v5966, %v5965
        %v5980 = vpack.c.bf16 %v5968, %v5967
        %v5981 = vpack.c.bf16 %v5970, %v5969
        %v5982 = vpack.c.bf16 %v5972, %v5971
        %v5983 = vpack.c.bf16 %v5974, %v5973
        %v5984 = vld [vmem:[%s16] sm:$0xf]
        %v5985 = vld [vmem:[%s16 + $0x4] sm:$0xf]
        %v5986 = vld [vmem:[%s16 + $0x8] sm:$0xf]
        %v5987 = vld [vmem:[%s16 + $0xc] sm:$0xf]
        %v5988 = vld [vmem:[%s16 + $0x10] sm:$0xf]
        %v5989 = vld [vmem:[%s16 + $0x14] sm:$0xf]
        %v5990 = vld [vmem:[%s16 + $0x18] sm:$0xf]
        %v5991 = vld [vmem:[%s16 + $0x1c] sm:$0xf]
        %v5992 = vld [vmem:[%s17] sm:$0x1]
        %v5994 = vlaneseq
        %v5995 = vshrl.u32 %v5994, 7
        %v5996 = vsub.s32 0, %v5995
        %v5997 = vrot.slane %v5992, %v5996
        %v6007 = vunpack.c.l.b16 %v5984
        %v6008 = vunpack.c.l.b16 %v5985
        %v6009 = vunpack.c.l.b16 %v5986
        %v6010 = vunpack.c.l.b16 %v5987
        %v6011 = vunpack.c.l.b16 %v5988
        %v6012 = vunpack.c.l.b16 %v5989
        %v6013 = vunpack.c.l.b16 %v5990
        %v6014 = vunpack.c.l.b16 %v5991
        %v6015 = vpack.c.b16 %v6008, %v6007
        %v6016 = vpack.c.b16 %v6010, %v6009
        %v6017 = vpack.c.b16 %v6012, %v6011
        %v6018 = vpack.c.b16 %v6014, %v6013
        %v6024 = vsel %vm1384, %v5975, 0
        %v6027 = vsel %vm1384, %v5976, 0
        %v6030 = vsel %vm1384, %v5977, 0
        %v6033 = vsel %vm1384, %v5978, 0
        %v6036 = vsel %vm1384, %v5979, 0
        %v6039 = vsel %vm1384, %v5980, 0
        %v6042 = vsel %vm1384, %v5981, 0
        %v6045 = vsel %vm1384, %v5982, 0
        %v6048 = vsel %vm1384, %v5983, 0
        %6050 = vmatprep.subr.bf16.mxu0 0
        %6051 = vmatpush1.bf16.msra.mxu0 0
        %6052 = vmatprep.subr.bf16.mxu0 0
        %6053 = vmatpush1.bf16.msra.mxu0 0
        %6054 = vmatprep.subr.bf16.mxu0 0
        %6055 = vmatpush1.bf16.msra.mxu0 0
        %6056 = vmatprep.subr.bf16.mxu0 0
        %6057 = vmatpush1.bf16.msra.mxu0 0
        %6058 = vmatprep.subr.bf16.mxu0 0
        %6059 = vmatpush1.bf16.msra.mxu0 %v6018
        %6060 = vmatprep.subr.bf16.mxu0 0
        %6061 = vmatpush1.bf16.msra.mxu0 %v6017
        %6062 = vmatprep.subr.bf16.mxu0 0
        %6063 = vmatpush1.bf16.msra.mxu0 %v6016
        %6064 = vmatprep.subr.bf16.mxu0 0
        %6065 = vmatpush1.bf16.msra.mxu0 %v6015
        %6066 = vmatprep.subr.bf16.mxu0 0
        %6067 = vmatpush2.bf16.msra.mxu0 0
        %6068 = vmatprep.subr.bf16.mxu0 0
        %6069 = vmatpush2.bf16.msra.mxu0 0
        %6070 = vmatprep.subr.bf16.mxu0 0
        %6071 = vmatpush2.bf16.msra.mxu0 0
        %6072 = vmatprep.subr.bf16.mxu0 0
        %6073 = vmatpush2.bf16.msra.mxu0 0
        %6074 = vmatprep.subr.bf16.mxu0 0
        %6075 = vmatpush2.bf16.msra.mxu0 0
        %6076 = vmatprep.subr.bf16.mxu0 0
        %6077 = vmatpush2.bf16.msra.mxu0 0
        %6078 = vmatprep.subr.bf16.mxu0 0
        %6079 = vmatpush2.bf16.msra.mxu0 0
        %6080 = vmatprep.subr.bf16.mxu0 0
        %6081 = vmatpush2.bf16.msra.mxu0 0
        %6082 = vmatprep.mubr.bf16.mxu0 0
        %6083 = vmatmul.mubr.bf16.gmra.mxu0 %v6024
        %v6084 = vpop.f32.mrf.mxu0
        %v6085 = vadd.f32 %v5997, %v6084
        %v6086 = vpop.f32.mrf.mxu0
        %v6087 = vpop.f32.mrf.mxu0
        %v6088 = vadd.f32 %v5997, %v6087
        %v6089 = vpop.f32.mrf.mxu0
        %6090 = vmatprep.mubr.bf16.mxu0 0
        %6091 = vmatmul.mubr.bf16.gmra.mxu0 %v6027
        %v6092 = vpop.f32.mrf.mxu0
        %v6093 = vadd.f32 %v5997, %v6092
        %v6094 = vpop.f32.mrf.mxu0
        %v6095 = vpop.f32.mrf.mxu0
        %v6096 = vadd.f32 %v5997, %v6095
        %v6097 = vpop.f32.mrf.mxu0
        %6098 = vmatprep.mubr.bf16.mxu0 0
        %6099 = vmatmul.mubr.bf16.gmra.mxu0 %v6030
        %v6100 = vpop.f32.mrf.mxu0
        %v6101 = vadd.f32 %v5997, %v6100
        %v6102 = vpop.f32.mrf.mxu0
        %v6103 = vpop.f32.mrf.mxu0
        %v6104 = vadd.f32 %v5997, %v6103
        %v6105 = vpop.f32.mrf.mxu0
        %6106 = vmatprep.mubr.bf16.mxu0 0
        %6107 = vmatmul.mubr.bf16.gmra.mxu0 %v6033
        %v6108 = vpop.f32.mrf.mxu0
        %v6109 = vadd.f32 %v5997, %v6108
        %v6110 = vpop.f32.mrf.mxu0
        %v6111 = vpop.f32.mrf.mxu0
        %v6112 = vadd.f32 %v5997, %v6111
        %v6113 = vpop.f32.mrf.mxu0
        %6114 = vmatprep.mubr.bf16.mxu0 0
        %6115 = vmatmul.mubr.bf16.gmra.mxu0 %v6036
        %v6116 = vpop.f32.mrf.mxu0
        %v6117 = vadd.f32 %v5997, %v6116
        %v6118 = vpop.f32.mrf.mxu0
        %v6119 = vpop.f32.mrf.mxu0
        %v6120 = vadd.f32 %v5997, %v6119
        %v6121 = vpop.f32.mrf.mxu0
        %6122 = vmatprep.mubr.bf16.mxu0 0
        %6123 = vmatmul.mubr.bf16.gmra.mxu0 %v6039
        %v6124 = vpop.f32.mrf.mxu0
        %v6125 = vadd.f32 %v5997, %v6124
        %v6126 = vpop.f32.mrf.mxu0
        %v6127 = vpop.f32.mrf.mxu0
        %v6128 = vadd.f32 %v5997, %v6127
        %v6129 = vpop.f32.mrf.mxu0
        %6130 = vmatprep.mubr.bf16.mxu0 0
        %6131 = vmatmul.mubr.bf16.gmra.mxu0 %v6042
        %v6132 = vpop.f32.mrf.mxu0
        %v6133 = vadd.f32 %v5997, %v6132
        %v6134 = vpop.f32.mrf.mxu0
        %v6135 = vpop.f32.mrf.mxu0
        %v6136 = vadd.f32 %v5997, %v6135
        %v6137 = vpop.f32.mrf.mxu0
        %6138 = vmatprep.mubr.bf16.mxu0 0
        %6139 = vmatmul.mubr.bf16.gmra.mxu0 %v6045
        %v6140 = vpop.f32.mrf.mxu0
        %v6141 = vadd.f32 %v5997, %v6140
        %v6142 = vpop.f32.mrf.mxu0
        %v6143 = vpop.f32.mrf.mxu0
        %v6144 = vadd.f32 %v5997, %v6143
        %v6145 = vpop.f32.mrf.mxu0
        %6146 = vmatprep.mubr.bf16.mxu0 0
        %6147 = vmatmul.mubr.bf16.gmra.mxu0 %v6048
        %v6148 = vpop.f32.mrf.mxu0
        %v6149 = vadd.f32 %v5997, %v6148
        %v6150 = vpop.f32.mrf.mxu0
        %v6151 = vpop.f32.mrf.mxu0
        %v6152 = vadd.f32 %v5997, %v6151
        %v6153 = vpop.f32.mrf.mxu0
        %6154 = vdwg.mxu0
        %v6155 = vadd.f32 %v6085, %v5775
        %v6156 = vadd.f32 %v6088, %v5776
        %v6157 = vadd.f32 %v6093, %v5777
        %v6158 = vadd.f32 %v6096, %v5778
        %v6159 = vadd.f32 %v6101, %v5779
        %v6160 = vadd.f32 %v6104, %v5780
        %v6161 = vadd.f32 %v6109, %v5781
        %v6162 = vadd.f32 %v6112, %v5782
        %v6163 = vadd.f32 %v6117, %v5783
        %v6164 = vadd.f32 %v6120, %v5784
        %v6165 = vadd.f32 %v6125, %v5785
        %v6166 = vadd.f32 %v6128, %v5786
        %v6167 = vadd.f32 %v6133, %v5787
        %v6168 = vadd.f32 %v6136, %v5788
        %v6169 = vadd.f32 %v6141, %v5789
        %v6170 = vadd.f32 %v6144, %v5790
        %v6171 = vadd.f32 %v6149, %v5791
        %v6172 = vadd.f32 %v6152, %v5792
        %v6173 = vld [vmem:[%s18] sm:$0x1]
        %v6174 = vld [vmem:[%s19] sm:$0x1]
        %v6175 = vsel %vm1365, %v6155, 0.0
        %6176 = vadd.xlane.f32.xlu0 %v6175
        %v6177 = vpop.xlane.xlu0 %6176
        %v6178 = vsel %vm1365, %v6156, 0.0
        %6179 = vadd.xlane.f32.xlu0 %v6178
        %v6180 = vpop.xlane.xlu0 %6179
        %v6181 = vsel %vm1365, %v6157, 0.0
        %6182 = vadd.xlane.f32.xlu0 %v6181
        %v6183 = vpop.xlane.xlu0 %6182
        %v6184 = vsel %vm1365, %v6158, 0.0
        %6185 = vadd.xlane.f32.xlu0 %v6184
        %v6186 = vpop.xlane.xlu0 %6185
        %v6187 = vsel %vm1365, %v6159, 0.0
        %6188 = vadd.xlane.f32.xlu0 %v6187
        %v6189 = vpop.xlane.xlu0 %6188
        %v6190 = vsel %vm1365, %v6160, 0.0
        %6191 = vadd.xlane.f32.xlu0 %v6190
        %v6192 = vpop.xlane.xlu0 %6191
        %v6193 = vsel %vm1365, %v6161, 0.0
        %6194 = vadd.xlane.f32.xlu0 %v6193
        %v6195 = vpop.xlane.xlu0 %6194
        %v6196 = vsel %vm1365, %v6162, 0.0
        %6197 = vadd.xlane.f32.xlu0 %v6196
        %v6198 = vpop.xlane.xlu0 %6197
        %v6199 = vsel %vm1365, %v6163, 0.0
        %6200 = vadd.xlane.f32.xlu0 %v6199
        %v6201 = vpop.xlane.xlu0 %6200
        %v6202 = vsel %vm1365, %v6164, 0.0
        %6203 = vadd.xlane.f32.xlu0 %v6202
        %v6204 = vpop.xlane.xlu0 %6203
        %v6205 = vsel %vm1365, %v6165, 0.0
        %6206 = vadd.xlane.f32.xlu0 %v6205
        %v6207 = vpop.xlane.xlu0 %6206
        %v6208 = vsel %vm1365, %v6166, 0.0
        %6209 = vadd.xlane.f32.xlu0 %v6208
        %v6210 = vpop.xlane.xlu0 %6209
        %v6211 = vsel %vm1365, %v6167, 0.0
        %6212 = vadd.xlane.f32.xlu0 %v6211
        %v6213 = vpop.xlane.xlu0 %6212
        %v6214 = vsel %vm1365, %v6168, 0.0
        %6215 = vadd.xlane.f32.xlu0 %v6214
        %v6216 = vpop.xlane.xlu0 %6215
        %v6217 = vsel %vm1365, %v6169, 0.0
        %6218 = vadd.xlane.f32.xlu0 %v6217
        %v6219 = vpop.xlane.xlu0 %6218
        %v6220 = vsel %vm1365, %v6170, 0.0
        %6221 = vadd.xlane.f32.xlu0 %v6220
        %v6222 = vpop.xlane.xlu0 %6221
        %v6223 = vsel %vm1365, %v6171, 0.0
        %6224 = vadd.xlane.f32.xlu0 %v6223
        %v6225 = vpop.xlane.xlu0 %6224
        %v6226 = vsel %vm5560, %v6172, 0.0
        %6227 = vadd.xlane.f32.xlu0 %v6226
        %v6228 = vpop.xlane.xlu0 %6227
        %v6229 = vmul.f32 %v6177, %v5564
        %v6230 = vmul.f32 %v6180, %v5564
        %v6231 = vmul.f32 %v6183, %v5564
        %v6232 = vmul.f32 %v6186, %v5564
        %v6233 = vmul.f32 %v6189, %v5564
        %v6234 = vmul.f32 %v6192, %v5564
        %v6235 = vmul.f32 %v6195, %v5564
        %v6236 = vmul.f32 %v6198, %v5564
        %v6237 = vmul.f32 %v6201, %v5564
        %v6238 = vmul.f32 %v6204, %v5564
        %v6239 = vmul.f32 %v6207, %v5564
        %v6240 = vmul.f32 %v6210, %v5564
        %v6241 = vmul.f32 %v6213, %v5564
        %v6242 = vmul.f32 %v6216, %v5564
        %v6243 = vmul.f32 %v6219, %v5564
        %v6244 = vmul.f32 %v6222, %v5564
        %v6245 = vmul.f32 %v6225, %v5564
        %v6246 = vmul.f32 %v6228, %v5564
        %v6247 = vsub.f32 %v6155, %v6229
        %v6248 = vsub.f32 %v6156, %v6230
        %v6249 = vsub.f32 %v6157, %v6231
        %v6250 = vsub.f32 %v6158, %v6232
        %v6251 = vsub.f32 %v6159, %v6233
        %v6252 = vsub.f32 %v6160, %v6234
        %v6253 = vsub.f32 %v6161, %v6235
        %v6254 = vsub.f32 %v6162, %v6236
        %v6255 = vsub.f32 %v6163, %v6237
        %v6256 = vsub.f32 %v6164, %v6238
        %v6257 = vsub.f32 %v6165, %v6239
        %v6258 = vsub.f32 %v6166, %v6240
        %v6259 = vsub.f32 %v6167, %v6241
        %v6260 = vsub.f32 %v6168, %v6242
        %v6261 = vsub.f32 %v6169, %v6243
        %v6262 = vsub.f32 %v6170, %v6244
        %v6263 = vsub.f32 %v6171, %v6245
        %v6264 = vsub.f32 %v6172, %v6246
        %v6265 = vmul.f32 %v6247, %v6247
        %v6266 = vmul.f32 %v6248, %v6248
        %v6267 = vmul.f32 %v6249, %v6249
        %v6268 = vmul.f32 %v6250, %v6250
        %v6269 = vmul.f32 %v6251, %v6251
        %v6270 = vmul.f32 %v6252, %v6252
        %v6271 = vmul.f32 %v6253, %v6253
        %v6272 = vmul.f32 %v6254, %v6254
        %v6273 = vmul.f32 %v6255, %v6255
        %v6274 = vmul.f32 %v6256, %v6256
        %v6275 = vmul.f32 %v6257, %v6257
        %v6276 = vmul.f32 %v6258, %v6258
        %v6277 = vmul.f32 %v6259, %v6259
        %v6278 = vmul.f32 %v6260, %v6260
        %v6279 = vmul.f32 %v6261, %v6261
        %v6280 = vmul.f32 %v6262, %v6262
        %v6281 = vmul.f32 %v6263, %v6263
        %v6282 = vmul.f32 %v6264, %v6264
        %v6283 = vsel %vm1365, %v6265, 0.0
        %6284 = vadd.xlane.f32.xlu0 %v6283
        %v6285 = vpop.xlane.xlu0 %6284
        %v6286 = vsel %vm1365, %v6266, 0.0
        %6287 = vadd.xlane.f32.xlu0 %v6286
        %v6288 = vpop.xlane.xlu0 %6287
        %v6289 = vsel %vm1365, %v6267, 0.0
        %6290 = vadd.xlane.f32.xlu0 %v6289
        %v6291 = vpop.xlane.xlu0 %6290
        %v6292 = vsel %vm1365, %v6268, 0.0
        %6293 = vadd.xlane.f32.xlu0 %v6292
        %v6294 = vpop.xlane.xlu0 %6293
        %v6295 = vsel %vm1365, %v6269, 0.0
        %6296 = vadd.xlane.f32.xlu0 %v6295
        %v6297 = vpop.xlane.xlu0 %6296
        %v6298 = vsel %vm1365, %v6270, 0.0
        %6299 = vadd.xlane.f32.xlu0 %v6298
        %v6300 = vpop.xlane.xlu0 %6299
        %v6301 = vsel %vm1365, %v6271, 0.0
        %6302 = vadd.xlane.f32.xlu0 %v6301
        %v6303 = vpop.xlane.xlu0 %6302
        %v6304 = vsel %vm1365, %v6272, 0.0
        %6305 = vadd.xlane.f32.xlu0 %v6304
        %v6306 = vpop.xlane.xlu0 %6305
        %v6307 = vsel %vm1365, %v6273, 0.0
        %6308 = vadd.xlane.f32.xlu0 %v6307
        %v6309 = vpop.xlane.xlu0 %6308
        %v6310 = vsel %vm1365, %v6274, 0.0
        %6311 = vadd.xlane.f32.xlu0 %v6310
        %v6312 = vpop.xlane.xlu0 %6311
        %v6313 = vsel %vm1365, %v6275, 0.0
        %6314 = vadd.xlane.f32.xlu0 %v6313
        %v6315 = vpop.xlane.xlu0 %6314
        %v6316 = vsel %vm1365, %v6276, 0.0
        %6317 = vadd.xlane.f32.xlu0 %v6316
        %v6318 = vpop.xlane.xlu0 %6317
        %v6319 = vsel %vm1365, %v6277, 0.0
        %6320 = vadd.xlane.f32.xlu0 %v6319
        %v6321 = vpop.xlane.xlu0 %6320
        %v6322 = vsel %vm1365, %v6278, 0.0
        %6323 = vadd.xlane.f32.xlu0 %v6322
        %v6324 = vpop.xlane.xlu0 %6323
        %v6325 = vsel %vm1365, %v6279, 0.0
        %6326 = vadd.xlane.f32.xlu0 %v6325
        %v6327 = vpop.xlane.xlu0 %6326
        %v6328 = vsel %vm1365, %v6280, 0.0
        %6329 = vadd.xlane.f32.xlu0 %v6328
        %v6330 = vpop.xlane.xlu0 %6329
        %v6331 = vsel %vm1365, %v6281, 0.0
        %6332 = vadd.xlane.f32.xlu0 %v6331
        %v6333 = vpop.xlane.xlu0 %6332
        %v6334 = vsel %vm5560, %v6282, 0.0
        %6335 = vadd.xlane.f32.xlu0 %v6334
        %v6336 = vpop.xlane.xlu0 %6335
        %v6337 = vmul.f32 %v6285, %v5564
        %v6338 = vmul.f32 %v6288, %v5564
        %v6339 = vmul.f32 %v6291, %v5564
        %v6340 = vmul.f32 %v6294, %v5564
        %v6341 = vmul.f32 %v6297, %v5564
        %v6342 = vmul.f32 %v6300, %v5564
        %v6343 = vmul.f32 %v6303, %v5564
        %v6344 = vmul.f32 %v6306, %v5564
        %v6345 = vmul.f32 %v6309, %v5564
        %v6346 = vmul.f32 %v6312, %v5564
        %v6347 = vmul.f32 %v6315, %v5564
        %v6348 = vmul.f32 %v6318, %v5564
        %v6349 = vmul.f32 %v6321, %v5564
        %v6350 = vmul.f32 %v6324, %v5564
        %v6351 = vmul.f32 %v6327, %v5564
        %v6352 = vmul.f32 %v6330, %v5564
        %v6353 = vmul.f32 %v6333, %v5564
        %v6354 = vmul.f32 %v6336, %v5564
        %v6355 = vadd.f32 %v6337, 1e-05
        %v6356 = vadd.f32 %v6338, 1e-05
        %v6357 = vadd.f32 %v6339, 1e-05
        %v6358 = vadd.f32 %v6340, 1e-05
        %v6359 = vadd.f32 %v6341, 1e-05
        %v6360 = vadd.f32 %v6342, 1e-05
        %v6361 = vadd.f32 %v6343, 1e-05
        %v6362 = vadd.f32 %v6344, 1e-05
        %v6363 = vadd.f32 %v6345, 1e-05
        %v6364 = vadd.f32 %v6346, 1e-05
        %v6365 = vadd.f32 %v6347, 1e-05
        %v6366 = vadd.f32 %v6348, 1e-05
        %v6367 = vadd.f32 %v6349, 1e-05
        %v6368 = vadd.f32 %v6350, 1e-05
        %v6369 = vadd.f32 %v6351, 1e-05
        %v6370 = vadd.f32 %v6352, 1e-05
        %v6371 = vadd.f32 %v6353, 1e-05
        %v6372 = vadd.f32 %v6354, 1e-05
        %v6373 = vrsqrt.pop %v6355
        %v6374 = vrsqrt.pop %v6356
        %v6375 = vrsqrt.pop %v6357
        %v6376 = vrsqrt.pop %v6358
        %v6377 = vrsqrt.pop %v6359
        %v6378 = vrsqrt.pop %v6360
        %v6379 = vrsqrt.pop %v6361
        %v6380 = vrsqrt.pop %v6362
        %v6381 = vrsqrt.pop %v6363
        %v6382 = vrsqrt.pop %v6364
        %v6383 = vrsqrt.pop %v6365
        %v6384 = vrsqrt.pop %v6366
        %v6385 = vrsqrt.pop %v6367
        %v6386 = vrsqrt.pop %v6368
        %v6387 = vrsqrt.pop %v6369
        %v6388 = vrsqrt.pop %v6370
        %v6389 = vrsqrt.pop %v6371
        %v6390 = vrsqrt.pop %v6372
        %v6391 = vmul.f32 %v6247, %v6373
        %v6392 = vmul.f32 %v6248, %v6374
        %v6393 = vmul.f32 %v6249, %v6375
        %v6394 = vmul.f32 %v6250, %v6376
        %v6395 = vmul.f32 %v6251, %v6377
        %v6396 = vmul.f32 %v6252, %v6378
        %v6397 = vmul.f32 %v6253, %v6379
        %v6398 = vmul.f32 %v6254, %v6380
        %v6399 = vmul.f32 %v6255, %v6381
        %v6400 = vmul.f32 %v6256, %v6382
        %v6401 = vmul.f32 %v6257, %v6383
        %v6402 = vmul.f32 %v6258, %v6384
        %v6403 = vmul.f32 %v6259, %v6385
        %v6404 = vmul.f32 %v6260, %v6386
        %v6405 = vmul.f32 %v6261, %v6387
        %v6406 = vmul.f32 %v6262, %v6388
        %v6407 = vmul.f32 %v6263, %v6389
        %v6408 = vmul.f32 %v6264, %v6390
        %v6410 = vlaneseq
        %v6411 = vshrl.u32 %v6410, 7
        %v6412 = vsub.s32 0, %v6411
        %v6413 = vrot.slane %v6173, %v6412
        %v6415 = vmul.f32 %v6391, %v6413
        %v6416 = vmul.f32 %v6392, %v6413
        %v6417 = vmul.f32 %v6393, %v6413
        %v6418 = vmul.f32 %v6394, %v6413
        %v6419 = vmul.f32 %v6395, %v6413
        %v6420 = vmul.f32 %v6396, %v6413
        %v6421 = vmul.f32 %v6397, %v6413
        %v6422 = vmul.f32 %v6398, %v6413
        %v6423 = vmul.f32 %v6399, %v6413
        %v6424 = vmul.f32 %v6400, %v6413
        %v6425 = vmul.f32 %v6401, %v6413
        %v6426 = vmul.f32 %v6402, %v6413
        %v6427 = vmul.f32 %v6403, %v6413
        %v6428 = vmul.f32 %v6404, %v6413
        %v6429 = vmul.f32 %v6405, %v6413
        %v6430 = vmul.f32 %v6406, %v6413
        %v6431 = vmul.f32 %v6407, %v6413
        %v6432 = vmul.f32 %v6408, %v6413
        %v6434 = vlaneseq
        %v6435 = vshrl.u32 %v6434, 7
        %v6436 = vsub.s32 0, %v6435
        %v6437 = vrot.slane %v6174, %v6436
        %v6439 = vadd.f32 %v6415, %v6437
        %v6440 = vadd.f32 %v6416, %v6437
        %v6441 = vadd.f32 %v6417, %v6437
        %v6442 = vadd.f32 %v6418, %v6437
        %v6443 = vadd.f32 %v6419, %v6437
        %v6444 = vadd.f32 %v6420, %v6437
        %v6445 = vadd.f32 %v6421, %v6437
        %v6446 = vadd.f32 %v6422, %v6437
        %v6447 = vadd.f32 %v6423, %v6437
        %v6448 = vadd.f32 %v6424, %v6437
        %v6449 = vadd.f32 %v6425, %v6437
        %v6450 = vadd.f32 %v6426, %v6437
        %v6451 = vadd.f32 %v6427, %v6437
        %v6452 = vadd.f32 %v6428, %v6437
        %v6453 = vadd.f32 %v6429, %v6437
        %v6454 = vadd.f32 %v6430, %v6437
        %v6455 = vadd.f32 %v6431, %v6437
        %v6456 = vadd.f32 %v6432, %v6437
        %v6457 = vpack.c.bf16 %v6440, %v6439
        %v6458 = vpack.c.bf16 %v6442, %v6441
        %v6459 = vpack.c.bf16 %v6444, %v6443
        %v6460 = vpack.c.bf16 %v6446, %v6445
        %v6461 = vpack.c.bf16 %v6448, %v6447
        %v6462 = vpack.c.bf16 %v6450, %v6449
        %v6463 = vpack.c.bf16 %v6452, %v6451
        %v6464 = vpack.c.bf16 %v6454, %v6453
        %v6465 = vpack.c.bf16 %v6456, %v6455
        %s6466 = scalar_lea.vmem %s8, 16
        %v6467 = vld [vmem:[%s6466] sm:$0xf]
        %v6468 = vld [vmem:[%s6466 + $0x4] sm:$0xf]
        %v6469 = vld [vmem:[%s6466 + $0x8] sm:$0xf]
        %v6470 = vld [vmem:[%s6466 + $0xc] sm:$0xf]
        %s6471 = scalar_lea.vmem %s9, 1
        %v6472 = vld [vmem:[%s6471] sm:$0x1]
        %v6474 = vlaneseq
        %v6475 = vshrl.u32 %v6474, 7
        %v6476 = vsub.s32 0, %v6475
        %v6477 = vrot.slane %v6472, %v6476
        %v6483 = vunpack.c.l.b16 %v6467
        %v6484 = vunpack.c.l.b16 %v6468
        %v6485 = vunpack.c.l.b16 %v6469
        %v6486 = vunpack.c.l.b16 %v6470
        %v6487 = vpack.c.b16 %v6484, %v6483
        %v6488 = vpack.c.b16 %v6486, %v6485
        %v6492 = vsel %vm1365, %v6457, 0
        %v6495 = vsel %vm1365, %v6458, 0
        %v6498 = vsel %vm1365, %v6459, 0
        %v6501 = vsel %vm1365, %v6460, 0
        %v6504 = vsel %vm1365, %v6461, 0
        %v6507 = vsel %vm1365, %v6462, 0
        %v6510 = vsel %vm1365, %v6463, 0
        %v6513 = vsel %vm1365, %v6464, 0
        %v6516 = vsel %vm1365, %v6465, 0
        %6518 = vmatprep.subr.bf16.mxu0 0
        %6519 = vmatpush1.bf16.msra.mxu0 0
        %6520 = vmatprep.subr.bf16.mxu0 0
        %6521 = vmatpush1.bf16.msra.mxu0 0
        %6522 = vmatprep.subr.bf16.mxu0 0
        %6523 = vmatpush1.bf16.msra.mxu0 0
        %6524 = vmatprep.subr.bf16.mxu0 0
        %6525 = vmatpush1.bf16.msra.mxu0 0
        %6526 = vmatprep.subr.bf16.mxu0 0
        %6527 = vmatpush1.bf16.msra.mxu0 0
        %6528 = vmatprep.subr.bf16.mxu0 0
        %6529 = vmatpush1.bf16.msra.mxu0 0
        %6530 = vmatprep.subr.bf16.mxu0 0
        %6531 = vmatpush1.bf16.msra.mxu0 %v6488
        %6532 = vmatprep.subr.bf16.mxu0 0
        %6533 = vmatpush1.bf16.msra.mxu0 %v6487
        %6534 = vmatprep.subr.bf16.mxu0 0
        %6535 = vmatpush2.bf16.msra.mxu0 0
        %6536 = vmatprep.subr.bf16.mxu0 0
        %6537 = vmatpush2.bf16.msra.mxu0 0
        %6538 = vmatprep.subr.bf16.mxu0 0
        %6539 = vmatpush2.bf16.msra.mxu0 0
        %6540 = vmatprep.subr.bf16.mxu0 0
        %6541 = vmatpush2.bf16.msra.mxu0 0
        %6542 = vmatprep.subr.bf16.mxu0 0
        %6543 = vmatpush2.bf16.msra.mxu0 0
        %6544 = vmatprep.subr.bf16.mxu0 0
        %6545 = vmatpush2.bf16.msra.mxu0 0
        %6546 = vmatprep.subr.bf16.mxu0 0
        %6547 = vmatpush2.bf16.msra.mxu0 0
        %6548 = vmatprep.subr.bf16.mxu0 0
        %6549 = vmatpush2.bf16.msra.mxu0 0
        %6550 = vmatprep.mubr.bf16.mxu0 0
        %6551 = vmatmul.mubr.bf16.gmra.mxu0 %v6492
        %v6552 = vpop.f32.mrf.mxu0
        %v6553 = vadd.f32 %v6477, %v6552
        %v6554 = vpop.f32.mrf.mxu0
        %v6555 = vpop.f32.mrf.mxu0
        %v6556 = vadd.f32 %v6477, %v6555
        %v6557 = vpop.f32.mrf.mxu0
        %6558 = vmatprep.mubr.bf16.mxu0 0
        %6559 = vmatmul.mubr.bf16.gmra.mxu0 %v6495
        %v6560 = vpop.f32.mrf.mxu0
        %v6561 = vadd.f32 %v6477, %v6560
        %v6562 = vpop.f32.mrf.mxu0
        %v6563 = vpop.f32.mrf.mxu0
        %v6564 = vadd.f32 %v6477, %v6563
        %v6565 = vpop.f32.mrf.mxu0
        %6566 = vmatprep.mubr.bf16.mxu0 0
        %6567 = vmatmul.mubr.bf16.gmra.mxu0 %v6498
        %v6568 = vpop.f32.mrf.mxu0
        %v6569 = vadd.f32 %v6477, %v6568
        %v6570 = vpop.f32.mrf.mxu0
        %v6571 = vpop.f32.mrf.mxu0
        %v6572 = vadd.f32 %v6477, %v6571
        %v6573 = vpop.f32.mrf.mxu0
        %6574 = vmatprep.mubr.bf16.mxu0 0
        %6575 = vmatmul.mubr.bf16.gmra.mxu0 %v6501
        %v6576 = vpop.f32.mrf.mxu0
        %v6577 = vadd.f32 %v6477, %v6576
        %v6578 = vpop.f32.mrf.mxu0
        %v6579 = vpop.f32.mrf.mxu0
        %v6580 = vadd.f32 %v6477, %v6579
        %v6581 = vpop.f32.mrf.mxu0
        %6582 = vmatprep.mubr.bf16.mxu0 0
        %6583 = vmatmul.mubr.bf16.gmra.mxu0 %v6504
        %v6584 = vpop.f32.mrf.mxu0
        %v6585 = vadd.f32 %v6477, %v6584
        %v6586 = vpop.f32.mrf.mxu0
        %v6587 = vpop.f32.mrf.mxu0
        %v6588 = vadd.f32 %v6477, %v6587
        %v6589 = vpop.f32.mrf.mxu0
        %6590 = vmatprep.mubr.bf16.mxu0 0
        %6591 = vmatmul.mubr.bf16.gmra.mxu0 %v6507
        %v6592 = vpop.f32.mrf.mxu0
        %v6593 = vadd.f32 %v6477, %v6592
        %v6594 = vpop.f32.mrf.mxu0
        %v6595 = vpop.f32.mrf.mxu0
        %v6596 = vadd.f32 %v6477, %v6595
        %v6597 = vpop.f32.mrf.mxu0
        %6598 = vmatprep.mubr.bf16.mxu0 0
        %6599 = vmatmul.mubr.bf16.gmra.mxu0 %v6510
        %v6600 = vpop.f32.mrf.mxu0
        %v6601 = vadd.f32 %v6477, %v6600
        %v6602 = vpop.f32.mrf.mxu0
        %v6603 = vpop.f32.mrf.mxu0
        %v6604 = vadd.f32 %v6477, %v6603
        %v6605 = vpop.f32.mrf.mxu0
        %6606 = vmatprep.mubr.bf16.mxu0 0
        %6607 = vmatmul.mubr.bf16.gmra.mxu0 %v6513
        %v6608 = vpop.f32.mrf.mxu0
        %v6609 = vadd.f32 %v6477, %v6608
        %v6610 = vpop.f32.mrf.mxu0
        %v6611 = vpop.f32.mrf.mxu0
        %v6612 = vadd.f32 %v6477, %v6611
        %v6613 = vpop.f32.mrf.mxu0
        %6614 = vmatprep.mubr.bf16.mxu0 0
        %6615 = vmatmul.mubr.bf16.gmra.mxu0 %v6516
        %v6616 = vpop.f32.mrf.mxu0
        %v6617 = vadd.f32 %v6477, %v6616
        %v6618 = vpop.f32.mrf.mxu0
        %v6619 = vpop.f32.mrf.mxu0
        %v6620 = vadd.f32 %v6477, %v6619
        %v6621 = vpop.f32.mrf.mxu0
        %6622 = vdwg.mxu0
        %v6623 = vpack.c.bf16 %v6556, %v6553
        %v6624 = vpack.c.bf16 %v6564, %v6561
        %v6625 = vpack.c.bf16 %v6572, %v6569
        %v6626 = vpack.c.bf16 %v6580, %v6577
        %v6627 = vpack.c.bf16 %v6588, %v6585
        %v6628 = vpack.c.bf16 %v6596, %v6593
        %v6629 = vpack.c.bf16 %v6604, %v6601
        %v6630 = vpack.c.bf16 %v6612, %v6609
        %v6631 = vpack.c.bf16 %v6620, %v6617
        %6641 = vrot.lane.b32.xlu0 %v6623, 96
        %v6642 = vpop.permute.xlu0 %6641
        %6643 = vrot.lane.b32.xlu0 %v6624, 96
        %v6644 = vpop.permute.xlu0 %6643
        %6645 = vrot.lane.b32.xlu0 %v6625, 96
        %v6646 = vpop.permute.xlu0 %6645
        %6647 = vrot.lane.b32.xlu0 %v6626, 96
        %v6648 = vpop.permute.xlu0 %6647
        %6649 = vrot.lane.b32.xlu0 %v6627, 96
        %v6650 = vpop.permute.xlu0 %6649
        %6651 = vrot.lane.b32.xlu0 %v6628, 96
        %v6652 = vpop.permute.xlu0 %6651
        %6653 = vrot.lane.b32.xlu0 %v6629, 96
        %v6654 = vpop.permute.xlu0 %6653
        %6655 = vrot.lane.b32.xlu0 %v6630, 96
        %v6656 = vpop.permute.xlu0 %6655
        %6657 = vrot.lane.b32.xlu0 %v6631, 96
        %v6658 = vpop.permute.xlu0 %6657
        %v6660 = vsel %vm973, %v6623, 0
        %v6663 = vsel %vm973, %v6624, 0
        %v6666 = vsel %vm973, %v6625, 0
        %v6669 = vsel %vm973, %v6626, 0
        %v6672 = vsel %vm973, %v6627, 0
        %v6675 = vsel %vm973, %v6628, 0
        %v6678 = vsel %vm973, %v6629, 0
        %v6681 = vsel %vm973, %v6630, 0
        %v6684 = vsel %vm973, %v6631, 0
        %v6687 = vsel %vm973, %v6642, 0
        %v6690 = vsel %vm973, %v6644, 0
        %v6693 = vsel %vm973, %v6646, 0
        %v6696 = vsel %vm973, %v6648, 0
        %v6699 = vsel %vm973, %v6650, 0
        %v6702 = vsel %vm973, %v6652, 0
        %v6705 = vsel %vm973, %v6654, 0
        %v6708 = vsel %vm973, %v6656, 0
        %v6711 = vsel %vm973, %v6658, 0
        %6713 = vmatprep.subr.bf16.mxu0 0
        %6714 = vmatpush1.bf16.xpose.msra.mxu0 %v6708
        %6715 = vmatprep.subr.bf16.mxu0 0
        %6716 = vmatpush1.bf16.xpose.msra.mxu0 %v6705
        %6717 = vmatprep.subr.bf16.mxu0 0
        %6718 = vmatpush1.bf16.xpose.msra.mxu0 %v6702
        %6719 = vmatprep.subr.bf16.mxu0 0
        %6720 = vmatpush1.bf16.xpose.msra.mxu0 %v6699
        %6721 = vmatprep.subr.bf16.mxu0 0
        %6722 = vmatpush1.bf16.xpose.msra.mxu0 %v6696
        %6723 = vmatprep.subr.bf16.mxu0 0
        %6724 = vmatpush1.bf16.xpose.msra.mxu0 %v6693
        %6725 = vmatprep.subr.bf16.mxu0 0
        %6726 = vmatpush1.bf16.xpose.msra.mxu0 %v6690
        %6727 = vmatprep.subr.bf16.mxu0 0
        %6728 = vmatpush1.bf16.xpose.msra.mxu0 %v6687
        %6729 = vmatprep.subr.bf16.mxu0 0
        %6730 = vmatpush2.bf16.xpose.msra.mxu0 0
        %6731 = vmatprep.subr.bf16.mxu0 0
        %6732 = vmatpush2.bf16.xpose.msra.mxu0 0
        %6733 = vmatprep.subr.bf16.mxu0 0
        %6734 = vmatpush2.bf16.xpose.msra.mxu0 0
        %6735 = vmatprep.subr.bf16.mxu0 0
        %6736 = vmatpush2.bf16.xpose.msra.mxu0 0
        %6737 = vmatprep.subr.bf16.mxu0 0
        %6738 = vmatpush2.bf16.xpose.msra.mxu0 0
        %6739 = vmatprep.subr.bf16.mxu0 0
        %6740 = vmatpush2.bf16.xpose.msra.mxu0 0
        %6741 = vmatprep.subr.bf16.mxu0 0
        %6742 = vmatpush2.bf16.xpose.msra.mxu0 0
        %6743 = vmatprep.subr.bf16.mxu0 0
        %6744 = vmatpush2.bf16.xpose.msra.mxu0 %v6711
        %6745 = vmatprep.mubr.bf16.mxu0 0
        %6746 = vmatmul.mubr.bf16.gmra.mxu0 %v6660
        %v6747 = vpop.f32.mrf.mxu0
        %v6748 = vadd.f32 0.0, %v6747
        %v6749 = vpop.f32.mrf.mxu0
        %v6750 = vadd.f32 0.0, %v6749
        %v6751 = vpop.f32.mrf.mxu0
        %v6752 = vadd.f32 0.0, %v6751
        %v6753 = vpop.f32.mrf.mxu0
        %v6754 = vadd.f32 0.0, %v6753
        %6755 = vmatprep.mubr.bf16.mxu0 0
        %6756 = vmatmul.mubr.bf16.gmra.mxu0 %v6663
        %v6757 = vpop.f32.mrf.mxu0
        %v6758 = vadd.f32 0.0, %v6757
        %v6759 = vpop.f32.mrf.mxu0
        %v6760 = vadd.f32 0.0, %v6759
        %v6761 = vpop.f32.mrf.mxu0
        %v6762 = vadd.f32 0.0, %v6761
        %v6763 = vpop.f32.mrf.mxu0
        %v6764 = vadd.f32 0.0, %v6763
        %6765 = vmatprep.mubr.bf16.mxu0 0
        %6766 = vmatmul.mubr.bf16.gmra.mxu0 %v6666
        %v6767 = vpop.f32.mrf.mxu0
        %v6768 = vadd.f32 0.0, %v6767
        %v6769 = vpop.f32.mrf.mxu0
        %v6770 = vadd.f32 0.0, %v6769
        %v6771 = vpop.f32.mrf.mxu0
        %v6772 = vadd.f32 0.0, %v6771
        %v6773 = vpop.f32.mrf.mxu0
        %v6774 = vadd.f32 0.0, %v6773
        %6775 = vmatprep.mubr.bf16.mxu0 0
        %6776 = vmatmul.mubr.bf16.gmra.mxu0 %v6669
        %v6777 = vpop.f32.mrf.mxu0
        %v6778 = vadd.f32 0.0, %v6777
        %v6779 = vpop.f32.mrf.mxu0
        %v6780 = vadd.f32 0.0, %v6779
        %v6781 = vpop.f32.mrf.mxu0
        %v6782 = vadd.f32 0.0, %v6781
        %v6783 = vpop.f32.mrf.mxu0
        %v6784 = vadd.f32 0.0, %v6783
        %6785 = vmatprep.mubr.bf16.mxu0 0
        %6786 = vmatmul.mubr.bf16.gmra.mxu0 %v6672
        %v6787 = vpop.f32.mrf.mxu0
        %v6788 = vadd.f32 0.0, %v6787
        %v6789 = vpop.f32.mrf.mxu0
        %v6790 = vadd.f32 0.0, %v6789
        %v6791 = vpop.f32.mrf.mxu0
        %v6792 = vadd.f32 0.0, %v6791
        %v6793 = vpop.f32.mrf.mxu0
        %v6794 = vadd.f32 0.0, %v6793
        %6795 = vmatprep.mubr.bf16.mxu0 0
        %6796 = vmatmul.mubr.bf16.gmra.mxu0 %v6675
        %v6797 = vpop.f32.mrf.mxu0
        %v6798 = vadd.f32 0.0, %v6797
        %v6799 = vpop.f32.mrf.mxu0
        %v6800 = vadd.f32 0.0, %v6799
        %v6801 = vpop.f32.mrf.mxu0
        %v6802 = vadd.f32 0.0, %v6801
        %v6803 = vpop.f32.mrf.mxu0
        %v6804 = vadd.f32 0.0, %v6803
        %6805 = vmatprep.mubr.bf16.mxu0 0
        %6806 = vmatmul.mubr.bf16.gmra.mxu0 %v6678
        %v6807 = vpop.f32.mrf.mxu0
        %v6808 = vadd.f32 0.0, %v6807
        %v6809 = vpop.f32.mrf.mxu0
        %v6810 = vadd.f32 0.0, %v6809
        %v6811 = vpop.f32.mrf.mxu0
        %v6812 = vadd.f32 0.0, %v6811
        %v6813 = vpop.f32.mrf.mxu0
        %v6814 = vadd.f32 0.0, %v6813
        %6815 = vmatprep.mubr.bf16.mxu0 0
        %6816 = vmatmul.mubr.bf16.gmra.mxu0 %v6681
        %v6817 = vpop.f32.mrf.mxu0
        %v6818 = vadd.f32 0.0, %v6817
        %v6819 = vpop.f32.mrf.mxu0
        %v6820 = vadd.f32 0.0, %v6819
        %v6821 = vpop.f32.mrf.mxu0
        %v6822 = vadd.f32 0.0, %v6821
        %v6823 = vpop.f32.mrf.mxu0
        %v6824 = vadd.f32 0.0, %v6823
        %6825 = vmatprep.mubr.bf16.mxu0 0
        %6826 = vmatmul.mubr.bf16.gmra.mxu0 %v6684
        %v6827 = vpop.f32.mrf.mxu0
        %v6828 = vadd.f32 0.0, %v6827
        %v6829 = vpop.f32.mrf.mxu0
        %v6830 = vadd.f32 0.0, %v6829
        %v6831 = vpop.f32.mrf.mxu0
        %v6832 = vadd.f32 0.0, %v6831
        %v6833 = vpop.f32.mrf.mxu0
        %v6834 = vadd.f32 0.0, %v6833
        %6835 = vdwg.mxu0
        %v6836 = vsel %vm2462, %v6750, -inf
        %v6837 = vmax.f32 %v6748, %v6836
        %6838 = vmax.xlane.f32.xlu0 %v6837
        %v6839 = vpop.xlane.xlu0 %6838
        %v6840 = vsel %vm2462, %v6754, -inf
        %v6841 = vmax.f32 %v6752, %v6840
        %6842 = vmax.xlane.f32.xlu0 %v6841
        %v6843 = vpop.xlane.xlu0 %6842
        %v6844 = vsel %vm2462, %v6760, -inf
        %v6845 = vmax.f32 %v6758, %v6844
        %6846 = vmax.xlane.f32.xlu0 %v6845
        %v6847 = vpop.xlane.xlu0 %6846
        %v6848 = vsel %vm2462, %v6764, -inf
        %v6849 = vmax.f32 %v6762, %v6848
        %6850 = vmax.xlane.f32.xlu0 %v6849
        %v6851 = vpop.xlane.xlu0 %6850
        %v6852 = vsel %vm2462, %v6770, -inf
        %v6853 = vmax.f32 %v6768, %v6852
        %6854 = vmax.xlane.f32.xlu0 %v6853
        %v6855 = vpop.xlane.xlu0 %6854
        %v6856 = vsel %vm2462, %v6774, -inf
        %v6857 = vmax.f32 %v6772, %v6856
        %6858 = vmax.xlane.f32.xlu0 %v6857
        %v6859 = vpop.xlane.xlu0 %6858
        %v6860 = vsel %vm2462, %v6780, -inf
        %v6861 = vmax.f32 %v6778, %v6860
        %6862 = vmax.xlane.f32.xlu0 %v6861
        %v6863 = vpop.xlane.xlu0 %6862
        %v6864 = vsel %vm2462, %v6784, -inf
        %v6865 = vmax.f32 %v6782, %v6864
        %6866 = vmax.xlane.f32.xlu0 %v6865
        %v6867 = vpop.xlane.xlu0 %6866
        %v6868 = vsel %vm2462, %v6790, -inf
        %v6869 = vmax.f32 %v6788, %v6868
        %6870 = vmax.xlane.f32.xlu0 %v6869
        %v6871 = vpop.xlane.xlu0 %6870
        %v6872 = vsel %vm2462, %v6794, -inf
        %v6873 = vmax.f32 %v6792, %v6872
        %6874 = vmax.xlane.f32.xlu0 %v6873
        %v6875 = vpop.xlane.xlu0 %6874
        %v6876 = vsel %vm2462, %v6800, -inf
        %v6877 = vmax.f32 %v6798, %v6876
        %6878 = vmax.xlane.f32.xlu0 %v6877
        %v6879 = vpop.xlane.xlu0 %6878
        %v6880 = vsel %vm2462, %v6804, -inf
        %v6881 = vmax.f32 %v6802, %v6880
        %6882 = vmax.xlane.f32.xlu0 %v6881
        %v6883 = vpop.xlane.xlu0 %6882
        %v6884 = vsel %vm2462, %v6810, -inf
        %v6885 = vmax.f32 %v6808, %v6884
        %6886 = vmax.xlane.f32.xlu0 %v6885
        %v6887 = vpop.xlane.xlu0 %6886
        %v6888 = vsel %vm2462, %v6814, -inf
        %v6889 = vmax.f32 %v6812, %v6888
        %6890 = vmax.xlane.f32.xlu0 %v6889
        %v6891 = vpop.xlane.xlu0 %6890
        %v6892 = vsel %vm2462, %v6820, -inf
        %v6893 = vmax.f32 %v6818, %v6892
        %6894 = vmax.xlane.f32.xlu0 %v6893
        %v6895 = vpop.xlane.xlu0 %6894
        %v6896 = vsel %vm2462, %v6824, -inf
        %v6897 = vmax.f32 %v6822, %v6896
        %6898 = vmax.xlane.f32.xlu0 %v6897
        %v6899 = vpop.xlane.xlu0 %6898
        %v6900 = vsel %vm2462, %v6830, -inf
        %v6901 = vmax.f32 %v6828, %v6900
        %6902 = vmax.xlane.f32.xlu0 %v6901
        %v6903 = vpop.xlane.xlu0 %6902
        %v6904 = vsel %vm2531, %v6832, -inf
        %v6905 = vsel %vm2533, %v6834, -inf
        %v6906 = vmax.f32 %v6904, %v6905
        %6907 = vmax.xlane.f32.xlu0 %v6906
        %v6908 = vpop.xlane.xlu0 %6907
        %v6909 = vsub.f32 %v6748, %v6839
        %v6910 = vsub.f32 %v6750, %v6839
        %v6911 = vsub.f32 %v6752, %v6843
        %v6912 = vsub.f32 %v6754, %v6843
        %v6913 = vsub.f32 %v6758, %v6847
        %v6914 = vsub.f32 %v6760, %v6847
        %v6915 = vsub.f32 %v6762, %v6851
        %v6916 = vsub.f32 %v6764, %v6851
        %v6917 = vsub.f32 %v6768, %v6855
        %v6918 = vsub.f32 %v6770, %v6855
        %v6919 = vsub.f32 %v6772, %v6859
        %v6920 = vsub.f32 %v6774, %v6859
        %v6921 = vsub.f32 %v6778, %v6863
        %v6922 = vsub.f32 %v6780, %v6863
        %v6923 = vsub.f32 %v6782, %v6867
        %v6924 = vsub.f32 %v6784, %v6867
        %v6925 = vsub.f32 %v6788, %v6871
        %v6926 = vsub.f32 %v6790, %v6871
        %v6927 = vsub.f32 %v6792, %v6875
        %v6928 = vsub.f32 %v6794, %v6875
        %v6929 = vsub.f32 %v6798, %v6879
        %v6930 = vsub.f32 %v6800, %v6879
        %v6931 = vsub.f32 %v6802, %v6883
        %v6932 = vsub.f32 %v6804, %v6883
        %v6933 = vsub.f32 %v6808, %v6887
        %v6934 = vsub.f32 %v6810, %v6887
        %v6935 = vsub.f32 %v6812, %v6891
        %v6936 = vsub.f32 %v6814, %v6891
        %v6937 = vsub.f32 %v6818, %v6895
        %v6938 = vsub.f32 %v6820, %v6895
        %v6939 = vsub.f32 %v6822, %v6899
        %v6940 = vsub.f32 %v6824, %v6899
        %v6941 = vsub.f32 %v6828, %v6903
        %v6942 = vsub.f32 %v6830, %v6903
        %v6943 = vsub.f32 %v6832, %v6908
        %v6944 = vsub.f32 %v6834, %v6908
        %v6945 = vmul.f32 %v6909, 1.442695
        %v6946 = vpow.pop %v6945
        %v6947 = vmul.f32 %v6910, 1.442695
        %v6948 = vpow.pop %v6947
        %v6949 = vmul.f32 %v6911, 1.442695
        %v6950 = vpow.pop %v6949
        %v6951 = vmul.f32 %v6912, 1.442695
        %v6952 = vpow.pop %v6951
        %v6953 = vmul.f32 %v6913, 1.442695
        %v6954 = vpow.pop %v6953
        %v6955 = vmul.f32 %v6914, 1.442695
        %v6956 = vpow.pop %v6955
        %v6957 = vmul.f32 %v6915, 1.442695
        %v6958 = vpow.pop %v6957
        %v6959 = vmul.f32 %v6916, 1.442695
        %v6960 = vpow.pop %v6959
        %v6961 = vmul.f32 %v6917, 1.442695
        %v6962 = vpow.pop %v6961
        %v6963 = vmul.f32 %v6918, 1.442695
        %v6964 = vpow.pop %v6963
        %v6965 = vmul.f32 %v6919, 1.442695
        %v6966 = vpow.pop %v6965
        %v6967 = vmul.f32 %v6920, 1.442695
        %v6968 = vpow.pop %v6967
        %v6969 = vmul.f32 %v6921, 1.442695
        %v6970 = vpow.pop %v6969
        %v6971 = vmul.f32 %v6922, 1.442695
        %v6972 = vpow.pop %v6971
        %v6973 = vmul.f32 %v6923, 1.442695
        %v6974 = vpow.pop %v6973
        %v6975 = vmul.f32 %v6924, 1.442695
        %v6976 = vpow.pop %v6975
        %v6977 = vmul.f32 %v6925, 1.442695
        %v6978 = vpow.pop %v6977
        %v6979 = vmul.f32 %v6926, 1.442695
        %v6980 = vpow.pop %v6979
        %v6981 = vmul.f32 %v6927, 1.442695
        %v6982 = vpow.pop %v6981
        %v6983 = vmul.f32 %v6928, 1.442695
        %v6984 = vpow.pop %v6983
        %v6985 = vmul.f32 %v6929, 1.442695
        %v6986 = vpow.pop %v6985
        %v6987 = vmul.f32 %v6930, 1.442695
        %v6988 = vpow.pop %v6987
        %v6989 = vmul.f32 %v6931, 1.442695
        %v6990 = vpow.pop %v6989
        %v6991 = vmul.f32 %v6932, 1.442695
        %v6992 = vpow.pop %v6991
        %v6993 = vmul.f32 %v6933, 1.442695
        %v6994 = vpow.pop %v6993
        %v6995 = vmul.f32 %v6934, 1.442695
        %v6996 = vpow.pop %v6995
        %v6997 = vmul.f32 %v6935, 1.442695
        %v6998 = vpow.pop %v6997
        %v6999 = vmul.f32 %v6936, 1.442695
        %v7000 = vpow.pop %v6999
        %v7001 = vmul.f32 %v6937, 1.442695
        %v7002 = vpow.pop %v7001
        %v7003 = vmul.f32 %v6938, 1.442695
        %v7004 = vpow.pop %v7003
        %v7005 = vmul.f32 %v6939, 1.442695
        %v7006 = vpow.pop %v7005
        %v7007 = vmul.f32 %v6940, 1.442695
        %v7008 = vpow.pop %v7007
        %v7009 = vmul.f32 %v6941, 1.442695
        %v7010 = vpow.pop %v7009
        %v7011 = vmul.f32 %v6942, 1.442695
        %v7012 = vpow.pop %v7011
        %v7013 = vmul.f32 %v6943, 1.442695
        %v7014 = vpow.pop %v7013
        %v7015 = vmul.f32 %v6944, 1.442695
        %v7016 = vpow.pop %v7015
        %v7017 = vsel %vm2462, %v6948, 0.0
        %v7018 = vadd.f32 %v6946, %v7017
        %7019 = vadd.xlane.f32.xlu0 %v7018
        %v7020 = vpop.xlane.xlu0 %7019
        %v7021 = vsel %vm2462, %v6952, 0.0
        %v7022 = vadd.f32 %v6950, %v7021
        %7023 = vadd.xlane.f32.xlu0 %v7022
        %v7024 = vpop.xlane.xlu0 %7023
        %v7025 = vsel %vm2462, %v6956, 0.0
        %v7026 = vadd.f32 %v6954, %v7025
        %7027 = vadd.xlane.f32.xlu0 %v7026
        %v7028 = vpop.xlane.xlu0 %7027
        %v7029 = vsel %vm2462, %v6960, 0.0
        %v7030 = vadd.f32 %v6958, %v7029
        %7031 = vadd.xlane.f32.xlu0 %v7030
        %v7032 = vpop.xlane.xlu0 %7031
        %v7033 = vsel %vm2462, %v6964, 0.0
        %v7034 = vadd.f32 %v6962, %v7033
        %7035 = vadd.xlane.f32.xlu0 %v7034
        %v7036 = vpop.xlane.xlu0 %7035
        %v7037 = vsel %vm2462, %v6968, 0.0
        %v7038 = vadd.f32 %v6966, %v7037
        %7039 = vadd.xlane.f32.xlu0 %v7038
        %v7040 = vpop.xlane.xlu0 %7039
        %v7041 = vsel %vm2462, %v6972, 0.0
        %v7042 = vadd.f32 %v6970, %v7041
        %7043 = vadd.xlane.f32.xlu0 %v7042
        %v7044 = vpop.xlane.xlu0 %7043
        %v7045 = vsel %vm2462, %v6976, 0.0
        %v7046 = vadd.f32 %v6974, %v7045
        %7047 = vadd.xlane.f32.xlu0 %v7046
        %v7048 = vpop.xlane.xlu0 %7047
        %v7049 = vsel %vm2462, %v6980, 0.0
        %v7050 = vadd.f32 %v6978, %v7049
        %7051 = vadd.xlane.f32.xlu0 %v7050
        %v7052 = vpop.xlane.xlu0 %7051
        %v7053 = vsel %vm2462, %v6984, 0.0
        %v7054 = vadd.f32 %v6982, %v7053
        %7055 = vadd.xlane.f32.xlu0 %v7054
        %v7056 = vpop.xlane.xlu0 %7055
        %v7057 = vsel %vm2462, %v6988, 0.0
        %v7058 = vadd.f32 %v6986, %v7057
        %7059 = vadd.xlane.f32.xlu0 %v7058
        %v7060 = vpop.xlane.xlu0 %7059
        %v7061 = vsel %vm2462, %v6992, 0.0
        %v7062 = vadd.f32 %v6990, %v7061
        %7063 = vadd.xlane.f32.xlu0 %v7062
        %v7064 = vpop.xlane.xlu0 %7063
        %v7065 = vsel %vm2462, %v6996, 0.0
        %v7066 = vadd.f32 %v6994, %v7065
        %7067 = vadd.xlane.f32.xlu0 %v7066
        %v7068 = vpop.xlane.xlu0 %7067
        %v7069 = vsel %vm2462, %v7000, 0.0
        %v7070 = vadd.f32 %v6998, %v7069
        %7071 = vadd.xlane.f32.xlu0 %v7070
        %v7072 = vpop.xlane.xlu0 %7071
        %v7073 = vsel %vm2462, %v7004, 0.0
        %v7074 = vadd.f32 %v7002, %v7073
        %7075 = vadd.xlane.f32.xlu0 %v7074
        %v7076 = vpop.xlane.xlu0 %7075
        %v7077 = vsel %vm2462, %v7008, 0.0
        %v7078 = vadd.f32 %v7006, %v7077
        %7079 = vadd.xlane.f32.xlu0 %v7078
        %v7080 = vpop.xlane.xlu0 %7079
        %v7081 = vsel %vm2462, %v7012, 0.0
        %v7082 = vadd.f32 %v7010, %v7081
        %7083 = vadd.xlane.f32.xlu0 %v7082
        %v7084 = vpop.xlane.xlu0 %7083
        %v7085 = vsel %vm2531, %v7014, 0.0
        %v7086 = vsel %vm2533, %v7016, 0.0
        %v7087 = vadd.f32 %v7085, %v7086
        %7088 = vadd.xlane.f32.xlu0 %v7087
        %v7089 = vpop.xlane.xlu0 %7088
        %v7090 = vpack.c.bf16 %v6950, %v6946
        %v7091 = vpack.c.bf16 %v6952, %v6948
        %v7092 = vpack.c.bf16 %v6958, %v6954
        %v7093 = vpack.c.bf16 %v6960, %v6956
        %v7094 = vpack.c.bf16 %v6966, %v6962
        %v7095 = vpack.c.bf16 %v6968, %v6964
        %v7096 = vpack.c.bf16 %v6974, %v6970
        %v7097 = vpack.c.bf16 %v6976, %v6972
        %v7098 = vpack.c.bf16 %v6982, %v6978
        %v7099 = vpack.c.bf16 %v6984, %v6980
        %v7100 = vpack.c.bf16 %v6990, %v6986
        %v7101 = vpack.c.bf16 %v6992, %v6988
        %v7102 = vpack.c.bf16 %v6998, %v6994
        %v7103 = vpack.c.bf16 %v7000, %v6996
        %v7104 = vpack.c.bf16 %v7006, %v7002
        %v7105 = vpack.c.bf16 %v7008, %v7004
        %v7106 = vpack.c.bf16 %v7014, %v7010
        %v7107 = vpack.c.bf16 %v7016, %v7012
        %7108 = vrot.lane.b32.xlu0 %v6623, 64
        %v7109 = vpop.permute.xlu0 %7108
        %7110 = vrot.lane.b32.xlu0 %v6624, 64
        %v7111 = vpop.permute.xlu0 %7110
        %7112 = vrot.lane.b32.xlu0 %v6625, 64
        %v7113 = vpop.permute.xlu0 %7112
        %7114 = vrot.lane.b32.xlu0 %v6626, 64
        %v7115 = vpop.permute.xlu0 %7114
        %7116 = vrot.lane.b32.xlu0 %v6627, 64
        %v7117 = vpop.permute.xlu0 %7116
        %7118 = vrot.lane.b32.xlu0 %v6628, 64
        %v7119 = vpop.permute.xlu0 %7118
        %7120 = vrot.lane.b32.xlu0 %v6629, 64
        %v7121 = vpop.permute.xlu0 %7120
        %7122 = vrot.lane.b32.xlu0 %v6630, 64
        %v7123 = vpop.permute.xlu0 %7122
        %7124 = vrot.lane.b32.xlu0 %v6631, 64
        %v7125 = vpop.permute.xlu0 %7124
        %v7135 = vsel %vm2462, %v7091, 0
        %v7138 = vsel %vm2462, %v7093, 0
        %v7141 = vsel %vm2462, %v7095, 0
        %v7144 = vsel %vm2462, %v7097, 0
        %v7147 = vsel %vm2462, %v7099, 0
        %v7150 = vsel %vm2462, %v7101, 0
        %v7153 = vsel %vm2462, %v7103, 0
        %v7156 = vsel %vm2462, %v7105, 0
        %v7159 = vsel %vm2462, %v7107, 0
        %v7162 = vsel %vm2790, %v7125, 0
        %7164 = vmatprep.subr.bf16.mxu0 0
        %7165 = vmatpush1.bf16.msra.mxu0 %v7123
        %7166 = vmatprep.subr.bf16.mxu0 0
        %7167 = vmatpush1.bf16.msra.mxu0 %v7121
        %7168 = vmatprep.subr.bf16.mxu0 0
        %7169 = vmatpush1.bf16.msra.mxu0 %v7119
        %7170 = vmatprep.subr.bf16.mxu0 0
        %7171 = vmatpush1.bf16.msra.mxu0 %v7117
        %7172 = vmatprep.subr.bf16.mxu0 0
        %7173 = vmatpush1.bf16.msra.mxu0 %v7115
        %7174 = vmatprep.subr.bf16.mxu0 0
        %7175 = vmatpush1.bf16.msra.mxu0 %v7113
        %7176 = vmatprep.subr.bf16.mxu0 0
        %7177 = vmatpush1.bf16.msra.mxu0 %v7111
        %7178 = vmatprep.subr.bf16.mxu0 0
        %7179 = vmatpush1.bf16.msra.mxu0 %v7109
        %7180 = vmatprep.subr.bf16.mxu0 0
        %7181 = vmatpush2.bf16.msra.mxu0 0
        %7182 = vmatprep.subr.bf16.mxu0 0
        %7183 = vmatpush2.bf16.msra.mxu0 0
        %7184 = vmatprep.subr.bf16.mxu0 0
        %7185 = vmatpush2.bf16.msra.mxu0 0
        %7186 = vmatprep.subr.bf16.mxu0 0
        %7187 = vmatpush2.bf16.msra.mxu0 0
        %7188 = vmatprep.subr.bf16.mxu0 0
        %7189 = vmatpush2.bf16.msra.mxu0 0
        %7190 = vmatprep.subr.bf16.mxu0 0
        %7191 = vmatpush2.bf16.msra.mxu0 0
        %7192 = vmatprep.subr.bf16.mxu0 0
        %7193 = vmatpush2.bf16.msra.mxu0 0
        %7194 = vmatprep.subr.bf16.mxu0 0
        %7195 = vmatpush2.bf16.msra.mxu0 %v7162
        %7196 = vmatprep.mubr.bf16.mxu0 %v7135
        %7197 = vmatmul.mubr.bf16.gmra.mxu0 %v7090
        %v7198 = vpop.f32.mrf.mxu0
        %v7199 = vadd.f32 0.0, %v7198
        %v7200 = vpop.f32.mrf.mxu0
        %v7201 = vpop.f32.mrf.mxu0
        %v7202 = vadd.f32 0.0, %v7201
        %v7203 = vpop.f32.mrf.mxu0
        %7204 = vmatprep.mubr.bf16.mxu0 %v7138
        %7205 = vmatmul.mubr.bf16.gmra.mxu0 %v7092
        %v7206 = vpop.f32.mrf.mxu0
        %v7207 = vadd.f32 0.0, %v7206
        %v7208 = vpop.f32.mrf.mxu0
        %v7209 = vpop.f32.mrf.mxu0
        %v7210 = vadd.f32 0.0, %v7209
        %v7211 = vpop.f32.mrf.mxu0
        %7212 = vmatprep.mubr.bf16.mxu0 %v7141
        %7213 = vmatmul.mubr.bf16.gmra.mxu0 %v7094
        %v7214 = vpop.f32.mrf.mxu0
        %v7215 = vadd.f32 0.0, %v7214
        %v7216 = vpop.f32.mrf.mxu0
        %v7217 = vpop.f32.mrf.mxu0
        %v7218 = vadd.f32 0.0, %v7217
        %v7219 = vpop.f32.mrf.mxu0
        %7220 = vmatprep.mubr.bf16.mxu0 %v7144
        %7221 = vmatmul.mubr.bf16.gmra.mxu0 %v7096
        %v7222 = vpop.f32.mrf.mxu0
        %v7223 = vadd.f32 0.0, %v7222
        %v7224 = vpop.f32.mrf.mxu0
        %v7225 = vpop.f32.mrf.mxu0
        %v7226 = vadd.f32 0.0, %v7225
        %v7227 = vpop.f32.mrf.mxu0
        %7228 = vmatprep.mubr.bf16.mxu0 %v7147
        %7229 = vmatmul.mubr.bf16.gmra.mxu0 %v7098
        %v7230 = vpop.f32.mrf.mxu0
        %v7231 = vadd.f32 0.0, %v7230
        %v7232 = vpop.f32.mrf.mxu0
        %v7233 = vpop.f32.mrf.mxu0
        %v7234 = vadd.f32 0.0, %v7233
        %v7235 = vpop.f32.mrf.mxu0
        %7236 = vmatprep.mubr.bf16.mxu0 %v7150
        %7237 = vmatmul.mubr.bf16.gmra.mxu0 %v7100
        %v7238 = vpop.f32.mrf.mxu0
        %v7239 = vadd.f32 0.0, %v7238
        %v7240 = vpop.f32.mrf.mxu0
        %v7241 = vpop.f32.mrf.mxu0
        %v7242 = vadd.f32 0.0, %v7241
        %v7243 = vpop.f32.mrf.mxu0
        %7244 = vmatprep.mubr.bf16.mxu0 %v7153
        %7245 = vmatmul.mubr.bf16.gmra.mxu0 %v7102
        %v7246 = vpop.f32.mrf.mxu0
        %v7247 = vadd.f32 0.0, %v7246
        %v7248 = vpop.f32.mrf.mxu0
        %v7249 = vpop.f32.mrf.mxu0
        %v7250 = vadd.f32 0.0, %v7249
        %v7251 = vpop.f32.mrf.mxu0
        %7252 = vmatprep.mubr.bf16.mxu0 %v7156
        %7253 = vmatmul.mubr.bf16.gmra.mxu0 %v7104
        %v7254 = vpop.f32.mrf.mxu0
        %v7255 = vadd.f32 0.0, %v7254
        %v7256 = vpop.f32.mrf.mxu0
        %v7257 = vpop.f32.mrf.mxu0
        %v7258 = vadd.f32 0.0, %v7257
        %v7259 = vpop.f32.mrf.mxu0
        %7260 = vmatprep.mubr.bf16.mxu0 %v7159
        %7261 = vmatmul.mubr.bf16.gmra.mxu0 %v7106
        %v7262 = vpop.f32.mrf.mxu0
        %v7263 = vadd.f32 0.0, %v7262
        %v7264 = vpop.f32.mrf.mxu0
        %v7265 = vpop.f32.mrf.mxu0
        %v7266 = vadd.f32 0.0, %v7265
        %v7267 = vpop.f32.mrf.mxu0
        %7268 = vdwg.mxu0
        %v7269 = vrcp.pop %v7020
        %v7270 = vmul.f32 1.0, %v7269
        %v7271 = vrcp.pop %v7024
        %v7272 = vmul.f32 1.0, %v7271
        %v7273 = vrcp.pop %v7028
        %v7274 = vmul.f32 1.0, %v7273
        %v7275 = vrcp.pop %v7032
        %v7276 = vmul.f32 1.0, %v7275
        %v7277 = vrcp.pop %v7036
        %v7278 = vmul.f32 1.0, %v7277
        %v7279 = vrcp.pop %v7040
        %v7280 = vmul.f32 1.0, %v7279
        %v7281 = vrcp.pop %v7044
        %v7282 = vmul.f32 1.0, %v7281
        %v7283 = vrcp.pop %v7048
        %v7284 = vmul.f32 1.0, %v7283
        %v7285 = vrcp.pop %v7052
        %v7286 = vmul.f32 1.0, %v7285
        %v7287 = vrcp.pop %v7056
        %v7288 = vmul.f32 1.0, %v7287
        %v7289 = vrcp.pop %v7060
        %v7290 = vmul.f32 1.0, %v7289
        %v7291 = vrcp.pop %v7064
        %v7292 = vmul.f32 1.0, %v7291
        %v7293 = vrcp.pop %v7068
        %v7294 = vmul.f32 1.0, %v7293
        %v7295 = vrcp.pop %v7072
        %v7296 = vmul.f32 1.0, %v7295
        %v7297 = vrcp.pop %v7076
        %v7298 = vmul.f32 1.0, %v7297
        %v7299 = vrcp.pop %v7080
        %v7300 = vmul.f32 1.0, %v7299
        %v7301 = vrcp.pop %v7084
        %v7302 = vmul.f32 1.0, %v7301
        %v7303 = vrcp.pop %v7089
        %v7304 = vmul.f32 1.0, %v7303
        %v7305 = vmul.f32 %v7199, %v7270
        %v7306 = vmul.f32 %v7202, %v7272
        %v7307 = vmul.f32 %v7207, %v7274
        %v7308 = vmul.f32 %v7210, %v7276
        %v7309 = vmul.f32 %v7215, %v7278
        %v7310 = vmul.f32 %v7218, %v7280
        %v7311 = vmul.f32 %v7223, %v7282
        %v7312 = vmul.f32 %v7226, %v7284
        %v7313 = vmul.f32 %v7231, %v7286
        %v7314 = vmul.f32 %v7234, %v7288
        %v7315 = vmul.f32 %v7239, %v7290
        %v7316 = vmul.f32 %v7242, %v7292
        %v7317 = vmul.f32 %v7247, %v7294
        %v7318 = vmul.f32 %v7250, %v7296
        %v7319 = vmul.f32 %v7255, %v7298
        %v7320 = vmul.f32 %v7258, %v7300
        %v7321 = vmul.f32 %v7263, %v7302
        %v7322 = vmul.f32 %v7266, %v7304
        %7323 = vrot.lane.b32.xlu0 %v6623, 120
        %v7324 = vpop.permute.xlu0 %7323
        %7325 = vrot.lane.b32.xlu0 %v6624, 120
        %v7326 = vpop.permute.xlu0 %7325
        %7327 = vrot.lane.b32.xlu0 %v6625, 120
        %v7328 = vpop.permute.xlu0 %7327
        %7329 = vrot.lane.b32.xlu0 %v6626, 120
        %v7330 = vpop.permute.xlu0 %7329
        %7331 = vrot.lane.b32.xlu0 %v6627, 120
        %v7332 = vpop.permute.xlu0 %7331
        %7333 = vrot.lane.b32.xlu0 %v6628, 120
        %v7334 = vpop.permute.xlu0 %7333
        %7335 = vrot.lane.b32.xlu0 %v6629, 120
        %v7336 = vpop.permute.xlu0 %7335
        %7337 = vrot.lane.b32.xlu0 %v6630, 120
        %v7338 = vpop.permute.xlu0 %7337
        %7339 = vrot.lane.b32.xlu0 %v6631, 120
        %v7340 = vpop.permute.xlu0 %7339
        %7341 = vrot.lane.b32.xlu0 %v6623, 88
        %v7342 = vpop.permute.xlu0 %7341
        %7343 = vrot.lane.b32.xlu0 %v6624, 88
        %v7344 = vpop.permute.xlu0 %7343
        %7345 = vrot.lane.b32.xlu0 %v6625, 88
        %v7346 = vpop.permute.xlu0 %7345
        %7347 = vrot.lane.b32.xlu0 %v6626, 88
        %v7348 = vpop.permute.xlu0 %7347
        %7349 = vrot.lane.b32.xlu0 %v6627, 88
        %v7350 = vpop.permute.xlu0 %7349
        %7351 = vrot.lane.b32.xlu0 %v6628, 88
        %v7352 = vpop.permute.xlu0 %7351
        %7353 = vrot.lane.b32.xlu0 %v6629, 88
        %v7354 = vpop.permute.xlu0 %7353
        %7355 = vrot.lane.b32.xlu0 %v6630, 88
        %v7356 = vpop.permute.xlu0 %7355
        %7357 = vrot.lane.b32.xlu0 %v6631, 88
        %v7358 = vpop.permute.xlu0 %7357
        %v7360 = vsel %vm973, %v7324, 0
        %v7363 = vsel %vm973, %v7326, 0
        %v7366 = vsel %vm973, %v7328, 0
        %v7369 = vsel %vm973, %v7330, 0
        %v7372 = vsel %vm973, %v7332, 0
        %v7375 = vsel %vm973, %v7334, 0
        %v7378 = vsel %vm973, %v7336, 0
        %v7381 = vsel %vm973, %v7338, 0
        %v7384 = vsel %vm973, %v7340, 0
        %v7387 = vsel %vm973, %v7342, 0
        %v7390 = vsel %vm973, %v7344, 0
        %v7393 = vsel %vm973, %v7346, 0
        %v7396 = vsel %vm973, %v7348, 0
        %v7399 = vsel %vm973, %v7350, 0
        %v7402 = vsel %vm973, %v7352, 0
        %v7405 = vsel %vm973, %v7354, 0
        %v7408 = vsel %vm973, %v7356, 0
        %v7411 = vsel %vm973, %v7358, 0
        %7413 = vmatprep.subr.bf16.mxu0 0
        %7414 = vmatpush1.bf16.xpose.msra.mxu0 %v7408
        %7415 = vmatprep.subr.bf16.mxu0 0
        %7416 = vmatpush1.bf16.xpose.msra.mxu0 %v7405
        %7417 = vmatprep.subr.bf16.mxu0 0
        %7418 = vmatpush1.bf16.xpose.msra.mxu0 %v7402
        %7419 = vmatprep.subr.bf16.mxu0 0
        %7420 = vmatpush1.bf16.xpose.msra.mxu0 %v7399
        %7421 = vmatprep.subr.bf16.mxu0 0
        %7422 = vmatpush1.bf16.xpose.msra.mxu0 %v7396
        %7423 = vmatprep.subr.bf16.mxu0 0
        %7424 = vmatpush1.bf16.xpose.msra.mxu0 %v7393
        %7425 = vmatprep.subr.bf16.mxu0 0
        %7426 = vmatpush1.bf16.xpose.msra.mxu0 %v7390
        %7427 = vmatprep.subr.bf16.mxu0 0
        %7428 = vmatpush1.bf16.xpose.msra.mxu0 %v7387
        %7429 = vmatprep.subr.bf16.mxu0 0
        %7430 = vmatpush2.bf16.xpose.msra.mxu0 0
        %7431 = vmatprep.subr.bf16.mxu0 0
        %7432 = vmatpush2.bf16.xpose.msra.mxu0 0
        %7433 = vmatprep.subr.bf16.mxu0 0
        %7434 = vmatpush2.bf16.xpose.msra.mxu0 0
        %7435 = vmatprep.subr.bf16.mxu0 0
        %7436 = vmatpush2.bf16.xpose.msra.mxu0 0
        %7437 = vmatprep.subr.bf16.mxu0 0
        %7438 = vmatpush2.bf16.xpose.msra.mxu0 0
        %7439 = vmatprep.subr.bf16.mxu0 0
        %7440 = vmatpush2.bf16.xpose.msra.mxu0 0
        %7441 = vmatprep.subr.bf16.mxu0 0
        %7442 = vmatpush2.bf16.xpose.msra.mxu0 0
        %7443 = vmatprep.subr.bf16.mxu0 0
        %7444 = vmatpush2.bf16.xpose.msra.mxu0 %v7411
        %7445 = vmatprep.mubr.bf16.mxu0 0
        %7446 = vmatmul.mubr.bf16.gmra.mxu0 %v7360
        %v7447 = vpop.f32.mrf.mxu0
        %v7448 = vadd.f32 0.0, %v7447
        %v7449 = vpop.f32.mrf.mxu0
        %v7450 = vadd.f32 0.0, %v7449
        %v7451 = vpop.f32.mrf.mxu0
        %v7452 = vadd.f32 0.0, %v7451
        %v7453 = vpop.f32.mrf.mxu0
        %v7454 = vadd.f32 0.0, %v7453
        %7455 = vmatprep.mubr.bf16.mxu0 0
        %7456 = vmatmul.mubr.bf16.gmra.mxu0 %v7363
        %v7457 = vpop.f32.mrf.mxu0
        %v7458 = vadd.f32 0.0, %v7457
        %v7459 = vpop.f32.mrf.mxu0
        %v7460 = vadd.f32 0.0, %v7459
        %v7461 = vpop.f32.mrf.mxu0
        %v7462 = vadd.f32 0.0, %v7461
        %v7463 = vpop.f32.mrf.mxu0
        %v7464 = vadd.f32 0.0, %v7463
        %7465 = vmatprep.mubr.bf16.mxu0 0
        %7466 = vmatmul.mubr.bf16.gmra.mxu0 %v7366
        %v7467 = vpop.f32.mrf.mxu0
        %v7468 = vadd.f32 0.0, %v7467
        %v7469 = vpop.f32.mrf.mxu0
        %v7470 = vadd.f32 0.0, %v7469
        %v7471 = vpop.f32.mrf.mxu0
        %v7472 = vadd.f32 0.0, %v7471
        %v7473 = vpop.f32.mrf.mxu0
        %v7474 = vadd.f32 0.0, %v7473
        %7475 = vmatprep.mubr.bf16.mxu0 0
        %7476 = vmatmul.mubr.bf16.gmra.mxu0 %v7369
        %v7477 = vpop.f32.mrf.mxu0
        %v7478 = vadd.f32 0.0, %v7477
        %v7479 = vpop.f32.mrf.mxu0
        %v7480 = vadd.f32 0.0, %v7479
        %v7481 = vpop.f32.mrf.mxu0
        %v7482 = vadd.f32 0.0, %v7481
        %v7483 = vpop.f32.mrf.mxu0
        %v7484 = vadd.f32 0.0, %v7483
        %7485 = vmatprep.mubr.bf16.mxu0 0
        %7486 = vmatmul.mubr.bf16.gmra.mxu0 %v7372
        %v7487 = vpop.f32.mrf.mxu0
        %v7488 = vadd.f32 0.0, %v7487
        %v7489 = vpop.f32.mrf.mxu0
        %v7490 = vadd.f32 0.0, %v7489
        %v7491 = vpop.f32.mrf.mxu0
        %v7492 = vadd.f32 0.0, %v7491
        %v7493 = vpop.f32.mrf.mxu0
        %v7494 = vadd.f32 0.0, %v7493
        %7495 = vmatprep.mubr.bf16.mxu0 0
        %7496 = vmatmul.mubr.bf16.gmra.mxu0 %v7375
        %v7497 = vpop.f32.mrf.mxu0
        %v7498 = vadd.f32 0.0, %v7497
        %v7499 = vpop.f32.mrf.mxu0
        %v7500 = vadd.f32 0.0, %v7499
        %v7501 = vpop.f32.mrf.mxu0
        %v7502 = vadd.f32 0.0, %v7501
        %v7503 = vpop.f32.mrf.mxu0
        %v7504 = vadd.f32 0.0, %v7503
        %7505 = vmatprep.mubr.bf16.mxu0 0
        %7506 = vmatmul.mubr.bf16.gmra.mxu0 %v7378
        %v7507 = vpop.f32.mrf.mxu0
        %v7508 = vadd.f32 0.0, %v7507
        %v7509 = vpop.f32.mrf.mxu0
        %v7510 = vadd.f32 0.0, %v7509
        %v7511 = vpop.f32.mrf.mxu0
        %v7512 = vadd.f32 0.0, %v7511
        %v7513 = vpop.f32.mrf.mxu0
        %v7514 = vadd.f32 0.0, %v7513
        %7515 = vmatprep.mubr.bf16.mxu0 0
        %7516 = vmatmul.mubr.bf16.gmra.mxu0 %v7381
        %v7517 = vpop.f32.mrf.mxu0
        %v7518 = vadd.f32 0.0, %v7517
        %v7519 = vpop.f32.mrf.mxu0
        %v7520 = vadd.f32 0.0, %v7519
        %v7521 = vpop.f32.mrf.mxu0
        %v7522 = vadd.f32 0.0, %v7521
        %v7523 = vpop.f32.mrf.mxu0
        %v7524 = vadd.f32 0.0, %v7523
        %7525 = vmatprep.mubr.bf16.mxu0 0
        %7526 = vmatmul.mubr.bf16.gmra.mxu0 %v7384
        %v7527 = vpop.f32.mrf.mxu0
        %v7528 = vadd.f32 0.0, %v7527
        %v7529 = vpop.f32.mrf.mxu0
        %v7530 = vadd.f32 0.0, %v7529
        %v7531 = vpop.f32.mrf.mxu0
        %v7532 = vadd.f32 0.0, %v7531
        %v7533 = vpop.f32.mrf.mxu0
        %v7534 = vadd.f32 0.0, %v7533
        %7535 = vdwg.mxu0
        %v7536 = vsel %vm2462, %v7450, -inf
        %v7537 = vmax.f32 %v7448, %v7536
        %7538 = vmax.xlane.f32.xlu0 %v7537
        %v7539 = vpop.xlane.xlu0 %7538
        %v7540 = vsel %vm2462, %v7454, -inf
        %v7541 = vmax.f32 %v7452, %v7540
        %7542 = vmax.xlane.f32.xlu0 %v7541
        %v7543 = vpop.xlane.xlu0 %7542
        %v7544 = vsel %vm2462, %v7460, -inf
        %v7545 = vmax.f32 %v7458, %v7544
        %7546 = vmax.xlane.f32.xlu0 %v7545
        %v7547 = vpop.xlane.xlu0 %7546
        %v7548 = vsel %vm2462, %v7464, -inf
        %v7549 = vmax.f32 %v7462, %v7548
        %7550 = vmax.xlane.f32.xlu0 %v7549
        %v7551 = vpop.xlane.xlu0 %7550
        %v7552 = vsel %vm2462, %v7470, -inf
        %v7553 = vmax.f32 %v7468, %v7552
        %7554 = vmax.xlane.f32.xlu0 %v7553
        %v7555 = vpop.xlane.xlu0 %7554
        %v7556 = vsel %vm2462, %v7474, -inf
        %v7557 = vmax.f32 %v7472, %v7556
        %7558 = vmax.xlane.f32.xlu0 %v7557
        %v7559 = vpop.xlane.xlu0 %7558
        %v7560 = vsel %vm2462, %v7480, -inf
        %v7561 = vmax.f32 %v7478, %v7560
        %7562 = vmax.xlane.f32.xlu0 %v7561
        %v7563 = vpop.xlane.xlu0 %7562
        %v7564 = vsel %vm2462, %v7484, -inf
        %v7565 = vmax.f32 %v7482, %v7564
        %7566 = vmax.xlane.f32.xlu0 %v7565
        %v7567 = vpop.xlane.xlu0 %7566
        %v7568 = vsel %vm2462, %v7490, -inf
        %v7569 = vmax.f32 %v7488, %v7568
        %7570 = vmax.xlane.f32.xlu0 %v7569
        %v7571 = vpop.xlane.xlu0 %7570
        %v7572 = vsel %vm2462, %v7494, -inf
        %v7573 = vmax.f32 %v7492, %v7572
        %7574 = vmax.xlane.f32.xlu0 %v7573
        %v7575 = vpop.xlane.xlu0 %7574
        %v7576 = vsel %vm2462, %v7500, -inf
        %v7577 = vmax.f32 %v7498, %v7576
        %7578 = vmax.xlane.f32.xlu0 %v7577
        %v7579 = vpop.xlane.xlu0 %7578
        %v7580 = vsel %vm2462, %v7504, -inf
        %v7581 = vmax.f32 %v7502, %v7580
        %7582 = vmax.xlane.f32.xlu0 %v7581
        %v7583 = vpop.xlane.xlu0 %7582
        %v7584 = vsel %vm2462, %v7510, -inf
        %v7585 = vmax.f32 %v7508, %v7584
        %7586 = vmax.xlane.f32.xlu0 %v7585
        %v7587 = vpop.xlane.xlu0 %7586
        %v7588 = vsel %vm2462, %v7514, -inf
        %v7589 = vmax.f32 %v7512, %v7588
        %7590 = vmax.xlane.f32.xlu0 %v7589
        %v7591 = vpop.xlane.xlu0 %7590
        %v7592 = vsel %vm2462, %v7520, -inf
        %v7593 = vmax.f32 %v7518, %v7592
        %7594 = vmax.xlane.f32.xlu0 %v7593
        %v7595 = vpop.xlane.xlu0 %7594
        %v7596 = vsel %vm2462, %v7524, -inf
        %v7597 = vmax.f32 %v7522, %v7596
        %7598 = vmax.xlane.f32.xlu0 %v7597
        %v7599 = vpop.xlane.xlu0 %7598
        %v7600 = vsel %vm2462, %v7530, -inf
        %v7601 = vmax.f32 %v7528, %v7600
        %7602 = vmax.xlane.f32.xlu0 %v7601
        %v7603 = vpop.xlane.xlu0 %7602
        %v7604 = vsel %vm2531, %v7532, -inf
        %v7605 = vsel %vm2533, %v7534, -inf
        %v7606 = vmax.f32 %v7604, %v7605
        %7607 = vmax.xlane.f32.xlu0 %v7606
        %v7608 = vpop.xlane.xlu0 %7607
        %v7609 = vsub.f32 %v7448, %v7539
        %v7610 = vsub.f32 %v7450, %v7539
        %v7611 = vsub.f32 %v7452, %v7543
        %v7612 = vsub.f32 %v7454, %v7543
        %v7613 = vsub.f32 %v7458, %v7547
        %v7614 = vsub.f32 %v7460, %v7547
        %v7615 = vsub.f32 %v7462, %v7551
        %v7616 = vsub.f32 %v7464, %v7551
        %v7617 = vsub.f32 %v7468, %v7555
        %v7618 = vsub.f32 %v7470, %v7555
        %v7619 = vsub.f32 %v7472, %v7559
        %v7620 = vsub.f32 %v7474, %v7559
        %v7621 = vsub.f32 %v7478, %v7563
        %v7622 = vsub.f32 %v7480, %v7563
        %v7623 = vsub.f32 %v7482, %v7567
        %v7624 = vsub.f32 %v7484, %v7567
        %v7625 = vsub.f32 %v7488, %v7571
        %v7626 = vsub.f32 %v7490, %v7571
        %v7627 = vsub.f32 %v7492, %v7575
        %v7628 = vsub.f32 %v7494, %v7575
        %v7629 = vsub.f32 %v7498, %v7579
        %v7630 = vsub.f32 %v7500, %v7579
        %v7631 = vsub.f32 %v7502, %v7583
        %v7632 = vsub.f32 %v7504, %v7583
        %v7633 = vsub.f32 %v7508, %v7587
        %v7634 = vsub.f32 %v7510, %v7587
        %v7635 = vsub.f32 %v7512, %v7591
        %v7636 = vsub.f32 %v7514, %v7591
        %v7637 = vsub.f32 %v7518, %v7595
        %v7638 = vsub.f32 %v7520, %v7595
        %v7639 = vsub.f32 %v7522, %v7599
        %v7640 = vsub.f32 %v7524, %v7599
        %v7641 = vsub.f32 %v7528, %v7603
        %v7642 = vsub.f32 %v7530, %v7603
        %v7643 = vsub.f32 %v7532, %v7608
        %v7644 = vsub.f32 %v7534, %v7608
        %v7645 = vmul.f32 %v7609, 1.442695
        %v7646 = vpow.pop %v7645
        %v7647 = vmul.f32 %v7610, 1.442695
        %v7648 = vpow.pop %v7647
        %v7649 = vmul.f32 %v7611, 1.442695
        %v7650 = vpow.pop %v7649
        %v7651 = vmul.f32 %v7612, 1.442695
        %v7652 = vpow.pop %v7651
        %v7653 = vmul.f32 %v7613, 1.442695
        %v7654 = vpow.pop %v7653
        %v7655 = vmul.f32 %v7614, 1.442695
        %v7656 = vpow.pop %v7655
        %v7657 = vmul.f32 %v7615, 1.442695
        %v7658 = vpow.pop %v7657
        %v7659 = vmul.f32 %v7616, 1.442695
        %v7660 = vpow.pop %v7659
        %v7661 = vmul.f32 %v7617, 1.442695
        %v7662 = vpow.pop %v7661
        %v7663 = vmul.f32 %v7618, 1.442695
        %v7664 = vpow.pop %v7663
        %v7665 = vmul.f32 %v7619, 1.442695
        %v7666 = vpow.pop %v7665
        %v7667 = vmul.f32 %v7620, 1.442695
        %v7668 = vpow.pop %v7667
        %v7669 = vmul.f32 %v7621, 1.442695
        %v7670 = vpow.pop %v7669
        %v7671 = vmul.f32 %v7622, 1.442695
        %v7672 = vpow.pop %v7671
        %v7673 = vmul.f32 %v7623, 1.442695
        %v7674 = vpow.pop %v7673
        %v7675 = vmul.f32 %v7624, 1.442695
        %v7676 = vpow.pop %v7675
        %v7677 = vmul.f32 %v7625, 1.442695
        %v7678 = vpow.pop %v7677
        %v7679 = vmul.f32 %v7626, 1.442695
        %v7680 = vpow.pop %v7679
        %v7681 = vmul.f32 %v7627, 1.442695
        %v7682 = vpow.pop %v7681
        %v7683 = vmul.f32 %v7628, 1.442695
        %v7684 = vpow.pop %v7683
        %v7685 = vmul.f32 %v7629, 1.442695
        %v7686 = vpow.pop %v7685
        %v7687 = vmul.f32 %v7630, 1.442695
        %v7688 = vpow.pop %v7687
        %v7689 = vmul.f32 %v7631, 1.442695
        %v7690 = vpow.pop %v7689
        %v7691 = vmul.f32 %v7632, 1.442695
        %v7692 = vpow.pop %v7691
        %v7693 = vmul.f32 %v7633, 1.442695
        %v7694 = vpow.pop %v7693
        %v7695 = vmul.f32 %v7634, 1.442695
        %v7696 = vpow.pop %v7695
        %v7697 = vmul.f32 %v7635, 1.442695
        %v7698 = vpow.pop %v7697
        %v7699 = vmul.f32 %v7636, 1.442695
        %v7700 = vpow.pop %v7699
        %v7701 = vmul.f32 %v7637, 1.442695
        %v7702 = vpow.pop %v7701
        %v7703 = vmul.f32 %v7638, 1.442695
        %v7704 = vpow.pop %v7703
        %v7705 = vmul.f32 %v7639, 1.442695
        %v7706 = vpow.pop %v7705
        %v7707 = vmul.f32 %v7640, 1.442695
        %v7708 = vpow.pop %v7707
        %v7709 = vmul.f32 %v7641, 1.442695
        %v7710 = vpow.pop %v7709
        %v7711 = vmul.f32 %v7642, 1.442695
        %v7712 = vpow.pop %v7711
        %v7713 = vmul.f32 %v7643, 1.442695
        %v7714 = vpow.pop %v7713
        %v7715 = vmul.f32 %v7644, 1.442695
        %v7716 = vpow.pop %v7715
        %v7717 = vsel %vm2462, %v7648, 0.0
        %v7718 = vadd.f32 %v7646, %v7717
        %7719 = vadd.xlane.f32.xlu0 %v7718
        %v7720 = vpop.xlane.xlu0 %7719
        %v7721 = vsel %vm2462, %v7652, 0.0
        %v7722 = vadd.f32 %v7650, %v7721
        %7723 = vadd.xlane.f32.xlu0 %v7722
        %v7724 = vpop.xlane.xlu0 %7723
        %v7725 = vsel %vm2462, %v7656, 0.0
        %v7726 = vadd.f32 %v7654, %v7725
        %7727 = vadd.xlane.f32.xlu0 %v7726
        %v7728 = vpop.xlane.xlu0 %7727
        %v7729 = vsel %vm2462, %v7660, 0.0
        %v7730 = vadd.f32 %v7658, %v7729
        %7731 = vadd.xlane.f32.xlu0 %v7730
        %v7732 = vpop.xlane.xlu0 %7731
        %v7733 = vsel %vm2462, %v7664, 0.0
        %v7734 = vadd.f32 %v7662, %v7733
        %7735 = vadd.xlane.f32.xlu0 %v7734
        %v7736 = vpop.xlane.xlu0 %7735
        %v7737 = vsel %vm2462, %v7668, 0.0
        %v7738 = vadd.f32 %v7666, %v7737
        %7739 = vadd.xlane.f32.xlu0 %v7738
        %v7740 = vpop.xlane.xlu0 %7739
        %v7741 = vsel %vm2462, %v7672, 0.0
        %v7742 = vadd.f32 %v7670, %v7741
        %7743 = vadd.xlane.f32.xlu0 %v7742
        %v7744 = vpop.xlane.xlu0 %7743
        %v7745 = vsel %vm2462, %v7676, 0.0
        %v7746 = vadd.f32 %v7674, %v7745
        %7747 = vadd.xlane.f32.xlu0 %v7746
        %v7748 = vpop.xlane.xlu0 %7747
        %v7749 = vsel %vm2462, %v7680, 0.0
        %v7750 = vadd.f32 %v7678, %v7749
        %7751 = vadd.xlane.f32.xlu0 %v7750
        %v7752 = vpop.xlane.xlu0 %7751
        %v7753 = vsel %vm2462, %v7684, 0.0
        %v7754 = vadd.f32 %v7682, %v7753
        %7755 = vadd.xlane.f32.xlu0 %v7754
        %v7756 = vpop.xlane.xlu0 %7755
        %v7757 = vsel %vm2462, %v7688, 0.0
        %v7758 = vadd.f32 %v7686, %v7757
        %7759 = vadd.xlane.f32.xlu0 %v7758
        %v7760 = vpop.xlane.xlu0 %7759
        %v7761 = vsel %vm2462, %v7692, 0.0
        %v7762 = vadd.f32 %v7690, %v7761
        %7763 = vadd.xlane.f32.xlu0 %v7762
        %v7764 = vpop.xlane.xlu0 %7763
        %v7765 = vsel %vm2462, %v7696, 0.0
        %v7766 = vadd.f32 %v7694, %v7765
        %7767 = vadd.xlane.f32.xlu0 %v7766
        %v7768 = vpop.xlane.xlu0 %7767
        %v7769 = vsel %vm2462, %v7700, 0.0
        %v7770 = vadd.f32 %v7698, %v7769
        %7771 = vadd.xlane.f32.xlu0 %v7770
        %v7772 = vpop.xlane.xlu0 %7771
        %v7773 = vsel %vm2462, %v7704, 0.0
        %v7774 = vadd.f32 %v7702, %v7773
        %7775 = vadd.xlane.f32.xlu0 %v7774
        %v7776 = vpop.xlane.xlu0 %7775
        %v7777 = vsel %vm2462, %v7708, 0.0
        %v7778 = vadd.f32 %v7706, %v7777
        %7779 = vadd.xlane.f32.xlu0 %v7778
        %v7780 = vpop.xlane.xlu0 %7779
        %v7781 = vsel %vm2462, %v7712, 0.0
        %v7782 = vadd.f32 %v7710, %v7781
        %7783 = vadd.xlane.f32.xlu0 %v7782
        %v7784 = vpop.xlane.xlu0 %7783
        %v7785 = vsel %vm2531, %v7714, 0.0
        %v7786 = vsel %vm2533, %v7716, 0.0
        %v7787 = vadd.f32 %v7785, %v7786
        %7788 = vadd.xlane.f32.xlu0 %v7787
        %v7789 = vpop.xlane.xlu0 %7788
        %v7790 = vpack.c.bf16 %v7650, %v7646
        %v7791 = vpack.c.bf16 %v7652, %v7648
        %v7792 = vpack.c.bf16 %v7658, %v7654
        %v7793 = vpack.c.bf16 %v7660, %v7656
        %v7794 = vpack.c.bf16 %v7666, %v7662
        %v7795 = vpack.c.bf16 %v7668, %v7664
        %v7796 = vpack.c.bf16 %v7674, %v7670
        %v7797 = vpack.c.bf16 %v7676, %v7672
        %v7798 = vpack.c.bf16 %v7682, %v7678
        %v7799 = vpack.c.bf16 %v7684, %v7680
        %v7800 = vpack.c.bf16 %v7690, %v7686
        %v7801 = vpack.c.bf16 %v7692, %v7688
        %v7802 = vpack.c.bf16 %v7698, %v7694
        %v7803 = vpack.c.bf16 %v7700, %v7696
        %v7804 = vpack.c.bf16 %v7706, %v7702
        %v7805 = vpack.c.bf16 %v7708, %v7704
        %v7806 = vpack.c.bf16 %v7714, %v7710
        %v7807 = vpack.c.bf16 %v7716, %v7712
        %7808 = vrot.lane.b32.xlu0 %v6623, 56
        %v7809 = vpop.permute.xlu0 %7808
        %7810 = vrot.lane.b32.xlu0 %v6624, 56
        %v7811 = vpop.permute.xlu0 %7810
        %7812 = vrot.lane.b32.xlu0 %v6625, 56
        %v7813 = vpop.permute.xlu0 %7812
        %7814 = vrot.lane.b32.xlu0 %v6626, 56
        %v7815 = vpop.permute.xlu0 %7814
        %7816 = vrot.lane.b32.xlu0 %v6627, 56
        %v7817 = vpop.permute.xlu0 %7816
        %7818 = vrot.lane.b32.xlu0 %v6628, 56
        %v7819 = vpop.permute.xlu0 %7818
        %7820 = vrot.lane.b32.xlu0 %v6629, 56
        %v7821 = vpop.permute.xlu0 %7820
        %7822 = vrot.lane.b32.xlu0 %v6630, 56
        %v7823 = vpop.permute.xlu0 %7822
        %7824 = vrot.lane.b32.xlu0 %v6631, 56
        %v7825 = vpop.permute.xlu0 %7824
        %v7835 = vsel %vm2462, %v7791, 0
        %v7838 = vsel %vm2462, %v7793, 0
        %v7841 = vsel %vm2462, %v7795, 0
        %v7844 = vsel %vm2462, %v7797, 0
        %v7847 = vsel %vm2462, %v7799, 0
        %v7850 = vsel %vm2462, %v7801, 0
        %v7853 = vsel %vm2462, %v7803, 0
        %v7856 = vsel %vm2462, %v7805, 0
        %v7859 = vsel %vm2462, %v7807, 0
        %v7862 = vsel %vm2790, %v7825, 0
        %7864 = vmatprep.subr.bf16.mxu0 0
        %7865 = vmatpush1.bf16.msra.mxu0 %v7823
        %7866 = vmatprep.subr.bf16.mxu0 0
        %7867 = vmatpush1.bf16.msra.mxu0 %v7821
        %7868 = vmatprep.subr.bf16.mxu0 0
        %7869 = vmatpush1.bf16.msra.mxu0 %v7819
        %7870 = vmatprep.subr.bf16.mxu0 0
        %7871 = vmatpush1.bf16.msra.mxu0 %v7817
        %7872 = vmatprep.subr.bf16.mxu0 0
        %7873 = vmatpush1.bf16.msra.mxu0 %v7815
        %7874 = vmatprep.subr.bf16.mxu0 0
        %7875 = vmatpush1.bf16.msra.mxu0 %v7813
        %7876 = vmatprep.subr.bf16.mxu0 0
        %7877 = vmatpush1.bf16.msra.mxu0 %v7811
        %7878 = vmatprep.subr.bf16.mxu0 0
        %7879 = vmatpush1.bf16.msra.mxu0 %v7809
        %7880 = vmatprep.subr.bf16.mxu0 0
        %7881 = vmatpush2.bf16.msra.mxu0 0
        %7882 = vmatprep.subr.bf16.mxu0 0
        %7883 = vmatpush2.bf16.msra.mxu0 0
        %7884 = vmatprep.subr.bf16.mxu0 0
        %7885 = vmatpush2.bf16.msra.mxu0 0
        %7886 = vmatprep.subr.bf16.mxu0 0
        %7887 = vmatpush2.bf16.msra.mxu0 0
        %7888 = vmatprep.subr.bf16.mxu0 0
        %7889 = vmatpush2.bf16.msra.mxu0 0
        %7890 = vmatprep.subr.bf16.mxu0 0
        %7891 = vmatpush2.bf16.msra.mxu0 0
        %7892 = vmatprep.subr.bf16.mxu0 0
        %7893 = vmatpush2.bf16.msra.mxu0 0
        %7894 = vmatprep.subr.bf16.mxu0 0
        %7895 = vmatpush2.bf16.msra.mxu0 %v7862
        %7896 = vmatprep.mubr.bf16.mxu0 %v7835
        %7897 = vmatmul.mubr.bf16.gmra.mxu0 %v7790
        %v7898 = vpop.f32.mrf.mxu0
        %v7899 = vadd.f32 0.0, %v7898
        %v7900 = vpop.f32.mrf.mxu0
        %v7901 = vpop.f32.mrf.mxu0
        %v7902 = vadd.f32 0.0, %v7901
        %v7903 = vpop.f32.mrf.mxu0
        %7904 = vmatprep.mubr.bf16.mxu0 %v7838
        %7905 = vmatmul.mubr.bf16.gmra.mxu0 %v7792
        %v7906 = vpop.f32.mrf.mxu0
        %v7907 = vadd.f32 0.0, %v7906
        %v7908 = vpop.f32.mrf.mxu0
        %v7909 = vpop.f32.mrf.mxu0
        %v7910 = vadd.f32 0.0, %v7909
        %v7911 = vpop.f32.mrf.mxu0
        %7912 = vmatprep.mubr.bf16.mxu0 %v7841
        %7913 = vmatmul.mubr.bf16.gmra.mxu0 %v7794
        %v7914 = vpop.f32.mrf.mxu0
        %v7915 = vadd.f32 0.0, %v7914
        %v7916 = vpop.f32.mrf.mxu0
        %v7917 = vpop.f32.mrf.mxu0
        %v7918 = vadd.f32 0.0, %v7917
        %v7919 = vpop.f32.mrf.mxu0
        %7920 = vmatprep.mubr.bf16.mxu0 %v7844
        %7921 = vmatmul.mubr.bf16.gmra.mxu0 %v7796
        %v7922 = vpop.f32.mrf.mxu0
        %v7923 = vadd.f32 0.0, %v7922
        %v7924 = vpop.f32.mrf.mxu0
        %v7925 = vpop.f32.mrf.mxu0
        %v7926 = vadd.f32 0.0, %v7925
        %v7927 = vpop.f32.mrf.mxu0
        %7928 = vmatprep.mubr.bf16.mxu0 %v7847
        %7929 = vmatmul.mubr.bf16.gmra.mxu0 %v7798
        %v7930 = vpop.f32.mrf.mxu0
        %v7931 = vadd.f32 0.0, %v7930
        %v7932 = vpop.f32.mrf.mxu0
        %v7933 = vpop.f32.mrf.mxu0
        %v7934 = vadd.f32 0.0, %v7933
        %v7935 = vpop.f32.mrf.mxu0
        %7936 = vmatprep.mubr.bf16.mxu0 %v7850
        %7937 = vmatmul.mubr.bf16.gmra.mxu0 %v7800
        %v7938 = vpop.f32.mrf.mxu0
        %v7939 = vadd.f32 0.0, %v7938
        %v7940 = vpop.f32.mrf.mxu0
        %v7941 = vpop.f32.mrf.mxu0
        %v7942 = vadd.f32 0.0, %v7941
        %v7943 = vpop.f32.mrf.mxu0
        %7944 = vmatprep.mubr.bf16.mxu0 %v7853
        %7945 = vmatmul.mubr.bf16.gmra.mxu0 %v7802
        %v7946 = vpop.f32.mrf.mxu0
        %v7947 = vadd.f32 0.0, %v7946
        %v7948 = vpop.f32.mrf.mxu0
        %v7949 = vpop.f32.mrf.mxu0
        %v7950 = vadd.f32 0.0, %v7949
        %v7951 = vpop.f32.mrf.mxu0
        %7952 = vmatprep.mubr.bf16.mxu0 %v7856
        %7953 = vmatmul.mubr.bf16.gmra.mxu0 %v7804
        %v7954 = vpop.f32.mrf.mxu0
        %v7955 = vadd.f32 0.0, %v7954
        %v7956 = vpop.f32.mrf.mxu0
        %v7957 = vpop.f32.mrf.mxu0
        %v7958 = vadd.f32 0.0, %v7957
        %v7959 = vpop.f32.mrf.mxu0
        %7960 = vmatprep.mubr.bf16.mxu0 %v7859
        %7961 = vmatmul.mubr.bf16.gmra.mxu0 %v7806
        %v7962 = vpop.f32.mrf.mxu0
        %v7963 = vadd.f32 0.0, %v7962
        %v7964 = vpop.f32.mrf.mxu0
        %v7965 = vpop.f32.mrf.mxu0
        %v7966 = vadd.f32 0.0, %v7965
        %v7967 = vpop.f32.mrf.mxu0
        %7968 = vdwg.mxu0
        %v7969 = vrcp.pop %v7720
        %v7970 = vmul.f32 1.0, %v7969
        %v7971 = vrcp.pop %v7724
        %v7972 = vmul.f32 1.0, %v7971
        %v7973 = vrcp.pop %v7728
        %v7974 = vmul.f32 1.0, %v7973
        %v7975 = vrcp.pop %v7732
        %v7976 = vmul.f32 1.0, %v7975
        %v7977 = vrcp.pop %v7736
        %v7978 = vmul.f32 1.0, %v7977
        %v7979 = vrcp.pop %v7740
        %v7980 = vmul.f32 1.0, %v7979
        %v7981 = vrcp.pop %v7744
        %v7982 = vmul.f32 1.0, %v7981
        %v7983 = vrcp.pop %v7748
        %v7984 = vmul.f32 1.0, %v7983
        %v7985 = vrcp.pop %v7752
        %v7986 = vmul.f32 1.0, %v7985
        %v7987 = vrcp.pop %v7756
        %v7988 = vmul.f32 1.0, %v7987
        %v7989 = vrcp.pop %v7760
        %v7990 = vmul.f32 1.0, %v7989
        %v7991 = vrcp.pop %v7764
        %v7992 = vmul.f32 1.0, %v7991
        %v7993 = vrcp.pop %v7768
        %v7994 = vmul.f32 1.0, %v7993
        %v7995 = vrcp.pop %v7772
        %v7996 = vmul.f32 1.0, %v7995
        %v7997 = vrcp.pop %v7776
        %v7998 = vmul.f32 1.0, %v7997
        %v7999 = vrcp.pop %v7780
        %v8000 = vmul.f32 1.0, %v7999
        %v8001 = vrcp.pop %v7784
        %v8002 = vmul.f32 1.0, %v8001
        %v8003 = vrcp.pop %v7789
        %v8004 = vmul.f32 1.0, %v8003
        %v8005 = vmul.f32 %v7899, %v7970
        %v8006 = vmul.f32 %v7902, %v7972
        %v8007 = vmul.f32 %v7907, %v7974
        %v8008 = vmul.f32 %v7910, %v7976
        %v8009 = vmul.f32 %v7915, %v7978
        %v8010 = vmul.f32 %v7918, %v7980
        %v8011 = vmul.f32 %v7923, %v7982
        %v8012 = vmul.f32 %v7926, %v7984
        %v8013 = vmul.f32 %v7931, %v7986
        %v8014 = vmul.f32 %v7934, %v7988
        %v8015 = vmul.f32 %v7939, %v7990
        %v8016 = vmul.f32 %v7942, %v7992
        %v8017 = vmul.f32 %v7947, %v7994
        %v8018 = vmul.f32 %v7950, %v7996
        %v8019 = vmul.f32 %v7955, %v7998
        %v8020 = vmul.f32 %v7958, %v8000
        %v8021 = vmul.f32 %v7963, %v8002
        %v8022 = vmul.f32 %v7966, %v8004
        %8023 = vrot.lane.b32.xlu0 %v6623, 112
        %v8024 = vpop.permute.xlu0 %8023
        %8025 = vrot.lane.b32.xlu0 %v6624, 112
        %v8026 = vpop.permute.xlu0 %8025
        %8027 = vrot.lane.b32.xlu0 %v6625, 112
        %v8028 = vpop.permute.xlu0 %8027
        %8029 = vrot.lane.b32.xlu0 %v6626, 112
        %v8030 = vpop.permute.xlu0 %8029
        %8031 = vrot.lane.b32.xlu0 %v6627, 112
        %v8032 = vpop.permute.xlu0 %8031
        %8033 = vrot.lane.b32.xlu0 %v6628, 112
        %v8034 = vpop.permute.xlu0 %8033
        %8035 = vrot.lane.b32.xlu0 %v6629, 112
        %v8036 = vpop.permute.xlu0 %8035
        %8037 = vrot.lane.b32.xlu0 %v6630, 112
        %v8038 = vpop.permute.xlu0 %8037
        %8039 = vrot.lane.b32.xlu0 %v6631, 112
        %v8040 = vpop.permute.xlu0 %8039
        %8041 = vrot.lane.b32.xlu0 %v6623, 80
        %v8042 = vpop.permute.xlu0 %8041
        %8043 = vrot.lane.b32.xlu0 %v6624, 80
        %v8044 = vpop.permute.xlu0 %8043
        %8045 = vrot.lane.b32.xlu0 %v6625, 80
        %v8046 = vpop.permute.xlu0 %8045
        %8047 = vrot.lane.b32.xlu0 %v6626, 80
        %v8048 = vpop.permute.xlu0 %8047
        %8049 = vrot.lane.b32.xlu0 %v6627, 80
        %v8050 = vpop.permute.xlu0 %8049
        %8051 = vrot.lane.b32.xlu0 %v6628, 80
        %v8052 = vpop.permute.xlu0 %8051
        %8053 = vrot.lane.b32.xlu0 %v6629, 80
        %v8054 = vpop.permute.xlu0 %8053
        %8055 = vrot.lane.b32.xlu0 %v6630, 80
        %v8056 = vpop.permute.xlu0 %8055
        %8057 = vrot.lane.b32.xlu0 %v6631, 80
        %v8058 = vpop.permute.xlu0 %8057
        %v8060 = vsel %vm973, %v8024, 0
        %v8063 = vsel %vm973, %v8026, 0
        %v8066 = vsel %vm973, %v8028, 0
        %v8069 = vsel %vm973, %v8030, 0
        %v8072 = vsel %vm973, %v8032, 0
        %v8075 = vsel %vm973, %v8034, 0
        %v8078 = vsel %vm973, %v8036, 0
        %v8081 = vsel %vm973, %v8038, 0
        %v8084 = vsel %vm973, %v8040, 0
        %v8087 = vsel %vm973, %v8042, 0
        %v8090 = vsel %vm973, %v8044, 0
        %v8093 = vsel %vm973, %v8046, 0
        %v8096 = vsel %vm973, %v8048, 0
        %v8099 = vsel %vm973, %v8050, 0
        %v8102 = vsel %vm973, %v8052, 0
        %v8105 = vsel %vm973, %v8054, 0
        %v8108 = vsel %vm973, %v8056, 0
        %v8111 = vsel %vm973, %v8058, 0
        %8113 = vmatprep.subr.bf16.mxu0 0
        %8114 = vmatpush1.bf16.xpose.msra.mxu0 %v8108
        %8115 = vmatprep.subr.bf16.mxu0 0
        %8116 = vmatpush1.bf16.xpose.msra.mxu0 %v8105
        %8117 = vmatprep.subr.bf16.mxu0 0
        %8118 = vmatpush1.bf16.xpose.msra.mxu0 %v8102
        %8119 = vmatprep.subr.bf16.mxu0 0
        %8120 = vmatpush1.bf16.xpose.msra.mxu0 %v8099
        %8121 = vmatprep.subr.bf16.mxu0 0
        %8122 = vmatpush1.bf16.xpose.msra.mxu0 %v8096
        %8123 = vmatprep.subr.bf16.mxu0 0
        %8124 = vmatpush1.bf16.xpose.msra.mxu0 %v8093
        %8125 = vmatprep.subr.bf16.mxu0 0
        %8126 = vmatpush1.bf16.xpose.msra.mxu0 %v8090
        %8127 = vmatprep.subr.bf16.mxu0 0
        %8128 = vmatpush1.bf16.xpose.msra.mxu0 %v8087
        %8129 = vmatprep.subr.bf16.mxu0 0
        %8130 = vmatpush2.bf16.xpose.msra.mxu0 0
        %8131 = vmatprep.subr.bf16.mxu0 0
        %8132 = vmatpush2.bf16.xpose.msra.mxu0 0
        %8133 = vmatprep.subr.bf16.mxu0 0
        %8134 = vmatpush2.bf16.xpose.msra.mxu0 0
        %8135 = vmatprep.subr.bf16.mxu0 0
        %8136 = vmatpush2.bf16.xpose.msra.mxu0 0
        %8137 = vmatprep.subr.bf16.mxu0 0
        %8138 = vmatpush2.bf16.xpose.msra.mxu0 0
        %8139 = vmatprep.subr.bf16.mxu0 0
        %8140 = vmatpush2.bf16.xpose.msra.mxu0 0
        %8141 = vmatprep.subr.bf16.mxu0 0
        %8142 = vmatpush2.bf16.xpose.msra.mxu0 0
        %8143 = vmatprep.subr.bf16.mxu0 0
        %8144 = vmatpush2.bf16.xpose.msra.mxu0 %v8111
        %8145 = vmatprep.mubr.bf16.mxu0 0
        %8146 = vmatmul.mubr.bf16.gmra.mxu0 %v8060
        %v8147 = vpop.f32.mrf.mxu0
        %v8148 = vadd.f32 0.0, %v8147
        %v8149 = vpop.f32.mrf.mxu0
        %v8150 = vadd.f32 0.0, %v8149
        %v8151 = vpop.f32.mrf.mxu0
        %v8152 = vadd.f32 0.0, %v8151
        %v8153 = vpop.f32.mrf.mxu0
        %v8154 = vadd.f32 0.0, %v8153
        %8155 = vmatprep.mubr.bf16.mxu0 0
        %8156 = vmatmul.mubr.bf16.gmra.mxu0 %v8063
        %v8157 = vpop.f32.mrf.mxu0
        %v8158 = vadd.f32 0.0, %v8157
        %v8159 = vpop.f32.mrf.mxu0
        %v8160 = vadd.f32 0.0, %v8159
        %v8161 = vpop.f32.mrf.mxu0
        %v8162 = vadd.f32 0.0, %v8161
        %v8163 = vpop.f32.mrf.mxu0
        %v8164 = vadd.f32 0.0, %v8163
        %8165 = vmatprep.mubr.bf16.mxu0 0
        %8166 = vmatmul.mubr.bf16.gmra.mxu0 %v8066
        %v8167 = vpop.f32.mrf.mxu0
        %v8168 = vadd.f32 0.0, %v8167
        %v8169 = vpop.f32.mrf.mxu0
        %v8170 = vadd.f32 0.0, %v8169
        %v8171 = vpop.f32.mrf.mxu0
        %v8172 = vadd.f32 0.0, %v8171
        %v8173 = vpop.f32.mrf.mxu0
        %v8174 = vadd.f32 0.0, %v8173
        %8175 = vmatprep.mubr.bf16.mxu0 0
        %8176 = vmatmul.mubr.bf16.gmra.mxu0 %v8069
        %v8177 = vpop.f32.mrf.mxu0
        %v8178 = vadd.f32 0.0, %v8177
        %v8179 = vpop.f32.mrf.mxu0
        %v8180 = vadd.f32 0.0, %v8179
        %v8181 = vpop.f32.mrf.mxu0
        %v8182 = vadd.f32 0.0, %v8181
        %v8183 = vpop.f32.mrf.mxu0
        %v8184 = vadd.f32 0.0, %v8183
        %8185 = vmatprep.mubr.bf16.mxu0 0
        %8186 = vmatmul.mubr.bf16.gmra.mxu0 %v8072
        %v8187 = vpop.f32.mrf.mxu0
        %v8188 = vadd.f32 0.0, %v8187
        %v8189 = vpop.f32.mrf.mxu0
        %v8190 = vadd.f32 0.0, %v8189
        %v8191 = vpop.f32.mrf.mxu0
        %v8192 = vadd.f32 0.0, %v8191
        %v8193 = vpop.f32.mrf.mxu0
        %v8194 = vadd.f32 0.0, %v8193
        %8195 = vmatprep.mubr.bf16.mxu0 0
        %8196 = vmatmul.mubr.bf16.gmra.mxu0 %v8075
        %v8197 = vpop.f32.mrf.mxu0
        %v8198 = vadd.f32 0.0, %v8197
        %v8199 = vpop.f32.mrf.mxu0
        %v8200 = vadd.f32 0.0, %v8199
        %v8201 = vpop.f32.mrf.mxu0
        %v8202 = vadd.f32 0.0, %v8201
        %v8203 = vpop.f32.mrf.mxu0
        %v8204 = vadd.f32 0.0, %v8203
        %8205 = vmatprep.mubr.bf16.mxu0 0
        %8206 = vmatmul.mubr.bf16.gmra.mxu0 %v8078
        %v8207 = vpop.f32.mrf.mxu0
        %v8208 = vadd.f32 0.0, %v8207
        %v8209 = vpop.f32.mrf.mxu0
        %v8210 = vadd.f32 0.0, %v8209
        %v8211 = vpop.f32.mrf.mxu0
        %v8212 = vadd.f32 0.0, %v8211
        %v8213 = vpop.f32.mrf.mxu0
        %v8214 = vadd.f32 0.0, %v8213
        %8215 = vmatprep.mubr.bf16.mxu0 0
        %8216 = vmatmul.mubr.bf16.gmra.mxu0 %v8081
        %v8217 = vpop.f32.mrf.mxu0
        %v8218 = vadd.f32 0.0, %v8217
        %v8219 = vpop.f32.mrf.mxu0
        %v8220 = vadd.f32 0.0, %v8219
        %v8221 = vpop.f32.mrf.mxu0
        %v8222 = vadd.f32 0.0, %v8221
        %v8223 = vpop.f32.mrf.mxu0
        %v8224 = vadd.f32 0.0, %v8223
        %8225 = vmatprep.mubr.bf16.mxu0 0
        %8226 = vmatmul.mubr.bf16.gmra.mxu0 %v8084
        %v8227 = vpop.f32.mrf.mxu0
        %v8228 = vadd.f32 0.0, %v8227
        %v8229 = vpop.f32.mrf.mxu0
        %v8230 = vadd.f32 0.0, %v8229
        %v8231 = vpop.f32.mrf.mxu0
        %v8232 = vadd.f32 0.0, %v8231
        %v8233 = vpop.f32.mrf.mxu0
        %v8234 = vadd.f32 0.0, %v8233
        %8235 = vdwg.mxu0
        %v8236 = vsel %vm2462, %v8150, -inf
        %v8237 = vmax.f32 %v8148, %v8236
        %8238 = vmax.xlane.f32.xlu0 %v8237
        %v8239 = vpop.xlane.xlu0 %8238
        %v8240 = vsel %vm2462, %v8154, -inf
        %v8241 = vmax.f32 %v8152, %v8240
        %8242 = vmax.xlane.f32.xlu0 %v8241
        %v8243 = vpop.xlane.xlu0 %8242
        %v8244 = vsel %vm2462, %v8160, -inf
        %v8245 = vmax.f32 %v8158, %v8244
        %8246 = vmax.xlane.f32.xlu0 %v8245
        %v8247 = vpop.xlane.xlu0 %8246
        %v8248 = vsel %vm2462, %v8164, -inf
        %v8249 = vmax.f32 %v8162, %v8248
        %8250 = vmax.xlane.f32.xlu0 %v8249
        %v8251 = vpop.xlane.xlu0 %8250
        %v8252 = vsel %vm2462, %v8170, -inf
        %v8253 = vmax.f32 %v8168, %v8252
        %8254 = vmax.xlane.f32.xlu0 %v8253
        %v8255 = vpop.xlane.xlu0 %8254
        %v8256 = vsel %vm2462, %v8174, -inf
        %v8257 = vmax.f32 %v8172, %v8256
        %8258 = vmax.xlane.f32.xlu0 %v8257
        %v8259 = vpop.xlane.xlu0 %8258
        %v8260 = vsel %vm2462, %v8180, -inf
        %v8261 = vmax.f32 %v8178, %v8260
        %8262 = vmax.xlane.f32.xlu0 %v8261
        %v8263 = vpop.xlane.xlu0 %8262
        %v8264 = vsel %vm2462, %v8184, -inf
        %v8265 = vmax.f32 %v8182, %v8264
        %8266 = vmax.xlane.f32.xlu0 %v8265
        %v8267 = vpop.xlane.xlu0 %8266
        %v8268 = vsel %vm2462, %v8190, -inf
        %v8269 = vmax.f32 %v8188, %v8268
        %8270 = vmax.xlane.f32.xlu0 %v8269
        %v8271 = vpop.xlane.xlu0 %8270
        %v8272 = vsel %vm2462, %v8194, -inf
        %v8273 = vmax.f32 %v8192, %v8272
        %8274 = vmax.xlane.f32.xlu0 %v8273
        %v8275 = vpop.xlane.xlu0 %8274
        %v8276 = vsel %vm2462, %v8200, -inf
        %v8277 = vmax.f32 %v8198, %v8276
        %8278 = vmax.xlane.f32.xlu0 %v8277
        %v8279 = vpop.xlane.xlu0 %8278
        %v8280 = vsel %vm2462, %v8204, -inf
        %v8281 = vmax.f32 %v8202, %v8280
        %8282 = vmax.xlane.f32.xlu0 %v8281
        %v8283 = vpop.xlane.xlu0 %8282
        %v8284 = vsel %vm2462, %v8210, -inf
        %v8285 = vmax.f32 %v8208, %v8284
        %8286 = vmax.xlane.f32.xlu0 %v8285
        %v8287 = vpop.xlane.xlu0 %8286
        %v8288 = vsel %vm2462, %v8214, -inf
        %v8289 = vmax.f32 %v8212, %v8288
        %8290 = vmax.xlane.f32.xlu0 %v8289
        %v8291 = vpop.xlane.xlu0 %8290
        %v8292 = vsel %vm2462, %v8220, -inf
        %v8293 = vmax.f32 %v8218, %v8292
        %8294 = vmax.xlane.f32.xlu0 %v8293
        %v8295 = vpop.xlane.xlu0 %8294
        %v8296 = vsel %vm2462, %v8224, -inf
        %v8297 = vmax.f32 %v8222, %v8296
        %8298 = vmax.xlane.f32.xlu0 %v8297
        %v8299 = vpop.xlane.xlu0 %8298
        %v8300 = vsel %vm2462, %v8230, -inf
        %v8301 = vmax.f32 %v8228, %v8300
        %8302 = vmax.xlane.f32.xlu0 %v8301
        %v8303 = vpop.xlane.xlu0 %8302
        %v8304 = vsel %vm2531, %v8232, -inf
        %v8305 = vsel %vm2533, %v8234, -inf
        %v8306 = vmax.f32 %v8304, %v8305
        %8307 = vmax.xlane.f32.xlu0 %v8306
        %v8308 = vpop.xlane.xlu0 %8307
        %v8309 = vsub.f32 %v8148, %v8239
        %v8310 = vsub.f32 %v8150, %v8239
        %v8311 = vsub.f32 %v8152, %v8243
        %v8312 = vsub.f32 %v8154, %v8243
        %v8313 = vsub.f32 %v8158, %v8247
        %v8314 = vsub.f32 %v8160, %v8247
        %v8315 = vsub.f32 %v8162, %v8251
        %v8316 = vsub.f32 %v8164, %v8251
        %v8317 = vsub.f32 %v8168, %v8255
        %v8318 = vsub.f32 %v8170, %v8255
        %v8319 = vsub.f32 %v8172, %v8259
        %v8320 = vsub.f32 %v8174, %v8259
        %v8321 = vsub.f32 %v8178, %v8263
        %v8322 = vsub.f32 %v8180, %v8263
        %v8323 = vsub.f32 %v8182, %v8267
        %v8324 = vsub.f32 %v8184, %v8267
        %v8325 = vsub.f32 %v8188, %v8271
        %v8326 = vsub.f32 %v8190, %v8271
        %v8327 = vsub.f32 %v8192, %v8275
        %v8328 = vsub.f32 %v8194, %v8275
        %v8329 = vsub.f32 %v8198, %v8279
        %v8330 = vsub.f32 %v8200, %v8279
        %v8331 = vsub.f32 %v8202, %v8283
        %v8332 = vsub.f32 %v8204, %v8283
        %v8333 = vsub.f32 %v8208, %v8287
        %v8334 = vsub.f32 %v8210, %v8287
        %v8335 = vsub.f32 %v8212, %v8291
        %v8336 = vsub.f32 %v8214, %v8291
        %v8337 = vsub.f32 %v8218, %v8295
        %v8338 = vsub.f32 %v8220, %v8295
        %v8339 = vsub.f32 %v8222, %v8299
        %v8340 = vsub.f32 %v8224, %v8299
        %v8341 = vsub.f32 %v8228, %v8303
        %v8342 = vsub.f32 %v8230, %v8303
        %v8343 = vsub.f32 %v8232, %v8308
        %v8344 = vsub.f32 %v8234, %v8308
        %v8345 = vmul.f32 %v8309, 1.442695
        %v8346 = vpow.pop %v8345
        %v8347 = vmul.f32 %v8310, 1.442695
        %v8348 = vpow.pop %v8347
        %v8349 = vmul.f32 %v8311, 1.442695
        %v8350 = vpow.pop %v8349
        %v8351 = vmul.f32 %v8312, 1.442695
        %v8352 = vpow.pop %v8351
        %v8353 = vmul.f32 %v8313, 1.442695
        %v8354 = vpow.pop %v8353
        %v8355 = vmul.f32 %v8314, 1.442695
        %v8356 = vpow.pop %v8355
        %v8357 = vmul.f32 %v8315, 1.442695
        %v8358 = vpow.pop %v8357
        %v8359 = vmul.f32 %v8316, 1.442695
        %v8360 = vpow.pop %v8359
        %v8361 = vmul.f32 %v8317, 1.442695
        %v8362 = vpow.pop %v8361
        %v8363 = vmul.f32 %v8318, 1.442695
        %v8364 = vpow.pop %v8363
        %v8365 = vmul.f32 %v8319, 1.442695
        %v8366 = vpow.pop %v8365
        %v8367 = vmul.f32 %v8320, 1.442695
        %v8368 = vpow.pop %v8367
        %v8369 = vmul.f32 %v8321, 1.442695
        %v8370 = vpow.pop %v8369
        %v8371 = vmul.f32 %v8322, 1.442695
        %v8372 = vpow.pop %v8371
        %v8373 = vmul.f32 %v8323, 1.442695
        %v8374 = vpow.pop %v8373
        %v8375 = vmul.f32 %v8324, 1.442695
        %v8376 = vpow.pop %v8375
        %v8377 = vmul.f32 %v8325, 1.442695
        %v8378 = vpow.pop %v8377
        %v8379 = vmul.f32 %v8326, 1.442695
        %v8380 = vpow.pop %v8379
        %v8381 = vmul.f32 %v8327, 1.442695
        %v8382 = vpow.pop %v8381
        %v8383 = vmul.f32 %v8328, 1.442695
        %v8384 = vpow.pop %v8383
        %v8385 = vmul.f32 %v8329, 1.442695
        %v8386 = vpow.pop %v8385
        %v8387 = vmul.f32 %v8330, 1.442695
        %v8388 = vpow.pop %v8387
        %v8389 = vmul.f32 %v8331, 1.442695
        %v8390 = vpow.pop %v8389
        %v8391 = vmul.f32 %v8332, 1.442695
        %v8392 = vpow.pop %v8391
        %v8393 = vmul.f32 %v8333, 1.442695
        %v8394 = vpow.pop %v8393
        %v8395 = vmul.f32 %v8334, 1.442695
        %v8396 = vpow.pop %v8395
        %v8397 = vmul.f32 %v8335, 1.442695
        %v8398 = vpow.pop %v8397
        %v8399 = vmul.f32 %v8336, 1.442695
        %v8400 = vpow.pop %v8399
        %v8401 = vmul.f32 %v8337, 1.442695
        %v8402 = vpow.pop %v8401
        %v8403 = vmul.f32 %v8338, 1.442695
        %v8404 = vpow.pop %v8403
        %v8405 = vmul.f32 %v8339, 1.442695
        %v8406 = vpow.pop %v8405
        %v8407 = vmul.f32 %v8340, 1.442695
        %v8408 = vpow.pop %v8407
        %v8409 = vmul.f32 %v8341, 1.442695
        %v8410 = vpow.pop %v8409
        %v8411 = vmul.f32 %v8342, 1.442695
        %v8412 = vpow.pop %v8411
        %v8413 = vmul.f32 %v8343, 1.442695
        %v8414 = vpow.pop %v8413
        %v8415 = vmul.f32 %v8344, 1.442695
        %v8416 = vpow.pop %v8415
        %v8417 = vsel %vm2462, %v8348, 0.0
        %v8418 = vadd.f32 %v8346, %v8417
        %8419 = vadd.xlane.f32.xlu0 %v8418
        %v8420 = vpop.xlane.xlu0 %8419
        %v8421 = vsel %vm2462, %v8352, 0.0
        %v8422 = vadd.f32 %v8350, %v8421
        %8423 = vadd.xlane.f32.xlu0 %v8422
        %v8424 = vpop.xlane.xlu0 %8423
        %v8425 = vsel %vm2462, %v8356, 0.0
        %v8426 = vadd.f32 %v8354, %v8425
        %8427 = vadd.xlane.f32.xlu0 %v8426
        %v8428 = vpop.xlane.xlu0 %8427
        %v8429 = vsel %vm2462, %v8360, 0.0
        %v8430 = vadd.f32 %v8358, %v8429
        %8431 = vadd.xlane.f32.xlu0 %v8430
        %v8432 = vpop.xlane.xlu0 %8431
        %v8433 = vsel %vm2462, %v8364, 0.0
        %v8434 = vadd.f32 %v8362, %v8433
        %8435 = vadd.xlane.f32.xlu0 %v8434
        %v8436 = vpop.xlane.xlu0 %8435
        %v8437 = vsel %vm2462, %v8368, 0.0
        %v8438 = vadd.f32 %v8366, %v8437
        %8439 = vadd.xlane.f32.xlu0 %v8438
        %v8440 = vpop.xlane.xlu0 %8439
        %v8441 = vsel %vm2462, %v8372, 0.0
        %v8442 = vadd.f32 %v8370, %v8441
        %8443 = vadd.xlane.f32.xlu0 %v8442
        %v8444 = vpop.xlane.xlu0 %8443
        %v8445 = vsel %vm2462, %v8376, 0.0
        %v8446 = vadd.f32 %v8374, %v8445
        %8447 = vadd.xlane.f32.xlu0 %v8446
        %v8448 = vpop.xlane.xlu0 %8447
        %v8449 = vsel %vm2462, %v8380, 0.0
        %v8450 = vadd.f32 %v8378, %v8449
        %8451 = vadd.xlane.f32.xlu0 %v8450
        %v8452 = vpop.xlane.xlu0 %8451
        %v8453 = vsel %vm2462, %v8384, 0.0
        %v8454 = vadd.f32 %v8382, %v8453
        %8455 = vadd.xlane.f32.xlu0 %v8454
        %v8456 = vpop.xlane.xlu0 %8455
        %v8457 = vsel %vm2462, %v8388, 0.0
        %v8458 = vadd.f32 %v8386, %v8457
        %8459 = vadd.xlane.f32.xlu0 %v8458
        %v8460 = vpop.xlane.xlu0 %8459
        %v8461 = vsel %vm2462, %v8392, 0.0
        %v8462 = vadd.f32 %v8390, %v8461
        %8463 = vadd.xlane.f32.xlu0 %v8462
        %v8464 = vpop.xlane.xlu0 %8463
        %v8465 = vsel %vm2462, %v8396, 0.0
        %v8466 = vadd.f32 %v8394, %v8465
        %8467 = vadd.xlane.f32.xlu0 %v8466
        %v8468 = vpop.xlane.xlu0 %8467
        %v8469 = vsel %vm2462, %v8400, 0.0
        %v8470 = vadd.f32 %v8398, %v8469
        %8471 = vadd.xlane.f32.xlu0 %v8470
        %v8472 = vpop.xlane.xlu0 %8471
        %v8473 = vsel %vm2462, %v8404, 0.0
        %v8474 = vadd.f32 %v8402, %v8473
        %8475 = vadd.xlane.f32.xlu0 %v8474
        %v8476 = vpop.xlane.xlu0 %8475
        %v8477 = vsel %vm2462, %v8408, 0.0
        %v8478 = vadd.f32 %v8406, %v8477
        %8479 = vadd.xlane.f32.xlu0 %v8478
        %v8480 = vpop.xlane.xlu0 %8479
        %v8481 = vsel %vm2462, %v8412, 0.0
        %v8482 = vadd.f32 %v8410, %v8481
        %8483 = vadd.xlane.f32.xlu0 %v8482
        %v8484 = vpop.xlane.xlu0 %8483
        %v8485 = vsel %vm2531, %v8414, 0.0
        %v8486 = vsel %vm2533, %v8416, 0.0
        %v8487 = vadd.f32 %v8485, %v8486
        %8488 = vadd.xlane.f32.xlu0 %v8487
        %v8489 = vpop.xlane.xlu0 %8488
        %v8490 = vpack.c.bf16 %v8350, %v8346
        %v8491 = vpack.c.bf16 %v8352, %v8348
        %v8492 = vpack.c.bf16 %v8358, %v8354
        %v8493 = vpack.c.bf16 %v8360, %v8356
        %v8494 = vpack.c.bf16 %v8366, %v8362
        %v8495 = vpack.c.bf16 %v8368, %v8364
        %v8496 = vpack.c.bf16 %v8374, %v8370
        %v8497 = vpack.c.bf16 %v8376, %v8372
        %v8498 = vpack.c.bf16 %v8382, %v8378
        %v8499 = vpack.c.bf16 %v8384, %v8380
        %v8500 = vpack.c.bf16 %v8390, %v8386
        %v8501 = vpack.c.bf16 %v8392, %v8388
        %v8502 = vpack.c.bf16 %v8398, %v8394
        %v8503 = vpack.c.bf16 %v8400, %v8396
        %v8504 = vpack.c.bf16 %v8406, %v8402
        %v8505 = vpack.c.bf16 %v8408, %v8404
        %v8506 = vpack.c.bf16 %v8414, %v8410
        %v8507 = vpack.c.bf16 %v8416, %v8412
        %8508 = vrot.lane.b32.xlu0 %v6623, 48
        %v8509 = vpop.permute.xlu0 %8508
        %8510 = vrot.lane.b32.xlu0 %v6624, 48
        %v8511 = vpop.permute.xlu0 %8510
        %8512 = vrot.lane.b32.xlu0 %v6625, 48
        %v8513 = vpop.permute.xlu0 %8512
        %8514 = vrot.lane.b32.xlu0 %v6626, 48
        %v8515 = vpop.permute.xlu0 %8514
        %8516 = vrot.lane.b32.xlu0 %v6627, 48
        %v8517 = vpop.permute.xlu0 %8516
        %8518 = vrot.lane.b32.xlu0 %v6628, 48
        %v8519 = vpop.permute.xlu0 %8518
        %8520 = vrot.lane.b32.xlu0 %v6629, 48
        %v8521 = vpop.permute.xlu0 %8520
        %8522 = vrot.lane.b32.xlu0 %v6630, 48
        %v8523 = vpop.permute.xlu0 %8522
        %8524 = vrot.lane.b32.xlu0 %v6631, 48
        %v8525 = vpop.permute.xlu0 %8524
        %v8535 = vsel %vm2462, %v8491, 0
        %v8538 = vsel %vm2462, %v8493, 0
        %v8541 = vsel %vm2462, %v8495, 0
        %v8544 = vsel %vm2462, %v8497, 0
        %v8547 = vsel %vm2462, %v8499, 0
        %v8550 = vsel %vm2462, %v8501, 0
        %v8553 = vsel %vm2462, %v8503, 0
        %v8556 = vsel %vm2462, %v8505, 0
        %v8559 = vsel %vm2462, %v8507, 0
        %v8562 = vsel %vm2790, %v8525, 0
        %8564 = vmatprep.subr.bf16.mxu0 0
        %8565 = vmatpush1.bf16.msra.mxu0 %v8523
        %8566 = vmatprep.subr.bf16.mxu0 0
        %8567 = vmatpush1.bf16.msra.mxu0 %v8521
        %8568 = vmatprep.subr.bf16.mxu0 0
        %8569 = vmatpush1.bf16.msra.mxu0 %v8519
        %8570 = vmatprep.subr.bf16.mxu0 0
        %8571 = vmatpush1.bf16.msra.mxu0 %v8517
        %8572 = vmatprep.subr.bf16.mxu0 0
        %8573 = vmatpush1.bf16.msra.mxu0 %v8515
        %8574 = vmatprep.subr.bf16.mxu0 0
        %8575 = vmatpush1.bf16.msra.mxu0 %v8513
        %8576 = vmatprep.subr.bf16.mxu0 0
        %8577 = vmatpush1.bf16.msra.mxu0 %v8511
        %8578 = vmatprep.subr.bf16.mxu0 0
        %8579 = vmatpush1.bf16.msra.mxu0 %v8509
        %8580 = vmatprep.subr.bf16.mxu0 0
        %8581 = vmatpush2.bf16.msra.mxu0 0
        %8582 = vmatprep.subr.bf16.mxu0 0
        %8583 = vmatpush2.bf16.msra.mxu0 0
        %8584 = vmatprep.subr.bf16.mxu0 0
        %8585 = vmatpush2.bf16.msra.mxu0 0
        %8586 = vmatprep.subr.bf16.mxu0 0
        %8587 = vmatpush2.bf16.msra.mxu0 0
        %8588 = vmatprep.subr.bf16.mxu0 0
        %8589 = vmatpush2.bf16.msra.mxu0 0
        %8590 = vmatprep.subr.bf16.mxu0 0
        %8591 = vmatpush2.bf16.msra.mxu0 0
        %8592 = vmatprep.subr.bf16.mxu0 0
        %8593 = vmatpush2.bf16.msra.mxu0 0
        %8594 = vmatprep.subr.bf16.mxu0 0
        %8595 = vmatpush2.bf16.msra.mxu0 %v8562
        %8596 = vmatprep.mubr.bf16.mxu0 %v8535
        %8597 = vmatmul.mubr.bf16.gmra.mxu0 %v8490
        %v8598 = vpop.f32.mrf.mxu0
        %v8599 = vadd.f32 0.0, %v8598
        %v8600 = vpop.f32.mrf.mxu0
        %v8601 = vpop.f32.mrf.mxu0
        %v8602 = vadd.f32 0.0, %v8601
        %v8603 = vpop.f32.mrf.mxu0
        %8604 = vmatprep.mubr.bf16.mxu0 %v8538
        %8605 = vmatmul.mubr.bf16.gmra.mxu0 %v8492
        %v8606 = vpop.f32.mrf.mxu0
        %v8607 = vadd.f32 0.0, %v8606
        %v8608 = vpop.f32.mrf.mxu0
        %v8609 = vpop.f32.mrf.mxu0
        %v8610 = vadd.f32 0.0, %v8609
        %v8611 = vpop.f32.mrf.mxu0
        %8612 = vmatprep.mubr.bf16.mxu0 %v8541
        %8613 = vmatmul.mubr.bf16.gmra.mxu0 %v8494
        %v8614 = vpop.f32.mrf.mxu0
        %v8615 = vadd.f32 0.0, %v8614
        %v8616 = vpop.f32.mrf.mxu0
        %v8617 = vpop.f32.mrf.mxu0
        %v8618 = vadd.f32 0.0, %v8617
        %v8619 = vpop.f32.mrf.mxu0
        %8620 = vmatprep.mubr.bf16.mxu0 %v8544
        %8621 = vmatmul.mubr.bf16.gmra.mxu0 %v8496
        %v8622 = vpop.f32.mrf.mxu0
        %v8623 = vadd.f32 0.0, %v8622
        %v8624 = vpop.f32.mrf.mxu0
        %v8625 = vpop.f32.mrf.mxu0
        %v8626 = vadd.f32 0.0, %v8625
        %v8627 = vpop.f32.mrf.mxu0
        %8628 = vmatprep.mubr.bf16.mxu0 %v8547
        %8629 = vmatmul.mubr.bf16.gmra.mxu0 %v8498
        %v8630 = vpop.f32.mrf.mxu0
        %v8631 = vadd.f32 0.0, %v8630
        %v8632 = vpop.f32.mrf.mxu0
        %v8633 = vpop.f32.mrf.mxu0
        %v8634 = vadd.f32 0.0, %v8633
        %v8635 = vpop.f32.mrf.mxu0
        %8636 = vmatprep.mubr.bf16.mxu0 %v8550
        %8637 = vmatmul.mubr.bf16.gmra.mxu0 %v8500
        %v8638 = vpop.f32.mrf.mxu0
        %v8639 = vadd.f32 0.0, %v8638
        %v8640 = vpop.f32.mrf.mxu0
        %v8641 = vpop.f32.mrf.mxu0
        %v8642 = vadd.f32 0.0, %v8641
        %v8643 = vpop.f32.mrf.mxu0
        %8644 = vmatprep.mubr.bf16.mxu0 %v8553
        %8645 = vmatmul.mubr.bf16.gmra.mxu0 %v8502
        %v8646 = vpop.f32.mrf.mxu0
        %v8647 = vadd.f32 0.0, %v8646
        %v8648 = vpop.f32.mrf.mxu0
        %v8649 = vpop.f32.mrf.mxu0
        %v8650 = vadd.f32 0.0, %v8649
        %v8651 = vpop.f32.mrf.mxu0
        %8652 = vmatprep.mubr.bf16.mxu0 %v8556
        %8653 = vmatmul.mubr.bf16.gmra.mxu0 %v8504
        %v8654 = vpop.f32.mrf.mxu0
        %v8655 = vadd.f32 0.0, %v8654
        %v8656 = vpop.f32.mrf.mxu0
        %v8657 = vpop.f32.mrf.mxu0
        %v8658 = vadd.f32 0.0, %v8657
        %v8659 = vpop.f32.mrf.mxu0
        %8660 = vmatprep.mubr.bf16.mxu0 %v8559
        %8661 = vmatmul.mubr.bf16.gmra.mxu0 %v8506
        %v8662 = vpop.f32.mrf.mxu0
        %v8663 = vadd.f32 0.0, %v8662
        %v8664 = vpop.f32.mrf.mxu0
        %v8665 = vpop.f32.mrf.mxu0
        %v8666 = vadd.f32 0.0, %v8665
        %v8667 = vpop.f32.mrf.mxu0
        %8668 = vdwg.mxu0
        %v8669 = vrcp.pop %v8420
        %v8670 = vmul.f32 1.0, %v8669
        %v8671 = vrcp.pop %v8424
        %v8672 = vmul.f32 1.0, %v8671
        %v8673 = vrcp.pop %v8428
        %v8674 = vmul.f32 1.0, %v8673
        %v8675 = vrcp.pop %v8432
        %v8676 = vmul.f32 1.0, %v8675
        %v8677 = vrcp.pop %v8436
        %v8678 = vmul.f32 1.0, %v8677
        %v8679 = vrcp.pop %v8440
        %v8680 = vmul.f32 1.0, %v8679
        %v8681 = vrcp.pop %v8444
        %v8682 = vmul.f32 1.0, %v8681
        %v8683 = vrcp.pop %v8448
        %v8684 = vmul.f32 1.0, %v8683
        %v8685 = vrcp.pop %v8452
        %v8686 = vmul.f32 1.0, %v8685
        %v8687 = vrcp.pop %v8456
        %v8688 = vmul.f32 1.0, %v8687
        %v8689 = vrcp.pop %v8460
        %v8690 = vmul.f32 1.0, %v8689
        %v8691 = vrcp.pop %v8464
        %v8692 = vmul.f32 1.0, %v8691
        %v8693 = vrcp.pop %v8468
        %v8694 = vmul.f32 1.0, %v8693
        %v8695 = vrcp.pop %v8472
        %v8696 = vmul.f32 1.0, %v8695
        %v8697 = vrcp.pop %v8476
        %v8698 = vmul.f32 1.0, %v8697
        %v8699 = vrcp.pop %v8480
        %v8700 = vmul.f32 1.0, %v8699
        %v8701 = vrcp.pop %v8484
        %v8702 = vmul.f32 1.0, %v8701
        %v8703 = vrcp.pop %v8489
        %v8704 = vmul.f32 1.0, %v8703
        %v8705 = vmul.f32 %v8599, %v8670
        %v8706 = vmul.f32 %v8602, %v8672
        %v8707 = vmul.f32 %v8607, %v8674
        %v8708 = vmul.f32 %v8610, %v8676
        %v8709 = vmul.f32 %v8615, %v8678
        %v8710 = vmul.f32 %v8618, %v8680
        %v8711 = vmul.f32 %v8623, %v8682
        %v8712 = vmul.f32 %v8626, %v8684
        %v8713 = vmul.f32 %v8631, %v8686
        %v8714 = vmul.f32 %v8634, %v8688
        %v8715 = vmul.f32 %v8639, %v8690
        %v8716 = vmul.f32 %v8642, %v8692
        %v8717 = vmul.f32 %v8647, %v8694
        %v8718 = vmul.f32 %v8650, %v8696
        %v8719 = vmul.f32 %v8655, %v8698
        %v8720 = vmul.f32 %v8658, %v8700
        %v8721 = vmul.f32 %v8663, %v8702
        %v8722 = vmul.f32 %v8666, %v8704
        %8723 = vrot.lane.b32.xlu0 %v6623, 104
        %v8724 = vpop.permute.xlu0 %8723
        %8725 = vrot.lane.b32.xlu0 %v6624, 104
        %v8726 = vpop.permute.xlu0 %8725
        %8727 = vrot.lane.b32.xlu0 %v6625, 104
        %v8728 = vpop.permute.xlu0 %8727
        %8729 = vrot.lane.b32.xlu0 %v6626, 104
        %v8730 = vpop.permute.xlu0 %8729
        %8731 = vrot.lane.b32.xlu0 %v6627, 104
        %v8732 = vpop.permute.xlu0 %8731
        %8733 = vrot.lane.b32.xlu0 %v6628, 104
        %v8734 = vpop.permute.xlu0 %8733
        %8735 = vrot.lane.b32.xlu0 %v6629, 104
        %v8736 = vpop.permute.xlu0 %8735
        %8737 = vrot.lane.b32.xlu0 %v6630, 104
        %v8738 = vpop.permute.xlu0 %8737
        %8739 = vrot.lane.b32.xlu0 %v6631, 104
        %v8740 = vpop.permute.xlu0 %8739
        %8741 = vrot.lane.b32.xlu0 %v6623, 72
        %v8742 = vpop.permute.xlu0 %8741
        %8743 = vrot.lane.b32.xlu0 %v6624, 72
        %v8744 = vpop.permute.xlu0 %8743
        %8745 = vrot.lane.b32.xlu0 %v6625, 72
        %v8746 = vpop.permute.xlu0 %8745
        %8747 = vrot.lane.b32.xlu0 %v6626, 72
        %v8748 = vpop.permute.xlu0 %8747
        %8749 = vrot.lane.b32.xlu0 %v6627, 72
        %v8750 = vpop.permute.xlu0 %8749
        %8751 = vrot.lane.b32.xlu0 %v6628, 72
        %v8752 = vpop.permute.xlu0 %8751
        %8753 = vrot.lane.b32.xlu0 %v6629, 72
        %v8754 = vpop.permute.xlu0 %8753
        %8755 = vrot.lane.b32.xlu0 %v6630, 72
        %v8756 = vpop.permute.xlu0 %8755
        %8757 = vrot.lane.b32.xlu0 %v6631, 72
        %v8758 = vpop.permute.xlu0 %8757
        %v8760 = vsel %vm973, %v8724, 0
        %v8763 = vsel %vm973, %v8726, 0
        %v8766 = vsel %vm973, %v8728, 0
        %v8769 = vsel %vm973, %v8730, 0
        %v8772 = vsel %vm973, %v8732, 0
        %v8775 = vsel %vm973, %v8734, 0
        %v8778 = vsel %vm973, %v8736, 0
        %v8781 = vsel %vm973, %v8738, 0
        %v8784 = vsel %vm973, %v8740, 0
        %v8787 = vsel %vm973, %v8742, 0
        %v8790 = vsel %vm973, %v8744, 0
        %v8793 = vsel %vm973, %v8746, 0
        %v8796 = vsel %vm973, %v8748, 0
        %v8799 = vsel %vm973, %v8750, 0
        %v8802 = vsel %vm973, %v8752, 0
        %v8805 = vsel %vm973, %v8754, 0
        %v8808 = vsel %vm973, %v8756, 0
        %v8811 = vsel %vm973, %v8758, 0
        %8813 = vmatprep.subr.bf16.mxu0 0
        %8814 = vmatpush1.bf16.xpose.msra.mxu0 %v8808
        %8815 = vmatprep.subr.bf16.mxu0 0
        %8816 = vmatpush1.bf16.xpose.msra.mxu0 %v8805
        %8817 = vmatprep.subr.bf16.mxu0 0
        %8818 = vmatpush1.bf16.xpose.msra.mxu0 %v8802
        %8819 = vmatprep.subr.bf16.mxu0 0
        %8820 = vmatpush1.bf16.xpose.msra.mxu0 %v8799
        %8821 = vmatprep.subr.bf16.mxu0 0
        %8822 = vmatpush1.bf16.xpose.msra.mxu0 %v8796
        %8823 = vmatprep.subr.bf16.mxu0 0
        %8824 = vmatpush1.bf16.xpose.msra.mxu0 %v8793
        %8825 = vmatprep.subr.bf16.mxu0 0
        %8826 = vmatpush1.bf16.xpose.msra.mxu0 %v8790
        %8827 = vmatprep.subr.bf16.mxu0 0
        %8828 = vmatpush1.bf16.xpose.msra.mxu0 %v8787
        %8829 = vmatprep.subr.bf16.mxu0 0
        %8830 = vmatpush2.bf16.xpose.msra.mxu0 0
        %8831 = vmatprep.subr.bf16.mxu0 0
        %8832 = vmatpush2.bf16.xpose.msra.mxu0 0
        %8833 = vmatprep.subr.bf16.mxu0 0
        %8834 = vmatpush2.bf16.xpose.msra.mxu0 0
        %8835 = vmatprep.subr.bf16.mxu0 0
        %8836 = vmatpush2.bf16.xpose.msra.mxu0 0
        %8837 = vmatprep.subr.bf16.mxu0 0
        %8838 = vmatpush2.bf16.xpose.msra.mxu0 0
        %8839 = vmatprep.subr.bf16.mxu0 0
        %8840 = vmatpush2.bf16.xpose.msra.mxu0 0
        %8841 = vmatprep.subr.bf16.mxu0 0
        %8842 = vmatpush2.bf16.xpose.msra.mxu0 0
        %8843 = vmatprep.subr.bf16.mxu0 0
        %8844 = vmatpush2.bf16.xpose.msra.mxu0 %v8811
        %8845 = vmatprep.mubr.bf16.mxu0 0
        %8846 = vmatmul.mubr.bf16.gmra.mxu0 %v8760
        %v8847 = vpop.f32.mrf.mxu0
        %v8848 = vadd.f32 0.0, %v8847
        %v8849 = vpop.f32.mrf.mxu0
        %v8850 = vadd.f32 0.0, %v8849
        %v8851 = vpop.f32.mrf.mxu0
        %v8852 = vadd.f32 0.0, %v8851
        %v8853 = vpop.f32.mrf.mxu0
        %v8854 = vadd.f32 0.0, %v8853
        %8855 = vmatprep.mubr.bf16.mxu0 0
        %8856 = vmatmul.mubr.bf16.gmra.mxu0 %v8763
        %v8857 = vpop.f32.mrf.mxu0
        %v8858 = vadd.f32 0.0, %v8857
        %v8859 = vpop.f32.mrf.mxu0
        %v8860 = vadd.f32 0.0, %v8859
        %v8861 = vpop.f32.mrf.mxu0
        %v8862 = vadd.f32 0.0, %v8861
        %v8863 = vpop.f32.mrf.mxu0
        %v8864 = vadd.f32 0.0, %v8863
        %8865 = vmatprep.mubr.bf16.mxu0 0
        %8866 = vmatmul.mubr.bf16.gmra.mxu0 %v8766
        %v8867 = vpop.f32.mrf.mxu0
        %v8868 = vadd.f32 0.0, %v8867
        %v8869 = vpop.f32.mrf.mxu0
        %v8870 = vadd.f32 0.0, %v8869
        %v8871 = vpop.f32.mrf.mxu0
        %v8872 = vadd.f32 0.0, %v8871
        %v8873 = vpop.f32.mrf.mxu0
        %v8874 = vadd.f32 0.0, %v8873
        %8875 = vmatprep.mubr.bf16.mxu0 0
        %8876 = vmatmul.mubr.bf16.gmra.mxu0 %v8769
        %v8877 = vpop.f32.mrf.mxu0
        %v8878 = vadd.f32 0.0, %v8877
        %v8879 = vpop.f32.mrf.mxu0
        %v8880 = vadd.f32 0.0, %v8879
        %v8881 = vpop.f32.mrf.mxu0
        %v8882 = vadd.f32 0.0, %v8881
        %v8883 = vpop.f32.mrf.mxu0
        %v8884 = vadd.f32 0.0, %v8883
        %8885 = vmatprep.mubr.bf16.mxu0 0
        %8886 = vmatmul.mubr.bf16.gmra.mxu0 %v8772
        %v8887 = vpop.f32.mrf.mxu0
        %v8888 = vadd.f32 0.0, %v8887
        %v8889 = vpop.f32.mrf.mxu0
        %v8890 = vadd.f32 0.0, %v8889
        %v8891 = vpop.f32.mrf.mxu0
        %v8892 = vadd.f32 0.0, %v8891
        %v8893 = vpop.f32.mrf.mxu0
        %v8894 = vadd.f32 0.0, %v8893
        %8895 = vmatprep.mubr.bf16.mxu0 0
        %8896 = vmatmul.mubr.bf16.gmra.mxu0 %v8775
        %v8897 = vpop.f32.mrf.mxu0
        %v8898 = vadd.f32 0.0, %v8897
        %v8899 = vpop.f32.mrf.mxu0
        %v8900 = vadd.f32 0.0, %v8899
        %v8901 = vpop.f32.mrf.mxu0
        %v8902 = vadd.f32 0.0, %v8901
        %v8903 = vpop.f32.mrf.mxu0
        %v8904 = vadd.f32 0.0, %v8903
        %8905 = vmatprep.mubr.bf16.mxu0 0
        %8906 = vmatmul.mubr.bf16.gmra.mxu0 %v8778
        %v8907 = vpop.f32.mrf.mxu0
        %v8908 = vadd.f32 0.0, %v8907
        %v8909 = vpop.f32.mrf.mxu0
        %v8910 = vadd.f32 0.0, %v8909
        %v8911 = vpop.f32.mrf.mxu0
        %v8912 = vadd.f32 0.0, %v8911
        %v8913 = vpop.f32.mrf.mxu0
        %v8914 = vadd.f32 0.0, %v8913
        %8915 = vmatprep.mubr.bf16.mxu0 0
        %8916 = vmatmul.mubr.bf16.gmra.mxu0 %v8781
        %v8917 = vpop.f32.mrf.mxu0
        %v8918 = vadd.f32 0.0, %v8917
        %v8919 = vpop.f32.mrf.mxu0
        %v8920 = vadd.f32 0.0, %v8919
        %v8921 = vpop.f32.mrf.mxu0
        %v8922 = vadd.f32 0.0, %v8921
        %v8923 = vpop.f32.mrf.mxu0
        %v8924 = vadd.f32 0.0, %v8923
        %8925 = vmatprep.mubr.bf16.mxu0 0
        %8926 = vmatmul.mubr.bf16.gmra.mxu0 %v8784
        %v8927 = vpop.f32.mrf.mxu0
        %v8928 = vadd.f32 0.0, %v8927
        %v8929 = vpop.f32.mrf.mxu0
        %v8930 = vadd.f32 0.0, %v8929
        %v8931 = vpop.f32.mrf.mxu0
        %v8932 = vadd.f32 0.0, %v8931
        %v8933 = vpop.f32.mrf.mxu0
        %v8934 = vadd.f32 0.0, %v8933
        %8935 = vdwg.mxu0
        %v8936 = vsel %vm2462, %v8850, -inf
        %v8937 = vmax.f32 %v8848, %v8936
        %8938 = vmax.xlane.f32.xlu0 %v8937
        %v8939 = vpop.xlane.xlu0 %8938
        %v8940 = vsel %vm2462, %v8854, -inf
        %v8941 = vmax.f32 %v8852, %v8940
        %8942 = vmax.xlane.f32.xlu0 %v8941
        %v8943 = vpop.xlane.xlu0 %8942
        %v8944 = vsel %vm2462, %v8860, -inf
        %v8945 = vmax.f32 %v8858, %v8944
        %8946 = vmax.xlane.f32.xlu0 %v8945
        %v8947 = vpop.xlane.xlu0 %8946
        %v8948 = vsel %vm2462, %v8864, -inf
        %v8949 = vmax.f32 %v8862, %v8948
        %8950 = vmax.xlane.f32.xlu0 %v8949
        %v8951 = vpop.xlane.xlu0 %8950
        %v8952 = vsel %vm2462, %v8870, -inf
        %v8953 = vmax.f32 %v8868, %v8952
        %8954 = vmax.xlane.f32.xlu0 %v8953
        %v8955 = vpop.xlane.xlu0 %8954
        %v8956 = vsel %vm2462, %v8874, -inf
        %v8957 = vmax.f32 %v8872, %v8956
        %8958 = vmax.xlane.f32.xlu0 %v8957
        %v8959 = vpop.xlane.xlu0 %8958
        %v8960 = vsel %vm2462, %v8880, -inf
        %v8961 = vmax.f32 %v8878, %v8960
        %8962 = vmax.xlane.f32.xlu0 %v8961
        %v8963 = vpop.xlane.xlu0 %8962
        %v8964 = vsel %vm2462, %v8884, -inf
        %v8965 = vmax.f32 %v8882, %v8964
        %8966 = vmax.xlane.f32.xlu0 %v8965
        %v8967 = vpop.xlane.xlu0 %8966
        %v8968 = vsel %vm2462, %v8890, -inf
        %v8969 = vmax.f32 %v8888, %v8968
        %8970 = vmax.xlane.f32.xlu0 %v8969
        %v8971 = vpop.xlane.xlu0 %8970
        %v8972 = vsel %vm2462, %v8894, -inf
        %v8973 = vmax.f32 %v8892, %v8972
        %8974 = vmax.xlane.f32.xlu0 %v8973
        %v8975 = vpop.xlane.xlu0 %8974
        %v8976 = vsel %vm2462, %v8900, -inf
        %v8977 = vmax.f32 %v8898, %v8976
        %8978 = vmax.xlane.f32.xlu0 %v8977
        %v8979 = vpop.xlane.xlu0 %8978
        %v8980 = vsel %vm2462, %v8904, -inf
        %v8981 = vmax.f32 %v8902, %v8980
        %8982 = vmax.xlane.f32.xlu0 %v8981
        %v8983 = vpop.xlane.xlu0 %8982
        %v8984 = vsel %vm2462, %v8910, -inf
        %v8985 = vmax.f32 %v8908, %v8984
        %8986 = vmax.xlane.f32.xlu0 %v8985
        %v8987 = vpop.xlane.xlu0 %8986
        %v8988 = vsel %vm2462, %v8914, -inf
        %v8989 = vmax.f32 %v8912, %v8988
        %8990 = vmax.xlane.f32.xlu0 %v8989
        %v8991 = vpop.xlane.xlu0 %8990
        %v8992 = vsel %vm2462, %v8920, -inf
        %v8993 = vmax.f32 %v8918, %v8992
        %8994 = vmax.xlane.f32.xlu0 %v8993
        %v8995 = vpop.xlane.xlu0 %8994
        %v8996 = vsel %vm2462, %v8924, -inf
        %v8997 = vmax.f32 %v8922, %v8996
        %8998 = vmax.xlane.f32.xlu0 %v8997
        %v8999 = vpop.xlane.xlu0 %8998
        %v9000 = vsel %vm2462, %v8930, -inf
        %v9001 = vmax.f32 %v8928, %v9000
        %9002 = vmax.xlane.f32.xlu0 %v9001
        %v9003 = vpop.xlane.xlu0 %9002
        %v9004 = vsel %vm2531, %v8932, -inf
        %v9005 = vsel %vm2533, %v8934, -inf
        %v9006 = vmax.f32 %v9004, %v9005
        %9007 = vmax.xlane.f32.xlu0 %v9006
        %v9008 = vpop.xlane.xlu0 %9007
        %v9009 = vsub.f32 %v8848, %v8939
        %v9010 = vsub.f32 %v8850, %v8939
        %v9011 = vsub.f32 %v8852, %v8943
        %v9012 = vsub.f32 %v8854, %v8943
        %v9013 = vsub.f32 %v8858, %v8947
        %v9014 = vsub.f32 %v8860, %v8947
        %v9015 = vsub.f32 %v8862, %v8951
        %v9016 = vsub.f32 %v8864, %v8951
        %v9017 = vsub.f32 %v8868, %v8955
        %v9018 = vsub.f32 %v8870, %v8955
        %v9019 = vsub.f32 %v8872, %v8959
        %v9020 = vsub.f32 %v8874, %v8959
        %v9021 = vsub.f32 %v8878, %v8963
        %v9022 = vsub.f32 %v8880, %v8963
        %v9023 = vsub.f32 %v8882, %v8967
        %v9024 = vsub.f32 %v8884, %v8967
        %v9025 = vsub.f32 %v8888, %v8971
        %v9026 = vsub.f32 %v8890, %v8971
        %v9027 = vsub.f32 %v8892, %v8975
        %v9028 = vsub.f32 %v8894, %v8975
        %v9029 = vsub.f32 %v8898, %v8979
        %v9030 = vsub.f32 %v8900, %v8979
        %v9031 = vsub.f32 %v8902, %v8983
        %v9032 = vsub.f32 %v8904, %v8983
        %v9033 = vsub.f32 %v8908, %v8987
        %v9034 = vsub.f32 %v8910, %v8987
        %v9035 = vsub.f32 %v8912, %v8991
        %v9036 = vsub.f32 %v8914, %v8991
        %v9037 = vsub.f32 %v8918, %v8995
        %v9038 = vsub.f32 %v8920, %v8995
        %v9039 = vsub.f32 %v8922, %v8999
        %v9040 = vsub.f32 %v8924, %v8999
        %v9041 = vsub.f32 %v8928, %v9003
        %v9042 = vsub.f32 %v8930, %v9003
        %v9043 = vsub.f32 %v8932, %v9008
        %v9044 = vsub.f32 %v8934, %v9008
        %v9045 = vmul.f32 %v9009, 1.442695
        %v9046 = vpow.pop %v9045
        %v9047 = vmul.f32 %v9010, 1.442695
        %v9048 = vpow.pop %v9047
        %v9049 = vmul.f32 %v9011, 1.442695
        %v9050 = vpow.pop %v9049
        %v9051 = vmul.f32 %v9012, 1.442695
        %v9052 = vpow.pop %v9051
        %v9053 = vmul.f32 %v9013, 1.442695
        %v9054 = vpow.pop %v9053
        %v9055 = vmul.f32 %v9014, 1.442695
        %v9056 = vpow.pop %v9055
        %v9057 = vmul.f32 %v9015, 1.442695
        %v9058 = vpow.pop %v9057
        %v9059 = vmul.f32 %v9016, 1.442695
        %v9060 = vpow.pop %v9059
        %v9061 = vmul.f32 %v9017, 1.442695
        %v9062 = vpow.pop %v9061
        %v9063 = vmul.f32 %v9018, 1.442695
        %v9064 = vpow.pop %v9063
        %v9065 = vmul.f32 %v9019, 1.442695
        %v9066 = vpow.pop %v9065
        %v9067 = vmul.f32 %v9020, 1.442695
        %v9068 = vpow.pop %v9067
        %v9069 = vmul.f32 %v9021, 1.442695
        %v9070 = vpow.pop %v9069
        %v9071 = vmul.f32 %v9022, 1.442695
        %v9072 = vpow.pop %v9071
        %v9073 = vmul.f32 %v9023, 1.442695
        %v9074 = vpow.pop %v9073
        %v9075 = vmul.f32 %v9024, 1.442695
        %v9076 = vpow.pop %v9075
        %v9077 = vmul.f32 %v9025, 1.442695
        %v9078 = vpow.pop %v9077
        %v9079 = vmul.f32 %v9026, 1.442695
        %v9080 = vpow.pop %v9079
        %v9081 = vmul.f32 %v9027, 1.442695
        %v9082 = vpow.pop %v9081
        %v9083 = vmul.f32 %v9028, 1.442695
        %v9084 = vpow.pop %v9083
        %v9085 = vmul.f32 %v9029, 1.442695
        %v9086 = vpow.pop %v9085
        %v9087 = vmul.f32 %v9030, 1.442695
        %v9088 = vpow.pop %v9087
        %v9089 = vmul.f32 %v9031, 1.442695
        %v9090 = vpow.pop %v9089
        %v9091 = vmul.f32 %v9032, 1.442695
        %v9092 = vpow.pop %v9091
        %v9093 = vmul.f32 %v9033, 1.442695
        %v9094 = vpow.pop %v9093
        %v9095 = vmul.f32 %v9034, 1.442695
        %v9096 = vpow.pop %v9095
        %v9097 = vmul.f32 %v9035, 1.442695
        %v9098 = vpow.pop %v9097
        %v9099 = vmul.f32 %v9036, 1.442695
        %v9100 = vpow.pop %v9099
        %v9101 = vmul.f32 %v9037, 1.442695
        %v9102 = vpow.pop %v9101
        %v9103 = vmul.f32 %v9038, 1.442695
        %v9104 = vpow.pop %v9103
        %v9105 = vmul.f32 %v9039, 1.442695
        %v9106 = vpow.pop %v9105
        %v9107 = vmul.f32 %v9040, 1.442695
        %v9108 = vpow.pop %v9107
        %v9109 = vmul.f32 %v9041, 1.442695
        %v9110 = vpow.pop %v9109
        %v9111 = vmul.f32 %v9042, 1.442695
        %v9112 = vpow.pop %v9111
        %v9113 = vmul.f32 %v9043, 1.442695
        %v9114 = vpow.pop %v9113
        %v9115 = vmul.f32 %v9044, 1.442695
        %v9116 = vpow.pop %v9115
        %v9117 = vsel %vm2462, %v9048, 0.0
        %v9118 = vadd.f32 %v9046, %v9117
        %9119 = vadd.xlane.f32.xlu0 %v9118
        %v9120 = vpop.xlane.xlu0 %9119
        %v9121 = vsel %vm2462, %v9052, 0.0
        %v9122 = vadd.f32 %v9050, %v9121
        %9123 = vadd.xlane.f32.xlu0 %v9122
        %v9124 = vpop.xlane.xlu0 %9123
        %v9125 = vsel %vm2462, %v9056, 0.0
        %v9126 = vadd.f32 %v9054, %v9125
        %9127 = vadd.xlane.f32.xlu0 %v9126
        %v9128 = vpop.xlane.xlu0 %9127
        %v9129 = vsel %vm2462, %v9060, 0.0
        %v9130 = vadd.f32 %v9058, %v9129
        %9131 = vadd.xlane.f32.xlu0 %v9130
        %v9132 = vpop.xlane.xlu0 %9131
        %v9133 = vsel %vm2462, %v9064, 0.0
        %v9134 = vadd.f32 %v9062, %v9133
        %9135 = vadd.xlane.f32.xlu0 %v9134
        %v9136 = vpop.xlane.xlu0 %9135
        %v9137 = vsel %vm2462, %v9068, 0.0
        %v9138 = vadd.f32 %v9066, %v9137
        %9139 = vadd.xlane.f32.xlu0 %v9138
        %v9140 = vpop.xlane.xlu0 %9139
        %v9141 = vsel %vm2462, %v9072, 0.0
        %v9142 = vadd.f32 %v9070, %v9141
        %9143 = vadd.xlane.f32.xlu0 %v9142
        %v9144 = vpop.xlane.xlu0 %9143
        %v9145 = vsel %vm2462, %v9076, 0.0
        %v9146 = vadd.f32 %v9074, %v9145
        %9147 = vadd.xlane.f32.xlu0 %v9146
        %v9148 = vpop.xlane.xlu0 %9147
        %v9149 = vsel %vm2462, %v9080, 0.0
        %v9150 = vadd.f32 %v9078, %v9149
        %9151 = vadd.xlane.f32.xlu0 %v9150
        %v9152 = vpop.xlane.xlu0 %9151
        %v9153 = vsel %vm2462, %v9084, 0.0
        %v9154 = vadd.f32 %v9082, %v9153
        %9155 = vadd.xlane.f32.xlu0 %v9154
        %v9156 = vpop.xlane.xlu0 %9155
        %v9157 = vsel %vm2462, %v9088, 0.0
        %v9158 = vadd.f32 %v9086, %v9157
        %9159 = vadd.xlane.f32.xlu0 %v9158
        %v9160 = vpop.xlane.xlu0 %9159
        %v9161 = vsel %vm2462, %v9092, 0.0
        %v9162 = vadd.f32 %v9090, %v9161
        %9163 = vadd.xlane.f32.xlu0 %v9162
        %v9164 = vpop.xlane.xlu0 %9163
        %v9165 = vsel %vm2462, %v9096, 0.0
        %v9166 = vadd.f32 %v9094, %v9165
        %9167 = vadd.xlane.f32.xlu0 %v9166
        %v9168 = vpop.xlane.xlu0 %9167
        %v9169 = vsel %vm2462, %v9100, 0.0
        %v9170 = vadd.f32 %v9098, %v9169
        %9171 = vadd.xlane.f32.xlu0 %v9170
        %v9172 = vpop.xlane.xlu0 %9171
        %v9173 = vsel %vm2462, %v9104, 0.0
        %v9174 = vadd.f32 %v9102, %v9173
        %9175 = vadd.xlane.f32.xlu0 %v9174
        %v9176 = vpop.xlane.xlu0 %9175
        %v9177 = vsel %vm2462, %v9108, 0.0
        %v9178 = vadd.f32 %v9106, %v9177
        %9179 = vadd.xlane.f32.xlu0 %v9178
        %v9180 = vpop.xlane.xlu0 %9179
        %v9181 = vsel %vm2462, %v9112, 0.0
        %v9182 = vadd.f32 %v9110, %v9181
        %9183 = vadd.xlane.f32.xlu0 %v9182
        %v9184 = vpop.xlane.xlu0 %9183
        %v9185 = vsel %vm2531, %v9114, 0.0
        %v9186 = vsel %vm2533, %v9116, 0.0
        %v9187 = vadd.f32 %v9185, %v9186
        %9188 = vadd.xlane.f32.xlu0 %v9187
        %v9189 = vpop.xlane.xlu0 %9188
        %v9190 = vpack.c.bf16 %v9050, %v9046
        %v9191 = vpack.c.bf16 %v9052, %v9048
        %v9192 = vpack.c.bf16 %v9058, %v9054
        %v9193 = vpack.c.bf16 %v9060, %v9056
        %v9194 = vpack.c.bf16 %v9066, %v9062
        %v9195 = vpack.c.bf16 %v9068, %v9064
        %v9196 = vpack.c.bf16 %v9074, %v9070
        %v9197 = vpack.c.bf16 %v9076, %v9072
        %v9198 = vpack.c.bf16 %v9082, %v9078
        %v9199 = vpack.c.bf16 %v9084, %v9080
        %v9200 = vpack.c.bf16 %v9090, %v9086
        %v9201 = vpack.c.bf16 %v9092, %v9088
        %v9202 = vpack.c.bf16 %v9098, %v9094
        %v9203 = vpack.c.bf16 %v9100, %v9096
        %v9204 = vpack.c.bf16 %v9106, %v9102
        %v9205 = vpack.c.bf16 %v9108, %v9104
        %v9206 = vpack.c.bf16 %v9114, %v9110
        %v9207 = vpack.c.bf16 %v9116, %v9112
        %9208 = vrot.lane.b32.xlu0 %v6623, 40
        %v9209 = vpop.permute.xlu0 %9208
        %9210 = vrot.lane.b32.xlu0 %v6624, 40
        %v9211 = vpop.permute.xlu0 %9210
        %9212 = vrot.lane.b32.xlu0 %v6625, 40
        %v9213 = vpop.permute.xlu0 %9212
        %9214 = vrot.lane.b32.xlu0 %v6626, 40
        %v9215 = vpop.permute.xlu0 %9214
        %9216 = vrot.lane.b32.xlu0 %v6627, 40
        %v9217 = vpop.permute.xlu0 %9216
        %9218 = vrot.lane.b32.xlu0 %v6628, 40
        %v9219 = vpop.permute.xlu0 %9218
        %9220 = vrot.lane.b32.xlu0 %v6629, 40
        %v9221 = vpop.permute.xlu0 %9220
        %9222 = vrot.lane.b32.xlu0 %v6630, 40
        %v9223 = vpop.permute.xlu0 %9222
        %9224 = vrot.lane.b32.xlu0 %v6631, 40
        %v9225 = vpop.permute.xlu0 %9224
        %v9235 = vsel %vm2462, %v9191, 0
        %v9238 = vsel %vm2462, %v9193, 0
        %v9241 = vsel %vm2462, %v9195, 0
        %v9244 = vsel %vm2462, %v9197, 0
        %v9247 = vsel %vm2462, %v9199, 0
        %v9250 = vsel %vm2462, %v9201, 0
        %v9253 = vsel %vm2462, %v9203, 0
        %v9256 = vsel %vm2462, %v9205, 0
        %v9259 = vsel %vm2462, %v9207, 0
        %v9262 = vsel %vm2790, %v9225, 0
        %9264 = vmatprep.subr.bf16.mxu0 0
        %9265 = vmatpush1.bf16.msra.mxu0 %v9223
        %9266 = vmatprep.subr.bf16.mxu0 0
        %9267 = vmatpush1.bf16.msra.mxu0 %v9221
        %9268 = vmatprep.subr.bf16.mxu0 0
        %9269 = vmatpush1.bf16.msra.mxu0 %v9219
        %9270 = vmatprep.subr.bf16.mxu0 0
        %9271 = vmatpush1.bf16.msra.mxu0 %v9217
        %9272 = vmatprep.subr.bf16.mxu0 0
        %9273 = vmatpush1.bf16.msra.mxu0 %v9215
        %9274 = vmatprep.subr.bf16.mxu0 0
        %9275 = vmatpush1.bf16.msra.mxu0 %v9213
        %9276 = vmatprep.subr.bf16.mxu0 0
        %9277 = vmatpush1.bf16.msra.mxu0 %v9211
        %9278 = vmatprep.subr.bf16.mxu0 0
        %9279 = vmatpush1.bf16.msra.mxu0 %v9209
        %9280 = vmatprep.subr.bf16.mxu0 0
        %9281 = vmatpush2.bf16.msra.mxu0 0
        %9282 = vmatprep.subr.bf16.mxu0 0
        %9283 = vmatpush2.bf16.msra.mxu0 0
        %9284 = vmatprep.subr.bf16.mxu0 0
        %9285 = vmatpush2.bf16.msra.mxu0 0
        %9286 = vmatprep.subr.bf16.mxu0 0
        %9287 = vmatpush2.bf16.msra.mxu0 0
        %9288 = vmatprep.subr.bf16.mxu0 0
        %9289 = vmatpush2.bf16.msra.mxu0 0
        %9290 = vmatprep.subr.bf16.mxu0 0
        %9291 = vmatpush2.bf16.msra.mxu0 0
        %9292 = vmatprep.subr.bf16.mxu0 0
        %9293 = vmatpush2.bf16.msra.mxu0 0
        %9294 = vmatprep.subr.bf16.mxu0 0
        %9295 = vmatpush2.bf16.msra.mxu0 %v9262
        %9296 = vmatprep.mubr.bf16.mxu0 %v9235
        %9297 = vmatmul.mubr.bf16.gmra.mxu0 %v9190
        %v9298 = vpop.f32.mrf.mxu0
        %v9299 = vadd.f32 0.0, %v9298
        %v9300 = vpop.f32.mrf.mxu0
        %v9301 = vpop.f32.mrf.mxu0
        %v9302 = vadd.f32 0.0, %v9301
        %v9303 = vpop.f32.mrf.mxu0
        %9304 = vmatprep.mubr.bf16.mxu0 %v9238
        %9305 = vmatmul.mubr.bf16.gmra.mxu0 %v9192
        %v9306 = vpop.f32.mrf.mxu0
        %v9307 = vadd.f32 0.0, %v9306
        %v9308 = vpop.f32.mrf.mxu0
        %v9309 = vpop.f32.mrf.mxu0
        %v9310 = vadd.f32 0.0, %v9309
        %v9311 = vpop.f32.mrf.mxu0
        %9312 = vmatprep.mubr.bf16.mxu0 %v9241
        %9313 = vmatmul.mubr.bf16.gmra.mxu0 %v9194
        %v9314 = vpop.f32.mrf.mxu0
        %v9315 = vadd.f32 0.0, %v9314
        %v9316 = vpop.f32.mrf.mxu0
        %v9317 = vpop.f32.mrf.mxu0
        %v9318 = vadd.f32 0.0, %v9317
        %v9319 = vpop.f32.mrf.mxu0
        %9320 = vmatprep.mubr.bf16.mxu0 %v9244
        %9321 = vmatmul.mubr.bf16.gmra.mxu0 %v9196
        %v9322 = vpop.f32.mrf.mxu0
        %v9323 = vadd.f32 0.0, %v9322
        %v9324 = vpop.f32.mrf.mxu0
        %v9325 = vpop.f32.mrf.mxu0
        %v9326 = vadd.f32 0.0, %v9325
        %v9327 = vpop.f32.mrf.mxu0
        %9328 = vmatprep.mubr.bf16.mxu0 %v9247
        %9329 = vmatmul.mubr.bf16.gmra.mxu0 %v9198
        %v9330 = vpop.f32.mrf.mxu0
        %v9331 = vadd.f32 0.0, %v9330
        %v9332 = vpop.f32.mrf.mxu0
        %v9333 = vpop.f32.mrf.mxu0
        %v9334 = vadd.f32 0.0, %v9333
        %v9335 = vpop.f32.mrf.mxu0
        %9336 = vmatprep.mubr.bf16.mxu0 %v9250
        %9337 = vmatmul.mubr.bf16.gmra.mxu0 %v9200
        %v9338 = vpop.f32.mrf.mxu0
        %v9339 = vadd.f32 0.0, %v9338
        %v9340 = vpop.f32.mrf.mxu0
        %v9341 = vpop.f32.mrf.mxu0
        %v9342 = vadd.f32 0.0, %v9341
        %v9343 = vpop.f32.mrf.mxu0
        %9344 = vmatprep.mubr.bf16.mxu0 %v9253
        %9345 = vmatmul.mubr.bf16.gmra.mxu0 %v9202
        %v9346 = vpop.f32.mrf.mxu0
        %v9347 = vadd.f32 0.0, %v9346
        %v9348 = vpop.f32.mrf.mxu0
        %v9349 = vpop.f32.mrf.mxu0
        %v9350 = vadd.f32 0.0, %v9349
        %v9351 = vpop.f32.mrf.mxu0
        %9352 = vmatprep.mubr.bf16.mxu0 %v9256
        %9353 = vmatmul.mubr.bf16.gmra.mxu0 %v9204
        %v9354 = vpop.f32.mrf.mxu0
        %v9355 = vadd.f32 0.0, %v9354
        %v9356 = vpop.f32.mrf.mxu0
        %v9357 = vpop.f32.mrf.mxu0
        %v9358 = vadd.f32 0.0, %v9357
        %v9359 = vpop.f32.mrf.mxu0
        %9360 = vmatprep.mubr.bf16.mxu0 %v9259
        %9361 = vmatmul.mubr.bf16.gmra.mxu0 %v9206
        %v9362 = vpop.f32.mrf.mxu0
        %v9363 = vadd.f32 0.0, %v9362
        %v9364 = vpop.f32.mrf.mxu0
        %v9365 = vpop.f32.mrf.mxu0
        %v9366 = vadd.f32 0.0, %v9365
        %v9367 = vpop.f32.mrf.mxu0
        %9368 = vdwg.mxu0
        %v9369 = vrcp.pop %v9120
        %v9370 = vmul.f32 1.0, %v9369
        %v9371 = vrcp.pop %v9124
        %v9372 = vmul.f32 1.0, %v9371
        %v9373 = vrcp.pop %v9128
        %v9374 = vmul.f32 1.0, %v9373
        %v9375 = vrcp.pop %v9132
        %v9376 = vmul.f32 1.0, %v9375
        %v9377 = vrcp.pop %v9136
        %v9378 = vmul.f32 1.0, %v9377
        %v9379 = vrcp.pop %v9140
        %v9380 = vmul.f32 1.0, %v9379
        %v9381 = vrcp.pop %v9144
        %v9382 = vmul.f32 1.0, %v9381
        %v9383 = vrcp.pop %v9148
        %v9384 = vmul.f32 1.0, %v9383
        %v9385 = vrcp.pop %v9152
        %v9386 = vmul.f32 1.0, %v9385
        %v9387 = vrcp.pop %v9156
        %v9388 = vmul.f32 1.0, %v9387
        %v9389 = vrcp.pop %v9160
        %v9390 = vmul.f32 1.0, %v9389
        %v9391 = vrcp.pop %v9164
        %v9392 = vmul.f32 1.0, %v9391
        %v9393 = vrcp.pop %v9168
        %v9394 = vmul.f32 1.0, %v9393
        %v9395 = vrcp.pop %v9172
        %v9396 = vmul.f32 1.0, %v9395
        %v9397 = vrcp.pop %v9176
        %v9398 = vmul.f32 1.0, %v9397
        %v9399 = vrcp.pop %v9180
        %v9400 = vmul.f32 1.0, %v9399
        %v9401 = vrcp.pop %v9184
        %v9402 = vmul.f32 1.0, %v9401
        %v9403 = vrcp.pop %v9189
        %v9404 = vmul.f32 1.0, %v9403
        %v9405 = vmul.f32 %v9299, %v9370
        %v9406 = vmul.f32 %v9302, %v9372
        %v9407 = vmul.f32 %v9307, %v9374
        %v9408 = vmul.f32 %v9310, %v9376
        %v9409 = vmul.f32 %v9315, %v9378
        %v9410 = vmul.f32 %v9318, %v9380
        %v9411 = vmul.f32 %v9323, %v9382
        %v9412 = vmul.f32 %v9326, %v9384
        %v9413 = vmul.f32 %v9331, %v9386
        %v9414 = vmul.f32 %v9334, %v9388
        %v9415 = vmul.f32 %v9339, %v9390
        %v9416 = vmul.f32 %v9342, %v9392
        %v9417 = vmul.f32 %v9347, %v9394
        %v9418 = vmul.f32 %v9350, %v9396
        %v9419 = vmul.f32 %v9355, %v9398
        %v9420 = vmul.f32 %v9358, %v9400
        %v9421 = vmul.f32 %v9363, %v9402
        %v9422 = vmul.f32 %v9366, %v9404
        %9441 = vrot.lane.b32.xlu0 %v8005, 8
        %v9442 = vpop.permute.xlu0 %9441
        %9443 = vrot.lane.b32.xlu0 %v8006, 8
        %v9444 = vpop.permute.xlu0 %9443
        %9445 = vrot.lane.b32.xlu0 %v8007, 8
        %v9446 = vpop.permute.xlu0 %9445
        %9447 = vrot.lane.b32.xlu0 %v8008, 8
        %v9448 = vpop.permute.xlu0 %9447
        %9449 = vrot.lane.b32.xlu0 %v8009, 8
        %v9450 = vpop.permute.xlu0 %9449
        %9451 = vrot.lane.b32.xlu0 %v8010, 8
        %v9452 = vpop.permute.xlu0 %9451
        %9453 = vrot.lane.b32.xlu0 %v8011, 8
        %v9454 = vpop.permute.xlu0 %9453
        %9455 = vrot.lane.b32.xlu0 %v8012, 8
        %v9456 = vpop.permute.xlu0 %9455
        %9457 = vrot.lane.b32.xlu0 %v8013, 8
        %v9458 = vpop.permute.xlu0 %9457
        %9459 = vrot.lane.b32.xlu0 %v8014, 8
        %v9460 = vpop.permute.xlu0 %9459
        %9461 = vrot.lane.b32.xlu0 %v8015, 8
        %v9462 = vpop.permute.xlu0 %9461
        %9463 = vrot.lane.b32.xlu0 %v8016, 8
        %v9464 = vpop.permute.xlu0 %9463
        %9465 = vrot.lane.b32.xlu0 %v8017, 8
        %v9466 = vpop.permute.xlu0 %9465
        %9467 = vrot.lane.b32.xlu0 %v8018, 8
        %v9468 = vpop.permute.xlu0 %9467
        %9469 = vrot.lane.b32.xlu0 %v8019, 8
        %v9470 = vpop.permute.xlu0 %9469
        %9471 = vrot.lane.b32.xlu0 %v8020, 8
        %v9472 = vpop.permute.xlu0 %9471
        %9473 = vrot.lane.b32.xlu0 %v8021, 8
        %v9474 = vpop.permute.xlu0 %9473
        %9475 = vrot.lane.b32.xlu0 %v8022, 8
        %v9476 = vpop.permute.xlu0 %9475
        %9513 = vrot.lane.b32.xlu0 %v8705, 16
        %v9514 = vpop.permute.xlu0 %9513
        %9515 = vrot.lane.b32.xlu0 %v8706, 16
        %v9516 = vpop.permute.xlu0 %9515
        %9517 = vrot.lane.b32.xlu0 %v8707, 16
        %v9518 = vpop.permute.xlu0 %9517
        %9519 = vrot.lane.b32.xlu0 %v8708, 16
        %v9520 = vpop.permute.xlu0 %9519
        %9521 = vrot.lane.b32.xlu0 %v8709, 16
        %v9522 = vpop.permute.xlu0 %9521
        %9523 = vrot.lane.b32.xlu0 %v8710, 16
        %v9524 = vpop.permute.xlu0 %9523
        %9525 = vrot.lane.b32.xlu0 %v8711, 16
        %v9526 = vpop.permute.xlu0 %9525
        %9527 = vrot.lane.b32.xlu0 %v8712, 16
        %v9528 = vpop.permute.xlu0 %9527
        %9529 = vrot.lane.b32.xlu0 %v8713, 16
        %v9530 = vpop.permute.xlu0 %9529
        %9531 = vrot.lane.b32.xlu0 %v8714, 16
        %v9532 = vpop.permute.xlu0 %9531
        %9533 = vrot.lane.b32.xlu0 %v8715, 16
        %v9534 = vpop.permute.xlu0 %9533
        %9535 = vrot.lane.b32.xlu0 %v8716, 16
        %v9536 = vpop.permute.xlu0 %9535
        %9537 = vrot.lane.b32.xlu0 %v8717, 16
        %v9538 = vpop.permute.xlu0 %9537
        %9539 = vrot.lane.b32.xlu0 %v8718, 16
        %v9540 = vpop.permute.xlu0 %9539
        %9541 = vrot.lane.b32.xlu0 %v8719, 16
        %v9542 = vpop.permute.xlu0 %9541
        %9543 = vrot.lane.b32.xlu0 %v8720, 16
        %v9544 = vpop.permute.xlu0 %9543
        %9545 = vrot.lane.b32.xlu0 %v8721, 16
        %v9546 = vpop.permute.xlu0 %9545
        %9547 = vrot.lane.b32.xlu0 %v8722, 16
        %v9548 = vpop.permute.xlu0 %9547
        %9585 = vrot.lane.b32.xlu0 %v9405, 24
        %v9586 = vpop.permute.xlu0 %9585
        %9587 = vrot.lane.b32.xlu0 %v9406, 24
        %v9588 = vpop.permute.xlu0 %9587
        %9589 = vrot.lane.b32.xlu0 %v9407, 24
        %v9590 = vpop.permute.xlu0 %9589
        %9591 = vrot.lane.b32.xlu0 %v9408, 24
        %v9592 = vpop.permute.xlu0 %9591
        %9593 = vrot.lane.b32.xlu0 %v9409, 24
        %v9594 = vpop.permute.xlu0 %9593
        %9595 = vrot.lane.b32.xlu0 %v9410, 24
        %v9596 = vpop.permute.xlu0 %9595
        %9597 = vrot.lane.b32.xlu0 %v9411, 24
        %v9598 = vpop.permute.xlu0 %9597
        %9599 = vrot.lane.b32.xlu0 %v9412, 24
        %v9600 = vpop.permute.xlu0 %9599
        %9601 = vrot.lane.b32.xlu0 %v9413, 24
        %v9602 = vpop.permute.xlu0 %9601
        %9603 = vrot.lane.b32.xlu0 %v9414, 24
        %v9604 = vpop.permute.xlu0 %9603
        %9605 = vrot.lane.b32.xlu0 %v9415, 24
        %v9606 = vpop.permute.xlu0 %9605
        %9607 = vrot.lane.b32.xlu0 %v9416, 24
        %v9608 = vpop.permute.xlu0 %9607
        %9609 = vrot.lane.b32.xlu0 %v9417, 24
        %v9610 = vpop.permute.xlu0 %9609
        %9611 = vrot.lane.b32.xlu0 %v9418, 24
        %v9612 = vpop.permute.xlu0 %9611
        %9613 = vrot.lane.b32.xlu0 %v9419, 24
        %v9614 = vpop.permute.xlu0 %9613
        %9615 = vrot.lane.b32.xlu0 %v9420, 24
        %v9616 = vpop.permute.xlu0 %9615
        %9617 = vrot.lane.b32.xlu0 %v9421, 24
        %v9618 = vpop.permute.xlu0 %9617
        %9619 = vrot.lane.b32.xlu0 %v9422, 24
        %v9620 = vpop.permute.xlu0 %9619
        %v9639 = vsel %vm973, %v7305, %v9442
        %v9640 = vsel %vm973, %v7306, %v9444
        %v9641 = vsel %vm973, %v7307, %v9446
        %v9642 = vsel %vm973, %v7308, %v9448
        %v9643 = vsel %vm973, %v7309, %v9450
        %v9644 = vsel %vm973, %v7310, %v9452
        %v9645 = vsel %vm973, %v7311, %v9454
        %v9646 = vsel %vm973, %v7312, %v9456
        %v9647 = vsel %vm973, %v7313, %v9458
        %v9648 = vsel %vm973, %v7314, %v9460
        %v9649 = vsel %vm973, %v7315, %v9462
        %v9650 = vsel %vm973, %v7316, %v9464
        %v9651 = vsel %vm973, %v7317, %v9466
        %v9652 = vsel %vm973, %v7318, %v9468
        %v9653 = vsel %vm973, %v7319, %v9470
        %v9654 = vsel %vm973, %v7320, %v9472
        %v9655 = vsel %vm973, %v7321, %v9474
        %v9656 = vsel %vm973, %v7322, %v9476
        %v9657 = vsel %vm5287, %v9639, %v9514
        %v9658 = vsel %vm5287, %v9640, %v9516
        %v9659 = vsel %vm5287, %v9641, %v9518
        %v9660 = vsel %vm5287, %v9642, %v9520
        %v9661 = vsel %vm5287, %v9643, %v9522
        %v9662 = vsel %vm5287, %v9644, %v9524
        %v9663 = vsel %vm5287, %v9645, %v9526
        %v9664 = vsel %vm5287, %v9646, %v9528
        %v9665 = vsel %vm5287, %v9647, %v9530
        %v9666 = vsel %vm5287, %v9648, %v9532
        %v9667 = vsel %vm5287, %v9649, %v9534
        %v9668 = vsel %vm5287, %v9650, %v9536
        %v9669 = vsel %vm5287, %v9651, %v9538
        %v9670 = vsel %vm5287, %v9652, %v9540
        %v9671 = vsel %vm5287, %v9653, %v9542
        %v9672 = vsel %vm5287, %v9654, %v9544
        %v9673 = vsel %vm5287, %v9655, %v9546
        %v9674 = vsel %vm5287, %v9656, %v9548
        %v9675 = vsel %vm5306, %v9657, %v9586
        %v9676 = vsel %vm5306, %v9658, %v9588
        %v9677 = vsel %vm5306, %v9659, %v9590
        %v9678 = vsel %vm5306, %v9660, %v9592
        %v9679 = vsel %vm5306, %v9661, %v9594
        %v9680 = vsel %vm5306, %v9662, %v9596
        %v9681 = vsel %vm5306, %v9663, %v9598
        %v9682 = vsel %vm5306, %v9664, %v9600
        %v9683 = vsel %vm5306, %v9665, %v9602
        %v9684 = vsel %vm5306, %v9666, %v9604
        %v9685 = vsel %vm5306, %v9667, %v9606
        %v9686 = vsel %vm5306, %v9668, %v9608
        %v9687 = vsel %vm5306, %v9669, %v9610
        %v9688 = vsel %vm5306, %v9670, %v9612
        %v9689 = vsel %vm5306, %v9671, %v9614
        %v9690 = vsel %vm5306, %v9672, %v9616
        %v9691 = vsel %vm5306, %v9673, %v9618
        %v9692 = vsel %vm5306, %v9674, %v9620
        %v9693 = vpack.c.bf16 %v9676, %v9675
        %v9694 = vpack.c.bf16 %v9678, %v9677
        %v9695 = vpack.c.bf16 %v9680, %v9679
        %v9696 = vpack.c.bf16 %v9682, %v9681
        %v9697 = vpack.c.bf16 %v9684, %v9683
        %v9698 = vpack.c.bf16 %v9686, %v9685
        %v9699 = vpack.c.bf16 %v9688, %v9687
        %v9700 = vpack.c.bf16 %v9690, %v9689
        %v9701 = vpack.c.bf16 %v9692, %v9691
        %s9702 = scalar_lea.vmem %s10, 16
        %v9703 = vld [vmem:[%s9702] sm:$0xf]
        %v9704 = vld [vmem:[%s9702 + $0x4] sm:$0xf]
        %v9705 = vld [vmem:[%s9702 + $0x8] sm:$0xf]
        %v9706 = vld [vmem:[%s9702 + $0xc] sm:$0xf]
        %s9707 = scalar_lea.vmem %s11, 1
        %v9708 = vld [vmem:[%s9707] sm:$0x1]
        %v9710 = vlaneseq
        %v9711 = vshrl.u32 %v9710, 7
        %v9712 = vsub.s32 0, %v9711
        %v9713 = vrot.slane %v9708, %v9712
        %v9719 = vunpack.c.l.b16 %v9703
        %v9720 = vunpack.c.l.b16 %v9704
        %v9721 = vunpack.c.l.b16 %v9705
        %v9722 = vunpack.c.l.b16 %v9706
        %v9723 = vpack.c.b16 %v9720, %v9719
        %v9724 = vpack.c.b16 %v9722, %v9721
        %v9728 = vsel %vm1365, %v9693, 0
        %v9731 = vsel %vm1365, %v9694, 0
        %v9734 = vsel %vm1365, %v9695, 0
        %v9737 = vsel %vm1365, %v9696, 0
        %v9740 = vsel %vm1365, %v9697, 0
        %v9743 = vsel %vm1365, %v9698, 0
        %v9746 = vsel %vm1365, %v9699, 0
        %v9749 = vsel %vm1365, %v9700, 0
        %v9752 = vsel %vm1365, %v9701, 0
        %9754 = vmatprep.subr.bf16.mxu0 0
        %9755 = vmatpush1.bf16.msra.mxu0 0
        %9756 = vmatprep.subr.bf16.mxu0 0
        %9757 = vmatpush1.bf16.msra.mxu0 0
        %9758 = vmatprep.subr.bf16.mxu0 0
        %9759 = vmatpush1.bf16.msra.mxu0 0
        %9760 = vmatprep.subr.bf16.mxu0 0
        %9761 = vmatpush1.bf16.msra.mxu0 0
        %9762 = vmatprep.subr.bf16.mxu0 0
        %9763 = vmatpush1.bf16.msra.mxu0 0
        %9764 = vmatprep.subr.bf16.mxu0 0
        %9765 = vmatpush1.bf16.msra.mxu0 0
        %9766 = vmatprep.subr.bf16.mxu0 0
        %9767 = vmatpush1.bf16.msra.mxu0 %v9724
        %9768 = vmatprep.subr.bf16.mxu0 0
        %9769 = vmatpush1.bf16.msra.mxu0 %v9723
        %9770 = vmatprep.subr.bf16.mxu0 0
        %9771 = vmatpush2.bf16.msra.mxu0 0
        %9772 = vmatprep.subr.bf16.mxu0 0
        %9773 = vmatpush2.bf16.msra.mxu0 0
        %9774 = vmatprep.subr.bf16.mxu0 0
        %9775 = vmatpush2.bf16.msra.mxu0 0
        %9776 = vmatprep.subr.bf16.mxu0 0
        %9777 = vmatpush2.bf16.msra.mxu0 0
        %9778 = vmatprep.subr.bf16.mxu0 0
        %9779 = vmatpush2.bf16.msra.mxu0 0
        %9780 = vmatprep.subr.bf16.mxu0 0
        %9781 = vmatpush2.bf16.msra.mxu0 0
        %9782 = vmatprep.subr.bf16.mxu0 0
        %9783 = vmatpush2.bf16.msra.mxu0 0
        %9784 = vmatprep.subr.bf16.mxu0 0
        %9785 = vmatpush2.bf16.msra.mxu0 0
        %9786 = vmatprep.mubr.bf16.mxu0 0
        %9787 = vmatmul.mubr.bf16.gmra.mxu0 %v9728
        %v9788 = vpop.f32.mrf.mxu0
        %v9789 = vadd.f32 %v9713, %v9788
        %v9790 = vpop.f32.mrf.mxu0
        %v9791 = vpop.f32.mrf.mxu0
        %v9792 = vadd.f32 %v9713, %v9791
        %v9793 = vpop.f32.mrf.mxu0
        %9794 = vmatprep.mubr.bf16.mxu0 0
        %9795 = vmatmul.mubr.bf16.gmra.mxu0 %v9731
        %v9796 = vpop.f32.mrf.mxu0
        %v9797 = vadd.f32 %v9713, %v9796
        %v9798 = vpop.f32.mrf.mxu0
        %v9799 = vpop.f32.mrf.mxu0
        %v9800 = vadd.f32 %v9713, %v9799
        %v9801 = vpop.f32.mrf.mxu0
        %9802 = vmatprep.mubr.bf16.mxu0 0
        %9803 = vmatmul.mubr.bf16.gmra.mxu0 %v9734
        %v9804 = vpop.f32.mrf.mxu0
        %v9805 = vadd.f32 %v9713, %v9804
        %v9806 = vpop.f32.mrf.mxu0
        %v9807 = vpop.f32.mrf.mxu0
        %v9808 = vadd.f32 %v9713, %v9807
        %v9809 = vpop.f32.mrf.mxu0
        %9810 = vmatprep.mubr.bf16.mxu0 0
        %9811 = vmatmul.mubr.bf16.gmra.mxu0 %v9737
        %v9812 = vpop.f32.mrf.mxu0
        %v9813 = vadd.f32 %v9713, %v9812
        %v9814 = vpop.f32.mrf.mxu0
        %v9815 = vpop.f32.mrf.mxu0
        %v9816 = vadd.f32 %v9713, %v9815
        %v9817 = vpop.f32.mrf.mxu0
        %9818 = vmatprep.mubr.bf16.mxu0 0
        %9819 = vmatmul.mubr.bf16.gmra.mxu0 %v9740
        %v9820 = vpop.f32.mrf.mxu0
        %v9821 = vadd.f32 %v9713, %v9820
        %v9822 = vpop.f32.mrf.mxu0
        %v9823 = vpop.f32.mrf.mxu0
        %v9824 = vadd.f32 %v9713, %v9823
        %v9825 = vpop.f32.mrf.mxu0
        %9826 = vmatprep.mubr.bf16.mxu0 0
        %9827 = vmatmul.mubr.bf16.gmra.mxu0 %v9743
        %v9828 = vpop.f32.mrf.mxu0
        %v9829 = vadd.f32 %v9713, %v9828
        %v9830 = vpop.f32.mrf.mxu0
        %v9831 = vpop.f32.mrf.mxu0
        %v9832 = vadd.f32 %v9713, %v9831
        %v9833 = vpop.f32.mrf.mxu0
        %9834 = vmatprep.mubr.bf16.mxu0 0
        %9835 = vmatmul.mubr.bf16.gmra.mxu0 %v9746
        %v9836 = vpop.f32.mrf.mxu0
        %v9837 = vadd.f32 %v9713, %v9836
        %v9838 = vpop.f32.mrf.mxu0
        %v9839 = vpop.f32.mrf.mxu0
        %v9840 = vadd.f32 %v9713, %v9839
        %v9841 = vpop.f32.mrf.mxu0
        %9842 = vmatprep.mubr.bf16.mxu0 0
        %9843 = vmatmul.mubr.bf16.gmra.mxu0 %v9749
        %v9844 = vpop.f32.mrf.mxu0
        %v9845 = vadd.f32 %v9713, %v9844
        %v9846 = vpop.f32.mrf.mxu0
        %v9847 = vpop.f32.mrf.mxu0
        %v9848 = vadd.f32 %v9713, %v9847
        %v9849 = vpop.f32.mrf.mxu0
        %9850 = vmatprep.mubr.bf16.mxu0 0
        %9851 = vmatmul.mubr.bf16.gmra.mxu0 %v9752
        %v9852 = vpop.f32.mrf.mxu0
        %v9853 = vadd.f32 %v9713, %v9852
        %v9854 = vpop.f32.mrf.mxu0
        %v9855 = vpop.f32.mrf.mxu0
        %v9856 = vadd.f32 %v9713, %v9855
        %v9857 = vpop.f32.mrf.mxu0
        %9858 = vdwg.mxu0
        %v9859 = vadd.f32 %v9789, %v6439
        %v9860 = vadd.f32 %v9792, %v6440
        %v9861 = vadd.f32 %v9797, %v6441
        %v9862 = vadd.f32 %v9800, %v6442
        %v9863 = vadd.f32 %v9805, %v6443
        %v9864 = vadd.f32 %v9808, %v6444
        %v9865 = vadd.f32 %v9813, %v6445
        %v9866 = vadd.f32 %v9816, %v6446
        %v9867 = vadd.f32 %v9821, %v6447
        %v9868 = vadd.f32 %v9824, %v6448
        %v9869 = vadd.f32 %v9829, %v6449
        %v9870 = vadd.f32 %v9832, %v6450
        %v9871 = vadd.f32 %v9837, %v6451
        %v9872 = vadd.f32 %v9840, %v6452
        %v9873 = vadd.f32 %v9845, %v6453
        %v9874 = vadd.f32 %v9848, %v6454
        %v9875 = vadd.f32 %v9853, %v6455
        %v9876 = vadd.f32 %v9856, %v6456
        %s9877 = scalar_lea.vmem %s12, 1
        %v9878 = vld [vmem:[%s9877] sm:$0x1]
        %s9879 = scalar_lea.vmem %s13, 1
        %v9880 = vld [vmem:[%s9879] sm:$0x1]
        %v9881 = vsel %vm1365, %v9859, 0.0
        %9882 = vadd.xlane.f32.xlu0 %v9881
        %v9883 = vpop.xlane.xlu0 %9882
        %v9884 = vsel %vm1365, %v9860, 0.0
        %9885 = vadd.xlane.f32.xlu0 %v9884
        %v9886 = vpop.xlane.xlu0 %9885
        %v9887 = vsel %vm1365, %v9861, 0.0
        %9888 = vadd.xlane.f32.xlu0 %v9887
        %v9889 = vpop.xlane.xlu0 %9888
        %v9890 = vsel %vm1365, %v9862, 0.0
        %9891 = vadd.xlane.f32.xlu0 %v9890
        %v9892 = vpop.xlane.xlu0 %9891
        %v9893 = vsel %vm1365, %v9863, 0.0
        %9894 = vadd.xlane.f32.xlu0 %v9893
        %v9895 = vpop.xlane.xlu0 %9894
        %v9896 = vsel %vm1365, %v9864, 0.0
        %9897 = vadd.xlane.f32.xlu0 %v9896
        %v9898 = vpop.xlane.xlu0 %9897
        %v9899 = vsel %vm1365, %v9865, 0.0
        %9900 = vadd.xlane.f32.xlu0 %v9899
        %v9901 = vpop.xlane.xlu0 %9900
        %v9902 = vsel %vm1365, %v9866, 0.0
        %9903 = vadd.xlane.f32.xlu0 %v9902
        %v9904 = vpop.xlane.xlu0 %9903
        %v9905 = vsel %vm1365, %v9867, 0.0
        %9906 = vadd.xlane.f32.xlu0 %v9905
        %v9907 = vpop.xlane.xlu0 %9906
        %v9908 = vsel %vm1365, %v9868, 0.0
        %9909 = vadd.xlane.f32.xlu0 %v9908
        %v9910 = vpop.xlane.xlu0 %9909
        %v9911 = vsel %vm1365, %v9869, 0.0
        %9912 = vadd.xlane.f32.xlu0 %v9911
        %v9913 = vpop.xlane.xlu0 %9912
        %v9914 = vsel %vm1365, %v9870, 0.0
        %9915 = vadd.xlane.f32.xlu0 %v9914
        %v9916 = vpop.xlane.xlu0 %9915
        %v9917 = vsel %vm1365, %v9871, 0.0
        %9918 = vadd.xlane.f32.xlu0 %v9917
        %v9919 = vpop.xlane.xlu0 %9918
        %v9920 = vsel %vm1365, %v9872, 0.0
        %9921 = vadd.xlane.f32.xlu0 %v9920
        %v9922 = vpop.xlane.xlu0 %9921
        %v9923 = vsel %vm1365, %v9873, 0.0
        %9924 = vadd.xlane.f32.xlu0 %v9923
        %v9925 = vpop.xlane.xlu0 %9924
        %v9926 = vsel %vm1365, %v9874, 0.0
        %9927 = vadd.xlane.f32.xlu0 %v9926
        %v9928 = vpop.xlane.xlu0 %9927
        %v9929 = vsel %vm1365, %v9875, 0.0
        %9930 = vadd.xlane.f32.xlu0 %v9929
        %v9931 = vpop.xlane.xlu0 %9930
        %v9932 = vsel %vm5560, %v9876, 0.0
        %9933 = vadd.xlane.f32.xlu0 %v9932
        %v9934 = vpop.xlane.xlu0 %9933
        %v9935 = vmul.f32 %v9883, %v5564
        %v9936 = vmul.f32 %v9886, %v5564
        %v9937 = vmul.f32 %v9889, %v5564
        %v9938 = vmul.f32 %v9892, %v5564
        %v9939 = vmul.f32 %v9895, %v5564
        %v9940 = vmul.f32 %v9898, %v5564
        %v9941 = vmul.f32 %v9901, %v5564
        %v9942 = vmul.f32 %v9904, %v5564
        %v9943 = vmul.f32 %v9907, %v5564
        %v9944 = vmul.f32 %v9910, %v5564
        %v9945 = vmul.f32 %v9913, %v5564
        %v9946 = vmul.f32 %v9916, %v5564
        %v9947 = vmul.f32 %v9919, %v5564
        %v9948 = vmul.f32 %v9922, %v5564
        %v9949 = vmul.f32 %v9925, %v5564
        %v9950 = vmul.f32 %v9928, %v5564
        %v9951 = vmul.f32 %v9931, %v5564
        %v9952 = vmul.f32 %v9934, %v5564
        %v9953 = vsub.f32 %v9859, %v9935
        %v9954 = vsub.f32 %v9860, %v9936
        %v9955 = vsub.f32 %v9861, %v9937
        %v9956 = vsub.f32 %v9862, %v9938
        %v9957 = vsub.f32 %v9863, %v9939
        %v9958 = vsub.f32 %v9864, %v9940
        %v9959 = vsub.f32 %v9865, %v9941
        %v9960 = vsub.f32 %v9866, %v9942
        %v9961 = vsub.f32 %v9867, %v9943
        %v9962 = vsub.f32 %v9868, %v9944
        %v9963 = vsub.f32 %v9869, %v9945
        %v9964 = vsub.f32 %v9870, %v9946
        %v9965 = vsub.f32 %v9871, %v9947
        %v9966 = vsub.f32 %v9872, %v9948
        %v9967 = vsub.f32 %v9873, %v9949
        %v9968 = vsub.f32 %v9874, %v9950
        %v9969 = vsub.f32 %v9875, %v9951
        %v9970 = vsub.f32 %v9876, %v9952
        %v9971 = vmul.f32 %v9953, %v9953
        %v9972 = vmul.f32 %v9954, %v9954
        %v9973 = vmul.f32 %v9955, %v9955
        %v9974 = vmul.f32 %v9956, %v9956
        %v9975 = vmul.f32 %v9957, %v9957
        %v9976 = vmul.f32 %v9958, %v9958
        %v9977 = vmul.f32 %v9959, %v9959
        %v9978 = vmul.f32 %v9960, %v9960
        %v9979 = vmul.f32 %v9961, %v9961
        %v9980 = vmul.f32 %v9962, %v9962
        %v9981 = vmul.f32 %v9963, %v9963
        %v9982 = vmul.f32 %v9964, %v9964
        %v9983 = vmul.f32 %v9965, %v9965
        %v9984 = vmul.f32 %v9966, %v9966
        %v9985 = vmul.f32 %v9967, %v9967
        %v9986 = vmul.f32 %v9968, %v9968
        %v9987 = vmul.f32 %v9969, %v9969
        %v9988 = vmul.f32 %v9970, %v9970
        %v9989 = vsel %vm1365, %v9971, 0.0
        %9990 = vadd.xlane.f32.xlu0 %v9989
        %v9991 = vpop.xlane.xlu0 %9990
        %v9992 = vsel %vm1365, %v9972, 0.0
        %9993 = vadd.xlane.f32.xlu0 %v9992
        %v9994 = vpop.xlane.xlu0 %9993
        %v9995 = vsel %vm1365, %v9973, 0.0
        %9996 = vadd.xlane.f32.xlu0 %v9995
        %v9997 = vpop.xlane.xlu0 %9996
        %v9998 = vsel %vm1365, %v9974, 0.0
        %9999 = vadd.xlane.f32.xlu0 %v9998
        %v10000 = vpop.xlane.xlu0 %9999
        %v10001 = vsel %vm1365, %v9975, 0.0
        %10002 = vadd.xlane.f32.xlu0 %v10001
        %v10003 = vpop.xlane.xlu0 %10002
        %v10004 = vsel %vm1365, %v9976, 0.0
        %10005 = vadd.xlane.f32.xlu0 %v10004
        %v10006 = vpop.xlane.xlu0 %10005
        %v10007 = vsel %vm1365, %v9977, 0.0
        %10008 = vadd.xlane.f32.xlu0 %v10007
        %v10009 = vpop.xlane.xlu0 %10008
        %v10010 = vsel %vm1365, %v9978, 0.0
        %10011 = vadd.xlane.f32.xlu0 %v10010
        %v10012 = vpop.xlane.xlu0 %10011
        %v10013 = vsel %vm1365, %v9979, 0.0
        %10014 = vadd.xlane.f32.xlu0 %v10013
        %v10015 = vpop.xlane.xlu0 %10014
        %v10016 = vsel %vm1365, %v9980, 0.0
        %10017 = vadd.xlane.f32.xlu0 %v10016
        %v10018 = vpop.xlane.xlu0 %10017
        %v10019 = vsel %vm1365, %v9981, 0.0
        %10020 = vadd.xlane.f32.xlu0 %v10019
        %v10021 = vpop.xlane.xlu0 %10020
        %v10022 = vsel %vm1365, %v9982, 0.0
        %10023 = vadd.xlane.f32.xlu0 %v10022
        %v10024 = vpop.xlane.xlu0 %10023
        %v10025 = vsel %vm1365, %v9983, 0.0
        %10026 = vadd.xlane.f32.xlu0 %v10025
        %v10027 = vpop.xlane.xlu0 %10026
        %v10028 = vsel %vm1365, %v9984, 0.0
        %10029 = vadd.xlane.f32.xlu0 %v10028
        %v10030 = vpop.xlane.xlu0 %10029
        %v10031 = vsel %vm1365, %v9985, 0.0
        %10032 = vadd.xlane.f32.xlu0 %v10031
        %v10033 = vpop.xlane.xlu0 %10032
        %v10034 = vsel %vm1365, %v9986, 0.0
        %10035 = vadd.xlane.f32.xlu0 %v10034
        %v10036 = vpop.xlane.xlu0 %10035
        %v10037 = vsel %vm1365, %v9987, 0.0
        %10038 = vadd.xlane.f32.xlu0 %v10037
        %v10039 = vpop.xlane.xlu0 %10038
        %v10040 = vsel %vm5560, %v9988, 0.0
        %10041 = vadd.xlane.f32.xlu0 %v10040
        %v10042 = vpop.xlane.xlu0 %10041
        %v10043 = vmul.f32 %v9991, %v5564
        %v10044 = vmul.f32 %v9994, %v5564
        %v10045 = vmul.f32 %v9997, %v5564
        %v10046 = vmul.f32 %v10000, %v5564
        %v10047 = vmul.f32 %v10003, %v5564
        %v10048 = vmul.f32 %v10006, %v5564
        %v10049 = vmul.f32 %v10009, %v5564
        %v10050 = vmul.f32 %v10012, %v5564
        %v10051 = vmul.f32 %v10015, %v5564
        %v10052 = vmul.f32 %v10018, %v5564
        %v10053 = vmul.f32 %v10021, %v5564
        %v10054 = vmul.f32 %v10024, %v5564
        %v10055 = vmul.f32 %v10027, %v5564
        %v10056 = vmul.f32 %v10030, %v5564
        %v10057 = vmul.f32 %v10033, %v5564
        %v10058 = vmul.f32 %v10036, %v5564
        %v10059 = vmul.f32 %v10039, %v5564
        %v10060 = vmul.f32 %v10042, %v5564
        %v10061 = vadd.f32 %v10043, 1e-05
        %v10062 = vadd.f32 %v10044, 1e-05
        %v10063 = vadd.f32 %v10045, 1e-05
        %v10064 = vadd.f32 %v10046, 1e-05
        %v10065 = vadd.f32 %v10047, 1e-05
        %v10066 = vadd.f32 %v10048, 1e-05
        %v10067 = vadd.f32 %v10049, 1e-05
        %v10068 = vadd.f32 %v10050, 1e-05
        %v10069 = vadd.f32 %v10051, 1e-05
        %v10070 = vadd.f32 %v10052, 1e-05
        %v10071 = vadd.f32 %v10053, 1e-05
        %v10072 = vadd.f32 %v10054, 1e-05
        %v10073 = vadd.f32 %v10055, 1e-05
        %v10074 = vadd.f32 %v10056, 1e-05
        %v10075 = vadd.f32 %v10057, 1e-05
        %v10076 = vadd.f32 %v10058, 1e-05
        %v10077 = vadd.f32 %v10059, 1e-05
        %v10078 = vadd.f32 %v10060, 1e-05
        %v10079 = vrsqrt.pop %v10061
        %v10080 = vrsqrt.pop %v10062
        %v10081 = vrsqrt.pop %v10063
        %v10082 = vrsqrt.pop %v10064
        %v10083 = vrsqrt.pop %v10065
        %v10084 = vrsqrt.pop %v10066
        %v10085 = vrsqrt.pop %v10067
        %v10086 = vrsqrt.pop %v10068
        %v10087 = vrsqrt.pop %v10069
        %v10088 = vrsqrt.pop %v10070
        %v10089 = vrsqrt.pop %v10071
        %v10090 = vrsqrt.pop %v10072
        %v10091 = vrsqrt.pop %v10073
        %v10092 = vrsqrt.pop %v10074
        %v10093 = vrsqrt.pop %v10075
        %v10094 = vrsqrt.pop %v10076
        %v10095 = vrsqrt.pop %v10077
        %v10096 = vrsqrt.pop %v10078
        %v10097 = vmul.f32 %v9953, %v10079
        %v10098 = vmul.f32 %v9954, %v10080
        %v10099 = vmul.f32 %v9955, %v10081
        %v10100 = vmul.f32 %v9956, %v10082
        %v10101 = vmul.f32 %v9957, %v10083
        %v10102 = vmul.f32 %v9958, %v10084
        %v10103 = vmul.f32 %v9959, %v10085
        %v10104 = vmul.f32 %v9960, %v10086
        %v10105 = vmul.f32 %v9961, %v10087
        %v10106 = vmul.f32 %v9962, %v10088
        %v10107 = vmul.f32 %v9963, %v10089
        %v10108 = vmul.f32 %v9964, %v10090
        %v10109 = vmul.f32 %v9965, %v10091
        %v10110 = vmul.f32 %v9966, %v10092
        %v10111 = vmul.f32 %v9967, %v10093
        %v10112 = vmul.f32 %v9968, %v10094
        %v10113 = vmul.f32 %v9969, %v10095
        %v10114 = vmul.f32 %v9970, %v10096
        %v10116 = vlaneseq
        %v10117 = vshrl.u32 %v10116, 7
        %v10118 = vsub.s32 0, %v10117
        %v10119 = vrot.slane %v9878, %v10118
        %v10121 = vmul.f32 %v10097, %v10119
        %v10122 = vmul.f32 %v10098, %v10119
        %v10123 = vmul.f32 %v10099, %v10119
        %v10124 = vmul.f32 %v10100, %v10119
        %v10125 = vmul.f32 %v10101, %v10119
        %v10126 = vmul.f32 %v10102, %v10119
        %v10127 = vmul.f32 %v10103, %v10119
        %v10128 = vmul.f32 %v10104, %v10119
        %v10129 = vmul.f32 %v10105, %v10119
        %v10130 = vmul.f32 %v10106, %v10119
        %v10131 = vmul.f32 %v10107, %v10119
        %v10132 = vmul.f32 %v10108, %v10119
        %v10133 = vmul.f32 %v10109, %v10119
        %v10134 = vmul.f32 %v10110, %v10119
        %v10135 = vmul.f32 %v10111, %v10119
        %v10136 = vmul.f32 %v10112, %v10119
        %v10137 = vmul.f32 %v10113, %v10119
        %v10138 = vmul.f32 %v10114, %v10119
        %v10140 = vlaneseq
        %v10141 = vshrl.u32 %v10140, 7
        %v10142 = vsub.s32 0, %v10141
        %v10143 = vrot.slane %v9880, %v10142
        %v10145 = vadd.f32 %v10121, %v10143
        %v10146 = vadd.f32 %v10122, %v10143
        %v10147 = vadd.f32 %v10123, %v10143
        %v10148 = vadd.f32 %v10124, %v10143
        %v10149 = vadd.f32 %v10125, %v10143
        %v10150 = vadd.f32 %v10126, %v10143
        %v10151 = vadd.f32 %v10127, %v10143
        %v10152 = vadd.f32 %v10128, %v10143
        %v10153 = vadd.f32 %v10129, %v10143
        %v10154 = vadd.f32 %v10130, %v10143
        %v10155 = vadd.f32 %v10131, %v10143
        %v10156 = vadd.f32 %v10132, %v10143
        %v10157 = vadd.f32 %v10133, %v10143
        %v10158 = vadd.f32 %v10134, %v10143
        %v10159 = vadd.f32 %v10135, %v10143
        %v10160 = vadd.f32 %v10136, %v10143
        %v10161 = vadd.f32 %v10137, %v10143
        %v10162 = vadd.f32 %v10138, %v10143
        %v10163 = vpack.c.bf16 %v10146, %v10145
        %v10164 = vpack.c.bf16 %v10148, %v10147
        %v10165 = vpack.c.bf16 %v10150, %v10149
        %v10166 = vpack.c.bf16 %v10152, %v10151
        %v10167 = vpack.c.bf16 %v10154, %v10153
        %v10168 = vpack.c.bf16 %v10156, %v10155
        %v10169 = vpack.c.bf16 %v10158, %v10157
        %v10170 = vpack.c.bf16 %v10160, %v10159
        %v10171 = vpack.c.bf16 %v10162, %v10161
        %s10172 = scalar_lea.vmem %s14, 16
        %v10173 = vld [vmem:[%s10172] sm:$0xf]
        %v10174 = vld [vmem:[%s10172 + $0x4] sm:$0xf]
        %v10175 = vld [vmem:[%s10172 + $0x8] sm:$0xf]
        %v10176 = vld [vmem:[%s10172 + $0xc] sm:$0xf]
        %s10177 = scalar_lea.vmem %s15, 1
        %v10178 = vld [vmem:[%s10177] sm:$0x1]
        %v10180 = vlaneseq
        %v10181 = vshrl.u32 %v10180, 7
        %v10182 = vsub.s32 0, %v10181
        %v10183 = vrot.slane %v10178, %v10182
        %v10189 = vunpack.c.l.b16 %v10173
        %v10190 = vunpack.c.l.b16 %v10174
        %v10191 = vunpack.c.l.b16 %v10175
        %v10192 = vunpack.c.l.b16 %v10176
        %v10193 = vpack.c.b16 %v10190, %v10189
        %v10194 = vpack.c.b16 %v10192, %v10191
        %v10198 = vsel %vm1365, %v10163, 0
        %v10201 = vsel %vm1365, %v10164, 0
        %v10204 = vsel %vm1365, %v10165, 0
        %v10207 = vsel %vm1365, %v10166, 0
        %v10210 = vsel %vm1365, %v10167, 0
        %v10213 = vsel %vm1365, %v10168, 0
        %v10216 = vsel %vm1365, %v10169, 0
        %v10219 = vsel %vm1365, %v10170, 0
        %v10222 = vsel %vm1365, %v10171, 0
        %10224 = vmatprep.subr.bf16.mxu0 0
        %10225 = vmatpush1.bf16.msra.mxu0 0
        %10226 = vmatprep.subr.bf16.mxu0 0
        %10227 = vmatpush1.bf16.msra.mxu0 0
        %10228 = vmatprep.subr.bf16.mxu0 0
        %10229 = vmatpush1.bf16.msra.mxu0 0
        %10230 = vmatprep.subr.bf16.mxu0 0
        %10231 = vmatpush1.bf16.msra.mxu0 0
        %10232 = vmatprep.subr.bf16.mxu0 0
        %10233 = vmatpush1.bf16.msra.mxu0 0
        %10234 = vmatprep.subr.bf16.mxu0 0
        %10235 = vmatpush1.bf16.msra.mxu0 0
        %10236 = vmatprep.subr.bf16.mxu0 0
        %10237 = vmatpush1.bf16.msra.mxu0 %v10194
        %10238 = vmatprep.subr.bf16.mxu0 0
        %10239 = vmatpush1.bf16.msra.mxu0 %v10193
        %10240 = vmatprep.subr.bf16.mxu0 0
        %10241 = vmatpush2.bf16.msra.mxu0 0
        %10242 = vmatprep.subr.bf16.mxu0 0
        %10243 = vmatpush2.bf16.msra.mxu0 0
        %10244 = vmatprep.subr.bf16.mxu0 0
        %10245 = vmatpush2.bf16.msra.mxu0 0
        %10246 = vmatprep.subr.bf16.mxu0 0
        %10247 = vmatpush2.bf16.msra.mxu0 0
        %10248 = vmatprep.subr.bf16.mxu0 0
        %10249 = vmatpush2.bf16.msra.mxu0 0
        %10250 = vmatprep.subr.bf16.mxu0 0
        %10251 = vmatpush2.bf16.msra.mxu0 0
        %10252 = vmatprep.subr.bf16.mxu0 0
        %10253 = vmatpush2.bf16.msra.mxu0 0
        %10254 = vmatprep.subr.bf16.mxu0 0
        %10255 = vmatpush2.bf16.msra.mxu0 0
        %10256 = vmatprep.mubr.bf16.mxu0 0
        %10257 = vmatmul.mubr.bf16.gmra.mxu0 %v10198
        %v10258 = vpop.f32.mrf.mxu0
        %v10259 = vadd.f32 %v10183, %v10258
        %v10260 = vpop.f32.mrf.mxu0
        %v10261 = vpop.f32.mrf.mxu0
        %v10262 = vadd.f32 %v10183, %v10261
        %v10263 = vpop.f32.mrf.mxu0
        %10264 = vmatprep.mubr.bf16.mxu0 0
        %10265 = vmatmul.mubr.bf16.gmra.mxu0 %v10201
        %v10266 = vpop.f32.mrf.mxu0
        %v10267 = vadd.f32 %v10183, %v10266
        %v10268 = vpop.f32.mrf.mxu0
        %v10269 = vpop.f32.mrf.mxu0
        %v10270 = vadd.f32 %v10183, %v10269
        %v10271 = vpop.f32.mrf.mxu0
        %10272 = vmatprep.mubr.bf16.mxu0 0
        %10273 = vmatmul.mubr.bf16.gmra.mxu0 %v10204
        %v10274 = vpop.f32.mrf.mxu0
        %v10275 = vadd.f32 %v10183, %v10274
        %v10276 = vpop.f32.mrf.mxu0
        %v10277 = vpop.f32.mrf.mxu0
        %v10278 = vadd.f32 %v10183, %v10277
        %v10279 = vpop.f32.mrf.mxu0
        %10280 = vmatprep.mubr.bf16.mxu0 0
        %10281 = vmatmul.mubr.bf16.gmra.mxu0 %v10207
        %v10282 = vpop.f32.mrf.mxu0
        %v10283 = vadd.f32 %v10183, %v10282
        %v10284 = vpop.f32.mrf.mxu0
        %v10285 = vpop.f32.mrf.mxu0
        %v10286 = vadd.f32 %v10183, %v10285
        %v10287 = vpop.f32.mrf.mxu0
        %10288 = vmatprep.mubr.bf16.mxu0 0
        %10289 = vmatmul.mubr.bf16.gmra.mxu0 %v10210
        %v10290 = vpop.f32.mrf.mxu0
        %v10291 = vadd.f32 %v10183, %v10290
        %v10292 = vpop.f32.mrf.mxu0
        %v10293 = vpop.f32.mrf.mxu0
        %v10294 = vadd.f32 %v10183, %v10293
        %v10295 = vpop.f32.mrf.mxu0
        %10296 = vmatprep.mubr.bf16.mxu0 0
        %10297 = vmatmul.mubr.bf16.gmra.mxu0 %v10213
        %v10298 = vpop.f32.mrf.mxu0
        %v10299 = vadd.f32 %v10183, %v10298
        %v10300 = vpop.f32.mrf.mxu0
        %v10301 = vpop.f32.mrf.mxu0
        %v10302 = vadd.f32 %v10183, %v10301
        %v10303 = vpop.f32.mrf.mxu0
        %10304 = vmatprep.mubr.bf16.mxu0 0
        %10305 = vmatmul.mubr.bf16.gmra.mxu0 %v10216
        %v10306 = vpop.f32.mrf.mxu0
        %v10307 = vadd.f32 %v10183, %v10306
        %v10308 = vpop.f32.mrf.mxu0
        %v10309 = vpop.f32.mrf.mxu0
        %v10310 = vadd.f32 %v10183, %v10309
        %v10311 = vpop.f32.mrf.mxu0
        %10312 = vmatprep.mubr.bf16.mxu0 0
        %10313 = vmatmul.mubr.bf16.gmra.mxu0 %v10219
        %v10314 = vpop.f32.mrf.mxu0
        %v10315 = vadd.f32 %v10183, %v10314
        %v10316 = vpop.f32.mrf.mxu0
        %v10317 = vpop.f32.mrf.mxu0
        %v10318 = vadd.f32 %v10183, %v10317
        %v10319 = vpop.f32.mrf.mxu0
        %10320 = vmatprep.mubr.bf16.mxu0 0
        %10321 = vmatmul.mubr.bf16.gmra.mxu0 %v10222
        %v10322 = vpop.f32.mrf.mxu0
        %v10323 = vadd.f32 %v10183, %v10322
        %v10324 = vpop.f32.mrf.mxu0
        %v10325 = vpop.f32.mrf.mxu0
        %v10326 = vadd.f32 %v10183, %v10325
        %v10327 = vpop.f32.mrf.mxu0
        %10328 = vdwg.mxu0
        %v10329 = vmax.f32 %v10259, 0.0
        %v10330 = vmax.f32 %v10262, 0.0
        %v10331 = vmax.f32 %v10267, 0.0
        %v10332 = vmax.f32 %v10270, 0.0
        %v10333 = vmax.f32 %v10275, 0.0
        %v10334 = vmax.f32 %v10278, 0.0
        %v10335 = vmax.f32 %v10283, 0.0
        %v10336 = vmax.f32 %v10286, 0.0
        %v10337 = vmax.f32 %v10291, 0.0
        %v10338 = vmax.f32 %v10294, 0.0
        %v10339 = vmax.f32 %v10299, 0.0
        %v10340 = vmax.f32 %v10302, 0.0
        %v10341 = vmax.f32 %v10307, 0.0
        %v10342 = vmax.f32 %v10310, 0.0
        %v10343 = vmax.f32 %v10315, 0.0
        %v10344 = vmax.f32 %v10318, 0.0
        %v10345 = vmax.f32 %v10323, 0.0
        %v10346 = vmax.f32 %v10326, 0.0
        %v10347 = vpack.c.bf16 %v10330, %v10329
        %v10348 = vpack.c.bf16 %v10332, %v10331
        %v10349 = vpack.c.bf16 %v10334, %v10333
        %v10350 = vpack.c.bf16 %v10336, %v10335
        %v10351 = vpack.c.bf16 %v10338, %v10337
        %v10352 = vpack.c.bf16 %v10340, %v10339
        %v10353 = vpack.c.bf16 %v10342, %v10341
        %v10354 = vpack.c.bf16 %v10344, %v10343
        %v10355 = vpack.c.bf16 %v10346, %v10345
        %s10356 = scalar_lea.vmem %s16, 32
        %v10357 = vld [vmem:[%s10356] sm:$0xf]
        %v10358 = vld [vmem:[%s10356 + $0x4] sm:$0xf]
        %v10359 = vld [vmem:[%s10356 + $0x8] sm:$0xf]
        %v10360 = vld [vmem:[%s10356 + $0xc] sm:$0xf]
        %v10361 = vld [vmem:[%s10356 + $0x10] sm:$0xf]
        %v10362 = vld [vmem:[%s10356 + $0x14] sm:$0xf]
        %v10363 = vld [vmem:[%s10356 + $0x18] sm:$0xf]
        %v10364 = vld [vmem:[%s10356 + $0x1c] sm:$0xf]
        %s10365 = scalar_lea.vmem %s17, 1
        %v10366 = vld [vmem:[%s10365] sm:$0x1]
        %v10368 = vlaneseq
        %v10369 = vshrl.u32 %v10368, 7
        %v10370 = vsub.s32 0, %v10369
        %v10371 = vrot.slane %v10366, %v10370
        %v10381 = vunpack.c.l.b16 %v10357
        %v10382 = vunpack.c.l.b16 %v10358
        %v10383 = vunpack.c.l.b16 %v10359
        %v10384 = vunpack.c.l.b16 %v10360
        %v10385 = vunpack.c.l.b16 %v10361
        %v10386 = vunpack.c.l.b16 %v10362
        %v10387 = vunpack.c.l.b16 %v10363
        %v10388 = vunpack.c.l.b16 %v10364
        %v10389 = vpack.c.b16 %v10382, %v10381
        %v10390 = vpack.c.b16 %v10384, %v10383
        %v10391 = vpack.c.b16 %v10386, %v10385
        %v10392 = vpack.c.b16 %v10388, %v10387
        %v10398 = vsel %vm1384, %v10347, 0
        %v10401 = vsel %vm1384, %v10348, 0
        %v10404 = vsel %vm1384, %v10349, 0
        %v10407 = vsel %vm1384, %v10350, 0
        %v10410 = vsel %vm1384, %v10351, 0
        %v10413 = vsel %vm1384, %v10352, 0
        %v10416 = vsel %vm1384, %v10353, 0
        %v10419 = vsel %vm1384, %v10354, 0
        %v10422 = vsel %vm1384, %v10355, 0
        %10424 = vmatprep.subr.bf16.mxu0 0
        %10425 = vmatpush1.bf16.msra.mxu0 0
        %10426 = vmatprep.subr.bf16.mxu0 0
        %10427 = vmatpush1.bf16.msra.mxu0 0
        %10428 = vmatprep.subr.bf16.mxu0 0
        %10429 = vmatpush1.bf16.msra.mxu0 0
        %10430 = vmatprep.subr.bf16.mxu0 0
        %10431 = vmatpush1.bf16.msra.mxu0 0
        %10432 = vmatprep.subr.bf16.mxu0 0
        %10433 = vmatpush1.bf16.msra.mxu0 %v10392
        %10434 = vmatprep.subr.bf16.mxu0 0
        %10435 = vmatpush1.bf16.msra.mxu0 %v10391
        %10436 = vmatprep.subr.bf16.mxu0 0
        %10437 = vmatpush1.bf16.msra.mxu0 %v10390
        %10438 = vmatprep.subr.bf16.mxu0 0
        %10439 = vmatpush1.bf16.msra.mxu0 %v10389
        %10440 = vmatprep.subr.bf16.mxu0 0
        %10441 = vmatpush2.bf16.msra.mxu0 0
        %10442 = vmatprep.subr.bf16.mxu0 0
        %10443 = vmatpush2.bf16.msra.mxu0 0
        %10444 = vmatprep.subr.bf16.mxu0 0
        %10445 = vmatpush2.bf16.msra.mxu0 0
        %10446 = vmatprep.subr.bf16.mxu0 0
        %10447 = vmatpush2.bf16.msra.mxu0 0
        %10448 = vmatprep.subr.bf16.mxu0 0
        %10449 = vmatpush2.bf16.msra.mxu0 0
        %10450 = vmatprep.subr.bf16.mxu0 0
        %10451 = vmatpush2.bf16.msra.mxu0 0
        %10452 = vmatprep.subr.bf16.mxu0 0
        %10453 = vmatpush2.bf16.msra.mxu0 0
        %10454 = vmatprep.subr.bf16.mxu0 0
        %10455 = vmatpush2.bf16.msra.mxu0 0
        %10456 = vmatprep.mubr.bf16.mxu0 0
        %10457 = vmatmul.mubr.bf16.gmra.mxu0 %v10398
        %v10458 = vpop.f32.mrf.mxu0
        %v10459 = vadd.f32 %v10371, %v10458
        %v10460 = vpop.f32.mrf.mxu0
        %v10461 = vpop.f32.mrf.mxu0
        %v10462 = vadd.f32 %v10371, %v10461
        %v10463 = vpop.f32.mrf.mxu0
        %10464 = vmatprep.mubr.bf16.mxu0 0
        %10465 = vmatmul.mubr.bf16.gmra.mxu0 %v10401
        %v10466 = vpop.f32.mrf.mxu0
        %v10467 = vadd.f32 %v10371, %v10466
        %v10468 = vpop.f32.mrf.mxu0
        %v10469 = vpop.f32.mrf.mxu0
        %v10470 = vadd.f32 %v10371, %v10469
        %v10471 = vpop.f32.mrf.mxu0
        %10472 = vmatprep.mubr.bf16.mxu0 0
        %10473 = vmatmul.mubr.bf16.gmra.mxu0 %v10404
        %v10474 = vpop.f32.mrf.mxu0
        %v10475 = vadd.f32 %v10371, %v10474
        %v10476 = vpop.f32.mrf.mxu0
        %v10477 = vpop.f32.mrf.mxu0
        %v10478 = vadd.f32 %v10371, %v10477
        %v10479 = vpop.f32.mrf.mxu0
        %10480 = vmatprep.mubr.bf16.mxu0 0
        %10481 = vmatmul.mubr.bf16.gmra.mxu0 %v10407
        %v10482 = vpop.f32.mrf.mxu0
        %v10483 = vadd.f32 %v10371, %v10482
        %v10484 = vpop.f32.mrf.mxu0
        %v10485 = vpop.f32.mrf.mxu0
        %v10486 = vadd.f32 %v10371, %v10485
        %v10487 = vpop.f32.mrf.mxu0
        %10488 = vmatprep.mubr.bf16.mxu0 0
        %10489 = vmatmul.mubr.bf16.gmra.mxu0 %v10410
        %v10490 = vpop.f32.mrf.mxu0
        %v10491 = vadd.f32 %v10371, %v10490
        %v10492 = vpop.f32.mrf.mxu0
        %v10493 = vpop.f32.mrf.mxu0
        %v10494 = vadd.f32 %v10371, %v10493
        %v10495 = vpop.f32.mrf.mxu0
        %10496 = vmatprep.mubr.bf16.mxu0 0
        %10497 = vmatmul.mubr.bf16.gmra.mxu0 %v10413
        %v10498 = vpop.f32.mrf.mxu0
        %v10499 = vadd.f32 %v10371, %v10498
        %v10500 = vpop.f32.mrf.mxu0
        %v10501 = vpop.f32.mrf.mxu0
        %v10502 = vadd.f32 %v10371, %v10501
        %v10503 = vpop.f32.mrf.mxu0
        %10504 = vmatprep.mubr.bf16.mxu0 0
        %10505 = vmatmul.mubr.bf16.gmra.mxu0 %v10416
        %v10506 = vpop.f32.mrf.mxu0
        %v10507 = vadd.f32 %v10371, %v10506
        %v10508 = vpop.f32.mrf.mxu0
        %v10509 = vpop.f32.mrf.mxu0
        %v10510 = vadd.f32 %v10371, %v10509
        %v10511 = vpop.f32.mrf.mxu0
        %10512 = vmatprep.mubr.bf16.mxu0 0
        %10513 = vmatmul.mubr.bf16.gmra.mxu0 %v10419
        %v10514 = vpop.f32.mrf.mxu0
        %v10515 = vadd.f32 %v10371, %v10514
        %v10516 = vpop.f32.mrf.mxu0
        %v10517 = vpop.f32.mrf.mxu0
        %v10518 = vadd.f32 %v10371, %v10517
        %v10519 = vpop.f32.mrf.mxu0
        %10520 = vmatprep.mubr.bf16.mxu0 0
        %10521 = vmatmul.mubr.bf16.gmra.mxu0 %v10422
        %v10522 = vpop.f32.mrf.mxu0
        %v10523 = vadd.f32 %v10371, %v10522
        %v10524 = vpop.f32.mrf.mxu0
        %v10525 = vpop.f32.mrf.mxu0
        %v10526 = vadd.f32 %v10371, %v10525
        %v10527 = vpop.f32.mrf.mxu0
        %10528 = vdwg.mxu0
        %v10529 = vadd.f32 %v10459, %v10145
        %v10530 = vadd.f32 %v10462, %v10146
        %v10531 = vadd.f32 %v10467, %v10147
        %v10532 = vadd.f32 %v10470, %v10148
        %v10533 = vadd.f32 %v10475, %v10149
        %v10534 = vadd.f32 %v10478, %v10150
        %v10535 = vadd.f32 %v10483, %v10151
        %v10536 = vadd.f32 %v10486, %v10152
        %v10537 = vadd.f32 %v10491, %v10153
        %v10538 = vadd.f32 %v10494, %v10154
        %v10539 = vadd.f32 %v10499, %v10155
        %v10540 = vadd.f32 %v10502, %v10156
        %v10541 = vadd.f32 %v10507, %v10157
        %v10542 = vadd.f32 %v10510, %v10158
        %v10543 = vadd.f32 %v10515, %v10159
        %v10544 = vadd.f32 %v10518, %v10160
        %v10545 = vadd.f32 %v10523, %v10161
        %v10546 = vadd.f32 %v10526, %v10162
        %s10547 = scalar_lea.vmem %s18, 1
        %v10548 = vld [vmem:[%s10547] sm:$0x1]
        %s10549 = scalar_lea.vmem %s19, 1
        %v10550 = vld [vmem:[%s10549] sm:$0x1]
        %v10551 = vsel %vm1365, %v10529, 0.0
        %10552 = vadd.xlane.f32.xlu0 %v10551
        %v10553 = vpop.xlane.xlu0 %10552
        %v10554 = vsel %vm1365, %v10530, 0.0
        %10555 = vadd.xlane.f32.xlu0 %v10554
        %v10556 = vpop.xlane.xlu0 %10555
        %v10557 = vsel %vm1365, %v10531, 0.0
        %10558 = vadd.xlane.f32.xlu0 %v10557
        %v10559 = vpop.xlane.xlu0 %10558
        %v10560 = vsel %vm1365, %v10532, 0.0
        %10561 = vadd.xlane.f32.xlu0 %v10560
        %v10562 = vpop.xlane.xlu0 %10561
        %v10563 = vsel %vm1365, %v10533, 0.0
        %10564 = vadd.xlane.f32.xlu0 %v10563
        %v10565 = vpop.xlane.xlu0 %10564
        %v10566 = vsel %vm1365, %v10534, 0.0
        %10567 = vadd.xlane.f32.xlu0 %v10566
        %v10568 = vpop.xlane.xlu0 %10567
        %v10569 = vsel %vm1365, %v10535, 0.0
        %10570 = vadd.xlane.f32.xlu0 %v10569
        %v10571 = vpop.xlane.xlu0 %10570
        %v10572 = vsel %vm1365, %v10536, 0.0
        %10573 = vadd.xlane.f32.xlu0 %v10572
        %v10574 = vpop.xlane.xlu0 %10573
        %v10575 = vsel %vm1365, %v10537, 0.0
        %10576 = vadd.xlane.f32.xlu0 %v10575
        %v10577 = vpop.xlane.xlu0 %10576
        %v10578 = vsel %vm1365, %v10538, 0.0
        %10579 = vadd.xlane.f32.xlu0 %v10578
        %v10580 = vpop.xlane.xlu0 %10579
        %v10581 = vsel %vm1365, %v10539, 0.0
        %10582 = vadd.xlane.f32.xlu0 %v10581
        %v10583 = vpop.xlane.xlu0 %10582
        %v10584 = vsel %vm1365, %v10540, 0.0
        %10585 = vadd.xlane.f32.xlu0 %v10584
        %v10586 = vpop.xlane.xlu0 %10585
        %v10587 = vsel %vm1365, %v10541, 0.0
        %10588 = vadd.xlane.f32.xlu0 %v10587
        %v10589 = vpop.xlane.xlu0 %10588
        %v10590 = vsel %vm1365, %v10542, 0.0
        %10591 = vadd.xlane.f32.xlu0 %v10590
        %v10592 = vpop.xlane.xlu0 %10591
        %v10593 = vsel %vm1365, %v10543, 0.0
        %10594 = vadd.xlane.f32.xlu0 %v10593
        %v10595 = vpop.xlane.xlu0 %10594
        %v10596 = vsel %vm1365, %v10544, 0.0
        %10597 = vadd.xlane.f32.xlu0 %v10596
        %v10598 = vpop.xlane.xlu0 %10597
        %v10599 = vsel %vm1365, %v10545, 0.0
        %10600 = vadd.xlane.f32.xlu0 %v10599
        %v10601 = vpop.xlane.xlu0 %10600
        %v10602 = vsel %vm5560, %v10546, 0.0
        %10603 = vadd.xlane.f32.xlu0 %v10602
        %v10604 = vpop.xlane.xlu0 %10603
        %v10605 = vmul.f32 %v10553, %v5564
        %v10606 = vmul.f32 %v10556, %v5564
        %v10607 = vmul.f32 %v10559, %v5564
        %v10608 = vmul.f32 %v10562, %v5564
        %v10609 = vmul.f32 %v10565, %v5564
        %v10610 = vmul.f32 %v10568, %v5564
        %v10611 = vmul.f32 %v10571, %v5564
        %v10612 = vmul.f32 %v10574, %v5564
        %v10613 = vmul.f32 %v10577, %v5564
        %v10614 = vmul.f32 %v10580, %v5564
        %v10615 = vmul.f32 %v10583, %v5564
        %v10616 = vmul.f32 %v10586, %v5564
        %v10617 = vmul.f32 %v10589, %v5564
        %v10618 = vmul.f32 %v10592, %v5564
        %v10619 = vmul.f32 %v10595, %v5564
        %v10620 = vmul.f32 %v10598, %v5564
        %v10621 = vmul.f32 %v10601, %v5564
        %v10622 = vmul.f32 %v10604, %v5564
        %v10623 = vsub.f32 %v10529, %v10605
        %v10624 = vsub.f32 %v10530, %v10606
        %v10625 = vsub.f32 %v10531, %v10607
        %v10626 = vsub.f32 %v10532, %v10608
        %v10627 = vsub.f32 %v10533, %v10609
        %v10628 = vsub.f32 %v10534, %v10610
        %v10629 = vsub.f32 %v10535, %v10611
        %v10630 = vsub.f32 %v10536, %v10612
        %v10631 = vsub.f32 %v10537, %v10613
        %v10632 = vsub.f32 %v10538, %v10614
        %v10633 = vsub.f32 %v10539, %v10615
        %v10634 = vsub.f32 %v10540, %v10616
        %v10635 = vsub.f32 %v10541, %v10617
        %v10636 = vsub.f32 %v10542, %v10618
        %v10637 = vsub.f32 %v10543, %v10619
        %v10638 = vsub.f32 %v10544, %v10620
        %v10639 = vsub.f32 %v10545, %v10621
        %v10640 = vsub.f32 %v10546, %v10622
        %v10641 = vmul.f32 %v10623, %v10623
        %v10642 = vmul.f32 %v10624, %v10624
        %v10643 = vmul.f32 %v10625, %v10625
        %v10644 = vmul.f32 %v10626, %v10626
        %v10645 = vmul.f32 %v10627, %v10627
        %v10646 = vmul.f32 %v10628, %v10628
        %v10647 = vmul.f32 %v10629, %v10629
        %v10648 = vmul.f32 %v10630, %v10630
        %v10649 = vmul.f32 %v10631, %v10631
        %v10650 = vmul.f32 %v10632, %v10632
        %v10651 = vmul.f32 %v10633, %v10633
        %v10652 = vmul.f32 %v10634, %v10634
        %v10653 = vmul.f32 %v10635, %v10635
        %v10654 = vmul.f32 %v10636, %v10636
        %v10655 = vmul.f32 %v10637, %v10637
        %v10656 = vmul.f32 %v10638, %v10638
        %v10657 = vmul.f32 %v10639, %v10639
        %v10658 = vmul.f32 %v10640, %v10640
        %v10659 = vsel %vm1365, %v10641, 0.0
        %10660 = vadd.xlane.f32.xlu0 %v10659
        %v10661 = vpop.xlane.xlu0 %10660
        %v10662 = vsel %vm1365, %v10642, 0.0
        %10663 = vadd.xlane.f32.xlu0 %v10662
        %v10664 = vpop.xlane.xlu0 %10663
        %v10665 = vsel %vm1365, %v10643, 0.0
        %10666 = vadd.xlane.f32.xlu0 %v10665
        %v10667 = vpop.xlane.xlu0 %10666
        %v10668 = vsel %vm1365, %v10644, 0.0
        %10669 = vadd.xlane.f32.xlu0 %v10668
        %v10670 = vpop.xlane.xlu0 %10669
        %v10671 = vsel %vm1365, %v10645, 0.0
        %10672 = vadd.xlane.f32.xlu0 %v10671
        %v10673 = vpop.xlane.xlu0 %10672
        %v10674 = vsel %vm1365, %v10646, 0.0
        %10675 = vadd.xlane.f32.xlu0 %v10674
        %v10676 = vpop.xlane.xlu0 %10675
        %v10677 = vsel %vm1365, %v10647, 0.0
        %10678 = vadd.xlane.f32.xlu0 %v10677
        %v10679 = vpop.xlane.xlu0 %10678
        %v10680 = vsel %vm1365, %v10648, 0.0
        %10681 = vadd.xlane.f32.xlu0 %v10680
        %v10682 = vpop.xlane.xlu0 %10681
        %v10683 = vsel %vm1365, %v10649, 0.0
        %10684 = vadd.xlane.f32.xlu0 %v10683
        %v10685 = vpop.xlane.xlu0 %10684
        %v10686 = vsel %vm1365, %v10650, 0.0
        %10687 = vadd.xlane.f32.xlu0 %v10686
        %v10688 = vpop.xlane.xlu0 %10687
        %v10689 = vsel %vm1365, %v10651, 0.0
        %10690 = vadd.xlane.f32.xlu0 %v10689
        %v10691 = vpop.xlane.xlu0 %10690
        %v10692 = vsel %vm1365, %v10652, 0.0
        %10693 = vadd.xlane.f32.xlu0 %v10692
        %v10694 = vpop.xlane.xlu0 %10693
        %v10695 = vsel %vm1365, %v10653, 0.0
        %10696 = vadd.xlane.f32.xlu0 %v10695
        %v10697 = vpop.xlane.xlu0 %10696
        %v10698 = vsel %vm1365, %v10654, 0.0
        %10699 = vadd.xlane.f32.xlu0 %v10698
        %v10700 = vpop.xlane.xlu0 %10699
        %v10701 = vsel %vm1365, %v10655, 0.0
        %10702 = vadd.xlane.f32.xlu0 %v10701
        %v10703 = vpop.xlane.xlu0 %10702
        %v10704 = vsel %vm1365, %v10656, 0.0
        %10705 = vadd.xlane.f32.xlu0 %v10704
        %v10706 = vpop.xlane.xlu0 %10705
        %v10707 = vsel %vm1365, %v10657, 0.0
        %10708 = vadd.xlane.f32.xlu0 %v10707
        %v10709 = vpop.xlane.xlu0 %10708
        %v10710 = vsel %vm5560, %v10658, 0.0
        %10711 = vadd.xlane.f32.xlu0 %v10710
        %v10712 = vpop.xlane.xlu0 %10711
        %v10713 = vmul.f32 %v10661, %v5564
        %v10714 = vmul.f32 %v10664, %v5564
        %v10715 = vmul.f32 %v10667, %v5564
        %v10716 = vmul.f32 %v10670, %v5564
        %v10717 = vmul.f32 %v10673, %v5564
        %v10718 = vmul.f32 %v10676, %v5564
        %v10719 = vmul.f32 %v10679, %v5564
        %v10720 = vmul.f32 %v10682, %v5564
        %v10721 = vmul.f32 %v10685, %v5564
        %v10722 = vmul.f32 %v10688, %v5564
        %v10723 = vmul.f32 %v10691, %v5564
        %v10724 = vmul.f32 %v10694, %v5564
        %v10725 = vmul.f32 %v10697, %v5564
        %v10726 = vmul.f32 %v10700, %v5564
        %v10727 = vmul.f32 %v10703, %v5564
        %v10728 = vmul.f32 %v10706, %v5564
        %v10729 = vmul.f32 %v10709, %v5564
        %v10730 = vmul.f32 %v10712, %v5564
        %v10731 = vadd.f32 %v10713, 1e-05
        %v10732 = vadd.f32 %v10714, 1e-05
        %v10733 = vadd.f32 %v10715, 1e-05
        %v10734 = vadd.f32 %v10716, 1e-05
        %v10735 = vadd.f32 %v10717, 1e-05
        %v10736 = vadd.f32 %v10718, 1e-05
        %v10737 = vadd.f32 %v10719, 1e-05
        %v10738 = vadd.f32 %v10720, 1e-05
        %v10739 = vadd.f32 %v10721, 1e-05
        %v10740 = vadd.f32 %v10722, 1e-05
        %v10741 = vadd.f32 %v10723, 1e-05
        %v10742 = vadd.f32 %v10724, 1e-05
        %v10743 = vadd.f32 %v10725, 1e-05
        %v10744 = vadd.f32 %v10726, 1e-05
        %v10745 = vadd.f32 %v10727, 1e-05
        %v10746 = vadd.f32 %v10728, 1e-05
        %v10747 = vadd.f32 %v10729, 1e-05
        %v10748 = vadd.f32 %v10730, 1e-05
        %v10749 = vrsqrt.pop %v10731
        %v10750 = vrsqrt.pop %v10732
        %v10751 = vrsqrt.pop %v10733
        %v10752 = vrsqrt.pop %v10734
        %v10753 = vrsqrt.pop %v10735
        %v10754 = vrsqrt.pop %v10736
        %v10755 = vrsqrt.pop %v10737
        %v10756 = vrsqrt.pop %v10738
        %v10757 = vrsqrt.pop %v10739
        %v10758 = vrsqrt.pop %v10740
        %v10759 = vrsqrt.pop %v10741
        %v10760 = vrsqrt.pop %v10742
        %v10761 = vrsqrt.pop %v10743
        %v10762 = vrsqrt.pop %v10744
        %v10763 = vrsqrt.pop %v10745
        %v10764 = vrsqrt.pop %v10746
        %v10765 = vrsqrt.pop %v10747
        %v10766 = vrsqrt.pop %v10748
        %v10767 = vmul.f32 %v10623, %v10749
        %v10768 = vmul.f32 %v10624, %v10750
        %v10769 = vmul.f32 %v10625, %v10751
        %v10770 = vmul.f32 %v10626, %v10752
        %v10771 = vmul.f32 %v10627, %v10753
        %v10772 = vmul.f32 %v10628, %v10754
        %v10773 = vmul.f32 %v10629, %v10755
        %v10774 = vmul.f32 %v10630, %v10756
        %v10775 = vmul.f32 %v10631, %v10757
        %v10776 = vmul.f32 %v10632, %v10758
        %v10777 = vmul.f32 %v10633, %v10759
        %v10778 = vmul.f32 %v10634, %v10760
        %v10779 = vmul.f32 %v10635, %v10761
        %v10780 = vmul.f32 %v10636, %v10762
        %v10781 = vmul.f32 %v10637, %v10763
        %v10782 = vmul.f32 %v10638, %v10764
        %v10783 = vmul.f32 %v10639, %v10765
        %v10784 = vmul.f32 %v10640, %v10766
        %v10786 = vlaneseq
        %v10787 = vshrl.u32 %v10786, 7
        %v10788 = vsub.s32 0, %v10787
        %v10789 = vrot.slane %v10548, %v10788
        %v10791 = vmul.f32 %v10767, %v10789
        %v10792 = vmul.f32 %v10768, %v10789
        %v10793 = vmul.f32 %v10769, %v10789
        %v10794 = vmul.f32 %v10770, %v10789
        %v10795 = vmul.f32 %v10771, %v10789
        %v10796 = vmul.f32 %v10772, %v10789
        %v10797 = vmul.f32 %v10773, %v10789
        %v10798 = vmul.f32 %v10774, %v10789
        %v10799 = vmul.f32 %v10775, %v10789
        %v10800 = vmul.f32 %v10776, %v10789
        %v10801 = vmul.f32 %v10777, %v10789
        %v10802 = vmul.f32 %v10778, %v10789
        %v10803 = vmul.f32 %v10779, %v10789
        %v10804 = vmul.f32 %v10780, %v10789
        %v10805 = vmul.f32 %v10781, %v10789
        %v10806 = vmul.f32 %v10782, %v10789
        %v10807 = vmul.f32 %v10783, %v10789
        %v10808 = vmul.f32 %v10784, %v10789
        %v10810 = vlaneseq
        %v10811 = vshrl.u32 %v10810, 7
        %v10812 = vsub.s32 0, %v10811
        %v10813 = vrot.slane %v10550, %v10812
        %v10815 = vadd.f32 %v10791, %v10813
        %v10816 = vadd.f32 %v10792, %v10813
        %v10817 = vadd.f32 %v10793, %v10813
        %v10818 = vadd.f32 %v10794, %v10813
        %v10819 = vadd.f32 %v10795, %v10813
        %v10820 = vadd.f32 %v10796, %v10813
        %v10821 = vadd.f32 %v10797, %v10813
        %v10822 = vadd.f32 %v10798, %v10813
        %v10823 = vadd.f32 %v10799, %v10813
        %v10824 = vadd.f32 %v10800, %v10813
        %v10825 = vadd.f32 %v10801, %v10813
        %v10826 = vadd.f32 %v10802, %v10813
        %v10827 = vadd.f32 %v10803, %v10813
        %v10828 = vadd.f32 %v10804, %v10813
        %v10829 = vadd.f32 %v10805, %v10813
        %v10830 = vadd.f32 %v10806, %v10813
        %v10831 = vadd.f32 %v10807, %v10813
        %v10832 = vadd.f32 %v10808, %v10813
        %v10833 = vpack.c.bf16 %v10816, %v10815
        %v10834 = vpack.c.bf16 %v10818, %v10817
        %v10835 = vpack.c.bf16 %v10820, %v10819
        %v10836 = vpack.c.bf16 %v10822, %v10821
        %v10837 = vpack.c.bf16 %v10824, %v10823
        %v10838 = vpack.c.bf16 %v10826, %v10825
        %v10839 = vpack.c.bf16 %v10828, %v10827
        %v10840 = vpack.c.bf16 %v10830, %v10829
        %v10841 = vpack.c.bf16 %v10832, %v10831
        %v10842 = vld [vmem:[%s20] sm:$0xf]
        %v10843 = vld [vmem:[%s20 + $0x4] sm:$0xf]
        %v10844 = vld [vmem:[%s20 + $0x8] sm:$0xf]
        %v10845 = vld [vmem:[%s20 + $0xc] sm:$0xf]
        %v10846 = vld [vmem:[#allocation2] sm:$0x1]
        %v10848 = vlaneseq
        %v10849 = vshrl.u32 %v10848, 7
        %v10850 = vsub.s32 0, %v10849
        %v10851 = vrot.slane %v10846, %v10850
        %v10857 = vunpack.c.l.b16 %v10842
        %v10858 = vunpack.c.l.b16 %v10843
        %v10859 = vunpack.c.l.b16 %v10844
        %v10860 = vunpack.c.l.b16 %v10845
        %v10861 = vpack.c.b16 %v10858, %v10857
        %v10862 = vpack.c.b16 %v10860, %v10859
        %v10866 = vsel %vm1365, %v10833, 0
        %v10869 = vsel %vm1365, %v10834, 0
        %v10872 = vsel %vm1365, %v10835, 0
        %v10875 = vsel %vm1365, %v10836, 0
        %v10878 = vsel %vm1365, %v10837, 0
        %v10881 = vsel %vm1365, %v10838, 0
        %v10884 = vsel %vm1365, %v10839, 0
        %v10887 = vsel %vm1365, %v10840, 0
        %v10890 = vsel %vm1365, %v10841, 0
        %10892 = vmatprep.subr.bf16.mxu0 0
        %10893 = vmatpush1.bf16.msra.mxu0 0
        %10894 = vmatprep.subr.bf16.mxu0 0
        %10895 = vmatpush1.bf16.msra.mxu0 0
        %10896 = vmatprep.subr.bf16.mxu0 0
        %10897 = vmatpush1.bf16.msra.mxu0 0
        %10898 = vmatprep.subr.bf16.mxu0 0
        %10899 = vmatpush1.bf16.msra.mxu0 0
        %10900 = vmatprep.subr.bf16.mxu0 0
        %10901 = vmatpush1.bf16.msra.mxu0 0
        %10902 = vmatprep.subr.bf16.mxu0 0
        %10903 = vmatpush1.bf16.msra.mxu0 0
        %10904 = vmatprep.subr.bf16.mxu0 0
        %10905 = vmatpush1.bf16.msra.mxu0 %v10862
        %10906 = vmatprep.subr.bf16.mxu0 0
        %10907 = vmatpush1.bf16.msra.mxu0 %v10861
        %10908 = vmatprep.subr.bf16.mxu0 0
        %10909 = vmatpush2.bf16.msra.mxu0 0
        %10910 = vmatprep.subr.bf16.mxu0 0
        %10911 = vmatpush2.bf16.msra.mxu0 0
        %10912 = vmatprep.subr.bf16.mxu0 0
        %10913 = vmatpush2.bf16.msra.mxu0 0
        %10914 = vmatprep.subr.bf16.mxu0 0
        %10915 = vmatpush2.bf16.msra.mxu0 0
        %10916 = vmatprep.subr.bf16.mxu0 0
        %10917 = vmatpush2.bf16.msra.mxu0 0
        %10918 = vmatprep.subr.bf16.mxu0 0
        %10919 = vmatpush2.bf16.msra.mxu0 0
        %10920 = vmatprep.subr.bf16.mxu0 0
        %10921 = vmatpush2.bf16.msra.mxu0 0
        %10922 = vmatprep.subr.bf16.mxu0 0
        %10923 = vmatpush2.bf16.msra.mxu0 0
        %10924 = vmatprep.mubr.bf16.mxu0 0
        %10925 = vmatmul.mubr.bf16.gmra.mxu0 %v10866
        %v10926 = vpop.f32.mrf.mxu0
        %v10927 = vadd.f32 %v10851, %v10926
        %v10928 = vpop.f32.mrf.mxu0
        %v10929 = vpop.f32.mrf.mxu0
        %v10930 = vadd.f32 %v10851, %v10929
        %v10931 = vpop.f32.mrf.mxu0
        %10932 = vmatprep.mubr.bf16.mxu0 0
        %10933 = vmatmul.mubr.bf16.gmra.mxu0 %v10869
        %v10934 = vpop.f32.mrf.mxu0
        %v10935 = vadd.f32 %v10851, %v10934
        %v10936 = vpop.f32.mrf.mxu0
        %v10937 = vpop.f32.mrf.mxu0
        %v10938 = vadd.f32 %v10851, %v10937
        %v10939 = vpop.f32.mrf.mxu0
        %10940 = vmatprep.mubr.bf16.mxu0 0
        %10941 = vmatmul.mubr.bf16.gmra.mxu0 %v10872
        %v10942 = vpop.f32.mrf.mxu0
        %v10943 = vadd.f32 %v10851, %v10942
        %v10944 = vpop.f32.mrf.mxu0
        %v10945 = vpop.f32.mrf.mxu0
        %v10946 = vadd.f32 %v10851, %v10945
        %v10947 = vpop.f32.mrf.mxu0
        %10948 = vmatprep.mubr.bf16.mxu0 0
        %10949 = vmatmul.mubr.bf16.gmra.mxu0 %v10875
        %v10950 = vpop.f32.mrf.mxu0
        %v10951 = vadd.f32 %v10851, %v10950
        %v10952 = vpop.f32.mrf.mxu0
        %v10953 = vpop.f32.mrf.mxu0
        %v10954 = vadd.f32 %v10851, %v10953
        %v10955 = vpop.f32.mrf.mxu0
        %10956 = vmatprep.mubr.bf16.mxu0 0
        %10957 = vmatmul.mubr.bf16.gmra.mxu0 %v10878
        %v10958 = vpop.f32.mrf.mxu0
        %v10959 = vadd.f32 %v10851, %v10958
        %v10960 = vpop.f32.mrf.mxu0
        %v10961 = vpop.f32.mrf.mxu0
        %v10962 = vadd.f32 %v10851, %v10961
        %v10963 = vpop.f32.mrf.mxu0
        %10964 = vmatprep.mubr.bf16.mxu0 0
        %10965 = vmatmul.mubr.bf16.gmra.mxu0 %v10881
        %v10966 = vpop.f32.mrf.mxu0
        %v10967 = vadd.f32 %v10851, %v10966
        %v10968 = vpop.f32.mrf.mxu0
        %v10969 = vpop.f32.mrf.mxu0
        %v10970 = vadd.f32 %v10851, %v10969
        %v10971 = vpop.f32.mrf.mxu0
        %10972 = vmatprep.mubr.bf16.mxu0 0
        %10973 = vmatmul.mubr.bf16.gmra.mxu0 %v10884
        %v10974 = vpop.f32.mrf.mxu0
        %v10975 = vadd.f32 %v10851, %v10974
        %v10976 = vpop.f32.mrf.mxu0
        %v10977 = vpop.f32.mrf.mxu0
        %v10978 = vadd.f32 %v10851, %v10977
        %v10979 = vpop.f32.mrf.mxu0
        %10980 = vmatprep.mubr.bf16.mxu0 0
        %10981 = vmatmul.mubr.bf16.gmra.mxu0 %v10887
        %v10982 = vpop.f32.mrf.mxu0
        %v10983 = vadd.f32 %v10851, %v10982
        %v10984 = vpop.f32.mrf.mxu0
        %v10985 = vpop.f32.mrf.mxu0
        %v10986 = vadd.f32 %v10851, %v10985
        %v10987 = vpop.f32.mrf.mxu0
        %10988 = vmatprep.mubr.bf16.mxu0 0
        %10989 = vmatmul.mubr.bf16.gmra.mxu0 %v10890
        %v10990 = vpop.f32.mrf.mxu0
        %v10991 = vadd.f32 %v10851, %v10990
        %v10992 = vpop.f32.mrf.mxu0
        %v10993 = vpop.f32.mrf.mxu0
        %v10994 = vadd.f32 %v10851, %v10993
        %v10995 = vpop.f32.mrf.mxu0
        %10996 = vdwg.mxu0
        %v10997 = vld [vmem:[%s22] sm:$0xff]
        %v10998 = vld [vmem:[%s22 + $0x8] sm:$0xff]
        %v10999 = vld [vmem:[%s22 + $0x10] sm:$0xff]
        %v11000 = vld [vmem:[%s22 + $0x18] sm:$0xff]
        %v11001 = vld [vmem:[%s22 + $0x20] sm:$0xff]
        %v11002 = vld [vmem:[%s22 + $0x28] sm:$0xff]
        %v11003 = vld [vmem:[%s22 + $0x30] sm:$0xff]
        %v11004 = vld [vmem:[%s22 + $0x38] sm:$0xff]
        %v11005 = vld [vmem:[%s22 + $0x40] sm:$0xff]
        %v11006 = vld [vmem:[%s22 + $0x48] sm:$0xff]
        %v11007 = vld [vmem:[%s22 + $0x50] sm:$0xff]
        %v11008 = vld [vmem:[%s22 + $0x58] sm:$0xff]
        %v11009 = vld [vmem:[%s22 + $0x60] sm:$0xff]
        %v11010 = vld [vmem:[%s22 + $0x68] sm:$0xff]
        %v11011 = vld [vmem:[%s22 + $0x70] sm:$0xff]
        %v11012 = vld [vmem:[%s22 + $0x78] sm:$0xff]
        %v11013 = vld [vmem:[%s22 + $0x80] sm:$0xff]
        %v11014 = vld [vmem:[%s22 + $0x88] sm:$0x3]
        %11016 = vset.pattern.permute.xlu0 0
        %11017 = vperm.xlu0 %11016, %v10927
        %v11018 = vpop.permute.xlu0 %11017
        %11021 = vset.pattern.permute.xlu0 0
        %11022 = vperm.xlu0 %11021, %v10930
        %v11023 = vpop.permute.xlu0 %11022
        %11026 = vset.pattern.permute.xlu0 0
        %11027 = vperm.xlu0 %11026, %v10935
        %v11028 = vpop.permute.xlu0 %11027
        %11031 = vset.pattern.permute.xlu0 0
        %11032 = vperm.xlu0 %11031, %v10938
        %v11033 = vpop.permute.xlu0 %11032
        %11036 = vset.pattern.permute.xlu0 0
        %11037 = vperm.xlu0 %11036, %v10943
        %v11038 = vpop.permute.xlu0 %11037
        %11041 = vset.pattern.permute.xlu0 0
        %11042 = vperm.xlu0 %11041, %v10946
        %v11043 = vpop.permute.xlu0 %11042
        %11046 = vset.pattern.permute.xlu0 0
        %11047 = vperm.xlu0 %11046, %v10951
        %v11048 = vpop.permute.xlu0 %11047
        %11051 = vset.pattern.permute.xlu0 0
        %11052 = vperm.xlu0 %11051, %v10954
        %v11053 = vpop.permute.xlu0 %11052
        %11056 = vset.pattern.permute.xlu0 0
        %11057 = vperm.xlu0 %11056, %v10959
        %v11058 = vpop.permute.xlu0 %11057
        %11061 = vset.pattern.permute.xlu0 0
        %11062 = vperm.xlu0 %11061, %v10962
        %v11063 = vpop.permute.xlu0 %11062
        %11066 = vset.pattern.permute.xlu0 0
        %11067 = vperm.xlu0 %11066, %v10967
        %v11068 = vpop.permute.xlu0 %11067
        %11071 = vset.pattern.permute.xlu0 0
        %11072 = vperm.xlu0 %11071, %v10970
        %v11073 = vpop.permute.xlu0 %11072
        %11076 = vset.pattern.permute.xlu0 0
        %11077 = vperm.xlu0 %11076, %v10975
        %v11078 = vpop.permute.xlu0 %11077
        %11081 = vset.pattern.permute.xlu0 0
        %11082 = vperm.xlu0 %11081, %v10978
        %v11083 = vpop.permute.xlu0 %11082
        %11086 = vset.pattern.permute.xlu0 0
        %11087 = vperm.xlu0 %11086, %v10983
        %v11088 = vpop.permute.xlu0 %11087
        %11091 = vset.pattern.permute.xlu0 0
        %11092 = vperm.xlu0 %11091, %v10986
        %v11093 = vpop.permute.xlu0 %11092
        %11096 = vset.pattern.permute.xlu0 0
        %11097 = vperm.xlu0 %11096, %v10991
        %v11098 = vpop.permute.xlu0 %11097
        %11101 = vset.pattern.permute.xlu0 0
        %11102 = vperm.xlu0 %11101, %v10994
        %v11103 = vpop.permute.xlu0 %11102
        %v11105 = vmul.f32 %v11018, %v10997
        %v11106 = vmul.f32 %v11023, %v10998
        %v11107 = vmul.f32 %v11028, %v10999
        %v11108 = vmul.f32 %v11033, %v11000
        %v11109 = vmul.f32 %v11038, %v11001
        %v11110 = vmul.f32 %v11043, %v11002
        %v11111 = vmul.f32 %v11048, %v11003
        %v11112 = vmul.f32 %v11053, %v11004
        %v11113 = vmul.f32 %v11058, %v11005
        %v11114 = vmul.f32 %v11063, %v11006
        %v11115 = vmul.f32 %v11068, %v11007
        %v11116 = vmul.f32 %v11073, %v11008
        %v11117 = vmul.f32 %v11078, %v11009
        %v11118 = vmul.f32 %v11083, %v11010
        %v11119 = vmul.f32 %v11088, %v11011
        %v11120 = vmul.f32 %v11093, %v11012
        %v11121 = vmul.f32 %v11098, %v11013
        %v11122 = vmul.f32 %v11103, %v11014
        %v11123 = vadd.f32 %v11105, %v11106
        %v11124 = vadd.f32 %v11123, %v11107
        %v11125 = vadd.f32 %v11124, %v11108
        %v11126 = vadd.f32 %v11125, %v11109
        %v11127 = vadd.f32 %v11126, %v11110
        %v11128 = vadd.f32 %v11127, %v11111
        %v11129 = vadd.f32 %v11128, %v11112
        %v11130 = vadd.f32 %v11129, %v11113
        %v11131 = vadd.f32 %v11130, %v11114
        %v11132 = vadd.f32 %v11131, %v11115
        %v11133 = vadd.f32 %v11132, %v11116
        %v11134 = vadd.f32 %v11133, %v11117
        %v11135 = vadd.f32 %v11134, %v11118
        %v11136 = vadd.f32 %v11135, %v11119
        %v11137 = vadd.f32 %v11136, %v11120
        %v11138 = vadd.f32 %v11137, %v11121
        %v11139 = vsel %vm2531, %v11122, 0.0
        %v11140 = vadd.f32 %v11138, %v11139
        %v11141 = vrot.slane %v11140, 4
        %v11142 = vadd.f32 %v11140, %v11141
        %v11143 = vrot.slane %v11142, 2
        %v11144 = vadd.f32 %v11142, %v11143
        %v11145 = vrot.slane %v11144, 1
        %v11146 = vadd.f32 %v11144, %v11145
        %v11147 = vld [vmem:[%s23] sm:$0x1]
        %v11148 = vadd.f32 %v11146, %v11147
        %11149 = vst [vmem:[%s731] sm:$0x1] %v11148
        %s11150 = sand.u32 %s557, 1
        %s11151 = scalar_lea.sflag [#allocation4], %s11150
        %s11152 = sand.u32 %s557, 1
        %s11153 = scalar_lea.vmem [#allocation3], %s11152
        // Predicated region
        $region117: #{encoder_forward.1} parent=115 // pred_check
          %p11154 = pneg %p567
        $region118: #{encoder_forward.1} parent=115 // pred_check_branch
          %11156 = sbr.rel (%p11154) target = $region120
        $region119: #{encoder_forward.1} parent=115 // pred_region
          %s11158 = ssub.s32 16, 16
          %11159 = vsyncadd %s11151, %s11158
          %s11160 = smul.addr %s40, 16
          %s11161 = scalar_lea.hbm %s24, %s11160
          %s11163 = sshll.u32 %s11153, 4
          %s11164 = int_to_ptr.vmem [resolvable:$true] %s11163
          %11166 = dma.vmem_to_hbm [thread:$0]  %s11164, 16, %s11161, %s11151
        $region120: #{encoder_forward.1} parent=115 // pred_fallthru
          _
      $region116: #{encoder_forward.1} parent=5 // pred_fallthru
        _
      %p11167 = scmp.le.s32.totalorder 2, %s35
      // Predicated region
      $region121: #{encoder_forward.1} parent=5 // pred_check
        %p11168 = pneg %p11167
      $region122: #{encoder_forward.1} parent=5 // pred_check_branch
        %11170 = sbr.rel (%p11168) target = $region124
      $region123: #{encoder_forward.1} parent=5 // pred_region
        %s11171 = ssub.s32 %s35, 2
        // Predicated region
        $region125: #{encoder_forward.1} parent=123 // pred_check
          %p11172 = pneg %p573
        $region126: #{encoder_forward.1} parent=123 // pred_check_branch
          %11174 = sbr.rel (%p11172) target = $region128
        $region127: #{encoder_forward.1} parent=123 // pred_region
          %s11175 = sand.u32 %s558, 1
          %s11176 = scalar_lea.sflag [#allocation4], %s11175
          %s11177 = sand.u32 %s558, 1
          %s11178 = scalar_lea.vmem [#allocation3], %s11177
          %11179 = dma.done %s11176, 16
        $region128: #{encoder_forward.1} parent=123 // pred_fallthru
          _
      $region124: #{encoder_forward.1} parent=5 // pred_fallthru
        _
    $region6: #{encoder_forward.1} parent=1 // loop_footer
      %s39 = sadd.s32 1, %s35
    $region7: #{encoder_forward.1} parent=1 // loop_footer_branch
      %34 = sbr.rel target = $region3
    $region8: #{encoder_forward.1} parent=1 // loop_exit
      _
    %11180 = vsyncpa [#allocation4], 1
    %s11181 = scalar_lea.sflag [#allocation4], 1
    %11182 = vsyncpa %s11181, 1

</llo_original>
